<compile_context>
chip_gen: v7x
topology: tpu7x:2x2x1
jax: 0.10.0
libtpu: 0.0.40
codegen_flags: <defaults>
</compile_context>

<pallas_src>
import functools
import math

import jax
import jax.numpy as jnp
import numpy as np
from jax.experimental import pallas as pl
from jax.experimental.pallas import tpu as pltpu


SETTINGS = dict(
    output_len=8,      # T_out
    input_len=144,     # unused in forward
    var_len=10,        # in_dim (forward uses in_dim - 2 = 8 features)
    capacity=3,        # nodes
    var_out=1,         # F_out
    nhead=2,
    dropout=0.0,       # eval mode -> dropout is identity
    hidden_dims=32,    # H
    day_seq_len=6,     # D
    day_len=16,        # P  (L = D*P = 96 >= 71 needed by the dilated conv)
    num_layers=1,      # single-layer GRU
)


# -----------------------------------------------------------------------------
# The single fused kernel
# -----------------------------------------------------------------------------
def _fused_kernel(x_ref, wemb_ref, bemb_ref,
                  wconv_ref, bconv_ref,
                  wqkv_ref, bqkv_ref, wo_ref, bo_ref,
                  perm_ref, wih_ref, bih_ref, whh_ref, bhh_ref,
                  wproj_ref, bproj_ref,
                  o_ref,
                  emb_ref,
                  *, offs_main, offs_maskl, offs_maskr,
                  t2, t_out, hidden, nhead):
    f32 = jnp.float32
    bf16 = jnp.bfloat16
    BN, L, F = x_ref.shape
    L_pad = emb_ref.shape[1]
    H = hidden
    T2 = t2
    Hd = H // nhead

    # ---- 1. dec_emb: ONE (BN*L, F) x (F, 2H) matmul -------------------------
    x_flat = x_ref[...].reshape(BN * L, F).astype(bf16)
    emb = (jnp.dot(x_flat, wemb_ref[...], preferred_element_type=f32)
           + bemb_ref[...])                                    # (BN*L, 2H) f32
    emb_ref[:, :L, :] = emb.reshape(BN, L, 2 * H)
    emb_ref[:, L:, :] = jnp.zeros((BN, L_pad - L, 2 * H), f32)  # finite pad rows

    # ---- 2. conv1 + conv2 + conv3 (last T2 outputs) as ONE im2col matmul ----
    def slab(off):
        # (BN*T2, 2H) window of the embedding at (static) source offset `off`,
        # rows ordered (b, t).  3-D slice + reshape: no per-sample concats.
        return emb_ref[:, off:off + T2, :].reshape(BN * T2, 2 * H)

    tmod = jax.lax.broadcasted_iota(jnp.int32, (BN * T2, 1), 0) % T2
    mask_l = (tmod != 0).astype(f32)           # conv2 kw=0 zero-padding (t==0)
    mask_r = (tmod != T2 - 1).astype(f32)      # conv2 kw=2 zero-padding (t==T2-1)

    slabs = [slab(o) for o in offs_main]
    slabs += [mask_l * slab(o) for o in offs_maskl]
    slabs += [mask_r * slab(o) for o in offs_maskr]
    patch = jnp.concatenate(slabs, axis=-1).astype(bf16)       # (BN*T2, ntaps*2H)
    day = (jnp.dot(patch, wconv_ref[...], preferred_element_type=f32)
           + bconv_ref[...])                                    # (BN*T2, H)

    # ---- 3. multi-head self-attention gating: gru_in = day * MHA(day,day,day)
    qkv = (jnp.dot(day.astype(bf16), wqkv_ref[...], preferred_element_type=f32)
           + bqkv_ref[...])                                     # (BN*T2, 3H)
    scale = 1.0 / math.sqrt(Hd)
    q_all = qkv[:, :H] * scale
    k_all = qkv[:, H:2 * H]
    v_all = qkv[:, 2 * H:]
    dn = (((1,), (1,)), ((), ()))              # contract dim1/dim1 == q @ k.T
    att_rows = []
    for b in range(BN):
        r0 = b * T2
        heads = []
        for h in range(nhead):
            c0 = h * Hd
            q_h = q_all[r0:r0 + T2, c0:c0 + Hd]
            k_h = k_all[r0:r0 + T2, c0:c0 + Hd]
            v_h = v_all[r0:r0 + T2, c0:c0 + Hd]
            s = jax.lax.dot_general(q_h, k_h, dn, preferred_element_type=f32)
            s = s - jnp.max(s, axis=-1, keepdims=True)
            p = jnp.exp(s)
            p = p * pl.reciprocal(jnp.sum(p, axis=-1, keepdims=True), approx=True)
            heads.append(jnp.dot(p, v_h, preferred_element_type=f32))
        att_rows.append(jnp.concatenate(heads, axis=-1))
    att = jnp.concatenate(att_rows, axis=0)                     # (BN*T2, H)
    att = (jnp.dot(att.astype(bf16), wo_ref[...], preferred_element_type=f32)
           + bo_ref[...])
    gru_in = day * att                                          # rows (b, t)-major

    # ---- 4. single-layer GRU + fused output projection ----------------------
    # Permute rows to t-major ONCE on the MXU; each step then reads a
    # contiguous (BN, 3H) slice instead of gathering BN scattered rows.
    gru_in_tm = jnp.dot(perm_ref[...], gru_in, preferred_element_type=f32)
    xp_all = (jnp.dot(gru_in_tm.astype(bf16), wih_ref[...],
                      preferred_element_type=f32) + bih_ref[...])  # (BN*T2, 3H)
    whh = whh_ref[...]                         # (H, 3H) bf16
    bhh = bhh_ref[...]
    wproj = wproj_ref[...]                     # (1, H) f32
    bproj = bproj_ref[...]                     # (1, 1) f32

    h_st = jnp.zeros((BN, H), f32)
    cols = []
    for t in range(T2):                         # fully unrolled (T2 is static)
        xp = xp_all[t * BN:(t + 1) * BN, :]     # contiguous rows of step t
        hp = jnp.dot(h_st.astype(bf16), whh, preferred_element_type=f32) + bhh
        r = jax.nn.sigmoid(xp[:, :H] + hp[:, :H])
        z = jax.nn.sigmoid(xp[:, H:2 * H] + hp[:, H:2 * H])
        n = jnp.tanh(xp[:, 2 * H:] + r * hp[:, 2 * H:])
        h_st = (1.0 - z) * n + z * h_st
        if t >= T2 - t_out:
            cols.append(jnp.sum(h_st * wproj, axis=-1, keepdims=True) + bproj)
    o_ref[...] = jnp.concatenate(cols, axis=-1)                  # (BN, t_out)


# -----------------------------------------------------------------------------
# Parameter construction (deterministic, mimics _reset_parameters style)
# -----------------------------------------------------------------------------
def make_params(key, s):
    H = s['hidden_dims']
    F = s['var_len'] - 2
    out = s['var_out']
    keys = jax.random.split(key, 32)
    ki = iter(keys)

    def xavier(k, shape):
        if len(shape) == 2:
            fan_in, fan_out = shape[1], shape[0]
        else:
            rf = int(np.prod(shape[2:]))
            fan_in, fan_out = shape[1] * rf, shape[0] * rf
        bound = float(np.sqrt(6.0 / (fan_in + fan_out)))
        return jax.random.uniform(k, shape, jnp.float32, -bound, bound)

    def unif(k, shape):
        return jax.random.uniform(k, shape, jnp.float32, 0.0, 1.0)

    p = {}
    p['dec_emb_w'] = xavier(next(ki), (2 * H, F))
    p['dec_emb_b'] = unif(next(ki), (2 * H,))
    p['conv1_w'] = xavier(next(ki), (H, 2 * H, 36))
    p['conv1_b'] = unif(next(ki), (H,))
    p['conv2_w'] = xavier(next(ki), (H, 2 * H, 6, 3))
    p['conv2_b'] = unif(next(ki), (H,))
    p['conv3_w'] = xavier(next(ki), (H, 2 * H, 36))
    p['conv3_b'] = unif(next(ki), (H,))
    p['attn_in_w'] = xavier(next(ki), (3 * H, H))
    p['attn_in_b'] = unif(next(ki), (3 * H,))
    p['attn_out_w'] = xavier(next(ki), (H, H))
    p['attn_out_b'] = unif(next(ki), (H,))
    p['gru_w_ih'] = xavier(next(ki), (3 * H, H))
    p['gru_w_hh'] = xavier(next(ki), (3 * H, H))
    p['gru_b_ih'] = unif(next(ki), (3 * H,))
    p['gru_b_hh'] = unif(next(ki), (3 * H,))
    p['proj_w'] = xavier(next(ki), (out, H))
    p['proj_b'] = unif(next(ki), (out,))
    return p


# -----------------------------------------------------------------------------
# One-off weight re-layout: per-offset tap weights for conv1/conv2/conv3 are
# merged and concatenated along K (matching the kernel's patch slab order),
# matmul operands are transposed, and weight matrices are cast to bf16.
# -----------------------------------------------------------------------------
def prepare_weights(params, s):
    H = s['hidden_dims']
    D, P = s['day_seq_len'], s['day_len']
    T2 = 2 * s['output_len']
    L = D * P
    # TODO(synk): only var_out == 1 and num_layers == 1 are implemented (SETTINGS).
    assert s['var_out'] == 1 and s['num_layers'] == 1
    assert H % s['nhead'] == 0

    Lout1 = L - 35              # Conv1d k=36, dilation=1
    Lout3 = L - 70              # Conv1d k=36, dilation=2
    Hout = D + 2 - 6 + 1        # Conv2d k=(6,3), padding=(1,1)
    Wout = P + 2 - 3 + 1
    assert Lout1 >= T2 and Lout3 >= T2 and Hout >= 1
    assert Wout == T2           # last T2 flattened conv2 outputs == last output row

    def t(w2d):                 # (C_out, C_in) -> (C_in, C_out)
        return jnp.transpose(w2d)

    taps = {}

    def add_tap(off, w):
        taps[off] = (taps[off] + w) if off in taps else w

    start1 = Lout1 - T2
    for j in range(36):
        add_tap(start1 + j, t(params['conv1_w'][:, :, j]))
    start3 = Lout3 - T2
    for j in range(36):
        add_tap(start3 + 2 * j, t(params['conv3_w'][:, :, j]))

    offs_maskl, w_l, offs_maskr, w_r = [], [], [], []
    for kh in range(6):
        erow = (Hout - 2) + kh          # embedded-sequence "day" row read by this tap
        if erow < 0 or erow >= D:
            continue                     # reads a zero-padding row -> no contribution
        base = erow * P
        add_tap(base, t(params['conv2_w'][:, :, kh, 1]))            # kw=1, unmasked
        offs_maskl.append(base - 1)
        w_l.append(t(params['conv2_w'][:, :, kh, 0]))               # kw=0, mask t==0
        offs_maskr.append(base + 1)
        w_r.append(t(params['conv2_w'][:, :, kh, 2]))               # kw=2, mask t==T2-1

    assert w_l and w_r
    offs_main = sorted(taps)
    all_offs = list(offs_main) + offs_maskl + offs_maskr
    assert min(all_offs) >= 0
    assert max(all_offs) + T2 <= L + 8   # scratch is padded by 8 zero rows per sample

    bf16 = jnp.bfloat16
    # K-concatenated conv weight, order MUST match the kernel's slab order:
    # main taps (sorted), then left-masked, then right-masked.
    conv_w = jnp.concatenate([taps[o] for o in offs_main] + w_l + w_r,
                             axis=0).astype(bf16)                 # (ntaps*2H, H)

    weights = dict(
        emb_w_t=jnp.transpose(params['dec_emb_w']).astype(bf16),
        emb_b=params['dec_emb_b'].reshape(1, -1),
        conv_w=conv_w,
        conv_b=(params['conv1_b'] + params['conv2_b']
                + params['conv3_b']).reshape(1, -1),
        qkv_w_t=jnp.transpose(params['attn_in_w']).astype(bf16),
        qkv_b=params['attn_in_b'].reshape(1, -1),
        out_w_t=jnp.transpose(params['attn_out_w']).astype(bf16),
        out_b=params['attn_out_b'].reshape(1, -1),
        ih_w_t=jnp.transpose(params['gru_w_ih']).astype(bf16),
        ih_b=params['gru_b_ih'].reshape(1, -1),
        hh_w_t=jnp.transpose(params['gru_w_hh']).astype(bf16),
        hh_b=params['gru_b_hh'].reshape(1, -1),
        proj_w=params['proj_w'].reshape(1, -1),
        proj_b=params['proj_b'].reshape(1, 1),
    )
    plan = dict(offs_main=tuple(offs_main),
                offs_maskl=tuple(offs_maskl),
                offs_maskr=tuple(offs_maskr))
    return weights, plan


# -----------------------------------------------------------------------------
# Forward wrapper
# -----------------------------------------------------------------------------
def make_forward(s, plan):
    offs_main = tuple(plan['offs_main'])
    offs_maskl = tuple(plan['offs_maskl'])
    offs_maskr = tuple(plan['offs_maskr'])
    H = s['hidden_dims']
    t_out = s['output_len']
    T2 = 2 * t_out
    nhead = s['nhead']

    @jax.jit
    def forward(w, day_seq, adj):
        del adj                                  # unused, as in the PyTorch forward
        bs, nodes, D, P, F = day_seq.shape
        BN = bs * nodes
        L = D * P
        L_pad = L + 8                            # room for the conv2 right-pad tap
        x = day_seq.reshape(BN, L, F).astype(jnp.float32)

        # Constant row permutation (b,t)-major -> (t,b)-major for the GRU input
        # (trace-time constant; applied once on the MXU inside the kernel).
        idx = np.arange(BN * T2)
        src = (idx % BN) * T2 + idx // BN
        perm_np = np.zeros((BN * T2, BN * T2), np.float32)
        perm_np[idx, src] = 1.0
        perm = jnp.asarray(perm_np)

        kernel = functools.partial(
            _fused_kernel,
            offs_main=offs_main, offs_maskl=offs_maskl, offs_maskr=offs_maskr,
            t2=T2, t_out=t_out, hidden=H, nhead=nhead)

        def full(shape):
            return pl.BlockSpec(shape, lambda i, _n=len(shape): (0,) * _n)

        operands = (x, w['emb_w_t'], w['emb_b'],
                    w['conv_w'], w['conv_b'],
                    w['qkv_w_t'], w['qkv_b'], w['out_w_t'], w['out_b'],
                    perm, w['ih_w_t'], w['ih_b'], w['hh_w_t'], w['hh_b'],
                    w['proj_w'], w['proj_b'])

        out = pl.pallas_call(
            kernel,
            out_shape=jax.ShapeDtypeStruct((BN, t_out), jnp.float32),
            grid=(1,),
            in_specs=[full(op.shape) for op in operands],
            out_specs=full((BN, t_out)),
            scratch_shapes=[pltpu.VMEM((BN, L_pad, 2 * H), jnp.float32)],
            compiler_params=pltpu.CompilerParams(
                dimension_semantics=("arbitrary",)),
        )(*operands)
        return out.reshape(bs, nodes, -1)

    return forward


# -----------------------------------------------------------------------------
if __name__ == "__main__":
    s = SETTINGS
    key = jax.random.PRNGKey(0)
    pkey, dkey = jax.random.split(key)
    params = make_params(pkey, s)
    weights, plan = prepare_weights(params, s)
    forward = make_forward(s, plan)

    bs, nodes = 2, s['capacity']
    day_seq = jax.random.normal(
        dkey, (bs, nodes, s['day_seq_len'], s['day_len'], s['var_len'] - 2),
        jnp.float32)
    adj = jnp.zeros((nodes, nodes), jnp.float32)   # unused by forward, as in PyTorch

    out = forward(weights, day_seq, adj)
    out = jax.block_until_ready(out)
    assert out.shape == (bs, nodes, s['output_len'] * s['var_out']), out.shape
    assert bool(jnp.all(jnp.isfinite(out)))
    print("KERNEL_OK")
</pallas_src>

<mosaic_0001>
module attributes {stable_mosaic.version = 11 : i64} {
  func.func @_fused_kernel(%arg0: i32, %arg1: memref<6x96x8xf32, #tpu.memory_space<vmem>>, %arg2: memref<8x64xbf16, #tpu.memory_space<vmem>>, %arg3: memref<1x64xf32, #tpu.memory_space<vmem>>, %arg4: memref<4096x32xbf16, #tpu.memory_space<vmem>>, %arg5: memref<1x32xf32, #tpu.memory_space<vmem>>, %arg6: memref<32x96xbf16, #tpu.memory_space<vmem>>, %arg7: memref<1x96xf32, #tpu.memory_space<vmem>>, %arg8: memref<32x32xbf16, #tpu.memory_space<vmem>>, %arg9: memref<1x32xf32, #tpu.memory_space<vmem>>, %arg10: memref<96x96xf32, #tpu.memory_space<vmem>>, %arg11: memref<32x96xbf16, #tpu.memory_space<vmem>>, %arg12: memref<1x96xf32, #tpu.memory_space<vmem>>, %arg13: memref<32x96xbf16, #tpu.memory_space<vmem>>, %arg14: memref<1x96xf32, #tpu.memory_space<vmem>>, %arg15: memref<1x32xf32, #tpu.memory_space<vmem>>, %arg16: memref<1x1xf32, #tpu.memory_space<vmem>>, %arg17: memref<6x8xf32, #tpu.memory_space<vmem>>, %arg18: memref<6x104x64xf32, #tpu.memory_space<vmem>>) attributes {dimension_semantics = [#tpu.dimension_semantics<arbitrary>], iteration_bounds = array<i64: 1>, scalar_prefetch = 0 : i64, scratch_operands = 1 : i64, tpu.core_type = #tpu.core_type<tc>, window_params = [{pipeline_mode = #tpu.pipeline_mode<synchronous>, transform_indices = @transform_0, window_bounds = array<i64: 6, 96, 8>}, {pipeline_mode = #tpu.pipeline_mode<synchronous>, transform_indices = @transform_1, window_bounds = array<i64: 8, 64>}, {pipeline_mode = #tpu.pipeline_mode<synchronous>, transform_indices = @transform_2, window_bounds = array<i64: 1, 64>}, {pipeline_mode = #tpu.pipeline_mode<synchronous>, transform_indices = @transform_3, window_bounds = array<i64: 4096, 32>}, {pipeline_mode = #tpu.pipeline_mode<synchronous>, transform_indices = @transform_4, window_bounds = array<i64: 1, 32>}, {pipeline_mode = #tpu.pipeline_mode<synchronous>, transform_indices = @transform_5, window_bounds = array<i64: 32, 96>}, {pipeline_mode = #tpu.pipeline_mode<synchronous>, transform_indices = @transform_6, window_bounds = array<i64: 1, 96>}, {pipeline_mode = #tpu.pipeline_mode<synchronous>, transform_indices = @transform_7, window_bounds = array<i64: 32, 32>}, {pipeline_mode = #tpu.pipeline_mode<synchronous>, transform_indices = @transform_8, window_bounds = array<i64: 1, 32>}, {pipeline_mode = #tpu.pipeline_mode<synchronous>, transform_indices = @transform_9, window_bounds = array<i64: 96, 96>}, {pipeline_mode = #tpu.pipeline_mode<synchronous>, transform_indices = @transform_10, window_bounds = array<i64: 32, 96>}, {pipeline_mode = #tpu.pipeline_mode<synchronous>, transform_indices = @transform_11, window_bounds = array<i64: 1, 96>}, {pipeline_mode = #tpu.pipeline_mode<synchronous>, transform_indices = @transform_12, window_bounds = array<i64: 32, 96>}, {pipeline_mode = #tpu.pipeline_mode<synchronous>, transform_indices = @transform_13, window_bounds = array<i64: 1, 96>}, {pipeline_mode = #tpu.pipeline_mode<synchronous>, transform_indices = @transform_14, window_bounds = array<i64: 1, 32>}, {pipeline_mode = #tpu.pipeline_mode<synchronous>, transform_indices = @transform_15, window_bounds = array<i64: 1, 1>}, {pipeline_mode = #tpu.pipeline_mode<synchronous>, transform_indices = @transform_16, window_bounds = array<i64: 6, 8>}]} {
    %c0 = arith.constant 0 : index
    %c0_0 = arith.constant 0 : index
    %c0_1 = arith.constant 0 : index
    %0 = vector.load %arg1[%c0, %c0_0, %c0_1] : memref<6x96x8xf32, #tpu.memory_space<vmem>>, vector<6x96x8xf32>
    %1 = vector.shape_cast %0 : vector<6x96x8xf32> to vector<576x8xf32>
    %2 = arith.truncf %1 : vector<576x8xf32> to vector<576x8xbf16>
    %c0_2 = arith.constant 0 : index
    %c0_3 = arith.constant 0 : index
    %3 = vector.load %arg2[%c0_2, %c0_3] : memref<8x64xbf16, #tpu.memory_space<vmem>>, vector<8x64xbf16>
    %cst = arith.constant dense<0.000000e+00> : vector<576x64xf32>
    %4 = tpu.matmul %2, %3, %cst {dimension_numbers = #tpu.dot_dimension_numbers<[1], [0], [0], [1], [0, 0, 1, 1], [], []>} : vector<576x8xbf16>, vector<8x64xbf16>, vector<576x64xf32> -> vector<576x64xf32>
    %c0_4 = arith.constant 0 : index
    %c0_5 = arith.constant 0 : index
    %5 = vector.load %arg3[%c0_4, %c0_5] : memref<1x64xf32, #tpu.memory_space<vmem>>, vector<1x64xf32>
    %6 = vector.broadcast %5 : vector<1x64xf32> to vector<576x64xf32>
    %7 = arith.addf %4, %6 : vector<576x64xf32>
    %8 = vector.shape_cast %7 : vector<576x64xf32> to vector<6x96x64xf32>
    %c0_6 = arith.constant 0 : index
    %c0_7 = arith.constant 0 : index
    %c0_8 = arith.constant 0 : index
    %9 = vector.load %arg18[%c0_6, %c0_7, %c0_8] : memref<6x104x64xf32, #tpu.memory_space<vmem>>, vector<6x96x64xf32>
    tpu.vector_store %arg18[%c0_6, %c0_7, %c0_8], %8 {strides = array<i32>} : memref<6x104x64xf32, #tpu.memory_space<vmem>>, vector<6x96x64xf32>,
    %cst_9 = arith.constant 0.000000e+00 : f32
    %10 = vector.broadcast %cst_9 : f32 to vector<6x8x64xf32>
    %c0_10 = arith.constant 0 : index
    %c96 = arith.constant 96 : index
    %c0_11 = arith.constant 0 : index
    %11 = vector.load %arg18[%c0_10, %c96, %c0_11] : memref<6x104x64xf32, #tpu.memory_space<vmem>>, vector<6x8x64xf32>
    tpu.vector_store %arg18[%c0_10, %c96, %c0_11], %10 {strides = array<i32>} : memref<6x104x64xf32, #tpu.memory_space<vmem>>, vector<6x8x64xf32>,
    %12 = tpu.iota {dimensions = array<i32: 0>} : vector<96x1xi32>
    %c16_i32 = arith.constant 16 : i32
    %c0_i32 = arith.constant 0 : i32
    %13 = arith.cmpi eq, %c16_i32, %c0_i32 : i32
    %c1_i32 = arith.constant 1 : i32
    %14 = arith.select %13, %c1_i32, %c16_i32 : i32
    %15 = vector.broadcast %14 : i32 to vector<96x1xi32>
    %16 = arith.remsi %12, %15 : vector<96x1xi32>
    %c0_i32_12 = arith.constant 0 : i32
    %17 = vector.broadcast %c0_i32_12 : i32 to vector<96x1xi32>
    %18 = arith.cmpi ne, %16, %17 : vector<96x1xi32>
    %c0_i32_13 = arith.constant 0 : i32
    %19 = vector.broadcast %c0_i32_13 : i32 to vector<96x1xi32>
    %20 = arith.cmpi slt, %16, %19 : vector<96x1xi32>
    %c0_i32_14 = arith.constant 0 : i32
    %21 = arith.cmpi slt, %14, %c0_i32_14 : i32
    %22 = vector.broadcast %21 : i1 to vector<96x1xi1>
    %23 = vector.broadcast %22 : vector<96x1xi1> to vector<96x1xi1>
    %24 = arith.xori %20, %23 : vector<96x1xi1>
    %25 = arith.andi %24, %18 : vector<96x1xi1>
    %26 = vector.broadcast %14 : i32 to vector<96x1xi32>
    %27 = arith.addi %16, %26 : vector<96x1xi32>
    %28 = arith.select %25, %27, %16 : vector<96x1xi1>, vector<96x1xi32>
    %c0_i32_15 = arith.constant 0 : i32
    %29 = vector.broadcast %c0_i32_15 : i32 to vector<96x1xi32>
    %30 = arith.cmpi ne, %28, %29 : vector<96x1xi32>
    %31 = arith.extui %30 : vector<96x1xi1> to vector<96x1xi32>
    %32 = arith.sitofp %31 : vector<96x1xi32> to vector<96x1xf32>
    %c15_i32 = arith.constant 15 : i32
    %33 = vector.broadcast %c15_i32 : i32 to vector<96x1xi32>
    %34 = arith.cmpi ne, %28, %33 : vector<96x1xi32>
    %35 = arith.extui %34 : vector<96x1xi1> to vector<96x1xi32>
    %36 = arith.sitofp %35 : vector<96x1xi32> to vector<96x1xf32>
    %c0_16 = arith.constant 0 : index
    %c10 = arith.constant 10 : index
    %c0_17 = arith.constant 0 : index
    %37 = vector.load %arg18[%c0_16, %c10, %c0_17] : memref<6x104x64xf32, #tpu.memory_space<vmem>>, vector<6x16x64xf32>
    %38 = vector.shape_cast %37 : vector<6x16x64xf32> to vector<96x64xf32>
    %c0_18 = arith.constant 0 : index
    %c12 = arith.constant 12 : index
    %c0_19 = arith.constant 0 : index
    %39 = vector.load %arg18[%c0_18, %c12, %c0_19] : memref<6x104x64xf32, #tpu.memory_space<vmem>>, vector<6x16x64xf32>
    %40 = vector.shape_cast %39 : vector<6x16x64xf32> to vector<96x64xf32>
    %c0_20 = arith.constant 0 : index
    %c14 = arith.constant 14 : index
    %c0_21 = arith.constant 0 : index
    %41 = vector.load %arg18[%c0_20, %c14, %c0_21] : memref<6x104x64xf32, #tpu.memory_space<vmem>>, vector<6x16x64xf32>
    %42 = vector.shape_cast %41 : vector<6x16x64xf32> to vector<96x64xf32>
    %c0_22 = arith.constant 0 : index
    %c16 = arith.constant 16 : index
    %c0_23 = arith.constant 0 : index
    %43 = vector.load %arg18[%c0_22, %c16, %c0_23] : memref<6x104x64xf32, #tpu.memory_space<vmem>>, vector<6x16x64xf32>
    %44 = vector.shape_cast %43 : vector<6x16x64xf32> to vector<96x64xf32>
    %c0_24 = arith.constant 0 : index
    %c18 = arith.constant 18 : index
    %c0_25 = arith.constant 0 : index
    %45 = vector.load %arg18[%c0_24, %c18, %c0_25] : memref<6x104x64xf32, #tpu.memory_space<vmem>>, vector<6x16x64xf32>
    %46 = vector.shape_cast %45 : vector<6x16x64xf32> to vector<96x64xf32>
    %c0_26 = arith.constant 0 : index
    %c20 = arith.constant 20 : index
    %c0_27 = arith.constant 0 : index
    %47 = vector.load %arg18[%c0_26, %c20, %c0_27] : memref<6x104x64xf32, #tpu.memory_space<vmem>>, vector<6x16x64xf32>
    %48 = vector.shape_cast %47 : vector<6x16x64xf32> to vector<96x64xf32>
    %c0_28 = arith.constant 0 : index
    %c22 = arith.constant 22 : index
    %c0_29 = arith.constant 0 : index
    %49 = vector.load %arg18[%c0_28, %c22, %c0_29] : memref<6x104x64xf32, #tpu.memory_space<vmem>>, vector<6x16x64xf32>
    %50 = vector.shape_cast %49 : vector<6x16x64xf32> to vector<96x64xf32>
    %c0_30 = arith.constant 0 : index
    %c24 = arith.constant 24 : index
    %c0_31 = arith.constant 0 : index
    %51 = vector.load %arg18[%c0_30, %c24, %c0_31] : memref<6x104x64xf32, #tpu.memory_space<vmem>>, vector<6x16x64xf32>
    %52 = vector.shape_cast %51 : vector<6x16x64xf32> to vector<96x64xf32>
    %c0_32 = arith.constant 0 : index
    %c26 = arith.constant 26 : index
    %c0_33 = arith.constant 0 : index
    %53 = vector.load %arg18[%c0_32, %c26, %c0_33] : memref<6x104x64xf32, #tpu.memory_space<vmem>>, vector<6x16x64xf32>
    %54 = vector.shape_cast %53 : vector<6x16x64xf32> to vector<96x64xf32>
    %c0_34 = arith.constant 0 : index
    %c28 = arith.constant 28 : index
    %c0_35 = arith.constant 0 : index
    %55 = vector.load %arg18[%c0_34, %c28, %c0_35] : memref<6x104x64xf32, #tpu.memory_space<vmem>>, vector<6x16x64xf32>
    %56 = vector.shape_cast %55 : vector<6x16x64xf32> to vector<96x64xf32>
    %c0_36 = arith.constant 0 : index
    %c30 = arith.constant 30 : index
    %c0_37 = arith.constant 0 : index
    %57 = vector.load %arg18[%c0_36, %c30, %c0_37] : memref<6x104x64xf32, #tpu.memory_space<vmem>>, vector<6x16x64xf32>
    %58 = vector.shape_cast %57 : vector<6x16x64xf32> to vector<96x64xf32>
    %c0_38 = arith.constant 0 : index
    %c32 = arith.constant 32 : index
    %c0_39 = arith.constant 0 : index
    %59 = vector.load %arg18[%c0_38, %c32, %c0_39] : memref<6x104x64xf32, #tpu.memory_space<vmem>>, vector<6x16x64xf32>
    %60 = vector.shape_cast %59 : vector<6x16x64xf32> to vector<96x64xf32>
    %c0_40 = arith.constant 0 : index
    %c34 = arith.constant 34 : index
    %c0_41 = arith.constant 0 : index
    %61 = vector.load %arg18[%c0_40, %c34, %c0_41] : memref<6x104x64xf32, #tpu.memory_space<vmem>>, vector<6x16x64xf32>
    %62 = vector.shape_cast %61 : vector<6x16x64xf32> to vector<96x64xf32>
    %c0_42 = arith.constant 0 : index
    %c36 = arith.constant 36 : index
    %c0_43 = arith.constant 0 : index
    %63 = vector.load %arg18[%c0_42, %c36, %c0_43] : memref<6x104x64xf32, #tpu.memory_space<vmem>>, vector<6x16x64xf32>
    %64 = vector.shape_cast %63 : vector<6x16x64xf32> to vector<96x64xf32>
    %c0_44 = arith.constant 0 : index
    %c38 = arith.constant 38 : index
    %c0_45 = arith.constant 0 : index
    %65 = vector.load %arg18[%c0_44, %c38, %c0_45] : memref<6x104x64xf32, #tpu.memory_space<vmem>>, vector<6x16x64xf32>
    %66 = vector.shape_cast %65 : vector<6x16x64xf32> to vector<96x64xf32>
    %c0_46 = arith.constant 0 : index
    %c40 = arith.constant 40 : index
    %c0_47 = arith.constant 0 : index
    %67 = vector.load %arg18[%c0_46, %c40, %c0_47] : memref<6x104x64xf32, #tpu.memory_space<vmem>>, vector<6x16x64xf32>
    %68 = vector.shape_cast %67 : vector<6x16x64xf32> to vector<96x64xf32>
    %c0_48 = arith.constant 0 : index
    %c42 = arith.constant 42 : index
    %c0_49 = arith.constant 0 : index
    %69 = vector.load %arg18[%c0_48, %c42, %c0_49] : memref<6x104x64xf32, #tpu.memory_space<vmem>>, vector<6x16x64xf32>
    %70 = vector.shape_cast %69 : vector<6x16x64xf32> to vector<96x64xf32>
    %c0_50 = arith.constant 0 : index
    %c44 = arith.constant 44 : index
    %c0_51 = arith.constant 0 : index
    %71 = vector.load %arg18[%c0_50, %c44, %c0_51] : memref<6x104x64xf32, #tpu.memory_space<vmem>>, vector<6x16x64xf32>
    %72 = vector.shape_cast %71 : vector<6x16x64xf32> to vector<96x64xf32>
    %c0_52 = arith.constant 0 : index
    %c45 = arith.constant 45 : index
    %c0_53 = arith.constant 0 : index
    %73 = vector.load %arg18[%c0_52, %c45, %c0_53] : memref<6x104x64xf32, #tpu.memory_space<vmem>>, vector<6x16x64xf32>
    %74 = vector.shape_cast %73 : vector<6x16x64xf32> to vector<96x64xf32>
    %c0_54 = arith.constant 0 : index
    %c46 = arith.constant 46 : index
    %c0_55 = arith.constant 0 : index
    %75 = vector.load %arg18[%c0_54, %c46, %c0_55] : memref<6x104x64xf32, #tpu.memory_space<vmem>>, vector<6x16x64xf32>
    %76 = vector.shape_cast %75 : vector<6x16x64xf32> to vector<96x64xf32>
    %c0_56 = arith.constant 0 : index
    %c47 = arith.constant 47 : index
    %c0_57 = arith.constant 0 : index
    %77 = vector.load %arg18[%c0_56, %c47, %c0_57] : memref<6x104x64xf32, #tpu.memory_space<vmem>>, vector<6x16x64xf32>
    %78 = vector.shape_cast %77 : vector<6x16x64xf32> to vector<96x64xf32>
    %c0_58 = arith.constant 0 : index
    %c48 = arith.constant 48 : index
    %c0_59 = arith.constant 0 : index
    %79 = vector.load %arg18[%c0_58, %c48, %c0_59] : memref<6x104x64xf32, #tpu.memory_space<vmem>>, vector<6x16x64xf32>
    %80 = vector.shape_cast %79 : vector<6x16x64xf32> to vector<96x64xf32>
    %c0_60 = arith.constant 0 : index
    %c49 = arith.constant 49 : index
    %c0_61 = arith.constant 0 : index
    %81 = vector.load %arg18[%c0_60, %c49, %c0_61] : memref<6x104x64xf32, #tpu.memory_space<vmem>>, vector<6x16x64xf32>
    %82 = vector.shape_cast %81 : vector<6x16x64xf32> to vector<96x64xf32>
    %c0_62 = arith.constant 0 : index
    %c50 = arith.constant 50 : index
    %c0_63 = arith.constant 0 : index
    %83 = vector.load %arg18[%c0_62, %c50, %c0_63] : memref<6x104x64xf32, #tpu.memory_space<vmem>>, vector<6x16x64xf32>
    %84 = vector.shape_cast %83 : vector<6x16x64xf32> to vector<96x64xf32>
    %c0_64 = arith.constant 0 : index
    %c51 = arith.constant 51 : index
    %c0_65 = arith.constant 0 : index
    %85 = vector.load %arg18[%c0_64, %c51, %c0_65] : memref<6x104x64xf32, #tpu.memory_space<vmem>>, vector<6x16x64xf32>
    %86 = vector.shape_cast %85 : vector<6x16x64xf32> to vector<96x64xf32>
    %c0_66 = arith.constant 0 : index
    %c52 = arith.constant 52 : index
    %c0_67 = arith.constant 0 : index
    %87 = vector.load %arg18[%c0_66, %c52, %c0_67] : memref<6x104x64xf32, #tpu.memory_space<vmem>>, vector<6x16x64xf32>
    %88 = vector.shape_cast %87 : vector<6x16x64xf32> to vector<96x64xf32>
    %c0_68 = arith.constant 0 : index
    %c53 = arith.constant 53 : index
    %c0_69 = arith.constant 0 : index
    %89 = vector.load %arg18[%c0_68, %c53, %c0_69] : memref<6x104x64xf32, #tpu.memory_space<vmem>>, vector<6x16x64xf32>
    %90 = vector.shape_cast %89 : vector<6x16x64xf32> to vector<96x64xf32>
    %c0_70 = arith.constant 0 : index
    %c54 = arith.constant 54 : index
    %c0_71 = arith.constant 0 : index
    %91 = vector.load %arg18[%c0_70, %c54, %c0_71] : memref<6x104x64xf32, #tpu.memory_space<vmem>>, vector<6x16x64xf32>
    %92 = vector.shape_cast %91 : vector<6x16x64xf32> to vector<96x64xf32>
    %c0_72 = arith.constant 0 : index
    %c55 = arith.constant 55 : index
    %c0_73 = arith.constant 0 : index
    %93 = vector.load %arg18[%c0_72, %c55, %c0_73] : memref<6x104x64xf32, #tpu.memory_space<vmem>>, vector<6x16x64xf32>
    %94 = vector.shape_cast %93 : vector<6x16x64xf32> to vector<96x64xf32>
    %c0_74 = arith.constant 0 : index
    %c56 = arith.constant 56 : index
    %c0_75 = arith.constant 0 : index
    %95 = vector.load %arg18[%c0_74, %c56, %c0_75] : memref<6x104x64xf32, #tpu.memory_space<vmem>>, vector<6x16x64xf32>
    %96 = vector.shape_cast %95 : vector<6x16x64xf32> to vector<96x64xf32>
    %c0_76 = arith.constant 0 : index
    %c57 = arith.constant 57 : index
    %c0_77 = arith.constant 0 : index
    %97 = vector.load %arg18[%c0_76, %c57, %c0_77] : memref<6x104x64xf32, #tpu.memory_space<vmem>>, vector<6x16x64xf32>
    %98 = vector.shape_cast %97 : vector<6x16x64xf32> to vector<96x64xf32>
    %c0_78 = arith.constant 0 : index
    %c58 = arith.constant 58 : index
    %c0_79 = arith.constant 0 : index
    %99 = vector.load %arg18[%c0_78, %c58, %c0_79] : memref<6x104x64xf32, #tpu.memory_space<vmem>>, vector<6x16x64xf32>
    %100 = vector.shape_cast %99 : vector<6x16x64xf32> to vector<96x64xf32>
    %c0_80 = arith.constant 0 : index
    %c59 = arith.constant 59 : index
    %c0_81 = arith.constant 0 : index
    %101 = vector.load %arg18[%c0_80, %c59, %c0_81] : memref<6x104x64xf32, #tpu.memory_space<vmem>>, vector<6x16x64xf32>
    %102 = vector.shape_cast %101 : vector<6x16x64xf32> to vector<96x64xf32>
    %c0_82 = arith.constant 0 : index
    %c60 = arith.constant 60 : index
    %c0_83 = arith.constant 0 : index
    %103 = vector.load %arg18[%c0_82, %c60, %c0_83] : memref<6x104x64xf32, #tpu.memory_space<vmem>>, vector<6x16x64xf32>
    %104 = vector.shape_cast %103 : vector<6x16x64xf32> to vector<96x64xf32>
    %c0_84 = arith.constant 0 : index
    %c61 = arith.constant 61 : index
    %c0_85 = arith.constant 0 : index
    %105 = vector.load %arg18[%c0_84, %c61, %c0_85] : memref<6x104x64xf32, #tpu.memory_space<vmem>>, vector<6x16x64xf32>
    %106 = vector.shape_cast %105 : vector<6x16x64xf32> to vector<96x64xf32>
    %c0_86 = arith.constant 0 : index
    %c62 = arith.constant 62 : index
    %c0_87 = arith.constant 0 : index
    %107 = vector.load %arg18[%c0_86, %c62, %c0_87] : memref<6x104x64xf32, #tpu.memory_space<vmem>>, vector<6x16x64xf32>
    %108 = vector.shape_cast %107 : vector<6x16x64xf32> to vector<96x64xf32>
    %c0_88 = arith.constant 0 : index
    %c63 = arith.constant 63 : index
    %c0_89 = arith.constant 0 : index
    %109 = vector.load %arg18[%c0_88, %c63, %c0_89] : memref<6x104x64xf32, #tpu.memory_space<vmem>>, vector<6x16x64xf32>
    %110 = vector.shape_cast %109 : vector<6x16x64xf32> to vector<96x64xf32>
    %c0_90 = arith.constant 0 : index
    %c64 = arith.constant 64 : index
    %c0_91 = arith.constant 0 : index
    %111 = vector.load %arg18[%c0_90, %c64, %c0_91] : memref<6x104x64xf32, #tpu.memory_space<vmem>>, vector<6x16x64xf32>
    %112 = vector.shape_cast %111 : vector<6x16x64xf32> to vector<96x64xf32>
    %c0_92 = arith.constant 0 : index
    %c65 = arith.constant 65 : index
    %c0_93 = arith.constant 0 : index
    %113 = vector.load %arg18[%c0_92, %c65, %c0_93] : memref<6x104x64xf32, #tpu.memory_space<vmem>>, vector<6x16x64xf32>
    %114 = vector.shape_cast %113 : vector<6x16x64xf32> to vector<96x64xf32>
    %c0_94 = arith.constant 0 : index
    %c66 = arith.constant 66 : index
    %c0_95 = arith.constant 0 : index
    %115 = vector.load %arg18[%c0_94, %c66, %c0_95] : memref<6x104x64xf32, #tpu.memory_space<vmem>>, vector<6x16x64xf32>
    %116 = vector.shape_cast %115 : vector<6x16x64xf32> to vector<96x64xf32>
    %c0_96 = arith.constant 0 : index
    %c67 = arith.constant 67 : index
    %c0_97 = arith.constant 0 : index
    %117 = vector.load %arg18[%c0_96, %c67, %c0_97] : memref<6x104x64xf32, #tpu.memory_space<vmem>>, vector<6x16x64xf32>
    %118 = vector.shape_cast %117 : vector<6x16x64xf32> to vector<96x64xf32>
    %c0_98 = arith.constant 0 : index
    %c68 = arith.constant 68 : index
    %c0_99 = arith.constant 0 : index
    %119 = vector.load %arg18[%c0_98, %c68, %c0_99] : memref<6x104x64xf32, #tpu.memory_space<vmem>>, vector<6x16x64xf32>
    %120 = vector.shape_cast %119 : vector<6x16x64xf32> to vector<96x64xf32>
    %c0_100 = arith.constant 0 : index
    %c69 = arith.constant 69 : index
    %c0_101 = arith.constant 0 : index
    %121 = vector.load %arg18[%c0_100, %c69, %c0_101] : memref<6x104x64xf32, #tpu.memory_space<vmem>>, vector<6x16x64xf32>
    %122 = vector.shape_cast %121 : vector<6x16x64xf32> to vector<96x64xf32>
    %c0_102 = arith.constant 0 : index
    %c70 = arith.constant 70 : index
    %c0_103 = arith.constant 0 : index
    %123 = vector.load %arg18[%c0_102, %c70, %c0_103] : memref<6x104x64xf32, #tpu.memory_space<vmem>>, vector<6x16x64xf32>
    %124 = vector.shape_cast %123 : vector<6x16x64xf32> to vector<96x64xf32>
    %c0_104 = arith.constant 0 : index
    %c71 = arith.constant 71 : index
    %c0_105 = arith.constant 0 : index
    %125 = vector.load %arg18[%c0_104, %c71, %c0_105] : memref<6x104x64xf32, #tpu.memory_space<vmem>>, vector<6x16x64xf32>
    %126 = vector.shape_cast %125 : vector<6x16x64xf32> to vector<96x64xf32>
    %c0_106 = arith.constant 0 : index
    %c72 = arith.constant 72 : index
    %c0_107 = arith.constant 0 : index
    %127 = vector.load %arg18[%c0_106, %c72, %c0_107] : memref<6x104x64xf32, #tpu.memory_space<vmem>>, vector<6x16x64xf32>
    %128 = vector.shape_cast %127 : vector<6x16x64xf32> to vector<96x64xf32>
    %c0_108 = arith.constant 0 : index
    %c73 = arith.constant 73 : index
    %c0_109 = arith.constant 0 : index
    %129 = vector.load %arg18[%c0_108, %c73, %c0_109] : memref<6x104x64xf32, #tpu.memory_space<vmem>>, vector<6x16x64xf32>
    %130 = vector.shape_cast %129 : vector<6x16x64xf32> to vector<96x64xf32>
    %c0_110 = arith.constant 0 : index
    %c74 = arith.constant 74 : index
    %c0_111 = arith.constant 0 : index
    %131 = vector.load %arg18[%c0_110, %c74, %c0_111] : memref<6x104x64xf32, #tpu.memory_space<vmem>>, vector<6x16x64xf32>
    %132 = vector.shape_cast %131 : vector<6x16x64xf32> to vector<96x64xf32>
    %c0_112 = arith.constant 0 : index
    %c75 = arith.constant 75 : index
    %c0_113 = arith.constant 0 : index
    %133 = vector.load %arg18[%c0_112, %c75, %c0_113] : memref<6x104x64xf32, #tpu.memory_space<vmem>>, vector<6x16x64xf32>
    %134 = vector.shape_cast %133 : vector<6x16x64xf32> to vector<96x64xf32>
    %c0_114 = arith.constant 0 : index
    %c76 = arith.constant 76 : index
    %c0_115 = arith.constant 0 : index
    %135 = vector.load %arg18[%c0_114, %c76, %c0_115] : memref<6x104x64xf32, #tpu.memory_space<vmem>>, vector<6x16x64xf32>
    %136 = vector.shape_cast %135 : vector<6x16x64xf32> to vector<96x64xf32>
    %c0_116 = arith.constant 0 : index
    %c77 = arith.constant 77 : index
    %c0_117 = arith.constant 0 : index
    %137 = vector.load %arg18[%c0_116, %c77, %c0_117] : memref<6x104x64xf32, #tpu.memory_space<vmem>>, vector<6x16x64xf32>
    %138 = vector.shape_cast %137 : vector<6x16x64xf32> to vector<96x64xf32>
    %c0_118 = arith.constant 0 : index
    %c78 = arith.constant 78 : index
    %c0_119 = arith.constant 0 : index
    %139 = vector.load %arg18[%c0_118, %c78, %c0_119] : memref<6x104x64xf32, #tpu.memory_space<vmem>>, vector<6x16x64xf32>
    %140 = vector.shape_cast %139 : vector<6x16x64xf32> to vector<96x64xf32>
    %c0_120 = arith.constant 0 : index
    %c79 = arith.constant 79 : index
    %c0_121 = arith.constant 0 : index
    %141 = vector.load %arg18[%c0_120, %c79, %c0_121] : memref<6x104x64xf32, #tpu.memory_space<vmem>>, vector<6x16x64xf32>
    %142 = vector.shape_cast %141 : vector<6x16x64xf32> to vector<96x64xf32>
    %c0_122 = arith.constant 0 : index
    %c80 = arith.constant 80 : index
    %c0_123 = arith.constant 0 : index
    %143 = vector.load %arg18[%c0_122, %c80, %c0_123] : memref<6x104x64xf32, #tpu.memory_space<vmem>>, vector<6x16x64xf32>
    %144 = vector.shape_cast %143 : vector<6x16x64xf32> to vector<96x64xf32>
    %c0_124 = arith.constant 0 : index
    %c15 = arith.constant 15 : index
    %c0_125 = arith.constant 0 : index
    %145 = vector.load %arg18[%c0_124, %c15, %c0_125] : memref<6x104x64xf32, #tpu.memory_space<vmem>>, vector<6x16x64xf32>
    %146 = vector.shape_cast %145 : vector<6x16x64xf32> to vector<96x64xf32>
    %147 = vector.broadcast %32 : vector<96x1xf32> to vector<96x64xf32>
    %148 = arith.mulf %147, %146 : vector<96x64xf32>
    %c0_126 = arith.constant 0 : index
    %c31 = arith.constant 31 : index
    %c0_127 = arith.constant 0 : index
    %149 = vector.load %arg18[%c0_126, %c31, %c0_127] : memref<6x104x64xf32, #tpu.memory_space<vmem>>, vector<6x16x64xf32>
    %150 = vector.shape_cast %149 : vector<6x16x64xf32> to vector<96x64xf32>
    %151 = vector.broadcast %32 : vector<96x1xf32> to vector<96x64xf32>
    %152 = arith.mulf %151, %150 : vector<96x64xf32>
    %c0_128 = arith.constant 0 : index
    %c47_129 = arith.constant 47 : index
    %c0_130 = arith.constant 0 : index
    %153 = vector.load %arg18[%c0_128, %c47_129, %c0_130] : memref<6x104x64xf32, #tpu.memory_space<vmem>>, vector<6x16x64xf32>
    %154 = vector.shape_cast %153 : vector<6x16x64xf32> to vector<96x64xf32>
    %155 = vector.broadcast %32 : vector<96x1xf32> to vector<96x64xf32>
    %156 = arith.mulf %155, %154 : vector<96x64xf32>
    %c0_131 = arith.constant 0 : index
    %c63_132 = arith.constant 63 : index
    %c0_133 = arith.constant 0 : index
    %157 = vector.load %arg18[%c0_131, %c63_132, %c0_133] : memref<6x104x64xf32, #tpu.memory_space<vmem>>, vector<6x16x64xf32>
    %158 = vector.shape_cast %157 : vector<6x16x64xf32> to vector<96x64xf32>
    %159 = vector.broadcast %32 : vector<96x1xf32> to vector<96x64xf32>
    %160 = arith.mulf %159, %158 : vector<96x64xf32>
    %c0_134 = arith.constant 0 : index
    %c79_135 = arith.constant 79 : index
    %c0_136 = arith.constant 0 : index
    %161 = vector.load %arg18[%c0_134, %c79_135, %c0_136] : memref<6x104x64xf32, #tpu.memory_space<vmem>>, vector<6x16x64xf32>
    %162 = vector.shape_cast %161 : vector<6x16x64xf32> to vector<96x64xf32>
    %163 = vector.broadcast %32 : vector<96x1xf32> to vector<96x64xf32>
    %164 = arith.mulf %163, %162 : vector<96x64xf32>
    %c0_137 = arith.constant 0 : index
    %c17 = arith.constant 17 : index
    %c0_138 = arith.constant 0 : index
    %165 = vector.load %arg18[%c0_137, %c17, %c0_138] : memref<6x104x64xf32, #tpu.memory_space<vmem>>, vector<6x16x64xf32>
    %166 = vector.shape_cast %165 : vector<6x16x64xf32> to vector<96x64xf32>
    %167 = vector.broadcast %36 : vector<96x1xf32> to vector<96x64xf32>
    %168 = arith.mulf %167, %166 : vector<96x64xf32>
    %c0_139 = arith.constant 0 : index
    %c33 = arith.constant 33 : index
    %c0_140 = arith.constant 0 : index
    %169 = vector.load %arg18[%c0_139, %c33, %c0_140] : memref<6x104x64xf32, #tpu.memory_space<vmem>>, vector<6x16x64xf32>
    %170 = vector.shape_cast %169 : vector<6x16x64xf32> to vector<96x64xf32>
    %171 = vector.broadcast %36 : vector<96x1xf32> to vector<96x64xf32>
    %172 = arith.mulf %171, %170 : vector<96x64xf32>
    %c0_141 = arith.constant 0 : index
    %c49_142 = arith.constant 49 : index
    %c0_143 = arith.constant 0 : index
    %173 = vector.load %arg18[%c0_141, %c49_142, %c0_143] : memref<6x104x64xf32, #tpu.memory_space<vmem>>, vector<6x16x64xf32>
    %174 = vector.shape_cast %173 : vector<6x16x64xf32> to vector<96x64xf32>
    %175 = vector.broadcast %36 : vector<96x1xf32> to vector<96x64xf32>
    %176 = arith.mulf %175, %174 : vector<96x64xf32>
    %c0_144 = arith.constant 0 : index
    %c65_145 = arith.constant 65 : index
    %c0_146 = arith.constant 0 : index
    %177 = vector.load %arg18[%c0_144, %c65_145, %c0_146] : memref<6x104x64xf32, #tpu.memory_space<vmem>>, vector<6x16x64xf32>
    %178 = vector.shape_cast %177 : vector<6x16x64xf32> to vector<96x64xf32>
    %179 = vector.broadcast %36 : vector<96x1xf32> to vector<96x64xf32>
    %180 = arith.mulf %179, %178 : vector<96x64xf32>
    %c0_147 = arith.constant 0 : index
    %c81 = arith.constant 81 : index
    %c0_148 = arith.constant 0 : index
    %181 = vector.load %arg18[%c0_147, %c81, %c0_148] : memref<6x104x64xf32, #tpu.memory_space<vmem>>, vector<6x16x64xf32>
    %182 = vector.shape_cast %181 : vector<6x16x64xf32> to vector<96x64xf32>
    %183 = vector.broadcast %36 : vector<96x1xf32> to vector<96x64xf32>
    %184 = arith.mulf %183, %182 : vector<96x64xf32>
    %185 = tpu.concatenate %38, %40, %42, %44, %46, %48, %50, %52, %54, %56, %58, %60, %62, %64, %66, %68 in 1 : vector<96x64xf32>, vector<96x64xf32>, vector<96x64xf32>, vector<96x64xf32>, vector<96x64xf32>, vector<96x64xf32>, vector<96x64xf32>, vector<96x64xf32>, vector<96x64xf32>, vector<96x64xf32>, vector<96x64xf32>, vector<96x64xf32>, vector<96x64xf32>, vector<96x64xf32>, vector<96x64xf32>, vector<96x64xf32> -> vector<96x1024xf32>
    %186 = tpu.concatenate %70, %72, %74, %76, %78, %80, %82, %84, %86, %88, %90, %92, %94, %96, %98, %100 in 1 : vector<96x64xf32>, vector<96x64xf32>, vector<96x64xf32>, vector<96x64xf32>, vector<96x64xf32>, vector<96x64xf32>, vector<96x64xf32>, vector<96x64xf32>, vector<96x64xf32>, vector<96x64xf32>, vector<96x64xf32>, vector<96x64xf32>, vector<96x64xf32>, vector<96x64xf32>, vector<96x64xf32>, vector<96x64xf32> -> vector<96x1024xf32>
    %187 = tpu.concatenate %102, %104, %106, %108, %110, %112, %114, %116, %118, %120, %122, %124, %126, %128, %130, %132 in 1 : vector<96x64xf32>, vector<96x64xf32>, vector<96x64xf32>, vector<96x64xf32>, vector<96x64xf32>, vector<96x64xf32>, vector<96x64xf32>, vector<96x64xf32>, vector<96x64xf32>, vector<96x64xf32>, vector<96x64xf32>, vector<96x64xf32>, vector<96x64xf32>, vector<96x64xf32>, vector<96x64xf32>, vector<96x64xf32> -> vector<96x1024xf32>
    %188 = tpu.concatenate %134, %136, %138, %140, %142, %144, %148, %152, %156, %160, %164, %168, %172, %176, %180, %184 in 1 : vector<96x64xf32>, vector<96x64xf32>, vector<96x64xf32>, vector<96x64xf32>, vector<96x64xf32>, vector<96x64xf32>, vector<96x64xf32>, vector<96x64xf32>, vector<96x64xf32>, vector<96x64xf32>, vector<96x64xf32>, vector<96x64xf32>, vector<96x64xf32>, vector<96x64xf32>, vector<96x64xf32>, vector<96x64xf32> -> vector<96x1024xf32>
    %189 = tpu.concatenate %185, %186, %187, %188 in 1 : vector<96x1024xf32>, vector<96x1024xf32>, vector<96x1024xf32>, vector<96x1024xf32> -> vector<96x4096xf32>
    %190 = arith.truncf %189 : vector<96x4096xf32> to vector<96x4096xbf16>
    %c0_149 = arith.constant 0 : index
    %c0_150 = arith.constant 0 : index
    %191 = vector.load %arg4[%c0_149, %c0_150] : memref<4096x32xbf16, #tpu.memory_space<vmem>>, vector<4096x32xbf16>
    %cst_151 = arith.constant dense<0.000000e+00> : vector<96x32xf32>
    %192 = tpu.matmul %190, %191, %cst_151 {dimension_numbers = #tpu.dot_dimension_numbers<[1], [0], [0], [1], [0, 0, 1, 1], [], []>} : vector<96x4096xbf16>, vector<4096x32xbf16>, vector<96x32xf32> -> vector<96x32xf32>
    %c0_152 = arith.constant 0 : index
    %c0_153 = arith.constant 0 : index
    %193 = vector.load %arg5[%c0_152, %c0_153] : memref<1x32xf32, #tpu.memory_space<vmem>>, vector<1x32xf32>
    %194 = vector.broadcast %193 : vector<1x32xf32> to vector<96x32xf32>
    %195 = arith.addf %192, %194 : vector<96x32xf32>
    %196 = arith.truncf %195 : vector<96x32xf32> to vector<96x32xbf16>
    %c0_154 = arith.constant 0 : index
    %c0_155 = arith.constant 0 : index
    %197 = vector.load %arg6[%c0_154, %c0_155] : memref<32x96xbf16, #tpu.memory_space<vmem>>, vector<32x96xbf16>
    %cst_156 = arith.constant dense<0.000000e+00> : vector<96x96xf32>
    %198 = tpu.matmul %196, %197, %cst_156 {dimension_numbers = #tpu.dot_dimension_numbers<[1], [0], [0], [1], [0, 0, 1, 1], [], []>} : vector<96x32xbf16>, vector<32x96xbf16>, vector<96x96xf32> -> vector<96x96xf32>
    %c0_157 = arith.constant 0 : index
    %c0_158 = arith.constant 0 : index
    %199 = vector.load %arg7[%c0_157, %c0_158] : memref<1x96xf32, #tpu.memory_space<vmem>>, vector<1x96xf32>
    %200 = vector.broadcast %199 : vector<1x96xf32> to vector<96x96xf32>
    %201 = arith.addf %198, %200 : vector<96x96xf32>
    %202 = vector.extract_strided_slice %201 {offsets = [0, 0], sizes = [96, 32], strides = [1, 1]} : vector<96x96xf32> to vector<96x32xf32>
    %cst_159 = arith.constant 2.500000e-01 : f32
    %203 = vector.broadcast %cst_159 : f32 to vector<96x32xf32>
    %204 = arith.mulf %202, %203 : vector<96x32xf32>
    %205 = vector.extract_strided_slice %201 {offsets = [0, 32], sizes = [96, 32], strides = [1, 1]} : vector<96x96xf32> to vector<96x32xf32>
    %206 = vector.extract_strided_slice %201 {offsets = [0, 64], sizes = [96, 32], strides = [1, 1]} : vector<96x96xf32> to vector<96x32xf32>
    %207 = vector.extract_strided_slice %204 {offsets = [0, 0], sizes = [16, 16], strides = [1, 1]} : vector<96x32xf32> to vector<16x16xf32>
    %208 = vector.extract_strided_slice %205 {offsets = [0, 0], sizes = [16, 16], strides = [1, 1]} : vector<96x32xf32> to vector<16x16xf32>
    %209 = vector.extract_strided_slice %206 {offsets = [0, 0], sizes = [16, 16], strides = [1, 1]} : vector<96x32xf32> to vector<16x16xf32>
    %cst_160 = arith.constant dense<0.000000e+00> : vector<16x16xf32>
    %210 = tpu.matmul %207, %208, %cst_160 {dimension_numbers = #tpu.dot_dimension_numbers<[1], [1], [0], [0], [0, 0, 1, 0], [], []>} : vector<16x16xf32>, vector<16x16xf32>, vector<16x16xf32> -> vector<16x16xf32>
    %cst_161 = arith.constant dense<0xFF800000> : vector<16xf32>
    %211 = vector.multi_reduction <maximumf>, %210, %cst_161 [1] : vector<16x16xf32> to vector<16xf32>
    %212 = vector.shape_cast %211 : vector<16xf32> to vector<16x1xf32>
    %213 = vector.broadcast %212 : vector<16x1xf32> to vector<16x16xf32>
    %214 = arith.subf %210, %213 : vector<16x16xf32>
    %215 = math.exp %214 : vector<16x16xf32>
    %cst_162 = arith.constant dense<0.000000e+00> : vector<16xf32>
    %216 = vector.multi_reduction <add>, %215, %cst_162 [1] : vector<16x16xf32> to vector<16xf32>
    %217 = vector.shape_cast %216 : vector<16xf32> to vector<16x1xf32>
    %218 = tpu.reciprocal %217 {approx = true} : vector<16x1xf32> -> vector<16x1xf32>
    %219 = vector.broadcast %218 : vector<16x1xf32> to vector<16x16xf32>
    %220 = arith.mulf %215, %219 : vector<16x16xf32>
    %cst_163 = arith.constant dense<0.000000e+00> : vector<16x16xf32>
    %221 = tpu.matmul %220, %209, %cst_163 {dimension_numbers = #tpu.dot_dimension_numbers<[1], [0], [0], [1], [0, 0, 1, 1], [], []>} : vector<16x16xf32>, vector<16x16xf32>, vector<16x16xf32> -> vector<16x16xf32>
    %222 = vector.extract_strided_slice %204 {offsets = [0, 16], sizes = [16, 16], strides = [1, 1]} : vector<96x32xf32> to vector<16x16xf32>
    %223 = vector.extract_strided_slice %205 {offsets = [0, 16], sizes = [16, 16], strides = [1, 1]} : vector<96x32xf32> to vector<16x16xf32>
    %224 = vector.extract_strided_slice %206 {offsets = [0, 16], sizes = [16, 16], strides = [1, 1]} : vector<96x32xf32> to vector<16x16xf32>
    %cst_164 = arith.constant dense<0.000000e+00> : vector<16x16xf32>
    %225 = tpu.matmul %222, %223, %cst_164 {dimension_numbers = #tpu.dot_dimension_numbers<[1], [1], [0], [0], [0, 0, 1, 0], [], []>} : vector<16x16xf32>, vector<16x16xf32>, vector<16x16xf32> -> vector<16x16xf32>
    %cst_165 = arith.constant dense<0xFF800000> : vector<16xf32>
    %226 = vector.multi_reduction <maximumf>, %225, %cst_165 [1] : vector<16x16xf32> to vector<16xf32>
    %227 = vector.shape_cast %226 : vector<16xf32> to vector<16x1xf32>
    %228 = vector.broadcast %227 : vector<16x1xf32> to vector<16x16xf32>
    %229 = arith.subf %225, %228 : vector<16x16xf32>
    %230 = math.exp %229 : vector<16x16xf32>
    %cst_166 = arith.constant dense<0.000000e+00> : vector<16xf32>
    %231 = vector.multi_reduction <add>, %230, %cst_166 [1] : vector<16x16xf32> to vector<16xf32>
    %232 = vector.shape_cast %231 : vector<16xf32> to vector<16x1xf32>
    %233 = tpu.reciprocal %232 {approx = true} : vector<16x1xf32> -> vector<16x1xf32>
    %234 = vector.broadcast %233 : vector<16x1xf32> to vector<16x16xf32>
    %235 = arith.mulf %230, %234 : vector<16x16xf32>
    %cst_167 = arith.constant dense<0.000000e+00> : vector<16x16xf32>
    %236 = tpu.matmul %235, %224, %cst_167 {dimension_numbers = #tpu.dot_dimension_numbers<[1], [0], [0], [1], [0, 0, 1, 1], [], []>} : vector<16x16xf32>, vector<16x16xf32>, vector<16x16xf32> -> vector<16x16xf32>
    %237 = tpu.concatenate %221, %236 in 1 : vector<16x16xf32>, vector<16x16xf32> -> vector<16x32xf32>
    %238 = vector.extract_strided_slice %204 {offsets = [16, 0], sizes = [16, 16], strides = [1, 1]} : vector<96x32xf32> to vector<16x16xf32>
    %239 = vector.extract_strided_slice %205 {offsets = [16, 0], sizes = [16, 16], strides = [1, 1]} : vector<96x32xf32> to vector<16x16xf32>
    %240 = vector.extract_strided_slice %206 {offsets = [16, 0], sizes = [16, 16], strides = [1, 1]} : vector<96x32xf32> to vector<16x16xf32>
    %cst_168 = arith.constant dense<0.000000e+00> : vector<16x16xf32>
    %241 = tpu.matmul %238, %239, %cst_168 {dimension_numbers = #tpu.dot_dimension_numbers<[1], [1], [0], [0], [0, 0, 1, 0], [], []>} : vector<16x16xf32>, vector<16x16xf32>, vector<16x16xf32> -> vector<16x16xf32>
    %cst_169 = arith.constant dense<0xFF800000> : vector<16xf32>
    %242 = vector.multi_reduction <maximumf>, %241, %cst_169 [1] : vector<16x16xf32> to vector<16xf32>
    %243 = vector.shape_cast %242 : vector<16xf32> to vector<16x1xf32>
    %244 = vector.broadcast %243 : vector<16x1xf32> to vector<16x16xf32>
    %245 = arith.subf %241, %244 : vector<16x16xf32>
    %246 = math.exp %245 : vector<16x16xf32>
    %cst_170 = arith.constant dense<0.000000e+00> : vector<16xf32>
    %247 = vector.multi_reduction <add>, %246, %cst_170 [1] : vector<16x16xf32> to vector<16xf32>
    %248 = vector.shape_cast %247 : vector<16xf32> to vector<16x1xf32>
    %249 = tpu.reciprocal %248 {approx = true} : vector<16x1xf32> -> vector<16x1xf32>
    %250 = vector.broadcast %249 : vector<16x1xf32> to vector<16x16xf32>
    %251 = arith.mulf %246, %250 : vector<16x16xf32>
    %cst_171 = arith.constant dense<0.000000e+00> : vector<16x16xf32>
    %252 = tpu.matmul %251, %240, %cst_171 {dimension_numbers = #tpu.dot_dimension_numbers<[1], [0], [0], [1], [0, 0, 1, 1], [], []>} : vector<16x16xf32>, vector<16x16xf32>, vector<16x16xf32> -> vector<16x16xf32>
    %253 = vector.extract_strided_slice %204 {offsets = [16, 16], sizes = [16, 16], strides = [1, 1]} : vector<96x32xf32> to vector<16x16xf32>
    %254 = vector.extract_strided_slice %205 {offsets = [16, 16], sizes = [16, 16], strides = [1, 1]} : vector<96x32xf32> to vector<16x16xf32>
    %255 = vector.extract_strided_slice %206 {offsets = [16, 16], sizes = [16, 16], strides = [1, 1]} : vector<96x32xf32> to vector<16x16xf32>
    %cst_172 = arith.constant dense<0.000000e+00> : vector<16x16xf32>
    %256 = tpu.matmul %253, %254, %cst_172 {dimension_numbers = #tpu.dot_dimension_numbers<[1], [1], [0], [0], [0, 0, 1, 0], [], []>} : vector<16x16xf32>, vector<16x16xf32>, vector<16x16xf32> -> vector<16x16xf32>
    %cst_173 = arith.constant dense<0xFF800000> : vector<16xf32>
    %257 = vector.multi_reduction <maximumf>, %256, %cst_173 [1] : vector<16x16xf32> to vector<16xf32>
    %258 = vector.shape_cast %257 : vector<16xf32> to vector<16x1xf32>
    %259 = vector.broadcast %258 : vector<16x1xf32> to vector<16x16xf32>
    %260 = arith.subf %256, %259 : vector<16x16xf32>
    %261 = math.exp %260 : vector<16x16xf32>
    %cst_174 = arith.constant dense<0.000000e+00> : vector<16xf32>
    %262 = vector.multi_reduction <add>, %261, %cst_174 [1] : vector<16x16xf32> to vector<16xf32>
    %263 = vector.shape_cast %262 : vector<16xf32> to vector<16x1xf32>
    %264 = tpu.reciprocal %263 {approx = true} : vector<16x1xf32> -> vector<16x1xf32>
    %265 = vector.broadcast %264 : vector<16x1xf32> to vector<16x16xf32>
    %266 = arith.mulf %261, %265 : vector<16x16xf32>
    %cst_175 = arith.constant dense<0.000000e+00> : vector<16x16xf32>
    %267 = tpu.matmul %266, %255, %cst_175 {dimension_numbers = #tpu.dot_dimension_numbers<[1], [0], [0], [1], [0, 0, 1, 1], [], []>} : vector<16x16xf32>, vector<16x16xf32>, vector<16x16xf32> -> vector<16x16xf32>
    %268 = tpu.concatenate %252, %267 in 1 : vector<16x16xf32>, vector<16x16xf32> -> vector<16x32xf32>
    %269 = vector.extract_strided_slice %204 {offsets = [32, 0], sizes = [16, 16], strides = [1, 1]} : vector<96x32xf32> to vector<16x16xf32>
    %270 = vector.extract_strided_slice %205 {offsets = [32, 0], sizes = [16, 16], strides = [1, 1]} : vector<96x32xf32> to vector<16x16xf32>
    %271 = vector.extract_strided_slice %206 {offsets = [32, 0], sizes = [16, 16], strides = [1, 1]} : vector<96x32xf32> to vector<16x16xf32>
    %cst_176 = arith.constant dense<0.000000e+00> : vector<16x16xf32>
    %272 = tpu.matmul %269, %270, %cst_176 {dimension_numbers = #tpu.dot_dimension_numbers<[1], [1], [0], [0], [0, 0, 1, 0], [], []>} : vector<16x16xf32>, vector<16x16xf32>, vector<16x16xf32> -> vector<16x16xf32>
    %cst_177 = arith.constant dense<0xFF800000> : vector<16xf32>
    %273 = vector.multi_reduction <maximumf>, %272, %cst_177 [1] : vector<16x16xf32> to vector<16xf32>
    %274 = vector.shape_cast %273 : vector<16xf32> to vector<16x1xf32>
    %275 = vector.broadcast %274 : vector<16x1xf32> to vector<16x16xf32>
    %276 = arith.subf %272, %275 : vector<16x16xf32>
    %277 = math.exp %276 : vector<16x16xf32>
    %cst_178 = arith.constant dense<0.000000e+00> : vector<16xf32>
    %278 = vector.multi_reduction <add>, %277, %cst_178 [1] : vector<16x16xf32> to vector<16xf32>
    %279 = vector.shape_cast %278 : vector<16xf32> to vector<16x1xf32>
    %280 = tpu.reciprocal %279 {approx = true} : vector<16x1xf32> -> vector<16x1xf32>
    %281 = vector.broadcast %280 : vector<16x1xf32> to vector<16x16xf32>
    %282 = arith.mulf %277, %281 : vector<16x16xf32>
    %cst_179 = arith.constant dense<0.000000e+00> : vector<16x16xf32>
    %283 = tpu.matmul %282, %271, %cst_179 {dimension_numbers = #tpu.dot_dimension_numbers<[1], [0], [0], [1], [0, 0, 1, 1], [], []>} : vector<16x16xf32>, vector<16x16xf32>, vector<16x16xf32> -> vector<16x16xf32>
    %284 = vector.extract_strided_slice %204 {offsets = [32, 16], sizes = [16, 16], strides = [1, 1]} : vector<96x32xf32> to vector<16x16xf32>
    %285 = vector.extract_strided_slice %205 {offsets = [32, 16], sizes = [16, 16], strides = [1, 1]} : vector<96x32xf32> to vector<16x16xf32>
    %286 = vector.extract_strided_slice %206 {offsets = [32, 16], sizes = [16, 16], strides = [1, 1]} : vector<96x32xf32> to vector<16x16xf32>
    %cst_180 = arith.constant dense<0.000000e+00> : vector<16x16xf32>
    %287 = tpu.matmul %284, %285, %cst_180 {dimension_numbers = #tpu.dot_dimension_numbers<[1], [1], [0], [0], [0, 0, 1, 0], [], []>} : vector<16x16xf32>, vector<16x16xf32>, vector<16x16xf32> -> vector<16x16xf32>
    %cst_181 = arith.constant dense<0xFF800000> : vector<16xf32>
    %288 = vector.multi_reduction <maximumf>, %287, %cst_181 [1] : vector<16x16xf32> to vector<16xf32>
    %289 = vector.shape_cast %288 : vector<16xf32> to vector<16x1xf32>
    %290 = vector.broadcast %289 : vector<16x1xf32> to vector<16x16xf32>
    %291 = arith.subf %287, %290 : vector<16x16xf32>
    %292 = math.exp %291 : vector<16x16xf32>
    %cst_182 = arith.constant dense<0.000000e+00> : vector<16xf32>
    %293 = vector.multi_reduction <add>, %292, %cst_182 [1] : vector<16x16xf32> to vector<16xf32>
    %294 = vector.shape_cast %293 : vector<16xf32> to vector<16x1xf32>
    %295 = tpu.reciprocal %294 {approx = true} : vector<16x1xf32> -> vector<16x1xf32>
    %296 = vector.broadcast %295 : vector<16x1xf32> to vector<16x16xf32>
    %297 = arith.mulf %292, %296 : vector<16x16xf32>
    %cst_183 = arith.constant dense<0.000000e+00> : vector<16x16xf32>
    %298 = tpu.matmul %297, %286, %cst_183 {dimension_numbers = #tpu.dot_dimension_numbers<[1], [0], [0], [1], [0, 0, 1, 1], [], []>} : vector<16x16xf32>, vector<16x16xf32>, vector<16x16xf32> -> vector<16x16xf32>
    %299 = tpu.concatenate %283, %298 in 1 : vector<16x16xf32>, vector<16x16xf32> -> vector<16x32xf32>
    %300 = vector.extract_strided_slice %204 {offsets = [48, 0], sizes = [16, 16], strides = [1, 1]} : vector<96x32xf32> to vector<16x16xf32>
    %301 = vector.extract_strided_slice %205 {offsets = [48, 0], sizes = [16, 16], strides = [1, 1]} : vector<96x32xf32> to vector<16x16xf32>
    %302 = vector.extract_strided_slice %206 {offsets = [48, 0], sizes = [16, 16], strides = [1, 1]} : vector<96x32xf32> to vector<16x16xf32>
    %cst_184 = arith.constant dense<0.000000e+00> : vector<16x16xf32>
    %303 = tpu.matmul %300, %301, %cst_184 {dimension_numbers = #tpu.dot_dimension_numbers<[1], [1], [0], [0], [0, 0, 1, 0], [], []>} : vector<16x16xf32>, vector<16x16xf32>, vector<16x16xf32> -> vector<16x16xf32>
    %cst_185 = arith.constant dense<0xFF800000> : vector<16xf32>
    %304 = vector.multi_reduction <maximumf>, %303, %cst_185 [1] : vector<16x16xf32> to vector<16xf32>
    %305 = vector.shape_cast %304 : vector<16xf32> to vector<16x1xf32>
    %306 = vector.broadcast %305 : vector<16x1xf32> to vector<16x16xf32>
    %307 = arith.subf %303, %306 : vector<16x16xf32>
    %308 = math.exp %307 : vector<16x16xf32>
    %cst_186 = arith.constant dense<0.000000e+00> : vector<16xf32>
    %309 = vector.multi_reduction <add>, %308, %cst_186 [1] : vector<16x16xf32> to vector<16xf32>
    %310 = vector.shape_cast %309 : vector<16xf32> to vector<16x1xf32>
    %311 = tpu.reciprocal %310 {approx = true} : vector<16x1xf32> -> vector<16x1xf32>
    %312 = vector.broadcast %311 : vector<16x1xf32> to vector<16x16xf32>
    %313 = arith.mulf %308, %312 : vector<16x16xf32>
    %cst_187 = arith.constant dense<0.000000e+00> : vector<16x16xf32>
    %314 = tpu.matmul %313, %302, %cst_187 {dimension_numbers = #tpu.dot_dimension_numbers<[1], [0], [0], [1], [0, 0, 1, 1], [], []>} : vector<16x16xf32>, vector<16x16xf32>, vector<16x16xf32> -> vector<16x16xf32>
    %315 = vector.extract_strided_slice %204 {offsets = [48, 16], sizes = [16, 16], strides = [1, 1]} : vector<96x32xf32> to vector<16x16xf32>
    %316 = vector.extract_strided_slice %205 {offsets = [48, 16], sizes = [16, 16], strides = [1, 1]} : vector<96x32xf32> to vector<16x16xf32>
    %317 = vector.extract_strided_slice %206 {offsets = [48, 16], sizes = [16, 16], strides = [1, 1]} : vector<96x32xf32> to vector<16x16xf32>
    %cst_188 = arith.constant dense<0.000000e+00> : vector<16x16xf32>
    %318 = tpu.matmul %315, %316, %cst_188 {dimension_numbers = #tpu.dot_dimension_numbers<[1], [1], [0], [0], [0, 0, 1, 0], [], []>} : vector<16x16xf32>, vector<16x16xf32>, vector<16x16xf32> -> vector<16x16xf32>
    %cst_189 = arith.constant dense<0xFF800000> : vector<16xf32>
    %319 = vector.multi_reduction <maximumf>, %318, %cst_189 [1] : vector<16x16xf32> to vector<16xf32>
    %320 = vector.shape_cast %319 : vector<16xf32> to vector<16x1xf32>
    %321 = vector.broadcast %320 : vector<16x1xf32> to vector<16x16xf32>
    %322 = arith.subf %318, %321 : vector<16x16xf32>
    %323 = math.exp %322 : vector<16x16xf32>
    %cst_190 = arith.constant dense<0.000000e+00> : vector<16xf32>
    %324 = vector.multi_reduction <add>, %323, %cst_190 [1] : vector<16x16xf32> to vector<16xf32>
    %325 = vector.shape_cast %324 : vector<16xf32> to vector<16x1xf32>
    %326 = tpu.reciprocal %325 {approx = true} : vector<16x1xf32> -> vector<16x1xf32>
    %327 = vector.broadcast %326 : vector<16x1xf32> to vector<16x16xf32>
    %328 = arith.mulf %323, %327 : vector<16x16xf32>
    %cst_191 = arith.constant dense<0.000000e+00> : vector<16x16xf32>
    %329 = tpu.matmul %328, %317, %cst_191 {dimension_numbers = #tpu.dot_dimension_numbers<[1], [0], [0], [1], [0, 0, 1, 1], [], []>} : vector<16x16xf32>, vector<16x16xf32>, vector<16x16xf32> -> vector<16x16xf32>
    %330 = tpu.concatenate %314, %329 in 1 : vector<16x16xf32>, vector<16x16xf32> -> vector<16x32xf32>
    %331 = vector.extract_strided_slice %204 {offsets = [64, 0], sizes = [16, 16], strides = [1, 1]} : vector<96x32xf32> to vector<16x16xf32>
    %332 = vector.extract_strided_slice %205 {offsets = [64, 0], sizes = [16, 16], strides = [1, 1]} : vector<96x32xf32> to vector<16x16xf32>
    %333 = vector.extract_strided_slice %206 {offsets = [64, 0], sizes = [16, 16], strides = [1, 1]} : vector<96x32xf32> to vector<16x16xf32>
    %cst_192 = arith.constant dense<0.000000e+00> : vector<16x16xf32>
    %334 = tpu.matmul %331, %332, %cst_192 {dimension_numbers = #tpu.dot_dimension_numbers<[1], [1], [0], [0], [0, 0, 1, 0], [], []>} : vector<16x16xf32>, vector<16x16xf32>, vector<16x16xf32> -> vector<16x16xf32>
    %cst_193 = arith.constant dense<0xFF800000> : vector<16xf32>
    %335 = vector.multi_reduction <maximumf>, %334, %cst_193 [1] : vector<16x16xf32> to vector<16xf32>
    %336 = vector.shape_cast %335 : vector<16xf32> to vector<16x1xf32>
    %337 = vector.broadcast %336 : vector<16x1xf32> to vector<16x16xf32>
    %338 = arith.subf %334, %337 : vector<16x16xf32>
    %339 = math.exp %338 : vector<16x16xf32>
    %cst_194 = arith.constant dense<0.000000e+00> : vector<16xf32>
    %340 = vector.multi_reduction <add>, %339, %cst_194 [1] : vector<16x16xf32> to vector<16xf32>
    %341 = vector.shape_cast %340 : vector<16xf32> to vector<16x1xf32>
    %342 = tpu.reciprocal %341 {approx = true} : vector<16x1xf32> -> vector<16x1xf32>
    %343 = vector.broadcast %342 : vector<16x1xf32> to vector<16x16xf32>
    %344 = arith.mulf %339, %343 : vector<16x16xf32>
    %cst_195 = arith.constant dense<0.000000e+00> : vector<16x16xf32>
    %345 = tpu.matmul %344, %333, %cst_195 {dimension_numbers = #tpu.dot_dimension_numbers<[1], [0], [0], [1], [0, 0, 1, 1], [], []>} : vector<16x16xf32>, vector<16x16xf32>, vector<16x16xf32> -> vector<16x16xf32>
    %346 = vector.extract_strided_slice %204 {offsets = [64, 16], sizes = [16, 16], strides = [1, 1]} : vector<96x32xf32> to vector<16x16xf32>
    %347 = vector.extract_strided_slice %205 {offsets = [64, 16], sizes = [16, 16], strides = [1, 1]} : vector<96x32xf32> to vector<16x16xf32>
    %348 = vector.extract_strided_slice %206 {offsets = [64, 16], sizes = [16, 16], strides = [1, 1]} : vector<96x32xf32> to vector<16x16xf32>
    %cst_196 = arith.constant dense<0.000000e+00> : vector<16x16xf32>
    %349 = tpu.matmul %346, %347, %cst_196 {dimension_numbers = #tpu.dot_dimension_numbers<[1], [1], [0], [0], [0, 0, 1, 0], [], []>} : vector<16x16xf32>, vector<16x16xf32>, vector<16x16xf32> -> vector<16x16xf32>
    %cst_197 = arith.constant dense<0xFF800000> : vector<16xf32>
    %350 = vector.multi_reduction <maximumf>, %349, %cst_197 [1] : vector<16x16xf32> to vector<16xf32>
    %351 = vector.shape_cast %350 : vector<16xf32> to vector<16x1xf32>
    %352 = vector.broadcast %351 : vector<16x1xf32> to vector<16x16xf32>
    %353 = arith.subf %349, %352 : vector<16x16xf32>
    %354 = math.exp %353 : vector<16x16xf32>
    %cst_198 = arith.constant dense<0.000000e+00> : vector<16xf32>
    %355 = vector.multi_reduction <add>, %354, %cst_198 [1] : vector<16x16xf32> to vector<16xf32>
    %356 = vector.shape_cast %355 : vector<16xf32> to vector<16x1xf32>
    %357 = tpu.reciprocal %356 {approx = true} : vector<16x1xf32> -> vector<16x1xf32>
    %358 = vector.broadcast %357 : vector<16x1xf32> to vector<16x16xf32>
    %359 = arith.mulf %354, %358 : vector<16x16xf32>
    %cst_199 = arith.constant dense<0.000000e+00> : vector<16x16xf32>
    %360 = tpu.matmul %359, %348, %cst_199 {dimension_numbers = #tpu.dot_dimension_numbers<[1], [0], [0], [1], [0, 0, 1, 1], [], []>} : vector<16x16xf32>, vector<16x16xf32>, vector<16x16xf32> -> vector<16x16xf32>
    %361 = tpu.concatenate %345, %360 in 1 : vector<16x16xf32>, vector<16x16xf32> -> vector<16x32xf32>
    %362 = vector.extract_strided_slice %204 {offsets = [80, 0], sizes = [16, 16], strides = [1, 1]} : vector<96x32xf32> to vector<16x16xf32>
    %363 = vector.extract_strided_slice %205 {offsets = [80, 0], sizes = [16, 16], strides = [1, 1]} : vector<96x32xf32> to vector<16x16xf32>
    %364 = vector.extract_strided_slice %206 {offsets = [80, 0], sizes = [16, 16], strides = [1, 1]} : vector<96x32xf32> to vector<16x16xf32>
    %cst_200 = arith.constant dense<0.000000e+00> : vector<16x16xf32>
    %365 = tpu.matmul %362, %363, %cst_200 {dimension_numbers = #tpu.dot_dimension_numbers<[1], [1], [0], [0], [0, 0, 1, 0], [], []>} : vector<16x16xf32>, vector<16x16xf32>, vector<16x16xf32> -> vector<16x16xf32>
    %cst_201 = arith.constant dense<0xFF800000> : vector<16xf32>
    %366 = vector.multi_reduction <maximumf>, %365, %cst_201 [1] : vector<16x16xf32> to vector<16xf32>
    %367 = vector.shape_cast %366 : vector<16xf32> to vector<16x1xf32>
    %368 = vector.broadcast %367 : vector<16x1xf32> to vector<16x16xf32>
    %369 = arith.subf %365, %368 : vector<16x16xf32>
    %370 = math.exp %369 : vector<16x16xf32>
    %cst_202 = arith.constant dense<0.000000e+00> : vector<16xf32>
    %371 = vector.multi_reduction <add>, %370, %cst_202 [1] : vector<16x16xf32> to vector<16xf32>
    %372 = vector.shape_cast %371 : vector<16xf32> to vector<16x1xf32>
    %373 = tpu.reciprocal %372 {approx = true} : vector<16x1xf32> -> vector<16x1xf32>
    %374 = vector.broadcast %373 : vector<16x1xf32> to vector<16x16xf32>
    %375 = arith.mulf %370, %374 : vector<16x16xf32>
    %cst_203 = arith.constant dense<0.000000e+00> : vector<16x16xf32>
    %376 = tpu.matmul %375, %364, %cst_203 {dimension_numbers = #tpu.dot_dimension_numbers<[1], [0], [0], [1], [0, 0, 1, 1], [], []>} : vector<16x16xf32>, vector<16x16xf32>, vector<16x16xf32> -> vector<16x16xf32>
    %377 = vector.extract_strided_slice %204 {offsets = [80, 16], sizes = [16, 16], strides = [1, 1]} : vector<96x32xf32> to vector<16x16xf32>
    %378 = vector.extract_strided_slice %205 {offsets = [80, 16], sizes = [16, 16], strides = [1, 1]} : vector<96x32xf32> to vector<16x16xf32>
    %379 = vector.extract_strided_slice %206 {offsets = [80, 16], sizes = [16, 16], strides = [1, 1]} : vector<96x32xf32> to vector<16x16xf32>
    %cst_204 = arith.constant dense<0.000000e+00> : vector<16x16xf32>
    %380 = tpu.matmul %377, %378, %cst_204 {dimension_numbers = #tpu.dot_dimension_numbers<[1], [1], [0], [0], [0, 0, 1, 0], [], []>} : vector<16x16xf32>, vector<16x16xf32>, vector<16x16xf32> -> vector<16x16xf32>
    %cst_205 = arith.constant dense<0xFF800000> : vector<16xf32>
    %381 = vector.multi_reduction <maximumf>, %380, %cst_205 [1] : vector<16x16xf32> to vector<16xf32>
    %382 = vector.shape_cast %381 : vector<16xf32> to vector<16x1xf32>
    %383 = vector.broadcast %382 : vector<16x1xf32> to vector<16x16xf32>
    %384 = arith.subf %380, %383 : vector<16x16xf32>
    %385 = math.exp %384 : vector<16x16xf32>
    %cst_206 = arith.constant dense<0.000000e+00> : vector<16xf32>
    %386 = vector.multi_reduction <add>, %385, %cst_206 [1] : vector<16x16xf32> to vector<16xf32>
    %387 = vector.shape_cast %386 : vector<16xf32> to vector<16x1xf32>
    %388 = tpu.reciprocal %387 {approx = true} : vector<16x1xf32> -> vector<16x1xf32>
    %389 = vector.broadcast %388 : vector<16x1xf32> to vector<16x16xf32>
    %390 = arith.mulf %385, %389 : vector<16x16xf32>
    %cst_207 = arith.constant dense<0.000000e+00> : vector<16x16xf32>
    %391 = tpu.matmul %390, %379, %cst_207 {dimension_numbers = #tpu.dot_dimension_numbers<[1], [0], [0], [1], [0, 0, 1, 1], [], []>} : vector<16x16xf32>, vector<16x16xf32>, vector<16x16xf32> -> vector<16x16xf32>
    %392 = tpu.concatenate %376, %391 in 1 : vector<16x16xf32>, vector<16x16xf32> -> vector<16x32xf32>
    %393 = tpu.concatenate %237, %268, %299, %330, %361, %392 in 0 : vector<16x32xf32>, vector<16x32xf32>, vector<16x32xf32>, vector<16x32xf32>, vector<16x32xf32>, vector<16x32xf32> -> vector<96x32xf32>
    %394 = arith.truncf %393 : vector<96x32xf32> to vector<96x32xbf16>
    %c0_208 = arith.constant 0 : index
    %c0_209 = arith.constant 0 : index
    %395 = vector.load %arg8[%c0_208, %c0_209] : memref<32x32xbf16, #tpu.memory_space<vmem>>, vector<32x32xbf16>
    %cst_210 = arith.constant dense<0.000000e+00> : vector<96x32xf32>
    %396 = tpu.matmul %394, %395, %cst_210 {dimension_numbers = #tpu.dot_dimension_numbers<[1], [0], [0], [1], [0, 0, 1, 1], [], []>} : vector<96x32xbf16>, vector<32x32xbf16>, vector<96x32xf32> -> vector<96x32xf32>
    %c0_211 = arith.constant 0 : index
    %c0_212 = arith.constant 0 : index
    %397 = vector.load %arg9[%c0_211, %c0_212] : memref<1x32xf32, #tpu.memory_space<vmem>>, vector<1x32xf32>
    %398 = vector.broadcast %397 : vector<1x32xf32> to vector<96x32xf32>
    %399 = arith.addf %396, %398 : vector<96x32xf32>
    %400 = arith.mulf %195, %399 : vector<96x32xf32>
    %c0_213 = arith.constant 0 : index
    %c0_214 = arith.constant 0 : index
    %401 = vector.load %arg10[%c0_213, %c0_214] : memref<96x96xf32, #tpu.memory_space<vmem>>, vector<96x96xf32>
    %cst_215 = arith.constant dense<0.000000e+00> : vector<96x32xf32>
    %402 = tpu.matmul %401, %400, %cst_215 {dimension_numbers = #tpu.dot_dimension_numbers<[1], [0], [0], [1], [0, 0, 1, 1], [], []>} : vector<96x96xf32>, vector<96x32xf32>, vector<96x32xf32> -> vector<96x32xf32>
    %403 = arith.truncf %402 : vector<96x32xf32> to vector<96x32xbf16>
    %c0_216 = arith.constant 0 : index
    %c0_217 = arith.constant 0 : index
    %404 = vector.load %arg11[%c0_216, %c0_217] : memref<32x96xbf16, #tpu.memory_space<vmem>>, vector<32x96xbf16>
    %cst_218 = arith.constant dense<0.000000e+00> : vector<96x96xf32>
    %405 = tpu.matmul %403, %404, %cst_218 {dimension_numbers = #tpu.dot_dimension_numbers<[1], [0], [0], [1], [0, 0, 1, 1], [], []>} : vector<96x32xbf16>, vector<32x96xbf16>, vector<96x96xf32> -> vector<96x96xf32>
    %c0_219 = arith.constant 0 : index
    %c0_220 = arith.constant 0 : index
    %406 = vector.load %arg12[%c0_219, %c0_220] : memref<1x96xf32, #tpu.memory_space<vmem>>, vector<1x96xf32>
    %407 = vector.broadcast %406 : vector<1x96xf32> to vector<96x96xf32>
    %408 = arith.addf %405, %407 : vector<96x96xf32>
    %c0_221 = arith.constant 0 : index
    %c0_222 = arith.constant 0 : index
    %409 = vector.load %arg13[%c0_221, %c0_222] : memref<32x96xbf16, #tpu.memory_space<vmem>>, vector<32x96xbf16>
    %c0_223 = arith.constant 0 : index
    %c0_224 = arith.constant 0 : index
    %410 = vector.load %arg14[%c0_223, %c0_224] : memref<1x96xf32, #tpu.memory_space<vmem>>, vector<1x96xf32>
    %c0_225 = arith.constant 0 : index
    %c0_226 = arith.constant 0 : index
    %411 = vector.load %arg15[%c0_225, %c0_226] : memref<1x32xf32, #tpu.memory_space<vmem>>, vector<1x32xf32>
    %c0_227 = arith.constant 0 : index
    %c0_228 = arith.constant 0 : index
    %412 = vector.load %arg16[%c0_227, %c0_228] : memref<1x1xf32, #tpu.memory_space<vmem>>, vector<1x1xf32>
    %cst_229 = arith.constant 0.000000e+00 : f32
    %413 = vector.broadcast %cst_229 : f32 to vector<6x32xf32>
    %414 = vector.extract_strided_slice %408 {offsets = [0, 0], sizes = [6, 96], strides = [1, 1]} : vector<96x96xf32> to vector<6x96xf32>
    %415 = arith.truncf %413 : vector<6x32xf32> to vector<6x32xbf16>
    %cst_230 = arith.constant dense<0.000000e+00> : vector<6x96xf32>
    %416 = tpu.matmul %415, %409, %cst_230 {dimension_numbers = #tpu.dot_dimension_numbers<[1], [0], [0], [1], [0, 0, 1, 1], [], []>} : vector<6x32xbf16>, vector<32x96xbf16>, vector<6x96xf32> -> vector<6x96xf32>
    %417 = vector.broadcast %410 : vector<1x96xf32> to vector<6x96xf32>
    %418 = arith.addf %416, %417 : vector<6x96xf32>
    %419 = vector.extract_strided_slice %414 {offsets = [0, 0], sizes = [6, 32], strides = [1, 1]} : vector<6x96xf32> to vector<6x32xf32>
    %420 = vector.extract_strided_slice %418 {offsets = [0, 0], sizes = [6, 32], strides = [1, 1]} : vector<6x96xf32> to vector<6x32xf32>
    %421 = arith.addf %419, %420 : vector<6x32xf32>
    %422 = arith.negf %421 : vector<6x32xf32>
    %423 = math.exp %422 : vector<6x32xf32>
    %cst_231 = arith.constant 1.000000e+00 : f32
    %424 = vector.broadcast %cst_231 : f32 to vector<6x32xf32>
    %425 = arith.addf %424, %423 : vector<6x32xf32>
    %426 = arith.divf %424, %425 : vector<6x32xf32>
    %427 = vector.extract_strided_slice %414 {offsets = [0, 32], sizes = [6, 32], strides = [1, 1]} : vector<6x96xf32> to vector<6x32xf32>
    %428 = vector.extract_strided_slice %418 {offsets = [0, 32], sizes = [6, 32], strides = [1, 1]} : vector<6x96xf32> to vector<6x32xf32>
    %429 = arith.addf %427, %428 : vector<6x32xf32>
    %430 = arith.negf %429 : vector<6x32xf32>
    %431 = math.exp %430 : vector<6x32xf32>
    %cst_232 = arith.constant 1.000000e+00 : f32
    %432 = vector.broadcast %cst_232 : f32 to vector<6x32xf32>
    %433 = arith.addf %432, %431 : vector<6x32xf32>
    %434 = arith.divf %432, %433 : vector<6x32xf32>
    %435 = vector.extract_strided_slice %414 {offsets = [0, 64], sizes = [6, 32], strides = [1, 1]} : vector<6x96xf32> to vector<6x32xf32>
    %436 = vector.extract_strided_slice %418 {offsets = [0, 64], sizes = [6, 32], strides = [1, 1]} : vector<6x96xf32> to vector<6x32xf32>
    %437 = arith.mulf %426, %436 : vector<6x32xf32>
    %438 = arith.addf %435, %437 : vector<6x32xf32>
    %439 = math.tanh %438 : vector<6x32xf32>
    %cst_233 = arith.constant 1.000000e+00 : f32
    %440 = vector.broadcast %cst_233 : f32 to vector<6x32xf32>
    %441 = arith.subf %440, %434 : vector<6x32xf32>
    %442 = arith.mulf %441, %439 : vector<6x32xf32>
    %443 = arith.mulf %434, %413 : vector<6x32xf32>
    %444 = arith.addf %442, %443 : vector<6x32xf32>
    %445 = vector.extract_strided_slice %408 {offsets = [6, 0], sizes = [6, 96], strides = [1, 1]} : vector<96x96xf32> to vector<6x96xf32>
    %446 = arith.truncf %444 : vector<6x32xf32> to vector<6x32xbf16>
    %cst_234 = arith.constant dense<0.000000e+00> : vector<6x96xf32>
    %447 = tpu.matmul %446, %409, %cst_234 {dimension_numbers = #tpu.dot_dimension_numbers<[1], [0], [0], [1], [0, 0, 1, 1], [], []>} : vector<6x32xbf16>, vector<32x96xbf16>, vector<6x96xf32> -> vector<6x96xf32>
    %448 = vector.broadcast %410 : vector<1x96xf32> to vector<6x96xf32>
    %449 = arith.addf %447, %448 : vector<6x96xf32>
    %450 = vector.extract_strided_slice %445 {offsets = [0, 0], sizes = [6, 32], strides = [1, 1]} : vector<6x96xf32> to vector<6x32xf32>
    %451 = vector.extract_strided_slice %449 {offsets = [0, 0], sizes = [6, 32], strides = [1, 1]} : vector<6x96xf32> to vector<6x32xf32>
    %452 = arith.addf %450, %451 : vector<6x32xf32>
    %453 = arith.negf %452 : vector<6x32xf32>
    %454 = math.exp %453 : vector<6x32xf32>
    %cst_235 = arith.constant 1.000000e+00 : f32
    %455 = vector.broadcast %cst_235 : f32 to vector<6x32xf32>
    %456 = arith.addf %455, %454 : vector<6x32xf32>
    %457 = arith.divf %455, %456 : vector<6x32xf32>
    %458 = vector.extract_strided_slice %445 {offsets = [0, 32], sizes = [6, 32], strides = [1, 1]} : vector<6x96xf32> to vector<6x32xf32>
    %459 = vector.extract_strided_slice %449 {offsets = [0, 32], sizes = [6, 32], strides = [1, 1]} : vector<6x96xf32> to vector<6x32xf32>
    %460 = arith.addf %458, %459 : vector<6x32xf32>
    %461 = arith.negf %460 : vector<6x32xf32>
    %462 = math.exp %461 : vector<6x32xf32>
    %cst_236 = arith.constant 1.000000e+00 : f32
    %463 = vector.broadcast %cst_236 : f32 to vector<6x32xf32>
    %464 = arith.addf %463, %462 : vector<6x32xf32>
    %465 = arith.divf %463, %464 : vector<6x32xf32>
    %466 = vector.extract_strided_slice %445 {offsets = [0, 64], sizes = [6, 32], strides = [1, 1]} : vector<6x96xf32> to vector<6x32xf32>
    %467 = vector.extract_strided_slice %449 {offsets = [0, 64], sizes = [6, 32], strides = [1, 1]} : vector<6x96xf32> to vector<6x32xf32>
    %468 = arith.mulf %457, %467 : vector<6x32xf32>
    %469 = arith.addf %466, %468 : vector<6x32xf32>
    %470 = math.tanh %469 : vector<6x32xf32>
    %cst_237 = arith.constant 1.000000e+00 : f32
    %471 = vector.broadcast %cst_237 : f32 to vector<6x32xf32>
    %472 = arith.subf %471, %465 : vector<6x32xf32>
    %473 = arith.mulf %472, %470 : vector<6x32xf32>
    %474 = arith.mulf %465, %444 : vector<6x32xf32>
    %475 = arith.addf %473, %474 : vector<6x32xf32>
    %476 = vector.extract_strided_slice %408 {offsets = [12, 0], sizes = [6, 96], strides = [1, 1]} : vector<96x96xf32> to vector<6x96xf32>
    %477 = arith.truncf %475 : vector<6x32xf32> to vector<6x32xbf16>
    %cst_238 = arith.constant dense<0.000000e+00> : vector<6x96xf32>
    %478 = tpu.matmul %477, %409, %cst_238 {dimension_numbers = #tpu.dot_dimension_numbers<[1], [0], [0], [1], [0, 0, 1, 1], [], []>} : vector<6x32xbf16>, vector<32x96xbf16>, vector<6x96xf32> -> vector<6x96xf32>
    %479 = vector.broadcast %410 : vector<1x96xf32> to vector<6x96xf32>
    %480 = arith.addf %478, %479 : vector<6x96xf32>
    %481 = vector.extract_strided_slice %476 {offsets = [0, 0], sizes = [6, 32], strides = [1, 1]} : vector<6x96xf32> to vector<6x32xf32>
    %482 = vector.extract_strided_slice %480 {offsets = [0, 0], sizes = [6, 32], strides = [1, 1]} : vector<6x96xf32> to vector<6x32xf32>
    %483 = arith.addf %481, %482 : vector<6x32xf32>
    %484 = arith.negf %483 : vector<6x32xf32>
    %485 = math.exp %484 : vector<6x32xf32>
    %cst_239 = arith.constant 1.000000e+00 : f32
    %486 = vector.broadcast %cst_239 : f32 to vector<6x32xf32>
    %487 = arith.addf %486, %485 : vector<6x32xf32>
    %488 = arith.divf %486, %487 : vector<6x32xf32>
    %489 = vector.extract_strided_slice %476 {offsets = [0, 32], sizes = [6, 32], strides = [1, 1]} : vector<6x96xf32> to vector<6x32xf32>
    %490 = vector.extract_strided_slice %480 {offsets = [0, 32], sizes = [6, 32], strides = [1, 1]} : vector<6x96xf32> to vector<6x32xf32>
    %491 = arith.addf %489, %490 : vector<6x32xf32>
    %492 = arith.negf %491 : vector<6x32xf32>
    %493 = math.exp %492 : vector<6x32xf32>
    %cst_240 = arith.constant 1.000000e+00 : f32
    %494 = vector.broadcast %cst_240 : f32 to vector<6x32xf32>
    %495 = arith.addf %494, %493 : vector<6x32xf32>
    %496 = arith.divf %494, %495 : vector<6x32xf32>
    %497 = vector.extract_strided_slice %476 {offsets = [0, 64], sizes = [6, 32], strides = [1, 1]} : vector<6x96xf32> to vector<6x32xf32>
    %498 = vector.extract_strided_slice %480 {offsets = [0, 64], sizes = [6, 32], strides = [1, 1]} : vector<6x96xf32> to vector<6x32xf32>
    %499 = arith.mulf %488, %498 : vector<6x32xf32>
    %500 = arith.addf %497, %499 : vector<6x32xf32>
    %501 = math.tanh %500 : vector<6x32xf32>
    %cst_241 = arith.constant 1.000000e+00 : f32
    %502 = vector.broadcast %cst_241 : f32 to vector<6x32xf32>
    %503 = arith.subf %502, %496 : vector<6x32xf32>
    %504 = arith.mulf %503, %501 : vector<6x32xf32>
    %505 = arith.mulf %496, %475 : vector<6x32xf32>
    %506 = arith.addf %504, %505 : vector<6x32xf32>
    %507 = vector.extract_strided_slice %408 {offsets = [18, 0], sizes = [6, 96], strides = [1, 1]} : vector<96x96xf32> to vector<6x96xf32>
    %508 = arith.truncf %506 : vector<6x32xf32> to vector<6x32xbf16>
    %cst_242 = arith.constant dense<0.000000e+00> : vector<6x96xf32>
    %509 = tpu.matmul %508, %409, %cst_242 {dimension_numbers = #tpu.dot_dimension_numbers<[1], [0], [0], [1], [0, 0, 1, 1], [], []>} : vector<6x32xbf16>, vector<32x96xbf16>, vector<6x96xf32> -> vector<6x96xf32>
    %510 = vector.broadcast %410 : vector<1x96xf32> to vector<6x96xf32>
    %511 = arith.addf %509, %510 : vector<6x96xf32>
    %512 = vector.extract_strided_slice %507 {offsets = [0, 0], sizes = [6, 32], strides = [1, 1]} : vector<6x96xf32> to vector<6x32xf32>
    %513 = vector.extract_strided_slice %511 {offsets = [0, 0], sizes = [6, 32], strides = [1, 1]} : vector<6x96xf32> to vector<6x32xf32>
    %514 = arith.addf %512, %513 : vector<6x32xf32>
    %515 = arith.negf %514 : vector<6x32xf32>
    %516 = math.exp %515 : vector<6x32xf32>
    %cst_243 = arith.constant 1.000000e+00 : f32
    %517 = vector.broadcast %cst_243 : f32 to vector<6x32xf32>
    %518 = arith.addf %517, %516 : vector<6x32xf32>
    %519 = arith.divf %517, %518 : vector<6x32xf32>
    %520 = vector.extract_strided_slice %507 {offsets = [0, 32], sizes = [6, 32], strides = [1, 1]} : vector<6x96xf32> to vector<6x32xf32>
    %521 = vector.extract_strided_slice %511 {offsets = [0, 32], sizes = [6, 32], strides = [1, 1]} : vector<6x96xf32> to vector<6x32xf32>
    %522 = arith.addf %520, %521 : vector<6x32xf32>
    %523 = arith.negf %522 : vector<6x32xf32>
    %524 = math.exp %523 : vector<6x32xf32>
    %cst_244 = arith.constant 1.000000e+00 : f32
    %525 = vector.broadcast %cst_244 : f32 to vector<6x32xf32>
    %526 = arith.addf %525, %524 : vector<6x32xf32>
    %527 = arith.divf %525, %526 : vector<6x32xf32>
    %528 = vector.extract_strided_slice %507 {offsets = [0, 64], sizes = [6, 32], strides = [1, 1]} : vector<6x96xf32> to vector<6x32xf32>
    %529 = vector.extract_strided_slice %511 {offsets = [0, 64], sizes = [6, 32], strides = [1, 1]} : vector<6x96xf32> to vector<6x32xf32>
    %530 = arith.mulf %519, %529 : vector<6x32xf32>
    %531 = arith.addf %528, %530 : vector<6x32xf32>
    %532 = math.tanh %531 : vector<6x32xf32>
    %cst_245 = arith.constant 1.000000e+00 : f32
    %533 = vector.broadcast %cst_245 : f32 to vector<6x32xf32>
    %534 = arith.subf %533, %527 : vector<6x32xf32>
    %535 = arith.mulf %534, %532 : vector<6x32xf32>
    %536 = arith.mulf %527, %506 : vector<6x32xf32>
    %537 = arith.addf %535, %536 : vector<6x32xf32>
    %538 = vector.extract_strided_slice %408 {offsets = [24, 0], sizes = [6, 96], strides = [1, 1]} : vector<96x96xf32> to vector<6x96xf32>
    %539 = arith.truncf %537 : vector<6x32xf32> to vector<6x32xbf16>
    %cst_246 = arith.constant dense<0.000000e+00> : vector<6x96xf32>
    %540 = tpu.matmul %539, %409, %cst_246 {dimension_numbers = #tpu.dot_dimension_numbers<[1], [0], [0], [1], [0, 0, 1, 1], [], []>} : vector<6x32xbf16>, vector<32x96xbf16>, vector<6x96xf32> -> vector<6x96xf32>
    %541 = vector.broadcast %410 : vector<1x96xf32> to vector<6x96xf32>
    %542 = arith.addf %540, %541 : vector<6x96xf32>
    %543 = vector.extract_strided_slice %538 {offsets = [0, 0], sizes = [6, 32], strides = [1, 1]} : vector<6x96xf32> to vector<6x32xf32>
    %544 = vector.extract_strided_slice %542 {offsets = [0, 0], sizes = [6, 32], strides = [1, 1]} : vector<6x96xf32> to vector<6x32xf32>
    %545 = arith.addf %543, %544 : vector<6x32xf32>
    %546 = arith.negf %545 : vector<6x32xf32>
    %547 = math.exp %546 : vector<6x32xf32>
    %cst_247 = arith.constant 1.000000e+00 : f32
    %548 = vector.broadcast %cst_247 : f32 to vector<6x32xf32>
    %549 = arith.addf %548, %547 : vector<6x32xf32>
    %550 = arith.divf %548, %549 : vector<6x32xf32>
    %551 = vector.extract_strided_slice %538 {offsets = [0, 32], sizes = [6, 32], strides = [1, 1]} : vector<6x96xf32> to vector<6x32xf32>
    %552 = vector.extract_strided_slice %542 {offsets = [0, 32], sizes = [6, 32], strides = [1, 1]} : vector<6x96xf32> to vector<6x32xf32>
    %553 = arith.addf %551, %552 : vector<6x32xf32>
    %554 = arith.negf %553 : vector<6x32xf32>
    %555 = math.exp %554 : vector<6x32xf32>
    %cst_248 = arith.constant 1.000000e+00 : f32
    %556 = vector.broadcast %cst_248 : f32 to vector<6x32xf32>
    %557 = arith.addf %556, %555 : vector<6x32xf32>
    %558 = arith.divf %556, %557 : vector<6x32xf32>
    %559 = vector.extract_strided_slice %538 {offsets = [0, 64], sizes = [6, 32], strides = [1, 1]} : vector<6x96xf32> to vector<6x32xf32>
    %560 = vector.extract_strided_slice %542 {offsets = [0, 64], sizes = [6, 32], strides = [1, 1]} : vector<6x96xf32> to vector<6x32xf32>
    %561 = arith.mulf %550, %560 : vector<6x32xf32>
    %562 = arith.addf %559, %561 : vector<6x32xf32>
    %563 = math.tanh %562 : vector<6x32xf32>
    %cst_249 = arith.constant 1.000000e+00 : f32
    %564 = vector.broadcast %cst_249 : f32 to vector<6x32xf32>
    %565 = arith.subf %564, %558 : vector<6x32xf32>
    %566 = arith.mulf %565, %563 : vector<6x32xf32>
    %567 = arith.mulf %558, %537 : vector<6x32xf32>
    %568 = arith.addf %566, %567 : vector<6x32xf32>
    %569 = vector.extract_strided_slice %408 {offsets = [30, 0], sizes = [6, 96], strides = [1, 1]} : vector<96x96xf32> to vector<6x96xf32>
    %570 = arith.truncf %568 : vector<6x32xf32> to vector<6x32xbf16>
    %cst_250 = arith.constant dense<0.000000e+00> : vector<6x96xf32>
    %571 = tpu.matmul %570, %409, %cst_250 {dimension_numbers = #tpu.dot_dimension_numbers<[1], [0], [0], [1], [0, 0, 1, 1], [], []>} : vector<6x32xbf16>, vector<32x96xbf16>, vector<6x96xf32> -> vector<6x96xf32>
    %572 = vector.broadcast %410 : vector<1x96xf32> to vector<6x96xf32>
    %573 = arith.addf %571, %572 : vector<6x96xf32>
    %574 = vector.extract_strided_slice %569 {offsets = [0, 0], sizes = [6, 32], strides = [1, 1]} : vector<6x96xf32> to vector<6x32xf32>
    %575 = vector.extract_strided_slice %573 {offsets = [0, 0], sizes = [6, 32], strides = [1, 1]} : vector<6x96xf32> to vector<6x32xf32>
    %576 = arith.addf %574, %575 : vector<6x32xf32>
    %577 = arith.negf %576 : vector<6x32xf32>
    %578 = math.exp %577 : vector<6x32xf32>
    %cst_251 = arith.constant 1.000000e+00 : f32
    %579 = vector.broadcast %cst_251 : f32 to vector<6x32xf32>
    %580 = arith.addf %579, %578 : vector<6x32xf32>
    %581 = arith.divf %579, %580 : vector<6x32xf32>
    %582 = vector.extract_strided_slice %569 {offsets = [0, 32], sizes = [6, 32], strides = [1, 1]} : vector<6x96xf32> to vector<6x32xf32>
    %583 = vector.extract_strided_slice %573 {offsets = [0, 32], sizes = [6, 32], strides = [1, 1]} : vector<6x96xf32> to vector<6x32xf32>
    %584 = arith.addf %582, %583 : vector<6x32xf32>
    %585 = arith.negf %584 : vector<6x32xf32>
    %586 = math.exp %585 : vector<6x32xf32>
    %cst_252 = arith.constant 1.000000e+00 : f32
    %587 = vector.broadcast %cst_252 : f32 to vector<6x32xf32>
    %588 = arith.addf %587, %586 : vector<6x32xf32>
    %589 = arith.divf %587, %588 : vector<6x32xf32>
    %590 = vector.extract_strided_slice %569 {offsets = [0, 64], sizes = [6, 32], strides = [1, 1]} : vector<6x96xf32> to vector<6x32xf32>
    %591 = vector.extract_strided_slice %573 {offsets = [0, 64], sizes = [6, 32], strides = [1, 1]} : vector<6x96xf32> to vector<6x32xf32>
    %592 = arith.mulf %581, %591 : vector<6x32xf32>
    %593 = arith.addf %590, %592 : vector<6x32xf32>
    %594 = math.tanh %593 : vector<6x32xf32>
    %cst_253 = arith.constant 1.000000e+00 : f32
    %595 = vector.broadcast %cst_253 : f32 to vector<6x32xf32>
    %596 = arith.subf %595, %589 : vector<6x32xf32>
    %597 = arith.mulf %596, %594 : vector<6x32xf32>
    %598 = arith.mulf %589, %568 : vector<6x32xf32>
    %599 = arith.addf %597, %598 : vector<6x32xf32>
    %600 = vector.extract_strided_slice %408 {offsets = [36, 0], sizes = [6, 96], strides = [1, 1]} : vector<96x96xf32> to vector<6x96xf32>
    %601 = arith.truncf %599 : vector<6x32xf32> to vector<6x32xbf16>
    %cst_254 = arith.constant dense<0.000000e+00> : vector<6x96xf32>
    %602 = tpu.matmul %601, %409, %cst_254 {dimension_numbers = #tpu.dot_dimension_numbers<[1], [0], [0], [1], [0, 0, 1, 1], [], []>} : vector<6x32xbf16>, vector<32x96xbf16>, vector<6x96xf32> -> vector<6x96xf32>
    %603 = vector.broadcast %410 : vector<1x96xf32> to vector<6x96xf32>
    %604 = arith.addf %602, %603 : vector<6x96xf32>
    %605 = vector.extract_strided_slice %600 {offsets = [0, 0], sizes = [6, 32], strides = [1, 1]} : vector<6x96xf32> to vector<6x32xf32>
    %606 = vector.extract_strided_slice %604 {offsets = [0, 0], sizes = [6, 32], strides = [1, 1]} : vector<6x96xf32> to vector<6x32xf32>
    %607 = arith.addf %605, %606 : vector<6x32xf32>
    %608 = arith.negf %607 : vector<6x32xf32>
    %609 = math.exp %608 : vector<6x32xf32>
    %cst_255 = arith.constant 1.000000e+00 : f32
    %610 = vector.broadcast %cst_255 : f32 to vector<6x32xf32>
    %611 = arith.addf %610, %609 : vector<6x32xf32>
    %612 = arith.divf %610, %611 : vector<6x32xf32>
    %613 = vector.extract_strided_slice %600 {offsets = [0, 32], sizes = [6, 32], strides = [1, 1]} : vector<6x96xf32> to vector<6x32xf32>
    %614 = vector.extract_strided_slice %604 {offsets = [0, 32], sizes = [6, 32], strides = [1, 1]} : vector<6x96xf32> to vector<6x32xf32>
    %615 = arith.addf %613, %614 : vector<6x32xf32>
    %616 = arith.negf %615 : vector<6x32xf32>
    %617 = math.exp %616 : vector<6x32xf32>
    %cst_256 = arith.constant 1.000000e+00 : f32
    %618 = vector.broadcast %cst_256 : f32 to vector<6x32xf32>
    %619 = arith.addf %618, %617 : vector<6x32xf32>
    %620 = arith.divf %618, %619 : vector<6x32xf32>
    %621 = vector.extract_strided_slice %600 {offsets = [0, 64], sizes = [6, 32], strides = [1, 1]} : vector<6x96xf32> to vector<6x32xf32>
    %622 = vector.extract_strided_slice %604 {offsets = [0, 64], sizes = [6, 32], strides = [1, 1]} : vector<6x96xf32> to vector<6x32xf32>
    %623 = arith.mulf %612, %622 : vector<6x32xf32>
    %624 = arith.addf %621, %623 : vector<6x32xf32>
    %625 = math.tanh %624 : vector<6x32xf32>
    %cst_257 = arith.constant 1.000000e+00 : f32
    %626 = vector.broadcast %cst_257 : f32 to vector<6x32xf32>
    %627 = arith.subf %626, %620 : vector<6x32xf32>
    %628 = arith.mulf %627, %625 : vector<6x32xf32>
    %629 = arith.mulf %620, %599 : vector<6x32xf32>
    %630 = arith.addf %628, %629 : vector<6x32xf32>
    %631 = vector.extract_strided_slice %408 {offsets = [42, 0], sizes = [6, 96], strides = [1, 1]} : vector<96x96xf32> to vector<6x96xf32>
    %632 = arith.truncf %630 : vector<6x32xf32> to vector<6x32xbf16>
    %cst_258 = arith.constant dense<0.000000e+00> : vector<6x96xf32>
    %633 = tpu.matmul %632, %409, %cst_258 {dimension_numbers = #tpu.dot_dimension_numbers<[1], [0], [0], [1], [0, 0, 1, 1], [], []>} : vector<6x32xbf16>, vector<32x96xbf16>, vector<6x96xf32> -> vector<6x96xf32>
    %634 = vector.broadcast %410 : vector<1x96xf32> to vector<6x96xf32>
    %635 = arith.addf %633, %634 : vector<6x96xf32>
    %636 = vector.extract_strided_slice %631 {offsets = [0, 0], sizes = [6, 32], strides = [1, 1]} : vector<6x96xf32> to vector<6x32xf32>
    %637 = vector.extract_strided_slice %635 {offsets = [0, 0], sizes = [6, 32], strides = [1, 1]} : vector<6x96xf32> to vector<6x32xf32>
    %638 = arith.addf %636, %637 : vector<6x32xf32>
    %639 = arith.negf %638 : vector<6x32xf32>
    %640 = math.exp %639 : vector<6x32xf32>
    %cst_259 = arith.constant 1.000000e+00 : f32
    %641 = vector.broadcast %cst_259 : f32 to vector<6x32xf32>
    %642 = arith.addf %641, %640 : vector<6x32xf32>
    %643 = arith.divf %641, %642 : vector<6x32xf32>
    %644 = vector.extract_strided_slice %631 {offsets = [0, 32], sizes = [6, 32], strides = [1, 1]} : vector<6x96xf32> to vector<6x32xf32>
    %645 = vector.extract_strided_slice %635 {offsets = [0, 32], sizes = [6, 32], strides = [1, 1]} : vector<6x96xf32> to vector<6x32xf32>
    %646 = arith.addf %644, %645 : vector<6x32xf32>
    %647 = arith.negf %646 : vector<6x32xf32>
    %648 = math.exp %647 : vector<6x32xf32>
    %cst_260 = arith.constant 1.000000e+00 : f32
    %649 = vector.broadcast %cst_260 : f32 to vector<6x32xf32>
    %650 = arith.addf %649, %648 : vector<6x32xf32>
    %651 = arith.divf %649, %650 : vector<6x32xf32>
    %652 = vector.extract_strided_slice %631 {offsets = [0, 64], sizes = [6, 32], strides = [1, 1]} : vector<6x96xf32> to vector<6x32xf32>
    %653 = vector.extract_strided_slice %635 {offsets = [0, 64], sizes = [6, 32], strides = [1, 1]} : vector<6x96xf32> to vector<6x32xf32>
    %654 = arith.mulf %643, %653 : vector<6x32xf32>
    %655 = arith.addf %652, %654 : vector<6x32xf32>
    %656 = math.tanh %655 : vector<6x32xf32>
    %cst_261 = arith.constant 1.000000e+00 : f32
    %657 = vector.broadcast %cst_261 : f32 to vector<6x32xf32>
    %658 = arith.subf %657, %651 : vector<6x32xf32>
    %659 = arith.mulf %658, %656 : vector<6x32xf32>
    %660 = arith.mulf %651, %630 : vector<6x32xf32>
    %661 = arith.addf %659, %660 : vector<6x32xf32>
    %662 = vector.extract_strided_slice %408 {offsets = [48, 0], sizes = [6, 96], strides = [1, 1]} : vector<96x96xf32> to vector<6x96xf32>
    %663 = arith.truncf %661 : vector<6x32xf32> to vector<6x32xbf16>
    %cst_262 = arith.constant dense<0.000000e+00> : vector<6x96xf32>
    %664 = tpu.matmul %663, %409, %cst_262 {dimension_numbers = #tpu.dot_dimension_numbers<[1], [0], [0], [1], [0, 0, 1, 1], [], []>} : vector<6x32xbf16>, vector<32x96xbf16>, vector<6x96xf32> -> vector<6x96xf32>
    %665 = vector.broadcast %410 : vector<1x96xf32> to vector<6x96xf32>
    %666 = arith.addf %664, %665 : vector<6x96xf32>
    %667 = vector.extract_strided_slice %662 {offsets = [0, 0], sizes = [6, 32], strides = [1, 1]} : vector<6x96xf32> to vector<6x32xf32>
    %668 = vector.extract_strided_slice %666 {offsets = [0, 0], sizes = [6, 32], strides = [1, 1]} : vector<6x96xf32> to vector<6x32xf32>
    %669 = arith.addf %667, %668 : vector<6x32xf32>
    %670 = arith.negf %669 : vector<6x32xf32>
    %671 = math.exp %670 : vector<6x32xf32>
    %cst_263 = arith.constant 1.000000e+00 : f32
    %672 = vector.broadcast %cst_263 : f32 to vector<6x32xf32>
    %673 = arith.addf %672, %671 : vector<6x32xf32>
    %674 = arith.divf %672, %673 : vector<6x32xf32>
    %675 = vector.extract_strided_slice %662 {offsets = [0, 32], sizes = [6, 32], strides = [1, 1]} : vector<6x96xf32> to vector<6x32xf32>
    %676 = vector.extract_strided_slice %666 {offsets = [0, 32], sizes = [6, 32], strides = [1, 1]} : vector<6x96xf32> to vector<6x32xf32>
    %677 = arith.addf %675, %676 : vector<6x32xf32>
    %678 = arith.negf %677 : vector<6x32xf32>
    %679 = math.exp %678 : vector<6x32xf32>
    %cst_264 = arith.constant 1.000000e+00 : f32
    %680 = vector.broadcast %cst_264 : f32 to vector<6x32xf32>
    %681 = arith.addf %680, %679 : vector<6x32xf32>
    %682 = arith.divf %680, %681 : vector<6x32xf32>
    %683 = vector.extract_strided_slice %662 {offsets = [0, 64], sizes = [6, 32], strides = [1, 1]} : vector<6x96xf32> to vector<6x32xf32>
    %684 = vector.extract_strided_slice %666 {offsets = [0, 64], sizes = [6, 32], strides = [1, 1]} : vector<6x96xf32> to vector<6x32xf32>
    %685 = arith.mulf %674, %684 : vector<6x32xf32>
    %686 = arith.addf %683, %685 : vector<6x32xf32>
    %687 = math.tanh %686 : vector<6x32xf32>
    %cst_265 = arith.constant 1.000000e+00 : f32
    %688 = vector.broadcast %cst_265 : f32 to vector<6x32xf32>
    %689 = arith.subf %688, %682 : vector<6x32xf32>
    %690 = arith.mulf %689, %687 : vector<6x32xf32>
    %691 = arith.mulf %682, %661 : vector<6x32xf32>
    %692 = arith.addf %690, %691 : vector<6x32xf32>
    %693 = vector.broadcast %411 : vector<1x32xf32> to vector<6x32xf32>
    %694 = arith.mulf %692, %693 : vector<6x32xf32>
    %cst_266 = arith.constant dense<0.000000e+00> : vector<6xf32>
    %695 = vector.multi_reduction <add>, %694, %cst_266 [1] : vector<6x32xf32> to vector<6xf32>
    %696 = vector.shape_cast %695 : vector<6xf32> to vector<6x1xf32>
    %697 = vector.broadcast %412 : vector<1x1xf32> to vector<6x1xf32>
    %698 = arith.addf %696, %697 : vector<6x1xf32>
    %699 = vector.extract_strided_slice %408 {offsets = [54, 0], sizes = [6, 96], strides = [1, 1]} : vector<96x96xf32> to vector<6x96xf32>
    %700 = arith.truncf %692 : vector<6x32xf32> to vector<6x32xbf16>
    %cst_267 = arith.constant dense<0.000000e+00> : vector<6x96xf32>
    %701 = tpu.matmul %700, %409, %cst_267 {dimension_numbers = #tpu.dot_dimension_numbers<[1], [0], [0], [1], [0, 0, 1, 1], [], []>} : vector<6x32xbf16>, vector<32x96xbf16>, vector<6x96xf32> -> vector<6x96xf32>
    %702 = vector.broadcast %410 : vector<1x96xf32> to vector<6x96xf32>
    %703 = arith.addf %701, %702 : vector<6x96xf32>
    %704 = vector.extract_strided_slice %699 {offsets = [0, 0], sizes = [6, 32], strides = [1, 1]} : vector<6x96xf32> to vector<6x32xf32>
    %705 = vector.extract_strided_slice %703 {offsets = [0, 0], sizes = [6, 32], strides = [1, 1]} : vector<6x96xf32> to vector<6x32xf32>
    %706 = arith.addf %704, %705 : vector<6x32xf32>
    %707 = arith.negf %706 : vector<6x32xf32>
    %708 = math.exp %707 : vector<6x32xf32>
    %cst_268 = arith.constant 1.000000e+00 : f32
    %709 = vector.broadcast %cst_268 : f32 to vector<6x32xf32>
    %710 = arith.addf %709, %708 : vector<6x32xf32>
    %711 = arith.divf %709, %710 : vector<6x32xf32>
    %712 = vector.extract_strided_slice %699 {offsets = [0, 32], sizes = [6, 32], strides = [1, 1]} : vector<6x96xf32> to vector<6x32xf32>
    %713 = vector.extract_strided_slice %703 {offsets = [0, 32], sizes = [6, 32], strides = [1, 1]} : vector<6x96xf32> to vector<6x32xf32>
    %714 = arith.addf %712, %713 : vector<6x32xf32>
    %715 = arith.negf %714 : vector<6x32xf32>
    %716 = math.exp %715 : vector<6x32xf32>
    %cst_269 = arith.constant 1.000000e+00 : f32
    %717 = vector.broadcast %cst_269 : f32 to vector<6x32xf32>
    %718 = arith.addf %717, %716 : vector<6x32xf32>
    %719 = arith.divf %717, %718 : vector<6x32xf32>
    %720 = vector.extract_strided_slice %699 {offsets = [0, 64], sizes = [6, 32], strides = [1, 1]} : vector<6x96xf32> to vector<6x32xf32>
    %721 = vector.extract_strided_slice %703 {offsets = [0, 64], sizes = [6, 32], strides = [1, 1]} : vector<6x96xf32> to vector<6x32xf32>
    %722 = arith.mulf %711, %721 : vector<6x32xf32>
    %723 = arith.addf %720, %722 : vector<6x32xf32>
    %724 = math.tanh %723 : vector<6x32xf32>
    %cst_270 = arith.constant 1.000000e+00 : f32
    %725 = vector.broadcast %cst_270 : f32 to vector<6x32xf32>
    %726 = arith.subf %725, %719 : vector<6x32xf32>
    %727 = arith.mulf %726, %724 : vector<6x32xf32>
    %728 = arith.mulf %719, %692 : vector<6x32xf32>
    %729 = arith.addf %727, %728 : vector<6x32xf32>
    %730 = vector.broadcast %411 : vector<1x32xf32> to vector<6x32xf32>
    %731 = arith.mulf %729, %730 : vector<6x32xf32>
    %cst_271 = arith.constant dense<0.000000e+00> : vector<6xf32>
    %732 = vector.multi_reduction <add>, %731, %cst_271 [1] : vector<6x32xf32> to vector<6xf32>
    %733 = vector.shape_cast %732 : vector<6xf32> to vector<6x1xf32>
    %734 = vector.broadcast %412 : vector<1x1xf32> to vector<6x1xf32>
    %735 = arith.addf %733, %734 : vector<6x1xf32>
    %736 = vector.extract_strided_slice %408 {offsets = [60, 0], sizes = [6, 96], strides = [1, 1]} : vector<96x96xf32> to vector<6x96xf32>
    %737 = arith.truncf %729 : vector<6x32xf32> to vector<6x32xbf16>
    %cst_272 = arith.constant dense<0.000000e+00> : vector<6x96xf32>
    %738 = tpu.matmul %737, %409, %cst_272 {dimension_numbers = #tpu.dot_dimension_numbers<[1], [0], [0], [1], [0, 0, 1, 1], [], []>} : vector<6x32xbf16>, vector<32x96xbf16>, vector<6x96xf32> -> vector<6x96xf32>
    %739 = vector.broadcast %410 : vector<1x96xf32> to vector<6x96xf32>
    %740 = arith.addf %738, %739 : vector<6x96xf32>
    %741 = vector.extract_strided_slice %736 {offsets = [0, 0], sizes = [6, 32], strides = [1, 1]} : vector<6x96xf32> to vector<6x32xf32>
    %742 = vector.extract_strided_slice %740 {offsets = [0, 0], sizes = [6, 32], strides = [1, 1]} : vector<6x96xf32> to vector<6x32xf32>
    %743 = arith.addf %741, %742 : vector<6x32xf32>
    %744 = arith.negf %743 : vector<6x32xf32>
    %745 = math.exp %744 : vector<6x32xf32>
    %cst_273 = arith.constant 1.000000e+00 : f32
    %746 = vector.broadcast %cst_273 : f32 to vector<6x32xf32>
    %747 = arith.addf %746, %745 : vector<6x32xf32>
    %748 = arith.divf %746, %747 : vector<6x32xf32>
    %749 = vector.extract_strided_slice %736 {offsets = [0, 32], sizes = [6, 32], strides = [1, 1]} : vector<6x96xf32> to vector<6x32xf32>
    %750 = vector.extract_strided_slice %740 {offsets = [0, 32], sizes = [6, 32], strides = [1, 1]} : vector<6x96xf32> to vector<6x32xf32>
    %751 = arith.addf %749, %750 : vector<6x32xf32>
    %752 = arith.negf %751 : vector<6x32xf32>
    %753 = math.exp %752 : vector<6x32xf32>
    %cst_274 = arith.constant 1.000000e+00 : f32
    %754 = vector.broadcast %cst_274 : f32 to vector<6x32xf32>
    %755 = arith.addf %754, %753 : vector<6x32xf32>
    %756 = arith.divf %754, %755 : vector<6x32xf32>
    %757 = vector.extract_strided_slice %736 {offsets = [0, 64], sizes = [6, 32], strides = [1, 1]} : vector<6x96xf32> to vector<6x32xf32>
    %758 = vector.extract_strided_slice %740 {offsets = [0, 64], sizes = [6, 32], strides = [1, 1]} : vector<6x96xf32> to vector<6x32xf32>
    %759 = arith.mulf %748, %758 : vector<6x32xf32>
    %760 = arith.addf %757, %759 : vector<6x32xf32>
    %761 = math.tanh %760 : vector<6x32xf32>
    %cst_275 = arith.constant 1.000000e+00 : f32
    %762 = vector.broadcast %cst_275 : f32 to vector<6x32xf32>
    %763 = arith.subf %762, %756 : vector<6x32xf32>
    %764 = arith.mulf %763, %761 : vector<6x32xf32>
    %765 = arith.mulf %756, %729 : vector<6x32xf32>
    %766 = arith.addf %764, %765 : vector<6x32xf32>
    %767 = vector.broadcast %411 : vector<1x32xf32> to vector<6x32xf32>
    %768 = arith.mulf %766, %767 : vector<6x32xf32>
    %cst_276 = arith.constant dense<0.000000e+00> : vector<6xf32>
    %769 = vector.multi_reduction <add>, %768, %cst_276 [1] : vector<6x32xf32> to vector<6xf32>
    %770 = vector.shape_cast %769 : vector<6xf32> to vector<6x1xf32>
    %771 = vector.broadcast %412 : vector<1x1xf32> to vector<6x1xf32>
    %772 = arith.addf %770, %771 : vector<6x1xf32>
    %773 = vector.extract_strided_slice %408 {offsets = [66, 0], sizes = [6, 96], strides = [1, 1]} : vector<96x96xf32> to vector<6x96xf32>
    %774 = arith.truncf %766 : vector<6x32xf32> to vector<6x32xbf16>
    %cst_277 = arith.constant dense<0.000000e+00> : vector<6x96xf32>
    %775 = tpu.matmul %774, %409, %cst_277 {dimension_numbers = #tpu.dot_dimension_numbers<[1], [0], [0], [1], [0, 0, 1, 1], [], []>} : vector<6x32xbf16>, vector<32x96xbf16>, vector<6x96xf32> -> vector<6x96xf32>
    %776 = vector.broadcast %410 : vector<1x96xf32> to vector<6x96xf32>
    %777 = arith.addf %775, %776 : vector<6x96xf32>
    %778 = vector.extract_strided_slice %773 {offsets = [0, 0], sizes = [6, 32], strides = [1, 1]} : vector<6x96xf32> to vector<6x32xf32>
    %779 = vector.extract_strided_slice %777 {offsets = [0, 0], sizes = [6, 32], strides = [1, 1]} : vector<6x96xf32> to vector<6x32xf32>
    %780 = arith.addf %778, %779 : vector<6x32xf32>
    %781 = arith.negf %780 : vector<6x32xf32>
    %782 = math.exp %781 : vector<6x32xf32>
    %cst_278 = arith.constant 1.000000e+00 : f32
    %783 = vector.broadcast %cst_278 : f32 to vector<6x32xf32>
    %784 = arith.addf %783, %782 : vector<6x32xf32>
    %785 = arith.divf %783, %784 : vector<6x32xf32>
    %786 = vector.extract_strided_slice %773 {offsets = [0, 32], sizes = [6, 32], strides = [1, 1]} : vector<6x96xf32> to vector<6x32xf32>
    %787 = vector.extract_strided_slice %777 {offsets = [0, 32], sizes = [6, 32], strides = [1, 1]} : vector<6x96xf32> to vector<6x32xf32>
    %788 = arith.addf %786, %787 : vector<6x32xf32>
    %789 = arith.negf %788 : vector<6x32xf32>
    %790 = math.exp %789 : vector<6x32xf32>
    %cst_279 = arith.constant 1.000000e+00 : f32
    %791 = vector.broadcast %cst_279 : f32 to vector<6x32xf32>
    %792 = arith.addf %791, %790 : vector<6x32xf32>
    %793 = arith.divf %791, %792 : vector<6x32xf32>
    %794 = vector.extract_strided_slice %773 {offsets = [0, 64], sizes = [6, 32], strides = [1, 1]} : vector<6x96xf32> to vector<6x32xf32>
    %795 = vector.extract_strided_slice %777 {offsets = [0, 64], sizes = [6, 32], strides = [1, 1]} : vector<6x96xf32> to vector<6x32xf32>
    %796 = arith.mulf %785, %795 : vector<6x32xf32>
    %797 = arith.addf %794, %796 : vector<6x32xf32>
    %798 = math.tanh %797 : vector<6x32xf32>
    %cst_280 = arith.constant 1.000000e+00 : f32
    %799 = vector.broadcast %cst_280 : f32 to vector<6x32xf32>
    %800 = arith.subf %799, %793 : vector<6x32xf32>
    %801 = arith.mulf %800, %798 : vector<6x32xf32>
    %802 = arith.mulf %793, %766 : vector<6x32xf32>
    %803 = arith.addf %801, %802 : vector<6x32xf32>
    %804 = vector.broadcast %411 : vector<1x32xf32> to vector<6x32xf32>
    %805 = arith.mulf %803, %804 : vector<6x32xf32>
    %cst_281 = arith.constant dense<0.000000e+00> : vector<6xf32>
    %806 = vector.multi_reduction <add>, %805, %cst_281 [1] : vector<6x32xf32> to vector<6xf32>
    %807 = vector.shape_cast %806 : vector<6xf32> to vector<6x1xf32>
    %808 = vector.broadcast %412 : vector<1x1xf32> to vector<6x1xf32>
    %809 = arith.addf %807, %808 : vector<6x1xf32>
    %810 = vector.extract_strided_slice %408 {offsets = [72, 0], sizes = [6, 96], strides = [1, 1]} : vector<96x96xf32> to vector<6x96xf32>
    %811 = arith.truncf %803 : vector<6x32xf32> to vector<6x32xbf16>
    %cst_282 = arith.constant dense<0.000000e+00> : vector<6x96xf32>
    %812 = tpu.matmul %811, %409, %cst_282 {dimension_numbers = #tpu.dot_dimension_numbers<[1], [0], [0], [1], [0, 0, 1, 1], [], []>} : vector<6x32xbf16>, vector<32x96xbf16>, vector<6x96xf32> -> vector<6x96xf32>
    %813 = vector.broadcast %410 : vector<1x96xf32> to vector<6x96xf32>
    %814 = arith.addf %812, %813 : vector<6x96xf32>
    %815 = vector.extract_strided_slice %810 {offsets = [0, 0], sizes = [6, 32], strides = [1, 1]} : vector<6x96xf32> to vector<6x32xf32>
    %816 = vector.extract_strided_slice %814 {offsets = [0, 0], sizes = [6, 32], strides = [1, 1]} : vector<6x96xf32> to vector<6x32xf32>
    %817 = arith.addf %815, %816 : vector<6x32xf32>
    %818 = arith.negf %817 : vector<6x32xf32>
    %819 = math.exp %818 : vector<6x32xf32>
    %cst_283 = arith.constant 1.000000e+00 : f32
    %820 = vector.broadcast %cst_283 : f32 to vector<6x32xf32>
    %821 = arith.addf %820, %819 : vector<6x32xf32>
    %822 = arith.divf %820, %821 : vector<6x32xf32>
    %823 = vector.extract_strided_slice %810 {offsets = [0, 32], sizes = [6, 32], strides = [1, 1]} : vector<6x96xf32> to vector<6x32xf32>
    %824 = vector.extract_strided_slice %814 {offsets = [0, 32], sizes = [6, 32], strides = [1, 1]} : vector<6x96xf32> to vector<6x32xf32>
    %825 = arith.addf %823, %824 : vector<6x32xf32>
    %826 = arith.negf %825 : vector<6x32xf32>
    %827 = math.exp %826 : vector<6x32xf32>
    %cst_284 = arith.constant 1.000000e+00 : f32
    %828 = vector.broadcast %cst_284 : f32 to vector<6x32xf32>
    %829 = arith.addf %828, %827 : vector<6x32xf32>
    %830 = arith.divf %828, %829 : vector<6x32xf32>
    %831 = vector.extract_strided_slice %810 {offsets = [0, 64], sizes = [6, 32], strides = [1, 1]} : vector<6x96xf32> to vector<6x32xf32>
    %832 = vector.extract_strided_slice %814 {offsets = [0, 64], sizes = [6, 32], strides = [1, 1]} : vector<6x96xf32> to vector<6x32xf32>
    %833 = arith.mulf %822, %832 : vector<6x32xf32>
    %834 = arith.addf %831, %833 : vector<6x32xf32>
    %835 = math.tanh %834 : vector<6x32xf32>
    %cst_285 = arith.constant 1.000000e+00 : f32
    %836 = vector.broadcast %cst_285 : f32 to vector<6x32xf32>
    %837 = arith.subf %836, %830 : vector<6x32xf32>
    %838 = arith.mulf %837, %835 : vector<6x32xf32>
    %839 = arith.mulf %830, %803 : vector<6x32xf32>
    %840 = arith.addf %838, %839 : vector<6x32xf32>
    %841 = vector.broadcast %411 : vector<1x32xf32> to vector<6x32xf32>
    %842 = arith.mulf %840, %841 : vector<6x32xf32>
    %cst_286 = arith.constant dense<0.000000e+00> : vector<6xf32>
    %843 = vector.multi_reduction <add>, %842, %cst_286 [1] : vector<6x32xf32> to vector<6xf32>
    %844 = vector.shape_cast %843 : vector<6xf32> to vector<6x1xf32>
    %845 = vector.broadcast %412 : vector<1x1xf32> to vector<6x1xf32>
    %846 = arith.addf %844, %845 : vector<6x1xf32>
    %847 = vector.extract_strided_slice %408 {offsets = [78, 0], sizes = [6, 96], strides = [1, 1]} : vector<96x96xf32> to vector<6x96xf32>
    %848 = arith.truncf %840 : vector<6x32xf32> to vector<6x32xbf16>
    %cst_287 = arith.constant dense<0.000000e+00> : vector<6x96xf32>
    %849 = tpu.matmul %848, %409, %cst_287 {dimension_numbers = #tpu.dot_dimension_numbers<[1], [0], [0], [1], [0, 0, 1, 1], [], []>} : vector<6x32xbf16>, vector<32x96xbf16>, vector<6x96xf32> -> vector<6x96xf32>
    %850 = vector.broadcast %410 : vector<1x96xf32> to vector<6x96xf32>
    %851 = arith.addf %849, %850 : vector<6x96xf32>
    %852 = vector.extract_strided_slice %847 {offsets = [0, 0], sizes = [6, 32], strides = [1, 1]} : vector<6x96xf32> to vector<6x32xf32>
    %853 = vector.extract_strided_slice %851 {offsets = [0, 0], sizes = [6, 32], strides = [1, 1]} : vector<6x96xf32> to vector<6x32xf32>
    %854 = arith.addf %852, %853 : vector<6x32xf32>
    %855 = arith.negf %854 : vector<6x32xf32>
    %856 = math.exp %855 : vector<6x32xf32>
    %cst_288 = arith.constant 1.000000e+00 : f32
    %857 = vector.broadcast %cst_288 : f32 to vector<6x32xf32>
    %858 = arith.addf %857, %856 : vector<6x32xf32>
    %859 = arith.divf %857, %858 : vector<6x32xf32>
    %860 = vector.extract_strided_slice %847 {offsets = [0, 32], sizes = [6, 32], strides = [1, 1]} : vector<6x96xf32> to vector<6x32xf32>
    %861 = vector.extract_strided_slice %851 {offsets = [0, 32], sizes = [6, 32], strides = [1, 1]} : vector<6x96xf32> to vector<6x32xf32>
    %862 = arith.addf %860, %861 : vector<6x32xf32>
    %863 = arith.negf %862 : vector<6x32xf32>
    %864 = math.exp %863 : vector<6x32xf32>
    %cst_289 = arith.constant 1.000000e+00 : f32
    %865 = vector.broadcast %cst_289 : f32 to vector<6x32xf32>
    %866 = arith.addf %865, %864 : vector<6x32xf32>
    %867 = arith.divf %865, %866 : vector<6x32xf32>
    %868 = vector.extract_strided_slice %847 {offsets = [0, 64], sizes = [6, 32], strides = [1, 1]} : vector<6x96xf32> to vector<6x32xf32>
    %869 = vector.extract_strided_slice %851 {offsets = [0, 64], sizes = [6, 32], strides = [1, 1]} : vector<6x96xf32> to vector<6x32xf32>
    %870 = arith.mulf %859, %869 : vector<6x32xf32>
    %871 = arith.addf %868, %870 : vector<6x32xf32>
    %872 = math.tanh %871 : vector<6x32xf32>
    %cst_290 = arith.constant 1.000000e+00 : f32
    %873 = vector.broadcast %cst_290 : f32 to vector<6x32xf32>
    %874 = arith.subf %873, %867 : vector<6x32xf32>
    %875 = arith.mulf %874, %872 : vector<6x32xf32>
    %876 = arith.mulf %867, %840 : vector<6x32xf32>
    %877 = arith.addf %875, %876 : vector<6x32xf32>
    %878 = vector.broadcast %411 : vector<1x32xf32> to vector<6x32xf32>
    %879 = arith.mulf %877, %878 : vector<6x32xf32>
    %cst_291 = arith.constant dense<0.000000e+00> : vector<6xf32>
    %880 = vector.multi_reduction <add>, %879, %cst_291 [1] : vector<6x32xf32> to vector<6xf32>
    %881 = vector.shape_cast %880 : vector<6xf32> to vector<6x1xf32>
    %882 = vector.broadcast %412 : vector<1x1xf32> to vector<6x1xf32>
    %883 = arith.addf %881, %882 : vector<6x1xf32>
    %884 = vector.extract_strided_slice %408 {offsets = [84, 0], sizes = [6, 96], strides = [1, 1]} : vector<96x96xf32> to vector<6x96xf32>
    %885 = arith.truncf %877 : vector<6x32xf32> to vector<6x32xbf16>
    %cst_292 = arith.constant dense<0.000000e+00> : vector<6x96xf32>
    %886 = tpu.matmul %885, %409, %cst_292 {dimension_numbers = #tpu.dot_dimension_numbers<[1], [0], [0], [1], [0, 0, 1, 1], [], []>} : vector<6x32xbf16>, vector<32x96xbf16>, vector<6x96xf32> -> vector<6x96xf32>
    %887 = vector.broadcast %410 : vector<1x96xf32> to vector<6x96xf32>
    %888 = arith.addf %886, %887 : vector<6x96xf32>
    %889 = vector.extract_strided_slice %884 {offsets = [0, 0], sizes = [6, 32], strides = [1, 1]} : vector<6x96xf32> to vector<6x32xf32>
    %890 = vector.extract_strided_slice %888 {offsets = [0, 0], sizes = [6, 32], strides = [1, 1]} : vector<6x96xf32> to vector<6x32xf32>
    %891 = arith.addf %889, %890 : vector<6x32xf32>
    %892 = arith.negf %891 : vector<6x32xf32>
    %893 = math.exp %892 : vector<6x32xf32>
    %cst_293 = arith.constant 1.000000e+00 : f32
    %894 = vector.broadcast %cst_293 : f32 to vector<6x32xf32>
    %895 = arith.addf %894, %893 : vector<6x32xf32>
    %896 = arith.divf %894, %895 : vector<6x32xf32>
    %897 = vector.extract_strided_slice %884 {offsets = [0, 32], sizes = [6, 32], strides = [1, 1]} : vector<6x96xf32> to vector<6x32xf32>
    %898 = vector.extract_strided_slice %888 {offsets = [0, 32], sizes = [6, 32], strides = [1, 1]} : vector<6x96xf32> to vector<6x32xf32>
    %899 = arith.addf %897, %898 : vector<6x32xf32>
    %900 = arith.negf %899 : vector<6x32xf32>
    %901 = math.exp %900 : vector<6x32xf32>
    %cst_294 = arith.constant 1.000000e+00 : f32
    %902 = vector.broadcast %cst_294 : f32 to vector<6x32xf32>
    %903 = arith.addf %902, %901 : vector<6x32xf32>
    %904 = arith.divf %902, %903 : vector<6x32xf32>
    %905 = vector.extract_strided_slice %884 {offsets = [0, 64], sizes = [6, 32], strides = [1, 1]} : vector<6x96xf32> to vector<6x32xf32>
    %906 = vector.extract_strided_slice %888 {offsets = [0, 64], sizes = [6, 32], strides = [1, 1]} : vector<6x96xf32> to vector<6x32xf32>
    %907 = arith.mulf %896, %906 : vector<6x32xf32>
    %908 = arith.addf %905, %907 : vector<6x32xf32>
    %909 = math.tanh %908 : vector<6x32xf32>
    %cst_295 = arith.constant 1.000000e+00 : f32
    %910 = vector.broadcast %cst_295 : f32 to vector<6x32xf32>
    %911 = arith.subf %910, %904 : vector<6x32xf32>
    %912 = arith.mulf %911, %909 : vector<6x32xf32>
    %913 = arith.mulf %904, %877 : vector<6x32xf32>
    %914 = arith.addf %912, %913 : vector<6x32xf32>
    %915 = vector.broadcast %411 : vector<1x32xf32> to vector<6x32xf32>
    %916 = arith.mulf %914, %915 : vector<6x32xf32>
    %cst_296 = arith.constant dense<0.000000e+00> : vector<6xf32>
    %917 = vector.multi_reduction <add>, %916, %cst_296 [1] : vector<6x32xf32> to vector<6xf32>
    %918 = vector.shape_cast %917 : vector<6xf32> to vector<6x1xf32>
    %919 = vector.broadcast %412 : vector<1x1xf32> to vector<6x1xf32>
    %920 = arith.addf %918, %919 : vector<6x1xf32>
    %921 = vector.extract_strided_slice %408 {offsets = [90, 0], sizes = [6, 96], strides = [1, 1]} : vector<96x96xf32> to vector<6x96xf32>
    %922 = arith.truncf %914 : vector<6x32xf32> to vector<6x32xbf16>
    %cst_297 = arith.constant dense<0.000000e+00> : vector<6x96xf32>
    %923 = tpu.matmul %922, %409, %cst_297 {dimension_numbers = #tpu.dot_dimension_numbers<[1], [0], [0], [1], [0, 0, 1, 1], [], []>} : vector<6x32xbf16>, vector<32x96xbf16>, vector<6x96xf32> -> vector<6x96xf32>
    %924 = vector.broadcast %410 : vector<1x96xf32> to vector<6x96xf32>
    %925 = arith.addf %923, %924 : vector<6x96xf32>
    %926 = vector.extract_strided_slice %921 {offsets = [0, 0], sizes = [6, 32], strides = [1, 1]} : vector<6x96xf32> to vector<6x32xf32>
    %927 = vector.extract_strided_slice %925 {offsets = [0, 0], sizes = [6, 32], strides = [1, 1]} : vector<6x96xf32> to vector<6x32xf32>
    %928 = arith.addf %926, %927 : vector<6x32xf32>
    %929 = arith.negf %928 : vector<6x32xf32>
    %930 = math.exp %929 : vector<6x32xf32>
    %cst_298 = arith.constant 1.000000e+00 : f32
    %931 = vector.broadcast %cst_298 : f32 to vector<6x32xf32>
    %932 = arith.addf %931, %930 : vector<6x32xf32>
    %933 = arith.divf %931, %932 : vector<6x32xf32>
    %934 = vector.extract_strided_slice %921 {offsets = [0, 32], sizes = [6, 32], strides = [1, 1]} : vector<6x96xf32> to vector<6x32xf32>
    %935 = vector.extract_strided_slice %925 {offsets = [0, 32], sizes = [6, 32], strides = [1, 1]} : vector<6x96xf32> to vector<6x32xf32>
    %936 = arith.addf %934, %935 : vector<6x32xf32>
    %937 = arith.negf %936 : vector<6x32xf32>
    %938 = math.exp %937 : vector<6x32xf32>
    %cst_299 = arith.constant 1.000000e+00 : f32
    %939 = vector.broadcast %cst_299 : f32 to vector<6x32xf32>
    %940 = arith.addf %939, %938 : vector<6x32xf32>
    %941 = arith.divf %939, %940 : vector<6x32xf32>
    %942 = vector.extract_strided_slice %921 {offsets = [0, 64], sizes = [6, 32], strides = [1, 1]} : vector<6x96xf32> to vector<6x32xf32>
    %943 = vector.extract_strided_slice %925 {offsets = [0, 64], sizes = [6, 32], strides = [1, 1]} : vector<6x96xf32> to vector<6x32xf32>
    %944 = arith.mulf %933, %943 : vector<6x32xf32>
    %945 = arith.addf %942, %944 : vector<6x32xf32>
    %946 = math.tanh %945 : vector<6x32xf32>
    %cst_300 = arith.constant 1.000000e+00 : f32
    %947 = vector.broadcast %cst_300 : f32 to vector<6x32xf32>
    %948 = arith.subf %947, %941 : vector<6x32xf32>
    %949 = arith.mulf %948, %946 : vector<6x32xf32>
    %950 = arith.mulf %941, %914 : vector<6x32xf32>
    %951 = arith.addf %949, %950 : vector<6x32xf32>
    %952 = vector.broadcast %411 : vector<1x32xf32> to vector<6x32xf32>
    %953 = arith.mulf %951, %952 : vector<6x32xf32>
    %cst_301 = arith.constant dense<0.000000e+00> : vector<6xf32>
    %954 = vector.multi_reduction <add>, %953, %cst_301 [1] : vector<6x32xf32> to vector<6xf32>
    %955 = vector.shape_cast %954 : vector<6xf32> to vector<6x1xf32>
    %956 = vector.broadcast %412 : vector<1x1xf32> to vector<6x1xf32>
    %957 = arith.addf %955, %956 : vector<6x1xf32>
    %958 = tpu.concatenate %698, %735, %772, %809, %846, %883, %920, %957 in 1 : vector<6x1xf32>, vector<6x1xf32>, vector<6x1xf32>, vector<6x1xf32>, vector<6x1xf32>, vector<6x1xf32>, vector<6x1xf32>, vector<6x1xf32> -> vector<6x8xf32>
    %c0_302 = arith.constant 0 : index
    %c0_303 = arith.constant 0 : index
    %959 = vector.load %arg17[%c0_302, %c0_303] : memref<6x8xf32, #tpu.memory_space<vmem>>, vector<6x8xf32>
    tpu.vector_store %arg17[%c0_302, %c0_303], %958 {strides = array<i32>} : memref<6x8xf32, #tpu.memory_space<vmem>>, vector<6x8xf32>,
    return
  }
  func.func @transform_0(%arg0: i32) -> (i32, i32, i32) {
    %c0_i32 = arith.constant 0 : i32
    %c0_i32_0 = arith.constant 0 : i32
    %c0_i32_1 = arith.constant 0 : i32
    %c0_i32_2 = arith.constant 0 : i32
    return %c0_i32, %c0_i32_0, %c0_i32_1 : i32, i32, i32
  }
  func.func @transform_1(%arg0: i32) -> (i32, i32) {
    %c0_i32 = arith.constant 0 : i32
    %c0_i32_0 = arith.constant 0 : i32
    %c0_i32_1 = arith.constant 0 : i32
    return %c0_i32, %c0_i32_0 : i32, i32
  }
  func.func @transform_2(%arg0: i32) -> (i32, i32) {
    %c0_i32 = arith.constant 0 : i32
    %c0_i32_0 = arith.constant 0 : i32
    %c0_i32_1 = arith.constant 0 : i32
    return %c0_i32, %c0_i32_0 : i32, i32
  }
  func.func @transform_3(%arg0: i32) -> (i32, i32) {
    %c0_i32 = arith.constant 0 : i32
    %c0_i32_0 = arith.constant 0 : i32
    %c0_i32_1 = arith.constant 0 : i32
    return %c0_i32, %c0_i32_0 : i32, i32
  }
  func.func @transform_4(%arg0: i32) -> (i32, i32) {
    %c0_i32 = arith.constant 0 : i32
    %c0_i32_0 = arith.constant 0 : i32
    %c0_i32_1 = arith.constant 0 : i32
    return %c0_i32, %c0_i32_0 : i32, i32
  }
  func.func @transform_5(%arg0: i32) -> (i32, i32) {
    %c0_i32 = arith.constant 0 : i32
    %c0_i32_0 = arith.constant 0 : i32
    %c0_i32_1 = arith.constant 0 : i32
    return %c0_i32, %c0_i32_0 : i32, i32
  }
  func.func @transform_6(%arg0: i32) -> (i32, i32) {
    %c0_i32 = arith.constant 0 : i32
    %c0_i32_0 = arith.constant 0 : i32
    %c0_i32_1 = arith.constant 0 : i32
    return %c0_i32, %c0_i32_0 : i32, i32
  }
  func.func @transform_7(%arg0: i32) -> (i32, i32) {
    %c0_i32 = arith.constant 0 : i32
    %c0_i32_0 = arith.constant 0 : i32
    %c0_i32_1 = arith.constant 0 : i32
    return %c0_i32, %c0_i32_0 : i32, i32
  }
  func.func @transform_8(%arg0: i32) -> (i32, i32) {
    %c0_i32 = arith.constant 0 : i32
    %c0_i32_0 = arith.constant 0 : i32
    %c0_i32_1 = arith.constant 0 : i32
    return %c0_i32, %c0_i32_0 : i32, i32
  }
  func.func @transform_9(%arg0: i32) -> (i32, i32) {
    %c0_i32 = arith.constant 0 : i32
    %c0_i32_0 = arith.constant 0 : i32
    %c0_i32_1 = arith.constant 0 : i32
    return %c0_i32, %c0_i32_0 : i32, i32
  }
  func.func @transform_10(%arg0: i32) -> (i32, i32) {
    %c0_i32 = arith.constant 0 : i32
    %c0_i32_0 = arith.constant 0 : i32
    %c0_i32_1 = arith.constant 0 : i32
    return %c0_i32, %c0_i32_0 : i32, i32
  }
  func.func @transform_11(%arg0: i32) -> (i32, i32) {
    %c0_i32 = arith.constant 0 : i32
    %c0_i32_0 = arith.constant 0 : i32
    %c0_i32_1 = arith.constant 0 : i32
    return %c0_i32, %c0_i32_0 : i32, i32
  }
  func.func @transform_12(%arg0: i32) -> (i32, i32) {
    %c0_i32 = arith.constant 0 : i32
    %c0_i32_0 = arith.constant 0 : i32
    %c0_i32_1 = arith.constant 0 : i32
    return %c0_i32, %c0_i32_0 : i32, i32
  }
  func.func @transform_13(%arg0: i32) -> (i32, i32) {
    %c0_i32 = arith.constant 0 : i32
    %c0_i32_0 = arith.constant 0 : i32
    %c0_i32_1 = arith.constant 0 : i32
    return %c0_i32, %c0_i32_0 : i32, i32
  }
  func.func @transform_14(%arg0: i32) -> (i32, i32) {
    %c0_i32 = arith.constant 0 : i32
    %c0_i32_0 = arith.constant 0 : i32
    %c0_i32_1 = arith.constant 0 : i32
    return %c0_i32, %c0_i32_0 : i32, i32
  }
  func.func @transform_15(%arg0: i32) -> (i32, i32) {
    %c0_i32 = arith.constant 0 : i32
    %c0_i32_0 = arith.constant 0 : i32
    %c0_i32_1 = arith.constant 0 : i32
    return %c0_i32, %c0_i32_0 : i32, i32
  }
  func.func @transform_16(%arg0: i32) -> (i32, i32) {
    %c0_i32 = arith.constant 0 : i32
    %c0_i32_0 = arith.constant 0 : i32
    %c0_i32_1 = arith.constant 0 : i32
    return %c0_i32, %c0_i32_0 : i32, i32
  }
}

</mosaic_0001>

<llo_original>
// kernel: forward.1
$region0: #{forward.1}
  #allocation0 [shape = 'u32[]', space=smem, size = 0x4, offset = 0x4, fixed_abs, tag = 'smem constant byte address 0x4 - core index']
  #allocation1 [shape = 'u32[144,128]{1,0:T(1,128)}', space=vmem, size = 0x12000, scoped, tag = 'internal scratch']
  #allocation2 [shape = 'f32[6,104,64]{2,1,0:T(8,128)}', space=vmem, size = 0x4e000, scoped, tag = 'scratch operand']
  #allocation3 [shape = 'f32[1,1]{1,0:T(1,128)S(1)}', space=vmem, size = 0x200, scoped, tag = 'scoped memory for forward.1']
  %s0 = inlined_call_operand.vmem [shape: f32[6,96,8], index: 0, kind: input, shape index: {}]
  %s1 = inlined_call_operand.vmem [shape: bf16[8,64], index: 1, kind: input, shape index: {}]
  %s2 = inlined_call_operand.vmem [shape: f32[1,64], index: 2, kind: input, shape index: {}]
  %s3 = inlined_call_operand.vmem [shape: bf16[4096,32], index: 3, kind: input, shape index: {}]
  %s4 = inlined_call_operand.vmem [shape: f32[1,32], index: 4, kind: input, shape index: {}]
  %s5 = inlined_call_operand.vmem [shape: bf16[32,96], index: 5, kind: input, shape index: {}]
  %s6 = inlined_call_operand.vmem [shape: f32[1,96], index: 6, kind: input, shape index: {}]
  %s7 = inlined_call_operand.vmem [shape: bf16[32,32], index: 7, kind: input, shape index: {}]
  %s8 = inlined_call_operand.vmem [shape: f32[1,32], index: 8, kind: input, shape index: {}]
  %s9 = inlined_call_operand.vmem [shape: f32[96,96], index: 9, kind: input, shape index: {}]
  %s10 = inlined_call_operand.vmem [shape: bf16[32,96], index: 10, kind: input, shape index: {}]
  %s11 = inlined_call_operand.vmem [shape: f32[1,96], index: 11, kind: input, shape index: {}]
  %s12 = inlined_call_operand.vmem [shape: bf16[32,96], index: 12, kind: input, shape index: {}]
  %s13 = inlined_call_operand.vmem [shape: f32[1,96], index: 13, kind: input, shape index: {}]
  %s14 = inlined_call_operand.vmem [shape: f32[1,32], index: 14, kind: input, shape index: {}]
  %s15 = inlined_call_operand.<no memory space> [shape: f32[1,1], index: 15, kind: input, shape index: {}]
  %s16 = inlined_call_operand.vmem [shape: f32[6,8], index: 16, kind: output, shape index: {}]
  %s17 = sld [smem:[#allocation0]]
  $region74: #{forward.1} parent=0
    _
  %s19 = ssub.s32 1, %s17
  %s20 = scalar_select 0, %s19, %s17
  %v21 = vstv %s15
  %22 = vst [vmem:[#allocation3] sm:$0x1] %v21
  // Predicated region
  $region2: #{forward.1} parent=0 // pred_check
    _
  $region3: #{forward.1} parent=0 // pred_check_branch
    %24 = sbr.rel (0) target = $region5
  $region4: #{forward.1} parent=0 // pred_region
    _
  $region5: #{forward.1} parent=0 // pred_fallthru
    _
  // Predicated region
  $region6: #{forward.1} parent=0 // pred_check
    _
  $region7: #{forward.1} parent=0 // pred_check_branch
    %26 = sbr.rel (0) target = $region9
  $region8: #{forward.1} parent=0 // pred_region
    _
  $region9: #{forward.1} parent=0 // pred_fallthru
    _
  // Predicated region
  $region10: #{forward.1} parent=0 // pred_check
    _
  $region11: #{forward.1} parent=0 // pred_check_branch
    %28 = sbr.rel (0) target = $region13
  $region12: #{forward.1} parent=0 // pred_region
    _
  $region13: #{forward.1} parent=0 // pred_fallthru
    _
  // Predicated region
  $region14: #{forward.1} parent=0 // pred_check
    _
  $region15: #{forward.1} parent=0 // pred_check_branch
    %30 = sbr.rel (0) target = $region17
  $region16: #{forward.1} parent=0 // pred_region
    _
  $region17: #{forward.1} parent=0 // pred_fallthru
    _
  // Predicated region
  $region18: #{forward.1} parent=0 // pred_check
    _
  $region19: #{forward.1} parent=0 // pred_check_branch
    %32 = sbr.rel (0) target = $region21
  $region20: #{forward.1} parent=0 // pred_region
    _
  $region21: #{forward.1} parent=0 // pred_fallthru
    _
  // Predicated region
  $region22: #{forward.1} parent=0 // pred_check
    _
  $region23: #{forward.1} parent=0 // pred_check_branch
    %34 = sbr.rel (0) target = $region25
  $region24: #{forward.1} parent=0 // pred_region
    _
  $region25: #{forward.1} parent=0 // pred_fallthru
    _
  // Predicated region
  $region26: #{forward.1} parent=0 // pred_check
    _
  $region27: #{forward.1} parent=0 // pred_check_branch
    %36 = sbr.rel (0) target = $region29
  $region28: #{forward.1} parent=0 // pred_region
    _
  $region29: #{forward.1} parent=0 // pred_fallthru
    _
  // Predicated region
  $region30: #{forward.1} parent=0 // pred_check
    _
  $region31: #{forward.1} parent=0 // pred_check_branch
    %38 = sbr.rel (0) target = $region33
  $region32: #{forward.1} parent=0 // pred_region
    _
  $region33: #{forward.1} parent=0 // pred_fallthru
    _
  // Predicated region
  $region34: #{forward.1} parent=0 // pred_check
    _
  $region35: #{forward.1} parent=0 // pred_check_branch
    %40 = sbr.rel (0) target = $region37
  $region36: #{forward.1} parent=0 // pred_region
    _
  $region37: #{forward.1} parent=0 // pred_fallthru
    _
  // Predicated region
  $region38: #{forward.1} parent=0 // pred_check
    _
  $region39: #{forward.1} parent=0 // pred_check_branch
    %42 = sbr.rel (0) target = $region41
  $region40: #{forward.1} parent=0 // pred_region
    _
  $region41: #{forward.1} parent=0 // pred_fallthru
    _
  // Predicated region
  $region42: #{forward.1} parent=0 // pred_check
    _
  $region43: #{forward.1} parent=0 // pred_check_branch
    %44 = sbr.rel (0) target = $region45
  $region44: #{forward.1} parent=0 // pred_region
    _
  $region45: #{forward.1} parent=0 // pred_fallthru
    _
  // Predicated region
  $region46: #{forward.1} parent=0 // pred_check
    _
  $region47: #{forward.1} parent=0 // pred_check_branch
    %46 = sbr.rel (0) target = $region49
  $region48: #{forward.1} parent=0 // pred_region
    _
  $region49: #{forward.1} parent=0 // pred_fallthru
    _
  // Predicated region
  $region50: #{forward.1} parent=0 // pred_check
    _
  $region51: #{forward.1} parent=0 // pred_check_branch
    %48 = sbr.rel (0) target = $region53
  $region52: #{forward.1} parent=0 // pred_region
    _
  $region53: #{forward.1} parent=0 // pred_fallthru
    _
  // Predicated region
  $region54: #{forward.1} parent=0 // pred_check
    _
  $region55: #{forward.1} parent=0 // pred_check_branch
    %50 = sbr.rel (0) target = $region57
  $region56: #{forward.1} parent=0 // pred_region
    _
  $region57: #{forward.1} parent=0 // pred_fallthru
    _
  // Predicated region
  $region58: #{forward.1} parent=0 // pred_check
    _
  $region59: #{forward.1} parent=0 // pred_check_branch
    %52 = sbr.rel (0) target = $region61
  $region60: #{forward.1} parent=0 // pred_region
    _
  $region61: #{forward.1} parent=0 // pred_fallthru
    _
  // Predicated region
  $region62: #{forward.1} parent=0 // pred_check
    _
  $region63: #{forward.1} parent=0 // pred_check_branch
    %54 = sbr.rel (0) target = $region65
  $region64: #{forward.1} parent=0 // pred_region
    _
  $region65: #{forward.1} parent=0 // pred_fallthru
    _
  %v56 = vld [vmem:[%s0] sm:$0xff]
  %v57 = vld [vmem:[%s0 + $0x8] sm:$0xff]
  %v58 = vld [vmem:[%s0 + $0x10] sm:$0xff]
  %v59 = vld [vmem:[%s0 + $0x18] sm:$0xff]
  %v60 = vld [vmem:[%s0 + $0x20] sm:$0xff]
  %v61 = vld [vmem:[%s0 + $0x28] sm:$0xff]
  %v62 = vld [vmem:[%s0 + $0x30] sm:$0xff]
  %v63 = vld [vmem:[%s0 + $0x38] sm:$0xff]
  %v64 = vld [vmem:[%s0 + $0x40] sm:$0xff]
  %v65 = vld [vmem:[%s0 + $0x48] sm:$0xff]
  %v66 = vld [vmem:[%s0 + $0x50] sm:$0xff]
  %v67 = vld [vmem:[%s0 + $0x58] sm:$0xff]
  %v68 = vld [vmem:[%s0 + $0x60] sm:$0xff]
  %v69 = vld [vmem:[%s0 + $0x68] sm:$0xff]
  %v70 = vld [vmem:[%s0 + $0x70] sm:$0xff]
  %v71 = vld [vmem:[%s0 + $0x78] sm:$0xff]
  %v72 = vld [vmem:[%s0 + $0x80] sm:$0xff]
  %v73 = vld [vmem:[%s0 + $0x88] sm:$0xff]
  %v74 = vld [vmem:[%s0 + $0x90] sm:$0xff]
  %v75 = vld [vmem:[%s0 + $0x98] sm:$0xff]
  %v76 = vld [vmem:[%s0 + $0xa0] sm:$0xff]
  %v77 = vld [vmem:[%s0 + $0xa8] sm:$0xff]
  %v78 = vld [vmem:[%s0 + $0xb0] sm:$0xff]
  %v79 = vld [vmem:[%s0 + $0xb8] sm:$0xff]
  %v80 = vld [vmem:[%s0 + $0xc0] sm:$0xff]
  %v81 = vld [vmem:[%s0 + $0xc8] sm:$0xff]
  %v82 = vld [vmem:[%s0 + $0xd0] sm:$0xff]
  %v83 = vld [vmem:[%s0 + $0xd8] sm:$0xff]
  %v84 = vld [vmem:[%s0 + $0xe0] sm:$0xff]
  %v85 = vld [vmem:[%s0 + $0xe8] sm:$0xff]
  %v86 = vld [vmem:[%s0 + $0xf0] sm:$0xff]
  %v87 = vld [vmem:[%s0 + $0xf8] sm:$0xff]
  %v88 = vld [vmem:[%s0 + $0x100] sm:$0xff]
  %v89 = vld [vmem:[%s0 + $0x108] sm:$0xff]
  %v90 = vld [vmem:[%s0 + $0x110] sm:$0xff]
  %v91 = vld [vmem:[%s0 + $0x118] sm:$0xff]
  %v92 = vld [vmem:[%s0 + $0x120] sm:$0xff]
  %v93 = vld [vmem:[%s0 + $0x128] sm:$0xff]
  %v94 = vld [vmem:[%s0 + $0x130] sm:$0xff]
  %v95 = vld [vmem:[%s0 + $0x138] sm:$0xff]
  %v96 = vld [vmem:[%s0 + $0x140] sm:$0xff]
  %v97 = vld [vmem:[%s0 + $0x148] sm:$0xff]
  %v98 = vld [vmem:[%s0 + $0x150] sm:$0xff]
  %v99 = vld [vmem:[%s0 + $0x158] sm:$0xff]
  %v100 = vld [vmem:[%s0 + $0x160] sm:$0xff]
  %v101 = vld [vmem:[%s0 + $0x168] sm:$0xff]
  %v102 = vld [vmem:[%s0 + $0x170] sm:$0xff]
  %v103 = vld [vmem:[%s0 + $0x178] sm:$0xff]
  %v104 = vld [vmem:[%s0 + $0x180] sm:$0xff]
  %v105 = vld [vmem:[%s0 + $0x188] sm:$0xff]
  %v106 = vld [vmem:[%s0 + $0x190] sm:$0xff]
  %v107 = vld [vmem:[%s0 + $0x198] sm:$0xff]
  %v108 = vld [vmem:[%s0 + $0x1a0] sm:$0xff]
  %v109 = vld [vmem:[%s0 + $0x1a8] sm:$0xff]
  %v110 = vld [vmem:[%s0 + $0x1b0] sm:$0xff]
  %v111 = vld [vmem:[%s0 + $0x1b8] sm:$0xff]
  %v112 = vld [vmem:[%s0 + $0x1c0] sm:$0xff]
  %v113 = vld [vmem:[%s0 + $0x1c8] sm:$0xff]
  %v114 = vld [vmem:[%s0 + $0x1d0] sm:$0xff]
  %v115 = vld [vmem:[%s0 + $0x1d8] sm:$0xff]
  %v116 = vld [vmem:[%s0 + $0x1e0] sm:$0xff]
  %v117 = vld [vmem:[%s0 + $0x1e8] sm:$0xff]
  %v118 = vld [vmem:[%s0 + $0x1f0] sm:$0xff]
  %v119 = vld [vmem:[%s0 + $0x1f8] sm:$0xff]
  %v120 = vld [vmem:[%s0 + $0x200] sm:$0xff]
  %v121 = vld [vmem:[%s0 + $0x208] sm:$0xff]
  %v122 = vld [vmem:[%s0 + $0x210] sm:$0xff]
  %v123 = vld [vmem:[%s0 + $0x218] sm:$0xff]
  %v124 = vld [vmem:[%s0 + $0x220] sm:$0xff]
  %v125 = vld [vmem:[%s0 + $0x228] sm:$0xff]
  %v126 = vld [vmem:[%s0 + $0x230] sm:$0xff]
  %v127 = vld [vmem:[%s0 + $0x238] sm:$0xff]
  %v128 = vpack.c.bf16 %v57, %v56
  %v129 = vpack.c.bf16 %v59, %v58
  %v130 = vpack.c.bf16 %v61, %v60
  %v131 = vpack.c.bf16 %v63, %v62
  %v132 = vpack.c.bf16 %v65, %v64
  %v133 = vpack.c.bf16 %v67, %v66
  %v134 = vpack.c.bf16 %v69, %v68
  %v135 = vpack.c.bf16 %v71, %v70
  %v136 = vpack.c.bf16 %v73, %v72
  %v137 = vpack.c.bf16 %v75, %v74
  %v138 = vpack.c.bf16 %v77, %v76
  %v139 = vpack.c.bf16 %v79, %v78
  %v140 = vpack.c.bf16 %v81, %v80
  %v141 = vpack.c.bf16 %v83, %v82
  %v142 = vpack.c.bf16 %v85, %v84
  %v143 = vpack.c.bf16 %v87, %v86
  %v144 = vpack.c.bf16 %v89, %v88
  %v145 = vpack.c.bf16 %v91, %v90
  %v146 = vpack.c.bf16 %v93, %v92
  %v147 = vpack.c.bf16 %v95, %v94
  %v148 = vpack.c.bf16 %v97, %v96
  %v149 = vpack.c.bf16 %v99, %v98
  %v150 = vpack.c.bf16 %v101, %v100
  %v151 = vpack.c.bf16 %v103, %v102
  %v152 = vpack.c.bf16 %v105, %v104
  %v153 = vpack.c.bf16 %v107, %v106
  %v154 = vpack.c.bf16 %v109, %v108
  %v155 = vpack.c.bf16 %v111, %v110
  %v156 = vpack.c.bf16 %v113, %v112
  %v157 = vpack.c.bf16 %v115, %v114
  %v158 = vpack.c.bf16 %v117, %v116
  %v159 = vpack.c.bf16 %v119, %v118
  %v160 = vpack.c.bf16 %v121, %v120
  %v161 = vpack.c.bf16 %v123, %v122
  %v162 = vpack.c.bf16 %v125, %v124
  %v163 = vpack.c.bf16 %v127, %v126
  %v164 = vld [vmem:[%s1] sm:$0xf]
  %v165 = vld [vmem:[%s2] sm:$0x1]
  %v167 = vlaneseq
  %v168 = vshrl.u32 %v167, 7
  %v169 = vsub.s32 0, %v168
  %v170 = vrot.slane %v165, %v169
  %vm172 = vcmask 64512
  %v174 = vsel %vm172, %v128, 0
  %v177 = vsel %vm172, %v129, 0
  %v180 = vsel %vm172, %v130, 0
  %v183 = vsel %vm172, %v131, 0
  %v186 = vsel %vm172, %v132, 0
  %v189 = vsel %vm172, %v133, 0
  %v192 = vsel %vm172, %v134, 0
  %v195 = vsel %vm172, %v135, 0
  %v198 = vsel %vm172, %v136, 0
  %v201 = vsel %vm172, %v137, 0
  %v204 = vsel %vm172, %v138, 0
  %v207 = vsel %vm172, %v139, 0
  %v210 = vsel %vm172, %v140, 0
  %v213 = vsel %vm172, %v141, 0
  %v216 = vsel %vm172, %v142, 0
  %v219 = vsel %vm172, %v143, 0
  %v222 = vsel %vm172, %v144, 0
  %v225 = vsel %vm172, %v145, 0
  %v228 = vsel %vm172, %v146, 0
  %v231 = vsel %vm172, %v147, 0
  %v234 = vsel %vm172, %v148, 0
  %v237 = vsel %vm172, %v149, 0
  %v240 = vsel %vm172, %v150, 0
  %v243 = vsel %vm172, %v151, 0
  %v246 = vsel %vm172, %v152, 0
  %v249 = vsel %vm172, %v153, 0
  %v252 = vsel %vm172, %v154, 0
  %v255 = vsel %vm172, %v155, 0
  %v258 = vsel %vm172, %v156, 0
  %v261 = vsel %vm172, %v157, 0
  %v264 = vsel %vm172, %v158, 0
  %v267 = vsel %vm172, %v159, 0
  %v270 = vsel %vm172, %v160, 0
  %v273 = vsel %vm172, %v161, 0
  %v276 = vsel %vm172, %v162, 0
  %v279 = vsel %vm172, %v163, 0
  %vm281 = vcmask 1043456
  %v283 = vsel %vm281, %v164, 0
  %285 = vmatprep.subr.bf16.mxu0 0
  %286 = vmatpush1.bf16.msra.mxu0 %v283
  %287 = vmatprep.subr.bf16.mxu0 0
  %288 = vmatpush1.bf16.msra.mxu0 0
  %289 = vmatprep.subr.bf16.mxu0 0
  %290 = vmatpush1.bf16.msra.mxu0 0
  %291 = vmatprep.subr.bf16.mxu0 0
  %292 = vmatpush1.bf16.msra.mxu0 0
  %293 = vmatprep.subr.bf16.mxu0 0
  %294 = vmatpush1.bf16.msra.mxu0 0
  %295 = vmatprep.subr.bf16.mxu0 0
  %296 = vmatpush1.bf16.msra.mxu0 0
  %297 = vmatprep.subr.bf16.mxu0 0
  %298 = vmatpush1.bf16.msra.mxu0 0
  %299 = vmatprep.subr.bf16.mxu0 0
  %300 = vmatpush1.bf16.msra.mxu0 0
  %301 = vmatprep.subr.bf16.mxu0 0
  %302 = vmatpush1.bf16.msra.mxu0 0
  %303 = vmatprep.subr.bf16.mxu0 0
  %304 = vmatpush1.bf16.msra.mxu0 0
  %305 = vmatprep.subr.bf16.mxu0 0
  %306 = vmatpush1.bf16.msra.mxu0 0
  %307 = vmatprep.subr.bf16.mxu0 0
  %308 = vmatpush1.bf16.msra.mxu0 0
  %309 = vmatprep.subr.bf16.mxu0 0
  %310 = vmatpush1.bf16.msra.mxu0 0
  %311 = vmatprep.subr.bf16.mxu0 0
  %312 = vmatpush1.bf16.msra.mxu0 0
  %313 = vmatprep.subr.bf16.mxu0 0
  %314 = vmatpush1.bf16.msra.mxu0 0
  %315 = vmatprep.subr.bf16.mxu0 0
  %316 = vmatpush1.bf16.msra.mxu0 0
  %317 = vmatprep.mubr.bf16.mxu0 0
  %318 = vmatmul.mubr.bf16.gmra.mrb[0].mxu0 %v174
  %v319 = vpop.f32.mrb[0].mxu0
  %v320 = vadd.f32 %v170, %v319
  %v321 = vpop.f32.mrb[0].mxu0
  %v322 = vpop.f32.mrb[0].mxu0
  %v323 = vadd.f32 %v170, %v322
  %v324 = vpop.f32.mrb[0].mxu0
  %325 = vmatprep.mubr.bf16.mxu0 0
  %326 = vmatmul.mubr.bf16.gmra.mrb[0].mxu0 %v177
  %v327 = vpop.f32.mrb[0].mxu0
  %v328 = vadd.f32 %v170, %v327
  %v329 = vpop.f32.mrb[0].mxu0
  %v330 = vpop.f32.mrb[0].mxu0
  %v331 = vadd.f32 %v170, %v330
  %v332 = vpop.f32.mrb[0].mxu0
  %333 = vmatprep.mubr.bf16.mxu0 0
  %334 = vmatmul.mubr.bf16.gmra.mrb[0].mxu0 %v180
  %v335 = vpop.f32.mrb[0].mxu0
  %v336 = vadd.f32 %v170, %v335
  %v337 = vpop.f32.mrb[0].mxu0
  %v338 = vpop.f32.mrb[0].mxu0
  %v339 = vadd.f32 %v170, %v338
  %v340 = vpop.f32.mrb[0].mxu0
  %341 = vmatprep.mubr.bf16.mxu0 0
  %342 = vmatmul.mubr.bf16.gmra.mrb[0].mxu0 %v183
  %v343 = vpop.f32.mrb[0].mxu0
  %v344 = vadd.f32 %v170, %v343
  %v345 = vpop.f32.mrb[0].mxu0
  %v346 = vpop.f32.mrb[0].mxu0
  %v347 = vadd.f32 %v170, %v346
  %v348 = vpop.f32.mrb[0].mxu0
  %349 = vmatprep.mubr.bf16.mxu0 0
  %350 = vmatmul.mubr.bf16.gmra.mrb[0].mxu0 %v186
  %v351 = vpop.f32.mrb[0].mxu0
  %v352 = vadd.f32 %v170, %v351
  %v353 = vpop.f32.mrb[0].mxu0
  %v354 = vpop.f32.mrb[0].mxu0
  %v355 = vadd.f32 %v170, %v354
  %v356 = vpop.f32.mrb[0].mxu0
  %357 = vmatprep.mubr.bf16.mxu0 0
  %358 = vmatmul.mubr.bf16.gmra.mrb[0].mxu0 %v189
  %v359 = vpop.f32.mrb[0].mxu0
  %v360 = vadd.f32 %v170, %v359
  %v361 = vpop.f32.mrb[0].mxu0
  %v362 = vpop.f32.mrb[0].mxu0
  %v363 = vadd.f32 %v170, %v362
  %v364 = vpop.f32.mrb[0].mxu0
  %365 = vmatprep.mubr.bf16.mxu0 0
  %366 = vmatmul.mubr.bf16.gmra.mrb[0].mxu0 %v192
  %v367 = vpop.f32.mrb[0].mxu0
  %v368 = vadd.f32 %v170, %v367
  %v369 = vpop.f32.mrb[0].mxu0
  %v370 = vpop.f32.mrb[0].mxu0
  %v371 = vadd.f32 %v170, %v370
  %v372 = vpop.f32.mrb[0].mxu0
  %373 = vmatprep.mubr.bf16.mxu0 0
  %374 = vmatmul.mubr.bf16.gmra.mrb[0].mxu0 %v195
  %v375 = vpop.f32.mrb[0].mxu0
  %v376 = vadd.f32 %v170, %v375
  %v377 = vpop.f32.mrb[0].mxu0
  %v378 = vpop.f32.mrb[0].mxu0
  %v379 = vadd.f32 %v170, %v378
  %v380 = vpop.f32.mrb[0].mxu0
  %381 = vmatprep.mubr.bf16.mxu0 0
  %382 = vmatmul.mubr.bf16.gmra.mrb[0].mxu0 %v198
  %v383 = vpop.f32.mrb[0].mxu0
  %v384 = vadd.f32 %v170, %v383
  %v385 = vpop.f32.mrb[0].mxu0
  %v386 = vpop.f32.mrb[0].mxu0
  %v387 = vadd.f32 %v170, %v386
  %v388 = vpop.f32.mrb[0].mxu0
  %389 = vmatprep.mubr.bf16.mxu0 0
  %390 = vmatmul.mubr.bf16.gmra.mrb[0].mxu0 %v201
  %v391 = vpop.f32.mrb[0].mxu0
  %v392 = vadd.f32 %v170, %v391
  %v393 = vpop.f32.mrb[0].mxu0
  %v394 = vpop.f32.mrb[0].mxu0
  %v395 = vadd.f32 %v170, %v394
  %v396 = vpop.f32.mrb[0].mxu0
  %397 = vmatprep.mubr.bf16.mxu0 0
  %398 = vmatmul.mubr.bf16.gmra.mrb[0].mxu0 %v204
  %v399 = vpop.f32.mrb[0].mxu0
  %v400 = vadd.f32 %v170, %v399
  %v401 = vpop.f32.mrb[0].mxu0
  %v402 = vpop.f32.mrb[0].mxu0
  %v403 = vadd.f32 %v170, %v402
  %v404 = vpop.f32.mrb[0].mxu0
  %405 = vmatprep.mubr.bf16.mxu0 0
  %406 = vmatmul.mubr.bf16.gmra.mrb[0].mxu0 %v207
  %v407 = vpop.f32.mrb[0].mxu0
  %v408 = vadd.f32 %v170, %v407
  %v409 = vpop.f32.mrb[0].mxu0
  %v410 = vpop.f32.mrb[0].mxu0
  %v411 = vadd.f32 %v170, %v410
  %v412 = vpop.f32.mrb[0].mxu0
  %413 = vmatprep.mubr.bf16.mxu0 0
  %414 = vmatmul.mubr.bf16.gmra.mrb[0].mxu0 %v210
  %v415 = vpop.f32.mrb[0].mxu0
  %v416 = vadd.f32 %v170, %v415
  %v417 = vpop.f32.mrb[0].mxu0
  %v418 = vpop.f32.mrb[0].mxu0
  %v419 = vadd.f32 %v170, %v418
  %v420 = vpop.f32.mrb[0].mxu0
  %421 = vmatprep.mubr.bf16.mxu0 0
  %422 = vmatmul.mubr.bf16.gmra.mrb[0].mxu0 %v213
  %v423 = vpop.f32.mrb[0].mxu0
  %v424 = vadd.f32 %v170, %v423
  %v425 = vpop.f32.mrb[0].mxu0
  %v426 = vpop.f32.mrb[0].mxu0
  %v427 = vadd.f32 %v170, %v426
  %v428 = vpop.f32.mrb[0].mxu0
  %429 = vmatprep.mubr.bf16.mxu0 0
  %430 = vmatmul.mubr.bf16.gmra.mrb[0].mxu0 %v216
  %v431 = vpop.f32.mrb[0].mxu0
  %v432 = vadd.f32 %v170, %v431
  %v433 = vpop.f32.mrb[0].mxu0
  %v434 = vpop.f32.mrb[0].mxu0
  %v435 = vadd.f32 %v170, %v434
  %v436 = vpop.f32.mrb[0].mxu0
  %437 = vmatprep.mubr.bf16.mxu0 0
  %438 = vmatmul.mubr.bf16.gmra.mrb[0].mxu0 %v219
  %v439 = vpop.f32.mrb[0].mxu0
  %v440 = vadd.f32 %v170, %v439
  %v441 = vpop.f32.mrb[0].mxu0
  %v442 = vpop.f32.mrb[0].mxu0
  %v443 = vadd.f32 %v170, %v442
  %v444 = vpop.f32.mrb[0].mxu0
  %445 = vmatprep.mubr.bf16.mxu0 0
  %446 = vmatmul.mubr.bf16.gmra.mrb[0].mxu0 %v222
  %v447 = vpop.f32.mrb[0].mxu0
  %v448 = vadd.f32 %v170, %v447
  %v449 = vpop.f32.mrb[0].mxu0
  %v450 = vpop.f32.mrb[0].mxu0
  %v451 = vadd.f32 %v170, %v450
  %v452 = vpop.f32.mrb[0].mxu0
  %453 = vmatprep.mubr.bf16.mxu0 0
  %454 = vmatmul.mubr.bf16.gmra.mrb[0].mxu0 %v225
  %v455 = vpop.f32.mrb[0].mxu0
  %v456 = vadd.f32 %v170, %v455
  %v457 = vpop.f32.mrb[0].mxu0
  %v458 = vpop.f32.mrb[0].mxu0
  %v459 = vadd.f32 %v170, %v458
  %v460 = vpop.f32.mrb[0].mxu0
  %461 = vmatprep.mubr.bf16.mxu0 0
  %462 = vmatmul.mubr.bf16.gmra.mrb[0].mxu0 %v228
  %v463 = vpop.f32.mrb[0].mxu0
  %v464 = vadd.f32 %v170, %v463
  %v465 = vpop.f32.mrb[0].mxu0
  %v466 = vpop.f32.mrb[0].mxu0
  %v467 = vadd.f32 %v170, %v466
  %v468 = vpop.f32.mrb[0].mxu0
  %469 = vmatprep.mubr.bf16.mxu0 0
  %470 = vmatmul.mubr.bf16.gmra.mrb[0].mxu0 %v231
  %v471 = vpop.f32.mrb[0].mxu0
  %v472 = vadd.f32 %v170, %v471
  %v473 = vpop.f32.mrb[0].mxu0
  %v474 = vpop.f32.mrb[0].mxu0
  %v475 = vadd.f32 %v170, %v474
  %v476 = vpop.f32.mrb[0].mxu0
  %477 = vmatprep.mubr.bf16.mxu0 0
  %478 = vmatmul.mubr.bf16.gmra.mrb[0].mxu0 %v234
  %v479 = vpop.f32.mrb[0].mxu0
  %v480 = vadd.f32 %v170, %v479
  %v481 = vpop.f32.mrb[0].mxu0
  %v482 = vpop.f32.mrb[0].mxu0
  %v483 = vadd.f32 %v170, %v482
  %v484 = vpop.f32.mrb[0].mxu0
  %485 = vmatprep.mubr.bf16.mxu0 0
  %486 = vmatmul.mubr.bf16.gmra.mrb[0].mxu0 %v237
  %v487 = vpop.f32.mrb[0].mxu0
  %v488 = vadd.f32 %v170, %v487
  %v489 = vpop.f32.mrb[0].mxu0
  %v490 = vpop.f32.mrb[0].mxu0
  %v491 = vadd.f32 %v170, %v490
  %v492 = vpop.f32.mrb[0].mxu0
  %493 = vmatprep.mubr.bf16.mxu0 0
  %494 = vmatmul.mubr.bf16.gmra.mrb[0].mxu0 %v240
  %v495 = vpop.f32.mrb[0].mxu0
  %v496 = vadd.f32 %v170, %v495
  %v497 = vpop.f32.mrb[0].mxu0
  %v498 = vpop.f32.mrb[0].mxu0
  %v499 = vadd.f32 %v170, %v498
  %v500 = vpop.f32.mrb[0].mxu0
  %501 = vmatprep.mubr.bf16.mxu0 0
  %502 = vmatmul.mubr.bf16.gmra.mrb[0].mxu0 %v243
  %v503 = vpop.f32.mrb[0].mxu0
  %v504 = vadd.f32 %v170, %v503
  %v505 = vpop.f32.mrb[0].mxu0
  %v506 = vpop.f32.mrb[0].mxu0
  %v507 = vadd.f32 %v170, %v506
  %v508 = vpop.f32.mrb[0].mxu0
  %509 = vmatprep.mubr.bf16.mxu0 0
  %510 = vmatmul.mubr.bf16.gmra.mrb[0].mxu0 %v246
  %v511 = vpop.f32.mrb[0].mxu0
  %v512 = vadd.f32 %v170, %v511
  %v513 = vpop.f32.mrb[0].mxu0
  %v514 = vpop.f32.mrb[0].mxu0
  %v515 = vadd.f32 %v170, %v514
  %v516 = vpop.f32.mrb[0].mxu0
  %517 = vmatprep.mubr.bf16.mxu0 0
  %518 = vmatmul.mubr.bf16.gmra.mrb[0].mxu0 %v249
  %v519 = vpop.f32.mrb[0].mxu0
  %v520 = vadd.f32 %v170, %v519
  %v521 = vpop.f32.mrb[0].mxu0
  %v522 = vpop.f32.mrb[0].mxu0
  %v523 = vadd.f32 %v170, %v522
  %v524 = vpop.f32.mrb[0].mxu0
  %525 = vmatprep.mubr.bf16.mxu0 0
  %526 = vmatmul.mubr.bf16.gmra.mrb[0].mxu0 %v252
  %v527 = vpop.f32.mrb[0].mxu0
  %v528 = vadd.f32 %v170, %v527
  %v529 = vpop.f32.mrb[0].mxu0
  %v530 = vpop.f32.mrb[0].mxu0
  %v531 = vadd.f32 %v170, %v530
  %v532 = vpop.f32.mrb[0].mxu0
  %533 = vmatprep.mubr.bf16.mxu0 0
  %534 = vmatmul.mubr.bf16.gmra.mrb[0].mxu0 %v255
  %v535 = vpop.f32.mrb[0].mxu0
  %v536 = vadd.f32 %v170, %v535
  %v537 = vpop.f32.mrb[0].mxu0
  %v538 = vpop.f32.mrb[0].mxu0
  %v539 = vadd.f32 %v170, %v538
  %v540 = vpop.f32.mrb[0].mxu0
  %541 = vmatprep.mubr.bf16.mxu0 0
  %542 = vmatmul.mubr.bf16.gmra.mrb[0].mxu0 %v258
  %v543 = vpop.f32.mrb[0].mxu0
  %v544 = vadd.f32 %v170, %v543
  %v545 = vpop.f32.mrb[0].mxu0
  %v546 = vpop.f32.mrb[0].mxu0
  %v547 = vadd.f32 %v170, %v546
  %v548 = vpop.f32.mrb[0].mxu0
  %549 = vmatprep.mubr.bf16.mxu0 0
  %550 = vmatmul.mubr.bf16.gmra.mrb[0].mxu0 %v261
  %v551 = vpop.f32.mrb[0].mxu0
  %v552 = vadd.f32 %v170, %v551
  %v553 = vpop.f32.mrb[0].mxu0
  %v554 = vpop.f32.mrb[0].mxu0
  %v555 = vadd.f32 %v170, %v554
  %v556 = vpop.f32.mrb[0].mxu0
  %557 = vmatprep.mubr.bf16.mxu0 0
  %558 = vmatmul.mubr.bf16.gmra.mrb[0].mxu0 %v264
  %v559 = vpop.f32.mrb[0].mxu0
  %v560 = vadd.f32 %v170, %v559
  %v561 = vpop.f32.mrb[0].mxu0
  %v562 = vpop.f32.mrb[0].mxu0
  %v563 = vadd.f32 %v170, %v562
  %v564 = vpop.f32.mrb[0].mxu0
  %565 = vmatprep.mubr.bf16.mxu0 0
  %566 = vmatmul.mubr.bf16.gmra.mrb[0].mxu0 %v267
  %v567 = vpop.f32.mrb[0].mxu0
  %v568 = vadd.f32 %v170, %v567
  %v569 = vpop.f32.mrb[0].mxu0
  %v570 = vpop.f32.mrb[0].mxu0
  %v571 = vadd.f32 %v170, %v570
  %v572 = vpop.f32.mrb[0].mxu0
  %573 = vmatprep.mubr.bf16.mxu0 0
  %574 = vmatmul.mubr.bf16.gmra.mrb[0].mxu0 %v270
  %v575 = vpop.f32.mrb[0].mxu0
  %v576 = vadd.f32 %v170, %v575
  %v577 = vpop.f32.mrb[0].mxu0
  %v578 = vpop.f32.mrb[0].mxu0
  %v579 = vadd.f32 %v170, %v578
  %v580 = vpop.f32.mrb[0].mxu0
  %581 = vmatprep.mubr.bf16.mxu0 0
  %582 = vmatmul.mubr.bf16.gmra.mrb[0].mxu0 %v273
  %v583 = vpop.f32.mrb[0].mxu0
  %v584 = vadd.f32 %v170, %v583
  %v585 = vpop.f32.mrb[0].mxu0
  %v586 = vpop.f32.mrb[0].mxu0
  %v587 = vadd.f32 %v170, %v586
  %v588 = vpop.f32.mrb[0].mxu0
  %589 = vmatprep.mubr.bf16.mxu0 0
  %590 = vmatmul.mubr.bf16.gmra.mrb[0].mxu0 %v276
  %v591 = vpop.f32.mrb[0].mxu0
  %v592 = vadd.f32 %v170, %v591
  %v593 = vpop.f32.mrb[0].mxu0
  %v594 = vpop.f32.mrb[0].mxu0
  %v595 = vadd.f32 %v170, %v594
  %v596 = vpop.f32.mrb[0].mxu0
  %597 = vmatprep.mubr.bf16.mxu0 0
  %598 = vmatmul.mubr.bf16.gmra.mrb[0].mxu0 %v279
  %v599 = vpop.f32.mrb[0].mxu0
  %v600 = vadd.f32 %v170, %v599
  %v601 = vpop.f32.mrb[0].mxu0
  %v602 = vpop.f32.mrb[0].mxu0
  %v603 = vadd.f32 %v170, %v602
  %v604 = vpop.f32.mrb[0].mxu0
  %605 = vdwg.mxu0
  %vm606 = vcmask 523264
  %607 = vst.msk [vmem:[#allocation2] sm:$0xff] %vm606, %v320
  %608 = vst.msk [vmem:[#allocation2 + $0x8] sm:$0xff] %vm606, %v323
  %609 = vst.msk [vmem:[#allocation2 + $0x10] sm:$0xff] %vm606, %v328
  %610 = vst.msk [vmem:[#allocation2 + $0x18] sm:$0xff] %vm606, %v331
  %611 = vst.msk [vmem:[#allocation2 + $0x20] sm:$0xff] %vm606, %v336
  %612 = vst.msk [vmem:[#allocation2 + $0x28] sm:$0xff] %vm606, %v339
  %613 = vst.msk [vmem:[#allocation2 + $0x30] sm:$0xff] %vm606, %v344
  %614 = vst.msk [vmem:[#allocation2 + $0x38] sm:$0xff] %vm606, %v347
  %615 = vst.msk [vmem:[#allocation2 + $0x40] sm:$0xff] %vm606, %v352
  %616 = vst.msk [vmem:[#allocation2 + $0x48] sm:$0xff] %vm606, %v355
  %617 = vst.msk [vmem:[#allocation2 + $0x50] sm:$0xff] %vm606, %v360
  %618 = vst.msk [vmem:[#allocation2 + $0x58] sm:$0xff] %vm606, %v363
  %619 = vst.msk [vmem:[#allocation2 + $0x68] sm:$0xff] %vm606, %v368
  %620 = vst.msk [vmem:[#allocation2 + $0x70] sm:$0xff] %vm606, %v371
  %621 = vst.msk [vmem:[#allocation2 + $0x78] sm:$0xff] %vm606, %v376
  %622 = vst.msk [vmem:[#allocation2 + $0x80] sm:$0xff] %vm606, %v379
  %623 = vst.msk [vmem:[#allocation2 + $0x88] sm:$0xff] %vm606, %v384
  %624 = vst.msk [vmem:[#allocation2 + $0x90] sm:$0xff] %vm606, %v387
  %625 = vst.msk [vmem:[#allocation2 + $0x98] sm:$0xff] %vm606, %v392
  %626 = vst.msk [vmem:[#allocation2 + $0xa0] sm:$0xff] %vm606, %v395
  %627 = vst.msk [vmem:[#allocation2 + $0xa8] sm:$0xff] %vm606, %v400
  %628 = vst.msk [vmem:[#allocation2 + $0xb0] sm:$0xff] %vm606, %v403
  %629 = vst.msk [vmem:[#allocation2 + $0xb8] sm:$0xff] %vm606, %v408
  %630 = vst.msk [vmem:[#allocation2 + $0xc0] sm:$0xff] %vm606, %v411
  %631 = vst.msk [vmem:[#allocation2 + $0xd0] sm:$0xff] %vm606, %v416
  %632 = vst.msk [vmem:[#allocation2 + $0xd8] sm:$0xff] %vm606, %v419
  %633 = vst.msk [vmem:[#allocation2 + $0xe0] sm:$0xff] %vm606, %v424
  %634 = vst.msk [vmem:[#allocation2 + $0xe8] sm:$0xff] %vm606, %v427
  %635 = vst.msk [vmem:[#allocation2 + $0xf0] sm:$0xff] %vm606, %v432
  %636 = vst.msk [vmem:[#allocation2 + $0xf8] sm:$0xff] %vm606, %v435
  %637 = vst.msk [vmem:[#allocation2 + $0x100] sm:$0xff] %vm606, %v440
  %638 = vst.msk [vmem:[#allocation2 + $0x108] sm:$0xff] %vm606, %v443
  %639 = vst.msk [vmem:[#allocation2 + $0x110] sm:$0xff] %vm606, %v448
  %640 = vst.msk [vmem:[#allocation2 + $0x118] sm:$0xff] %vm606, %v451
  %641 = vst.msk [vmem:[#allocation2 + $0x120] sm:$0xff] %vm606, %v456
  %642 = vst.msk [vmem:[#allocation2 + $0x128] sm:$0xff] %vm606, %v459
  %643 = vst.msk [vmem:[#allocation2 + $0x138] sm:$0xff] %vm606, %v464
  %644 = vst.msk [vmem:[#allocation2 + $0x140] sm:$0xff] %vm606, %v467
  %645 = vst.msk [vmem:[#allocation2 + $0x148] sm:$0xff] %vm606, %v472
  %646 = vst.msk [vmem:[#allocation2 + $0x150] sm:$0xff] %vm606, %v475
  %647 = vst.msk [vmem:[#allocation2 + $0x158] sm:$0xff] %vm606, %v480
  %648 = vst.msk [vmem:[#allocation2 + $0x160] sm:$0xff] %vm606, %v483
  %649 = vst.msk [vmem:[#allocation2 + $0x168] sm:$0xff] %vm606, %v488
  %650 = vst.msk [vmem:[#allocation2 + $0x170] sm:$0xff] %vm606, %v491
  %651 = vst.msk [vmem:[#allocation2 + $0x178] sm:$0xff] %vm606, %v496
  %652 = vst.msk [vmem:[#allocation2 + $0x180] sm:$0xff] %vm606, %v499
  %653 = vst.msk [vmem:[#allocation2 + $0x188] sm:$0xff] %vm606, %v504
  %654 = vst.msk [vmem:[#allocation2 + $0x190] sm:$0xff] %vm606, %v507
  %655 = vst.msk [vmem:[#allocation2 + $0x1a0] sm:$0xff] %vm606, %v512
  %656 = vst.msk [vmem:[#allocation2 + $0x1a8] sm:$0xff] %vm606, %v515
  %657 = vst.msk [vmem:[#allocation2 + $0x1b0] sm:$0xff] %vm606, %v520
  %658 = vst.msk [vmem:[#allocation2 + $0x1b8] sm:$0xff] %vm606, %v523
  %659 = vst.msk [vmem:[#allocation2 + $0x1c0] sm:$0xff] %vm606, %v528
  %660 = vst.msk [vmem:[#allocation2 + $0x1c8] sm:$0xff] %vm606, %v531
  %661 = vst.msk [vmem:[#allocation2 + $0x1d0] sm:$0xff] %vm606, %v536
  %662 = vst.msk [vmem:[#allocation2 + $0x1d8] sm:$0xff] %vm606, %v539
  %663 = vst.msk [vmem:[#allocation2 + $0x1e0] sm:$0xff] %vm606, %v544
  %664 = vst.msk [vmem:[#allocation2 + $0x1e8] sm:$0xff] %vm606, %v547
  %665 = vst.msk [vmem:[#allocation2 + $0x1f0] sm:$0xff] %vm606, %v552
  %666 = vst.msk [vmem:[#allocation2 + $0x1f8] sm:$0xff] %vm606, %v555
  %667 = vst.msk [vmem:[#allocation2 + $0x208] sm:$0xff] %vm606, %v560
  %668 = vst.msk [vmem:[#allocation2 + $0x210] sm:$0xff] %vm606, %v563
  %669 = vst.msk [vmem:[#allocation2 + $0x218] sm:$0xff] %vm606, %v568
  %670 = vst.msk [vmem:[#allocation2 + $0x220] sm:$0xff] %vm606, %v571
  %671 = vst.msk [vmem:[#allocation2 + $0x228] sm:$0xff] %vm606, %v576
  %672 = vst.msk [vmem:[#allocation2 + $0x230] sm:$0xff] %vm606, %v579
  %673 = vst.msk [vmem:[#allocation2 + $0x238] sm:$0xff] %vm606, %v584
  %674 = vst.msk [vmem:[#allocation2 + $0x240] sm:$0xff] %vm606, %v587
  %675 = vst.msk [vmem:[#allocation2 + $0x248] sm:$0xff] %vm606, %v592
  %676 = vst.msk [vmem:[#allocation2 + $0x250] sm:$0xff] %vm606, %v595
  %677 = vst.msk [vmem:[#allocation2 + $0x258] sm:$0xff] %vm606, %v600
  %678 = vst.msk [vmem:[#allocation2 + $0x260] sm:$0xff] %vm606, %v603
  %679 = vst.msk [vmem:[#allocation2 + $0x60] sm:$0xff] %vm606, 0.0
  %680 = vst.msk [vmem:[#allocation2 + $0xc8] sm:$0xff] %vm606, 0.0
  %681 = vst.msk [vmem:[#allocation2 + $0x130] sm:$0xff] %vm606, 0.0
  %682 = vst.msk [vmem:[#allocation2 + $0x198] sm:$0xff] %vm606, 0.0
  %683 = vst.msk [vmem:[#allocation2 + $0x200] sm:$0xff] %vm606, 0.0
  %684 = vst.msk [vmem:[#allocation2 + $0x268] sm:$0xff] %vm606, 0.0
  %v685 = vlaneseq
  %v686 = vshrl.u32 %v685, 7
  %v687 = vadd.s32 %v686, 8
  %v688 = vadd.s32 %v686, 16
  %v689 = vadd.s32 %v686, 24
  %v690 = vadd.s32 %v686, 32
  %v691 = vadd.s32 %v686, 40
  %v692 = vadd.s32 %v686, 48
  %v693 = vadd.s32 %v686, 56
  %v694 = vadd.s32 %v686, 64
  %v695 = vadd.s32 %v686, 72
  %v696 = vadd.s32 %v686, 80
  %v697 = vadd.s32 %v686, 88
  %vm698 = vcmp.lt.s32.totalorder %v686, 0
  %v699 = vsub.s32 0, %v686
  %v700 = vsel %vm698, %v699, %v686
  %v701 = vshrl.u32 %v700, 4
  %v702 = vand.u32 %v700, 15
  %v703 = vsub.s32 0, %v702
  %v704 = vsel %vm698, %v703, %v702
  %vm705 = vcmp.lt.s32.totalorder %v687, 0
  %v706 = vsub.s32 0, %v687
  %v707 = vsel %vm705, %v706, %v687
  %v708 = vshrl.u32 %v707, 4
  %v709 = vand.u32 %v707, 15
  %v710 = vsub.s32 0, %v709
  %v711 = vsel %vm705, %v710, %v709
  %vm712 = vcmp.lt.s32.totalorder %v688, 0
  %v713 = vsub.s32 0, %v688
  %v714 = vsel %vm712, %v713, %v688
  %v715 = vshrl.u32 %v714, 4
  %v716 = vand.u32 %v714, 15
  %v717 = vsub.s32 0, %v716
  %v718 = vsel %vm712, %v717, %v716
  %vm719 = vcmp.lt.s32.totalorder %v689, 0
  %v720 = vsub.s32 0, %v689
  %v721 = vsel %vm719, %v720, %v689
  %v722 = vshrl.u32 %v721, 4
  %v723 = vand.u32 %v721, 15
  %v724 = vsub.s32 0, %v723
  %v725 = vsel %vm719, %v724, %v723
  %vm726 = vcmp.lt.s32.totalorder %v690, 0
  %v727 = vsub.s32 0, %v690
  %v728 = vsel %vm726, %v727, %v690
  %v729 = vshrl.u32 %v728, 4
  %v730 = vand.u32 %v728, 15
  %v731 = vsub.s32 0, %v730
  %v732 = vsel %vm726, %v731, %v730
  %vm733 = vcmp.lt.s32.totalorder %v691, 0
  %v734 = vsub.s32 0, %v691
  %v735 = vsel %vm733, %v734, %v691
  %v736 = vshrl.u32 %v735, 4
  %v737 = vand.u32 %v735, 15
  %v738 = vsub.s32 0, %v737
  %v739 = vsel %vm733, %v738, %v737
  %vm740 = vcmp.lt.s32.totalorder %v692, 0
  %v741 = vsub.s32 0, %v692
  %v742 = vsel %vm740, %v741, %v692
  %v743 = vshrl.u32 %v742, 4
  %v744 = vand.u32 %v742, 15
  %v745 = vsub.s32 0, %v744
  %v746 = vsel %vm740, %v745, %v744
  %vm747 = vcmp.lt.s32.totalorder %v693, 0
  %v748 = vsub.s32 0, %v693
  %v749 = vsel %vm747, %v748, %v693
  %v750 = vshrl.u32 %v749, 4
  %v751 = vand.u32 %v749, 15
  %v752 = vsub.s32 0, %v751
  %v753 = vsel %vm747, %v752, %v751
  %vm754 = vcmp.lt.s32.totalorder %v694, 0
  %v755 = vsub.s32 0, %v694
  %v756 = vsel %vm754, %v755, %v694
  %v757 = vshrl.u32 %v756, 4
  %v758 = vand.u32 %v756, 15
  %v759 = vsub.s32 0, %v758
  %v760 = vsel %vm754, %v759, %v758
  %vm761 = vcmp.lt.s32.totalorder %v695, 0
  %v762 = vsub.s32 0, %v695
  %v763 = vsel %vm761, %v762, %v695
  %v764 = vshrl.u32 %v763, 4
  %v765 = vand.u32 %v763, 15
  %v766 = vsub.s32 0, %v765
  %v767 = vsel %vm761, %v766, %v765
  %vm768 = vcmp.lt.s32.totalorder %v696, 0
  %v769 = vsub.s32 0, %v696
  %v770 = vsel %vm768, %v769, %v696
  %v771 = vshrl.u32 %v770, 4
  %v772 = vand.u32 %v770, 15
  %v773 = vsub.s32 0, %v772
  %v774 = vsel %vm768, %v773, %v772
  %vm775 = vcmp.lt.s32.totalorder %v697, 0
  %v776 = vsub.s32 0, %v697
  %v777 = vsel %vm775, %v776, %v697
  %v778 = vshrl.u32 %v777, 4
  %v779 = vand.u32 %v777, 15
  %v780 = vsub.s32 0, %v779
  %v781 = vsel %vm775, %v780, %v779
  %vm782 = vcmp.ne.s32.totalorder %v704, 0
  %vm783 = vcmp.ne.s32.totalorder %v711, 0
  %vm784 = vcmp.ne.s32.totalorder %v718, 0
  %vm785 = vcmp.ne.s32.totalorder %v725, 0
  %vm786 = vcmp.ne.s32.totalorder %v732, 0
  %vm787 = vcmp.ne.s32.totalorder %v739, 0
  %vm788 = vcmp.ne.s32.totalorder %v746, 0
  %vm789 = vcmp.ne.s32.totalorder %v753, 0
  %vm790 = vcmp.ne.s32.totalorder %v760, 0
  %vm791 = vcmp.ne.s32.totalorder %v767, 0
  %vm792 = vcmp.ne.s32.totalorder %v774, 0
  %vm793 = vcmp.ne.s32.totalorder %v781, 0
  %vm794 = vcmp.lt.s32.totalorder %v704, 0
  %vm795 = vcmp.lt.s32.totalorder %v711, 0
  %vm796 = vcmp.lt.s32.totalorder %v718, 0
  %vm797 = vcmp.lt.s32.totalorder %v725, 0
  %vm798 = vcmp.lt.s32.totalorder %v732, 0
  %vm799 = vcmp.lt.s32.totalorder %v739, 0
  %vm800 = vcmp.lt.s32.totalorder %v746, 0
  %vm801 = vcmp.lt.s32.totalorder %v753, 0
  %vm802 = vcmp.lt.s32.totalorder %v760, 0
  %vm803 = vcmp.lt.s32.totalorder %v767, 0
  %vm804 = vcmp.lt.s32.totalorder %v774, 0
  %vm805 = vcmp.lt.s32.totalorder %v781, 0
  %vm806 = vmand %vm794, %vm782
  %vm807 = vmand %vm795, %vm783
  %vm808 = vmand %vm796, %vm784
  %vm809 = vmand %vm797, %vm785
  %vm810 = vmand %vm798, %vm786
  %vm811 = vmand %vm799, %vm787
  %vm812 = vmand %vm800, %vm788
  %vm813 = vmand %vm801, %vm789
  %vm814 = vmand %vm802, %vm790
  %vm815 = vmand %vm803, %vm791
  %vm816 = vmand %vm804, %vm792
  %vm817 = vmand %vm805, %vm793
  %v818 = vadd.s32 %v704, 16
  %v819 = vadd.s32 %v711, 16
  %v820 = vadd.s32 %v718, 16
  %v821 = vadd.s32 %v725, 16
  %v822 = vadd.s32 %v732, 16
  %v823 = vadd.s32 %v739, 16
  %v824 = vadd.s32 %v746, 16
  %v825 = vadd.s32 %v753, 16
  %v826 = vadd.s32 %v760, 16
  %v827 = vadd.s32 %v767, 16
  %v828 = vadd.s32 %v774, 16
  %v829 = vadd.s32 %v781, 16
  %v830 = vsel %vm806, %v818, %v704
  %v831 = vsel %vm807, %v819, %v711
  %v832 = vsel %vm808, %v820, %v718
  %v833 = vsel %vm809, %v821, %v725
  %v834 = vsel %vm810, %v822, %v732
  %v835 = vsel %vm811, %v823, %v739
  %v836 = vsel %vm812, %v824, %v746
  %v837 = vsel %vm813, %v825, %v753
  %v838 = vsel %vm814, %v826, %v760
  %v839 = vsel %vm815, %v827, %v767
  %v840 = vsel %vm816, %v828, %v774
  %v841 = vsel %vm817, %v829, %v781
  %vm842 = vcmp.ne.s32.totalorder %v830, 0
  %vm843 = vcmp.ne.s32.totalorder %v831, 0
  %vm844 = vcmp.ne.s32.totalorder %v832, 0
  %vm845 = vcmp.ne.s32.totalorder %v833, 0
  %vm846 = vcmp.ne.s32.totalorder %v834, 0
  %vm847 = vcmp.ne.s32.totalorder %v835, 0
  %vm848 = vcmp.ne.s32.totalorder %v836, 0
  %vm849 = vcmp.ne.s32.totalorder %v837, 0
  %vm850 = vcmp.ne.s32.totalorder %v838, 0
  %vm851 = vcmp.ne.s32.totalorder %v839, 0
  %vm852 = vcmp.ne.s32.totalorder %v840, 0
  %vm853 = vcmp.ne.s32.totalorder %v841, 0
  %v854 = vsel %vm842, 1, 0
  %v855 = vsel %vm843, 1, 0
  %v856 = vsel %vm844, 1, 0
  %v857 = vsel %vm845, 1, 0
  %v858 = vsel %vm846, 1, 0
  %v859 = vsel %vm847, 1, 0
  %v860 = vsel %vm848, 1, 0
  %v861 = vsel %vm849, 1, 0
  %v862 = vsel %vm850, 1, 0
  %v863 = vsel %vm851, 1, 0
  %v864 = vsel %vm852, 1, 0
  %v865 = vsel %vm853, 1, 0
  %v866 = vcvt.s32.f32 %v854
  %v867 = vcvt.s32.f32 %v855
  %v868 = vcvt.s32.f32 %v856
  %v869 = vcvt.s32.f32 %v857
  %v870 = vcvt.s32.f32 %v858
  %v871 = vcvt.s32.f32 %v859
  %v872 = vcvt.s32.f32 %v860
  %v873 = vcvt.s32.f32 %v861
  %v874 = vcvt.s32.f32 %v862
  %v875 = vcvt.s32.f32 %v863
  %v876 = vcvt.s32.f32 %v864
  %v877 = vcvt.s32.f32 %v865
  %vm878 = vcmp.ne.s32.totalorder %v830, 15
  %vm879 = vcmp.ne.s32.totalorder %v831, 15
  %vm880 = vcmp.ne.s32.totalorder %v832, 15
  %vm881 = vcmp.ne.s32.totalorder %v833, 15
  %vm882 = vcmp.ne.s32.totalorder %v834, 15
  %vm883 = vcmp.ne.s32.totalorder %v835, 15
  %vm884 = vcmp.ne.s32.totalorder %v836, 15
  %vm885 = vcmp.ne.s32.totalorder %v837, 15
  %vm886 = vcmp.ne.s32.totalorder %v838, 15
  %vm887 = vcmp.ne.s32.totalorder %v839, 15
  %vm888 = vcmp.ne.s32.totalorder %v840, 15
  %vm889 = vcmp.ne.s32.totalorder %v841, 15
  %v890 = vsel %vm878, 1, 0
  %v891 = vsel %vm879, 1, 0
  %v892 = vsel %vm880, 1, 0
  %v893 = vsel %vm881, 1, 0
  %v894 = vsel %vm882, 1, 0
  %v895 = vsel %vm883, 1, 0
  %v896 = vsel %vm884, 1, 0
  %v897 = vsel %vm885, 1, 0
  %v898 = vsel %vm886, 1, 0
  %v899 = vsel %vm887, 1, 0
  %v900 = vsel %vm888, 1, 0
  %v901 = vsel %vm889, 1, 0
  %v902 = vcvt.s32.f32 %v890
  %v903 = vcvt.s32.f32 %v891
  %v904 = vcvt.s32.f32 %v892
  %v905 = vcvt.s32.f32 %v893
  %v906 = vcvt.s32.f32 %v894
  %v907 = vcvt.s32.f32 %v895
  %v908 = vcvt.s32.f32 %v896
  %v909 = vcvt.s32.f32 %v897
  %v910 = vcvt.s32.f32 %v898
  %v911 = vcvt.s32.f32 %v899
  %v912 = vcvt.s32.f32 %v900
  %v913 = vcvt.s32.f32 %v901
  %v914 = vld [vmem:[#allocation2 + $0xa] sm:$0xff]
  %v915 = vld [vmem:[#allocation2 + $0x12] sm:$0xff]
  %v916 = vld [vmem:[#allocation2 + $0x72] sm:$0xff]
  %v917 = vld [vmem:[#allocation2 + $0x7a] sm:$0xff]
  %v918 = vld [vmem:[#allocation2 + $0xda] sm:$0xff]
  %v919 = vld [vmem:[#allocation2 + $0xe2] sm:$0xff]
  %v920 = vld [vmem:[#allocation2 + $0x142] sm:$0xff]
  %v921 = vld [vmem:[#allocation2 + $0x14a] sm:$0xff]
  %v922 = vld [vmem:[#allocation2 + $0x1aa] sm:$0xff]
  %v923 = vld [vmem:[#allocation2 + $0x1b2] sm:$0xff]
  %v924 = vld [vmem:[#allocation2 + $0x212] sm:$0xff]
  %v925 = vld [vmem:[#allocation2 + $0x21a] sm:$0xff]
  %v926 = vld [vmem:[#allocation2 + $0xc] sm:$0xff]
  %v927 = vld [vmem:[#allocation2 + $0x14] sm:$0xff]
  %v928 = vld [vmem:[#allocation2 + $0x74] sm:$0xff]
  %v929 = vld [vmem:[#allocation2 + $0x7c] sm:$0xff]
  %v930 = vld [vmem:[#allocation2 + $0xdc] sm:$0xff]
  %v931 = vld [vmem:[#allocation2 + $0xe4] sm:$0xff]
  %v932 = vld [vmem:[#allocation2 + $0x144] sm:$0xff]
  %v933 = vld [vmem:[#allocation2 + $0x14c] sm:$0xff]
  %v934 = vld [vmem:[#allocation2 + $0x1ac] sm:$0xff]
  %v935 = vld [vmem:[#allocation2 + $0x1b4] sm:$0xff]
  %v936 = vld [vmem:[#allocation2 + $0x214] sm:$0xff]
  %v937 = vld [vmem:[#allocation2 + $0x21c] sm:$0xff]
  %v938 = vld [vmem:[#allocation2 + $0xe] sm:$0xff]
  %v939 = vld [vmem:[#allocation2 + $0x16] sm:$0xff]
  %v940 = vld [vmem:[#allocation2 + $0x76] sm:$0xff]
  %v941 = vld [vmem:[#allocation2 + $0x7e] sm:$0xff]
  %v942 = vld [vmem:[#allocation2 + $0xde] sm:$0xff]
  %v943 = vld [vmem:[#allocation2 + $0xe6] sm:$0xff]
  %v944 = vld [vmem:[#allocation2 + $0x146] sm:$0xff]
  %v945 = vld [vmem:[#allocation2 + $0x14e] sm:$0xff]
  %v946 = vld [vmem:[#allocation2 + $0x1ae] sm:$0xff]
  %v947 = vld [vmem:[#allocation2 + $0x1b6] sm:$0xff]
  %v948 = vld [vmem:[#allocation2 + $0x216] sm:$0xff]
  %v949 = vld [vmem:[#allocation2 + $0x21e] sm:$0xff]
  %v950 = vld [vmem:[#allocation2 + $0x10] sm:$0xff]
  %v951 = vld [vmem:[#allocation2 + $0x18] sm:$0xff]
  %v952 = vld [vmem:[#allocation2 + $0x78] sm:$0xff]
  %v953 = vld [vmem:[#allocation2 + $0x80] sm:$0xff]
  %v954 = vld [vmem:[#allocation2 + $0xe0] sm:$0xff]
  %v955 = vld [vmem:[#allocation2 + $0xe8] sm:$0xff]
  %v956 = vld [vmem:[#allocation2 + $0x148] sm:$0xff]
  %v957 = vld [vmem:[#allocation2 + $0x150] sm:$0xff]
  %v958 = vld [vmem:[#allocation2 + $0x1b0] sm:$0xff]
  %v959 = vld [vmem:[#allocation2 + $0x1b8] sm:$0xff]
  %v960 = vld [vmem:[#allocation2 + $0x218] sm:$0xff]
  %v961 = vld [vmem:[#allocation2 + $0x220] sm:$0xff]
  %v962 = vld [vmem:[#allocation2 + $0x1a] sm:$0xff]
  %v963 = vld [vmem:[#allocation2 + $0x82] sm:$0xff]
  %v964 = vld [vmem:[#allocation2 + $0xea] sm:$0xff]
  %v965 = vld [vmem:[#allocation2 + $0x152] sm:$0xff]
  %v966 = vld [vmem:[#allocation2 + $0x1ba] sm:$0xff]
  %v967 = vld [vmem:[#allocation2 + $0x222] sm:$0xff]
  %v968 = vld [vmem:[#allocation2 + $0x1c] sm:$0xff]
  %v969 = vld [vmem:[#allocation2 + $0x84] sm:$0xff]
  %v970 = vld [vmem:[#allocation2 + $0xec] sm:$0xff]
  %v971 = vld [vmem:[#allocation2 + $0x154] sm:$0xff]
  %v972 = vld [vmem:[#allocation2 + $0x1bc] sm:$0xff]
  %v973 = vld [vmem:[#allocation2 + $0x224] sm:$0xff]
  %v974 = vld [vmem:[#allocation2 + $0x1e] sm:$0xff]
  %v975 = vld [vmem:[#allocation2 + $0x86] sm:$0xff]
  %v976 = vld [vmem:[#allocation2 + $0xee] sm:$0xff]
  %v977 = vld [vmem:[#allocation2 + $0x156] sm:$0xff]
  %v978 = vld [vmem:[#allocation2 + $0x1be] sm:$0xff]
  %v979 = vld [vmem:[#allocation2 + $0x226] sm:$0xff]
  %v980 = vld [vmem:[#allocation2 + $0x20] sm:$0xff]
  %v981 = vld [vmem:[#allocation2 + $0x88] sm:$0xff]
  %v982 = vld [vmem:[#allocation2 + $0xf0] sm:$0xff]
  %v983 = vld [vmem:[#allocation2 + $0x158] sm:$0xff]
  %v984 = vld [vmem:[#allocation2 + $0x1c0] sm:$0xff]
  %v985 = vld [vmem:[#allocation2 + $0x228] sm:$0xff]
  %v986 = vld [vmem:[#allocation2 + $0x22] sm:$0xff]
  %v987 = vld [vmem:[#allocation2 + $0x8a] sm:$0xff]
  %v988 = vld [vmem:[#allocation2 + $0xf2] sm:$0xff]
  %v989 = vld [vmem:[#allocation2 + $0x15a] sm:$0xff]
  %v990 = vld [vmem:[#allocation2 + $0x1c2] sm:$0xff]
  %v991 = vld [vmem:[#allocation2 + $0x22a] sm:$0xff]
  %v992 = vld [vmem:[#allocation2 + $0x24] sm:$0xff]
  %v993 = vld [vmem:[#allocation2 + $0x8c] sm:$0xff]
  %v994 = vld [vmem:[#allocation2 + $0xf4] sm:$0xff]
  %v995 = vld [vmem:[#allocation2 + $0x15c] sm:$0xff]
  %v996 = vld [vmem:[#allocation2 + $0x1c4] sm:$0xff]
  %v997 = vld [vmem:[#allocation2 + $0x22c] sm:$0xff]
  %v998 = vld [vmem:[#allocation2 + $0x26] sm:$0xff]
  %v999 = vld [vmem:[#allocation2 + $0x8e] sm:$0xff]
  %v1000 = vld [vmem:[#allocation2 + $0xf6] sm:$0xff]
  %v1001 = vld [vmem:[#allocation2 + $0x15e] sm:$0xff]
  %v1002 = vld [vmem:[#allocation2 + $0x1c6] sm:$0xff]
  %v1003 = vld [vmem:[#allocation2 + $0x22e] sm:$0xff]
  %v1004 = vld [vmem:[#allocation2 + $0x28] sm:$0xff]
  %v1005 = vld [vmem:[#allocation2 + $0x90] sm:$0xff]
  %v1006 = vld [vmem:[#allocation2 + $0xf8] sm:$0xff]
  %v1007 = vld [vmem:[#allocation2 + $0x160] sm:$0xff]
  %v1008 = vld [vmem:[#allocation2 + $0x1c8] sm:$0xff]
  %v1009 = vld [vmem:[#allocation2 + $0x230] sm:$0xff]
  %v1010 = vld [vmem:[#allocation2 + $0x2a] sm:$0xff]
  %v1011 = vld [vmem:[#allocation2 + $0x92] sm:$0xff]
  %v1012 = vld [vmem:[#allocation2 + $0xfa] sm:$0xff]
  %v1013 = vld [vmem:[#allocation2 + $0x162] sm:$0xff]
  %v1014 = vld [vmem:[#allocation2 + $0x1ca] sm:$0xff]
  %v1015 = vld [vmem:[#allocation2 + $0x232] sm:$0xff]
  %v1016 = vld [vmem:[#allocation2 + $0x2c] sm:$0xff]
  %v1017 = vld [vmem:[#allocation2 + $0x94] sm:$0xff]
  %v1018 = vld [vmem:[#allocation2 + $0xfc] sm:$0xff]
  %v1019 = vld [vmem:[#allocation2 + $0x164] sm:$0xff]
  %v1020 = vld [vmem:[#allocation2 + $0x1cc] sm:$0xff]
  %v1021 = vld [vmem:[#allocation2 + $0x234] sm:$0xff]
  %v1022 = vld [vmem:[#allocation2 + $0x2e] sm:$0xff]
  %v1023 = vld [vmem:[#allocation2 + $0x96] sm:$0xff]
  %v1024 = vld [vmem:[#allocation2 + $0xfe] sm:$0xff]
  %v1025 = vld [vmem:[#allocation2 + $0x166] sm:$0xff]
  %v1026 = vld [vmem:[#allocation2 + $0x1ce] sm:$0xff]
  %v1027 = vld [vmem:[#allocation2 + $0x236] sm:$0xff]
  %v1028 = vld [vmem:[#allocation2 + $0x30] sm:$0xff]
  %v1029 = vld [vmem:[#allocation2 + $0x98] sm:$0xff]
  %v1030 = vld [vmem:[#allocation2 + $0x100] sm:$0xff]
  %v1031 = vld [vmem:[#allocation2 + $0x168] sm:$0xff]
  %v1032 = vld [vmem:[#allocation2 + $0x1d0] sm:$0xff]
  %v1033 = vld [vmem:[#allocation2 + $0x238] sm:$0xff]
  %v1034 = vld [vmem:[#allocation2 + $0x32] sm:$0xff]
  %v1035 = vld [vmem:[#allocation2 + $0x9a] sm:$0xff]
  %v1036 = vld [vmem:[#allocation2 + $0x102] sm:$0xff]
  %v1037 = vld [vmem:[#allocation2 + $0x16a] sm:$0xff]
  %v1038 = vld [vmem:[#allocation2 + $0x1d2] sm:$0xff]
  %v1039 = vld [vmem:[#allocation2 + $0x23a] sm:$0xff]
  %v1040 = vld [vmem:[#allocation2 + $0x34] sm:$0xff]
  %v1041 = vld [vmem:[#allocation2 + $0x9c] sm:$0xff]
  %v1042 = vld [vmem:[#allocation2 + $0x104] sm:$0xff]
  %v1043 = vld [vmem:[#allocation2 + $0x16c] sm:$0xff]
  %v1044 = vld [vmem:[#allocation2 + $0x1d4] sm:$0xff]
  %v1045 = vld [vmem:[#allocation2 + $0x23c] sm:$0xff]
  %v1046 = vld [vmem:[#allocation2 + $0x2d] sm:$0xff]
  %v1047 = vld [vmem:[#allocation2 + $0x35] sm:$0xff]
  %v1048 = vld [vmem:[#allocation2 + $0x95] sm:$0xff]
  %v1049 = vld [vmem:[#allocation2 + $0x9d] sm:$0xff]
  %v1050 = vld [vmem:[#allocation2 + $0xfd] sm:$0xff]
  %v1051 = vld [vmem:[#allocation2 + $0x105] sm:$0xff]
  %v1052 = vld [vmem:[#allocation2 + $0x165] sm:$0xff]
  %v1053 = vld [vmem:[#allocation2 + $0x16d] sm:$0xff]
  %v1054 = vld [vmem:[#allocation2 + $0x1cd] sm:$0xff]
  %v1055 = vld [vmem:[#allocation2 + $0x1d5] sm:$0xff]
  %v1056 = vld [vmem:[#allocation2 + $0x235] sm:$0xff]
  %v1057 = vld [vmem:[#allocation2 + $0x23d] sm:$0xff]
  %v1058 = vld [vmem:[#allocation2 + $0x36] sm:$0xff]
  %v1059 = vld [vmem:[#allocation2 + $0x9e] sm:$0xff]
  %v1060 = vld [vmem:[#allocation2 + $0x106] sm:$0xff]
  %v1061 = vld [vmem:[#allocation2 + $0x16e] sm:$0xff]
  %v1062 = vld [vmem:[#allocation2 + $0x1d6] sm:$0xff]
  %v1063 = vld [vmem:[#allocation2 + $0x23e] sm:$0xff]
  %v1064 = vld [vmem:[#allocation2 + $0x2f] sm:$0xff]
  %v1065 = vld [vmem:[#allocation2 + $0x37] sm:$0xff]
  %v1066 = vld [vmem:[#allocation2 + $0x97] sm:$0xff]
  %v1067 = vld [vmem:[#allocation2 + $0x9f] sm:$0xff]
  %v1068 = vld [vmem:[#allocation2 + $0xff] sm:$0xff]
  %v1069 = vld [vmem:[#allocation2 + $0x107] sm:$0xff]
  %v1070 = vld [vmem:[#allocation2 + $0x167] sm:$0xff]
  %v1071 = vld [vmem:[#allocation2 + $0x16f] sm:$0xff]
  %v1072 = vld [vmem:[#allocation2 + $0x1cf] sm:$0xff]
  %v1073 = vld [vmem:[#allocation2 + $0x1d7] sm:$0xff]
  %v1074 = vld [vmem:[#allocation2 + $0x237] sm:$0xff]
  %v1075 = vld [vmem:[#allocation2 + $0x23f] sm:$0xff]
  %v1076 = vld [vmem:[#allocation2 + $0x38] sm:$0xff]
  %v1077 = vld [vmem:[#allocation2 + $0xa0] sm:$0xff]
  %v1078 = vld [vmem:[#allocation2 + $0x108] sm:$0xff]
  %v1079 = vld [vmem:[#allocation2 + $0x170] sm:$0xff]
  %v1080 = vld [vmem:[#allocation2 + $0x1d8] sm:$0xff]
  %v1081 = vld [vmem:[#allocation2 + $0x240] sm:$0xff]
  %v1082 = vld [vmem:[#allocation2 + $0x31] sm:$0xff]
  %v1083 = vld [vmem:[#allocation2 + $0x39] sm:$0xff]
  %v1084 = vld [vmem:[#allocation2 + $0x99] sm:$0xff]
  %v1085 = vld [vmem:[#allocation2 + $0xa1] sm:$0xff]
  %v1086 = vld [vmem:[#allocation2 + $0x101] sm:$0xff]
  %v1087 = vld [vmem:[#allocation2 + $0x109] sm:$0xff]
  %v1088 = vld [vmem:[#allocation2 + $0x169] sm:$0xff]
  %v1089 = vld [vmem:[#allocation2 + $0x171] sm:$0xff]
  %v1090 = vld [vmem:[#allocation2 + $0x1d1] sm:$0xff]
  %v1091 = vld [vmem:[#allocation2 + $0x1d9] sm:$0xff]
  %v1092 = vld [vmem:[#allocation2 + $0x239] sm:$0xff]
  %v1093 = vld [vmem:[#allocation2 + $0x241] sm:$0xff]
  %v1094 = vld [vmem:[#allocation2 + $0x3a] sm:$0xff]
  %v1095 = vld [vmem:[#allocation2 + $0xa2] sm:$0xff]
  %v1096 = vld [vmem:[#allocation2 + $0x10a] sm:$0xff]
  %v1097 = vld [vmem:[#allocation2 + $0x172] sm:$0xff]
  %v1098 = vld [vmem:[#allocation2 + $0x1da] sm:$0xff]
  %v1099 = vld [vmem:[#allocation2 + $0x242] sm:$0xff]
  %v1100 = vld [vmem:[#allocation2 + $0x33] sm:$0xff]
  %v1101 = vld [vmem:[#allocation2 + $0x3b] sm:$0xff]
  %v1102 = vld [vmem:[#allocation2 + $0x9b] sm:$0xff]
  %v1103 = vld [vmem:[#allocation2 + $0xa3] sm:$0xff]
  %v1104 = vld [vmem:[#allocation2 + $0x103] sm:$0xff]
  %v1105 = vld [vmem:[#allocation2 + $0x10b] sm:$0xff]
  %v1106 = vld [vmem:[#allocation2 + $0x16b] sm:$0xff]
  %v1107 = vld [vmem:[#allocation2 + $0x173] sm:$0xff]
  %v1108 = vld [vmem:[#allocation2 + $0x1d3] sm:$0xff]
  %v1109 = vld [vmem:[#allocation2 + $0x1db] sm:$0xff]
  %v1110 = vld [vmem:[#allocation2 + $0x23b] sm:$0xff]
  %v1111 = vld [vmem:[#allocation2 + $0x243] sm:$0xff]
  %v1112 = vld [vmem:[#allocation2 + $0x3c] sm:$0xff]
  %v1113 = vld [vmem:[#allocation2 + $0xa4] sm:$0xff]
  %v1114 = vld [vmem:[#allocation2 + $0x10c] sm:$0xff]
  %v1115 = vld [vmem:[#allocation2 + $0x174] sm:$0xff]
  %v1116 = vld [vmem:[#allocation2 + $0x1dc] sm:$0xff]
  %v1117 = vld [vmem:[#allocation2 + $0x244] sm:$0xff]
  %v1118 = vld [vmem:[#allocation2 + $0x3d] sm:$0xff]
  %v1119 = vld [vmem:[#allocation2 + $0xa5] sm:$0xff]
  %v1120 = vld [vmem:[#allocation2 + $0x10d] sm:$0xff]
  %v1121 = vld [vmem:[#allocation2 + $0x175] sm:$0xff]
  %v1122 = vld [vmem:[#allocation2 + $0x1dd] sm:$0xff]
  %v1123 = vld [vmem:[#allocation2 + $0x245] sm:$0xff]
  %v1124 = vld [vmem:[#allocation2 + $0x3e] sm:$0xff]
  %v1125 = vld [vmem:[#allocation2 + $0xa6] sm:$0xff]
  %v1126 = vld [vmem:[#allocation2 + $0x10e] sm:$0xff]
  %v1127 = vld [vmem:[#allocation2 + $0x176] sm:$0xff]
  %v1128 = vld [vmem:[#allocation2 + $0x1de] sm:$0xff]
  %v1129 = vld [vmem:[#allocation2 + $0x246] sm:$0xff]
  %v1130 = vld [vmem:[#allocation2 + $0x3f] sm:$0xff]
  %v1131 = vld [vmem:[#allocation2 + $0xa7] sm:$0xff]
  %v1132 = vld [vmem:[#allocation2 + $0x10f] sm:$0xff]
  %v1133 = vld [vmem:[#allocation2 + $0x177] sm:$0xff]
  %v1134 = vld [vmem:[#allocation2 + $0x1df] sm:$0xff]
  %v1135 = vld [vmem:[#allocation2 + $0x247] sm:$0xff]
  %v1136 = vld [vmem:[#allocation2 + $0x40] sm:$0xff]
  %v1137 = vld [vmem:[#allocation2 + $0xa8] sm:$0xff]
  %v1138 = vld [vmem:[#allocation2 + $0x110] sm:$0xff]
  %v1139 = vld [vmem:[#allocation2 + $0x178] sm:$0xff]
  %v1140 = vld [vmem:[#allocation2 + $0x1e0] sm:$0xff]
  %v1141 = vld [vmem:[#allocation2 + $0x248] sm:$0xff]
  %v1142 = vld [vmem:[#allocation2 + $0x41] sm:$0xff]
  %v1143 = vld [vmem:[#allocation2 + $0xa9] sm:$0xff]
  %v1144 = vld [vmem:[#allocation2 + $0x111] sm:$0xff]
  %v1145 = vld [vmem:[#allocation2 + $0x179] sm:$0xff]
  %v1146 = vld [vmem:[#allocation2 + $0x1e1] sm:$0xff]
  %v1147 = vld [vmem:[#allocation2 + $0x249] sm:$0xff]
  %v1148 = vld [vmem:[#allocation2 + $0x42] sm:$0xff]
  %v1149 = vld [vmem:[#allocation2 + $0xaa] sm:$0xff]
  %v1150 = vld [vmem:[#allocation2 + $0x112] sm:$0xff]
  %v1151 = vld [vmem:[#allocation2 + $0x17a] sm:$0xff]
  %v1152 = vld [vmem:[#allocation2 + $0x1e2] sm:$0xff]
  %v1153 = vld [vmem:[#allocation2 + $0x24a] sm:$0xff]
  %v1154 = vld [vmem:[#allocation2 + $0x43] sm:$0xff]
  %v1155 = vld [vmem:[#allocation2 + $0xab] sm:$0xff]
  %v1156 = vld [vmem:[#allocation2 + $0x113] sm:$0xff]
  %v1157 = vld [vmem:[#allocation2 + $0x17b] sm:$0xff]
  %v1158 = vld [vmem:[#allocation2 + $0x1e3] sm:$0xff]
  %v1159 = vld [vmem:[#allocation2 + $0x24b] sm:$0xff]
  %v1160 = vld [vmem:[#allocation2 + $0x44] sm:$0xff]
  %v1161 = vld [vmem:[#allocation2 + $0xac] sm:$0xff]
  %v1162 = vld [vmem:[#allocation2 + $0x114] sm:$0xff]
  %v1163 = vld [vmem:[#allocation2 + $0x17c] sm:$0xff]
  %v1164 = vld [vmem:[#allocation2 + $0x1e4] sm:$0xff]
  %v1165 = vld [vmem:[#allocation2 + $0x24c] sm:$0xff]
  %v1166 = vld [vmem:[#allocation2 + $0x45] sm:$0xff]
  %v1167 = vld [vmem:[#allocation2 + $0xad] sm:$0xff]
  %v1168 = vld [vmem:[#allocation2 + $0x115] sm:$0xff]
  %v1169 = vld [vmem:[#allocation2 + $0x17d] sm:$0xff]
  %v1170 = vld [vmem:[#allocation2 + $0x1e5] sm:$0xff]
  %v1171 = vld [vmem:[#allocation2 + $0x24d] sm:$0xff]
  %v1172 = vld [vmem:[#allocation2 + $0x46] sm:$0xff]
  %v1173 = vld [vmem:[#allocation2 + $0xae] sm:$0xff]
  %v1174 = vld [vmem:[#allocation2 + $0x116] sm:$0xff]
  %v1175 = vld [vmem:[#allocation2 + $0x17e] sm:$0xff]
  %v1176 = vld [vmem:[#allocation2 + $0x1e6] sm:$0xff]
  %v1177 = vld [vmem:[#allocation2 + $0x24e] sm:$0xff]
  %v1178 = vld [vmem:[#allocation2 + $0x47] sm:$0xff]
  %v1179 = vld [vmem:[#allocation2 + $0xaf] sm:$0xff]
  %v1180 = vld [vmem:[#allocation2 + $0x117] sm:$0xff]
  %v1181 = vld [vmem:[#allocation2 + $0x17f] sm:$0xff]
  %v1182 = vld [vmem:[#allocation2 + $0x1e7] sm:$0xff]
  %v1183 = vld [vmem:[#allocation2 + $0x24f] sm:$0xff]
  %v1184 = vld [vmem:[#allocation2 + $0x48] sm:$0xff]
  %v1185 = vld [vmem:[#allocation2 + $0xb0] sm:$0xff]
  %v1186 = vld [vmem:[#allocation2 + $0x118] sm:$0xff]
  %v1187 = vld [vmem:[#allocation2 + $0x180] sm:$0xff]
  %v1188 = vld [vmem:[#allocation2 + $0x1e8] sm:$0xff]
  %v1189 = vld [vmem:[#allocation2 + $0x250] sm:$0xff]
  %v1190 = vld [vmem:[#allocation2 + $0x49] sm:$0xff]
  %v1191 = vld [vmem:[#allocation2 + $0xb1] sm:$0xff]
  %v1192 = vld [vmem:[#allocation2 + $0x119] sm:$0xff]
  %v1193 = vld [vmem:[#allocation2 + $0x181] sm:$0xff]
  %v1194 = vld [vmem:[#allocation2 + $0x1e9] sm:$0xff]
  %v1195 = vld [vmem:[#allocation2 + $0x251] sm:$0xff]
  %v1196 = vld [vmem:[#allocation2 + $0x4a] sm:$0xff]
  %v1197 = vld [vmem:[#allocation2 + $0xb2] sm:$0xff]
  %v1198 = vld [vmem:[#allocation2 + $0x11a] sm:$0xff]
  %v1199 = vld [vmem:[#allocation2 + $0x182] sm:$0xff]
  %v1200 = vld [vmem:[#allocation2 + $0x1ea] sm:$0xff]
  %v1201 = vld [vmem:[#allocation2 + $0x252] sm:$0xff]
  %v1202 = vld [vmem:[#allocation2 + $0x4b] sm:$0xff]
  %v1203 = vld [vmem:[#allocation2 + $0xb3] sm:$0xff]
  %v1204 = vld [vmem:[#allocation2 + $0x11b] sm:$0xff]
  %v1205 = vld [vmem:[#allocation2 + $0x183] sm:$0xff]
  %v1206 = vld [vmem:[#allocation2 + $0x1eb] sm:$0xff]
  %v1207 = vld [vmem:[#allocation2 + $0x253] sm:$0xff]
  %v1208 = vld [vmem:[#allocation2 + $0x4c] sm:$0xff]
  %v1209 = vld [vmem:[#allocation2 + $0xb4] sm:$0xff]
  %v1210 = vld [vmem:[#allocation2 + $0x11c] sm:$0xff]
  %v1211 = vld [vmem:[#allocation2 + $0x184] sm:$0xff]
  %v1212 = vld [vmem:[#allocation2 + $0x1ec] sm:$0xff]
  %v1213 = vld [vmem:[#allocation2 + $0x254] sm:$0xff]
  %v1214 = vld [vmem:[#allocation2 + $0x4d] sm:$0xff]
  %v1215 = vld [vmem:[#allocation2 + $0xb5] sm:$0xff]
  %v1216 = vld [vmem:[#allocation2 + $0x11d] sm:$0xff]
  %v1217 = vld [vmem:[#allocation2 + $0x185] sm:$0xff]
  %v1218 = vld [vmem:[#allocation2 + $0x1ed] sm:$0xff]
  %v1219 = vld [vmem:[#allocation2 + $0x255] sm:$0xff]
  %v1220 = vld [vmem:[#allocation2 + $0x4e] sm:$0xff]
  %v1221 = vld [vmem:[#allocation2 + $0xb6] sm:$0xff]
  %v1222 = vld [vmem:[#allocation2 + $0x11e] sm:$0xff]
  %v1223 = vld [vmem:[#allocation2 + $0x186] sm:$0xff]
  %v1224 = vld [vmem:[#allocation2 + $0x1ee] sm:$0xff]
  %v1225 = vld [vmem:[#allocation2 + $0x256] sm:$0xff]
  %v1226 = vld [vmem:[#allocation2 + $0x4f] sm:$0xff]
  %v1227 = vld [vmem:[#allocation2 + $0xb7] sm:$0xff]
  %v1228 = vld [vmem:[#allocation2 + $0x11f] sm:$0xff]
  %v1229 = vld [vmem:[#allocation2 + $0x187] sm:$0xff]
  %v1230 = vld [vmem:[#allocation2 + $0x1ef] sm:$0xff]
  %v1231 = vld [vmem:[#allocation2 + $0x257] sm:$0xff]
  %v1232 = vld [vmem:[#allocation2 + $0x50] sm:$0xff]
  %v1233 = vld [vmem:[#allocation2 + $0xb8] sm:$0xff]
  %v1234 = vld [vmem:[#allocation2 + $0x120] sm:$0xff]
  %v1235 = vld [vmem:[#allocation2 + $0x188] sm:$0xff]
  %v1236 = vld [vmem:[#allocation2 + $0x1f0] sm:$0xff]
  %v1237 = vld [vmem:[#allocation2 + $0x258] sm:$0xff]
  %v1238 = vld [vmem:[#allocation2 + $0x51] sm:$0xff]
  %v1239 = vld [vmem:[#allocation2 + $0xb9] sm:$0xff]
  %v1240 = vld [vmem:[#allocation2 + $0x121] sm:$0xff]
  %v1241 = vld [vmem:[#allocation2 + $0x189] sm:$0xff]
  %v1242 = vld [vmem:[#allocation2 + $0x1f1] sm:$0xff]
  %v1243 = vld [vmem:[#allocation2 + $0x259] sm:$0xff]
  %v1244 = vld [vmem:[#allocation2 + $0x52] sm:$0xff]
  %v1245 = vld [vmem:[#allocation2 + $0xba] sm:$0xff]
  %v1246 = vld [vmem:[#allocation2 + $0x122] sm:$0xff]
  %v1247 = vld [vmem:[#allocation2 + $0x18a] sm:$0xff]
  %v1248 = vld [vmem:[#allocation2 + $0x1f2] sm:$0xff]
  %v1249 = vld [vmem:[#allocation2 + $0x25a] sm:$0xff]
  %v1250 = vld [vmem:[#allocation2 + $0x53] sm:$0xff]
  %v1251 = vld [vmem:[#allocation2 + $0xbb] sm:$0xff]
  %v1252 = vld [vmem:[#allocation2 + $0x123] sm:$0xff]
  %v1253 = vld [vmem:[#allocation2 + $0x18b] sm:$0xff]
  %v1254 = vld [vmem:[#allocation2 + $0x1f3] sm:$0xff]
  %v1255 = vld [vmem:[#allocation2 + $0x25b] sm:$0xff]
  %v1256 = vld [vmem:[#allocation2 + $0x54] sm:$0xff]
  %v1257 = vld [vmem:[#allocation2 + $0xbc] sm:$0xff]
  %v1258 = vld [vmem:[#allocation2 + $0x124] sm:$0xff]
  %v1259 = vld [vmem:[#allocation2 + $0x18c] sm:$0xff]
  %v1260 = vld [vmem:[#allocation2 + $0x1f4] sm:$0xff]
  %v1261 = vld [vmem:[#allocation2 + $0x25c] sm:$0xff]
  %v1262 = vld [vmem:[#allocation2 + $0x55] sm:$0xff]
  %v1263 = vld [vmem:[#allocation2 + $0xbd] sm:$0xff]
  %v1264 = vld [vmem:[#allocation2 + $0x125] sm:$0xff]
  %v1265 = vld [vmem:[#allocation2 + $0x18d] sm:$0xff]
  %v1266 = vld [vmem:[#allocation2 + $0x1f5] sm:$0xff]
  %v1267 = vld [vmem:[#allocation2 + $0x25d] sm:$0xff]
  %v1268 = vld [vmem:[#allocation2 + $0x56] sm:$0xff]
  %v1269 = vld [vmem:[#allocation2 + $0xbe] sm:$0xff]
  %v1270 = vld [vmem:[#allocation2 + $0x126] sm:$0xff]
  %v1271 = vld [vmem:[#allocation2 + $0x18e] sm:$0xff]
  %v1272 = vld [vmem:[#allocation2 + $0x1f6] sm:$0xff]
  %v1273 = vld [vmem:[#allocation2 + $0x25e] sm:$0xff]
  %v1274 = vld [vmem:[#allocation2 + $0x57] sm:$0xff]
  %v1275 = vld [vmem:[#allocation2 + $0xbf] sm:$0xff]
  %v1276 = vld [vmem:[#allocation2 + $0x127] sm:$0xff]
  %v1277 = vld [vmem:[#allocation2 + $0x18f] sm:$0xff]
  %v1278 = vld [vmem:[#allocation2 + $0x1f7] sm:$0xff]
  %v1279 = vld [vmem:[#allocation2 + $0x25f] sm:$0xff]
  %v1280 = vld [vmem:[#allocation2 + $0x58] sm:$0xff]
  %v1281 = vld [vmem:[#allocation2 + $0xc0] sm:$0xff]
  %v1282 = vld [vmem:[#allocation2 + $0x128] sm:$0xff]
  %v1283 = vld [vmem:[#allocation2 + $0x190] sm:$0xff]
  %v1284 = vld [vmem:[#allocation2 + $0x1f8] sm:$0xff]
  %v1285 = vld [vmem:[#allocation2 + $0x260] sm:$0xff]
  %v1286 = vld [vmem:[#allocation2 + $0xf] sm:$0xff]
  %v1287 = vld [vmem:[#allocation2 + $0x17] sm:$0xff]
  %v1288 = vld [vmem:[#allocation2 + $0x77] sm:$0xff]
  %v1289 = vld [vmem:[#allocation2 + $0x7f] sm:$0xff]
  %v1290 = vld [vmem:[#allocation2 + $0xdf] sm:$0xff]
  %v1291 = vld [vmem:[#allocation2 + $0xe7] sm:$0xff]
  %v1292 = vld [vmem:[#allocation2 + $0x147] sm:$0xff]
  %v1293 = vld [vmem:[#allocation2 + $0x14f] sm:$0xff]
  %v1294 = vld [vmem:[#allocation2 + $0x1af] sm:$0xff]
  %v1295 = vld [vmem:[#allocation2 + $0x1b7] sm:$0xff]
  %v1296 = vld [vmem:[#allocation2 + $0x217] sm:$0xff]
  %v1297 = vld [vmem:[#allocation2 + $0x21f] sm:$0xff]
  %v1298 = vmul.f32 %v866, %v1286
  %v1299 = vmul.f32 %v867, %v1287
  %v1300 = vmul.f32 %v868, %v1288
  %v1301 = vmul.f32 %v869, %v1289
  %v1302 = vmul.f32 %v870, %v1290
  %v1303 = vmul.f32 %v871, %v1291
  %v1304 = vmul.f32 %v872, %v1292
  %v1305 = vmul.f32 %v873, %v1293
  %v1306 = vmul.f32 %v874, %v1294
  %v1307 = vmul.f32 %v875, %v1295
  %v1308 = vmul.f32 %v876, %v1296
  %v1309 = vmul.f32 %v877, %v1297
  %v1310 = vld [vmem:[#allocation2 + $0x1f] sm:$0xff]
  %v1311 = vld [vmem:[#allocation2 + $0x27] sm:$0xff]
  %v1312 = vld [vmem:[#allocation2 + $0x87] sm:$0xff]
  %v1313 = vld [vmem:[#allocation2 + $0x8f] sm:$0xff]
  %v1314 = vld [vmem:[#allocation2 + $0xef] sm:$0xff]
  %v1315 = vld [vmem:[#allocation2 + $0xf7] sm:$0xff]
  %v1316 = vld [vmem:[#allocation2 + $0x157] sm:$0xff]
  %v1317 = vld [vmem:[#allocation2 + $0x15f] sm:$0xff]
  %v1318 = vld [vmem:[#allocation2 + $0x1bf] sm:$0xff]
  %v1319 = vld [vmem:[#allocation2 + $0x1c7] sm:$0xff]
  %v1320 = vld [vmem:[#allocation2 + $0x227] sm:$0xff]
  %v1321 = vld [vmem:[#allocation2 + $0x22f] sm:$0xff]
  %v1322 = vmul.f32 %v866, %v1310
  %v1323 = vmul.f32 %v867, %v1311
  %v1324 = vmul.f32 %v868, %v1312
  %v1325 = vmul.f32 %v869, %v1313
  %v1326 = vmul.f32 %v870, %v1314
  %v1327 = vmul.f32 %v871, %v1315
  %v1328 = vmul.f32 %v872, %v1316
  %v1329 = vmul.f32 %v873, %v1317
  %v1330 = vmul.f32 %v874, %v1318
  %v1331 = vmul.f32 %v875, %v1319
  %v1332 = vmul.f32 %v876, %v1320
  %v1333 = vmul.f32 %v877, %v1321
  %v1334 = vmul.f32 %v866, %v1064
  %v1335 = vmul.f32 %v867, %v1065
  %v1336 = vmul.f32 %v868, %v1066
  %v1337 = vmul.f32 %v869, %v1067
  %v1338 = vmul.f32 %v870, %v1068
  %v1339 = vmul.f32 %v871, %v1069
  %v1340 = vmul.f32 %v872, %v1070
  %v1341 = vmul.f32 %v873, %v1071
  %v1342 = vmul.f32 %v874, %v1072
  %v1343 = vmul.f32 %v875, %v1073
  %v1344 = vmul.f32 %v876, %v1074
  %v1345 = vmul.f32 %v877, %v1075
  %v1346 = vmul.f32 %v866, %v1130
  %v1347 = vmul.f32 %v867, %v1178
  %v1348 = vmul.f32 %v868, %v1131
  %v1349 = vmul.f32 %v869, %v1179
  %v1350 = vmul.f32 %v870, %v1132
  %v1351 = vmul.f32 %v871, %v1180
  %v1352 = vmul.f32 %v872, %v1133
  %v1353 = vmul.f32 %v873, %v1181
  %v1354 = vmul.f32 %v874, %v1134
  %v1355 = vmul.f32 %v875, %v1182
  %v1356 = vmul.f32 %v876, %v1135
  %v1357 = vmul.f32 %v877, %v1183
  %v1358 = vmul.f32 %v866, %v1226
  %v1359 = vmul.f32 %v867, %v1274
  %v1360 = vmul.f32 %v868, %v1227
  %v1361 = vmul.f32 %v869, %v1275
  %v1362 = vmul.f32 %v870, %v1228
  %v1363 = vmul.f32 %v871, %v1276
  %v1364 = vmul.f32 %v872, %v1229
  %v1365 = vmul.f32 %v873, %v1277
  %v1366 = vmul.f32 %v874, %v1230
  %v1367 = vmul.f32 %v875, %v1278
  %v1368 = vmul.f32 %v876, %v1231
  %v1369 = vmul.f32 %v877, %v1279
  %v1370 = vld [vmem:[#allocation2 + $0x11] sm:$0xff]
  %v1371 = vld [vmem:[#allocation2 + $0x19] sm:$0xff]
  %v1372 = vld [vmem:[#allocation2 + $0x79] sm:$0xff]
  %v1373 = vld [vmem:[#allocation2 + $0x81] sm:$0xff]
  %v1374 = vld [vmem:[#allocation2 + $0xe1] sm:$0xff]
  %v1375 = vld [vmem:[#allocation2 + $0xe9] sm:$0xff]
  %v1376 = vld [vmem:[#allocation2 + $0x149] sm:$0xff]
  %v1377 = vld [vmem:[#allocation2 + $0x151] sm:$0xff]
  %v1378 = vld [vmem:[#allocation2 + $0x1b1] sm:$0xff]
  %v1379 = vld [vmem:[#allocation2 + $0x1b9] sm:$0xff]
  %v1380 = vld [vmem:[#allocation2 + $0x219] sm:$0xff]
  %v1381 = vld [vmem:[#allocation2 + $0x221] sm:$0xff]
  %v1382 = vmul.f32 %v902, %v1370
  %v1383 = vmul.f32 %v903, %v1371
  %v1384 = vmul.f32 %v904, %v1372
  %v1385 = vmul.f32 %v905, %v1373
  %v1386 = vmul.f32 %v906, %v1374
  %v1387 = vmul.f32 %v907, %v1375
  %v1388 = vmul.f32 %v908, %v1376
  %v1389 = vmul.f32 %v909, %v1377
  %v1390 = vmul.f32 %v910, %v1378
  %v1391 = vmul.f32 %v911, %v1379
  %v1392 = vmul.f32 %v912, %v1380
  %v1393 = vmul.f32 %v913, %v1381
  %v1394 = vld [vmem:[#allocation2 + $0x21] sm:$0xff]
  %v1395 = vld [vmem:[#allocation2 + $0x29] sm:$0xff]
  %v1396 = vld [vmem:[#allocation2 + $0x89] sm:$0xff]
  %v1397 = vld [vmem:[#allocation2 + $0x91] sm:$0xff]
  %v1398 = vld [vmem:[#allocation2 + $0xf1] sm:$0xff]
  %v1399 = vld [vmem:[#allocation2 + $0xf9] sm:$0xff]
  %v1400 = vld [vmem:[#allocation2 + $0x159] sm:$0xff]
  %v1401 = vld [vmem:[#allocation2 + $0x161] sm:$0xff]
  %v1402 = vld [vmem:[#allocation2 + $0x1c1] sm:$0xff]
  %v1403 = vld [vmem:[#allocation2 + $0x1c9] sm:$0xff]
  %v1404 = vld [vmem:[#allocation2 + $0x229] sm:$0xff]
  %v1405 = vld [vmem:[#allocation2 + $0x231] sm:$0xff]
  %v1406 = vmul.f32 %v902, %v1394
  %v1407 = vmul.f32 %v903, %v1395
  %v1408 = vmul.f32 %v904, %v1396
  %v1409 = vmul.f32 %v905, %v1397
  %v1410 = vmul.f32 %v906, %v1398
  %v1411 = vmul.f32 %v907, %v1399
  %v1412 = vmul.f32 %v908, %v1400
  %v1413 = vmul.f32 %v909, %v1401
  %v1414 = vmul.f32 %v910, %v1402
  %v1415 = vmul.f32 %v911, %v1403
  %v1416 = vmul.f32 %v912, %v1404
  %v1417 = vmul.f32 %v913, %v1405
  %v1418 = vmul.f32 %v902, %v1082
  %v1419 = vmul.f32 %v903, %v1083
  %v1420 = vmul.f32 %v904, %v1084
  %v1421 = vmul.f32 %v905, %v1085
  %v1422 = vmul.f32 %v906, %v1086
  %v1423 = vmul.f32 %v907, %v1087
  %v1424 = vmul.f32 %v908, %v1088
  %v1425 = vmul.f32 %v909, %v1089
  %v1426 = vmul.f32 %v910, %v1090
  %v1427 = vmul.f32 %v911, %v1091
  %v1428 = vmul.f32 %v912, %v1092
  %v1429 = vmul.f32 %v913, %v1093
  %v1430 = vmul.f32 %v902, %v1142
  %v1431 = vmul.f32 %v903, %v1190
  %v1432 = vmul.f32 %v904, %v1143
  %v1433 = vmul.f32 %v905, %v1191
  %v1434 = vmul.f32 %v906, %v1144
  %v1435 = vmul.f32 %v907, %v1192
  %v1436 = vmul.f32 %v908, %v1145
  %v1437 = vmul.f32 %v909, %v1193
  %v1438 = vmul.f32 %v910, %v1146
  %v1439 = vmul.f32 %v911, %v1194
  %v1440 = vmul.f32 %v912, %v1147
  %v1441 = vmul.f32 %v913, %v1195
  %v1442 = vld [vmem:[#allocation2 + $0x59] sm:$0xff]
  %v1443 = vld [vmem:[#allocation2 + $0xc1] sm:$0xff]
  %v1444 = vld [vmem:[#allocation2 + $0x129] sm:$0xff]
  %v1445 = vld [vmem:[#allocation2 + $0x191] sm:$0xff]
  %v1446 = vld [vmem:[#allocation2 + $0x1f9] sm:$0xff]
  %v1447 = vld [vmem:[#allocation2 + $0x261] sm:$0xff]
  %v1448 = vmul.f32 %v902, %v1238
  %v1449 = vmul.f32 %v903, %v1442
  %v1450 = vmul.f32 %v904, %v1239
  %v1451 = vmul.f32 %v905, %v1443
  %v1452 = vmul.f32 %v906, %v1240
  %v1453 = vmul.f32 %v907, %v1444
  %v1454 = vmul.f32 %v908, %v1241
  %v1455 = vmul.f32 %v909, %v1445
  %v1456 = vmul.f32 %v910, %v1242
  %v1457 = vmul.f32 %v911, %v1446
  %v1458 = vmul.f32 %v912, %v1243
  %v1459 = vmul.f32 %v913, %v1447
  %1472 = vrot.lane.b32.xlu0 %v926, 64
  %v1473 = vpop.permute.xlu0 %1472
  %1474 = vrot.lane.b32.xlu0 %v927, 64
  %v1475 = vpop.permute.xlu0 %1474
  %1476 = vrot.lane.b32.xlu0 %v928, 64
  %v1477 = vpop.permute.xlu0 %1476
  %1478 = vrot.lane.b32.xlu0 %v929, 64
  %v1479 = vpop.permute.xlu0 %1478
  %1480 = vrot.lane.b32.xlu0 %v930, 64
  %v1481 = vpop.permute.xlu0 %1480
  %1482 = vrot.lane.b32.xlu0 %v931, 64
  %v1483 = vpop.permute.xlu0 %1482
  %1484 = vrot.lane.b32.xlu0 %v932, 64
  %v1485 = vpop.permute.xlu0 %1484
  %1486 = vrot.lane.b32.xlu0 %v933, 64
  %v1487 = vpop.permute.xlu0 %1486
  %1488 = vrot.lane.b32.xlu0 %v934, 64
  %v1489 = vpop.permute.xlu0 %1488
  %1490 = vrot.lane.b32.xlu0 %v935, 64
  %v1491 = vpop.permute.xlu0 %1490
  %1492 = vrot.lane.b32.xlu0 %v936, 64
  %v1493 = vpop.permute.xlu0 %1492
  %1494 = vrot.lane.b32.xlu0 %v937, 64
  %v1495 = vpop.permute.xlu0 %1494
  %1520 = vrot.lane.b32.xlu0 %v950, 64
  %v1521 = vpop.permute.xlu0 %1520
  %1522 = vrot.lane.b32.xlu0 %v951, 64
  %v1523 = vpop.permute.xlu0 %1522
  %1524 = vrot.lane.b32.xlu0 %v952, 64
  %v1525 = vpop.permute.xlu0 %1524
  %1526 = vrot.lane.b32.xlu0 %v953, 64
  %v1527 = vpop.permute.xlu0 %1526
  %1528 = vrot.lane.b32.xlu0 %v954, 64
  %v1529 = vpop.permute.xlu0 %1528
  %1530 = vrot.lane.b32.xlu0 %v955, 64
  %v1531 = vpop.permute.xlu0 %1530
  %1532 = vrot.lane.b32.xlu0 %v956, 64
  %v1533 = vpop.permute.xlu0 %1532
  %1534 = vrot.lane.b32.xlu0 %v957, 64
  %v1535 = vpop.permute.xlu0 %1534
  %1536 = vrot.lane.b32.xlu0 %v958, 64
  %v1537 = vpop.permute.xlu0 %1536
  %1538 = vrot.lane.b32.xlu0 %v959, 64
  %v1539 = vpop.permute.xlu0 %1538
  %1540 = vrot.lane.b32.xlu0 %v960, 64
  %v1541 = vpop.permute.xlu0 %1540
  %1542 = vrot.lane.b32.xlu0 %v961, 64
  %v1543 = vpop.permute.xlu0 %1542
  %1562 = vrot.lane.b32.xlu0 %v968, 64
  %v1563 = vpop.permute.xlu0 %1562
  %1564 = vrot.lane.b32.xlu0 %v969, 64
  %v1565 = vpop.permute.xlu0 %1564
  %1566 = vrot.lane.b32.xlu0 %v970, 64
  %v1567 = vpop.permute.xlu0 %1566
  %1568 = vrot.lane.b32.xlu0 %v971, 64
  %v1569 = vpop.permute.xlu0 %1568
  %1570 = vrot.lane.b32.xlu0 %v972, 64
  %v1571 = vpop.permute.xlu0 %1570
  %1572 = vrot.lane.b32.xlu0 %v973, 64
  %v1573 = vpop.permute.xlu0 %1572
  %1586 = vrot.lane.b32.xlu0 %v980, 64
  %v1587 = vpop.permute.xlu0 %1586
  %1588 = vrot.lane.b32.xlu0 %v981, 64
  %v1589 = vpop.permute.xlu0 %1588
  %1590 = vrot.lane.b32.xlu0 %v982, 64
  %v1591 = vpop.permute.xlu0 %1590
  %1592 = vrot.lane.b32.xlu0 %v983, 64
  %v1593 = vpop.permute.xlu0 %1592
  %1594 = vrot.lane.b32.xlu0 %v984, 64
  %v1595 = vpop.permute.xlu0 %1594
  %1596 = vrot.lane.b32.xlu0 %v985, 64
  %v1597 = vpop.permute.xlu0 %1596
  %1610 = vrot.lane.b32.xlu0 %v992, 64
  %v1611 = vpop.permute.xlu0 %1610
  %1612 = vrot.lane.b32.xlu0 %v993, 64
  %v1613 = vpop.permute.xlu0 %1612
  %1614 = vrot.lane.b32.xlu0 %v994, 64
  %v1615 = vpop.permute.xlu0 %1614
  %1616 = vrot.lane.b32.xlu0 %v995, 64
  %v1617 = vpop.permute.xlu0 %1616
  %1618 = vrot.lane.b32.xlu0 %v996, 64
  %v1619 = vpop.permute.xlu0 %1618
  %1620 = vrot.lane.b32.xlu0 %v997, 64
  %v1621 = vpop.permute.xlu0 %1620
  %1634 = vrot.lane.b32.xlu0 %v1004, 64
  %v1635 = vpop.permute.xlu0 %1634
  %1636 = vrot.lane.b32.xlu0 %v1005, 64
  %v1637 = vpop.permute.xlu0 %1636
  %1638 = vrot.lane.b32.xlu0 %v1006, 64
  %v1639 = vpop.permute.xlu0 %1638
  %1640 = vrot.lane.b32.xlu0 %v1007, 64
  %v1641 = vpop.permute.xlu0 %1640
  %1642 = vrot.lane.b32.xlu0 %v1008, 64
  %v1643 = vpop.permute.xlu0 %1642
  %1644 = vrot.lane.b32.xlu0 %v1009, 64
  %v1645 = vpop.permute.xlu0 %1644
  %1658 = vrot.lane.b32.xlu0 %v1016, 64
  %v1659 = vpop.permute.xlu0 %1658
  %1660 = vrot.lane.b32.xlu0 %v1017, 64
  %v1661 = vpop.permute.xlu0 %1660
  %1662 = vrot.lane.b32.xlu0 %v1018, 64
  %v1663 = vpop.permute.xlu0 %1662
  %1664 = vrot.lane.b32.xlu0 %v1019, 64
  %v1665 = vpop.permute.xlu0 %1664
  %1666 = vrot.lane.b32.xlu0 %v1020, 64
  %v1667 = vpop.permute.xlu0 %1666
  %1668 = vrot.lane.b32.xlu0 %v1021, 64
  %v1669 = vpop.permute.xlu0 %1668
  %1682 = vrot.lane.b32.xlu0 %v1028, 64
  %v1683 = vpop.permute.xlu0 %1682
  %1684 = vrot.lane.b32.xlu0 %v1029, 64
  %v1685 = vpop.permute.xlu0 %1684
  %1686 = vrot.lane.b32.xlu0 %v1030, 64
  %v1687 = vpop.permute.xlu0 %1686
  %1688 = vrot.lane.b32.xlu0 %v1031, 64
  %v1689 = vpop.permute.xlu0 %1688
  %1690 = vrot.lane.b32.xlu0 %v1032, 64
  %v1691 = vpop.permute.xlu0 %1690
  %1692 = vrot.lane.b32.xlu0 %v1033, 64
  %v1693 = vpop.permute.xlu0 %1692
  %v1700 = vsel %vm606, %v914, %v1473
  %v1701 = vsel %vm606, %v915, %v1475
  %v1702 = vsel %vm606, %v916, %v1477
  %v1703 = vsel %vm606, %v917, %v1479
  %v1704 = vsel %vm606, %v918, %v1481
  %v1705 = vsel %vm606, %v919, %v1483
  %v1706 = vsel %vm606, %v920, %v1485
  %v1707 = vsel %vm606, %v921, %v1487
  %v1708 = vsel %vm606, %v922, %v1489
  %v1709 = vsel %vm606, %v923, %v1491
  %v1710 = vsel %vm606, %v924, %v1493
  %v1711 = vsel %vm606, %v925, %v1495
  %v1712 = vsel %vm606, %v938, %v1521
  %v1713 = vsel %vm606, %v939, %v1523
  %v1714 = vsel %vm606, %v940, %v1525
  %v1715 = vsel %vm606, %v941, %v1527
  %v1716 = vsel %vm606, %v942, %v1529
  %v1717 = vsel %vm606, %v943, %v1531
  %v1718 = vsel %vm606, %v944, %v1533
  %v1719 = vsel %vm606, %v945, %v1535
  %v1720 = vsel %vm606, %v946, %v1537
  %v1721 = vsel %vm606, %v947, %v1539
  %v1722 = vsel %vm606, %v948, %v1541
  %v1723 = vsel %vm606, %v949, %v1543
  %v1724 = vsel %vm606, %v962, %v1563
  %v1725 = vsel %vm606, %v963, %v1565
  %v1726 = vsel %vm606, %v964, %v1567
  %v1727 = vsel %vm606, %v965, %v1569
  %v1728 = vsel %vm606, %v966, %v1571
  %v1729 = vsel %vm606, %v967, %v1573
  %v1730 = vsel %vm606, %v974, %v1587
  %v1731 = vsel %vm606, %v975, %v1589
  %v1732 = vsel %vm606, %v976, %v1591
  %v1733 = vsel %vm606, %v977, %v1593
  %v1734 = vsel %vm606, %v978, %v1595
  %v1735 = vsel %vm606, %v979, %v1597
  %v1736 = vsel %vm606, %v986, %v1611
  %v1737 = vsel %vm606, %v987, %v1613
  %v1738 = vsel %vm606, %v988, %v1615
  %v1739 = vsel %vm606, %v989, %v1617
  %v1740 = vsel %vm606, %v990, %v1619
  %v1741 = vsel %vm606, %v991, %v1621
  %v1742 = vsel %vm606, %v998, %v1635
  %v1743 = vsel %vm606, %v999, %v1637
  %v1744 = vsel %vm606, %v1000, %v1639
  %v1745 = vsel %vm606, %v1001, %v1641
  %v1746 = vsel %vm606, %v1002, %v1643
  %v1747 = vsel %vm606, %v1003, %v1645
  %v1748 = vsel %vm606, %v1010, %v1659
  %v1749 = vsel %vm606, %v1011, %v1661
  %v1750 = vsel %vm606, %v1012, %v1663
  %v1751 = vsel %vm606, %v1013, %v1665
  %v1752 = vsel %vm606, %v1014, %v1667
  %v1753 = vsel %vm606, %v1015, %v1669
  %v1754 = vsel %vm606, %v1022, %v1683
  %v1755 = vsel %vm606, %v1023, %v1685
  %v1756 = vsel %vm606, %v1024, %v1687
  %v1757 = vsel %vm606, %v1025, %v1689
  %v1758 = vsel %vm606, %v1026, %v1691
  %v1759 = vsel %vm606, %v1027, %v1693
  %1766 = vrot.lane.b32.xlu0 %v1040, 64
  %v1767 = vpop.permute.xlu0 %1766
  %1768 = vrot.lane.b32.xlu0 %v1041, 64
  %v1769 = vpop.permute.xlu0 %1768
  %1770 = vrot.lane.b32.xlu0 %v1042, 64
  %v1771 = vpop.permute.xlu0 %1770
  %1772 = vrot.lane.b32.xlu0 %v1043, 64
  %v1773 = vpop.permute.xlu0 %1772
  %1774 = vrot.lane.b32.xlu0 %v1044, 64
  %v1775 = vpop.permute.xlu0 %1774
  %1776 = vrot.lane.b32.xlu0 %v1045, 64
  %v1777 = vpop.permute.xlu0 %1776
  %1796 = vrot.lane.b32.xlu0 %v1022, 64
  %v1797 = vpop.permute.xlu0 %1796
  %1798 = vrot.lane.b32.xlu0 %v1058, 64
  %v1799 = vpop.permute.xlu0 %1798
  %1800 = vrot.lane.b32.xlu0 %v1023, 64
  %v1801 = vpop.permute.xlu0 %1800
  %1802 = vrot.lane.b32.xlu0 %v1059, 64
  %v1803 = vpop.permute.xlu0 %1802
  %1804 = vrot.lane.b32.xlu0 %v1024, 64
  %v1805 = vpop.permute.xlu0 %1804
  %1806 = vrot.lane.b32.xlu0 %v1060, 64
  %v1807 = vpop.permute.xlu0 %1806
  %1808 = vrot.lane.b32.xlu0 %v1025, 64
  %v1809 = vpop.permute.xlu0 %1808
  %1810 = vrot.lane.b32.xlu0 %v1061, 64
  %v1811 = vpop.permute.xlu0 %1810
  %1812 = vrot.lane.b32.xlu0 %v1026, 64
  %v1813 = vpop.permute.xlu0 %1812
  %1814 = vrot.lane.b32.xlu0 %v1062, 64
  %v1815 = vpop.permute.xlu0 %1814
  %1816 = vrot.lane.b32.xlu0 %v1027, 64
  %v1817 = vpop.permute.xlu0 %1816
  %1818 = vrot.lane.b32.xlu0 %v1063, 64
  %v1819 = vpop.permute.xlu0 %1818
  %1838 = vrot.lane.b32.xlu0 %v1076, 64
  %v1839 = vpop.permute.xlu0 %1838
  %1840 = vrot.lane.b32.xlu0 %v1077, 64
  %v1841 = vpop.permute.xlu0 %1840
  %1842 = vrot.lane.b32.xlu0 %v1078, 64
  %v1843 = vpop.permute.xlu0 %1842
  %1844 = vrot.lane.b32.xlu0 %v1079, 64
  %v1845 = vpop.permute.xlu0 %1844
  %1846 = vrot.lane.b32.xlu0 %v1080, 64
  %v1847 = vpop.permute.xlu0 %1846
  %1848 = vrot.lane.b32.xlu0 %v1081, 64
  %v1849 = vpop.permute.xlu0 %1848
  %1868 = vrot.lane.b32.xlu0 %v1034, 64
  %v1869 = vpop.permute.xlu0 %1868
  %1870 = vrot.lane.b32.xlu0 %v1094, 64
  %v1871 = vpop.permute.xlu0 %1870
  %1872 = vrot.lane.b32.xlu0 %v1035, 64
  %v1873 = vpop.permute.xlu0 %1872
  %1874 = vrot.lane.b32.xlu0 %v1095, 64
  %v1875 = vpop.permute.xlu0 %1874
  %1876 = vrot.lane.b32.xlu0 %v1036, 64
  %v1877 = vpop.permute.xlu0 %1876
  %1878 = vrot.lane.b32.xlu0 %v1096, 64
  %v1879 = vpop.permute.xlu0 %1878
  %1880 = vrot.lane.b32.xlu0 %v1037, 64
  %v1881 = vpop.permute.xlu0 %1880
  %1882 = vrot.lane.b32.xlu0 %v1097, 64
  %v1883 = vpop.permute.xlu0 %1882
  %1884 = vrot.lane.b32.xlu0 %v1038, 64
  %v1885 = vpop.permute.xlu0 %1884
  %1886 = vrot.lane.b32.xlu0 %v1098, 64
  %v1887 = vpop.permute.xlu0 %1886
  %1888 = vrot.lane.b32.xlu0 %v1039, 64
  %v1889 = vpop.permute.xlu0 %1888
  %1890 = vrot.lane.b32.xlu0 %v1099, 64
  %v1891 = vpop.permute.xlu0 %1890
  %1910 = vrot.lane.b32.xlu0 %v1112, 64
  %v1911 = vpop.permute.xlu0 %1910
  %1912 = vrot.lane.b32.xlu0 %v1113, 64
  %v1913 = vpop.permute.xlu0 %1912
  %1914 = vrot.lane.b32.xlu0 %v1114, 64
  %v1915 = vpop.permute.xlu0 %1914
  %1916 = vrot.lane.b32.xlu0 %v1115, 64
  %v1917 = vpop.permute.xlu0 %1916
  %1918 = vrot.lane.b32.xlu0 %v1116, 64
  %v1919 = vpop.permute.xlu0 %1918
  %1920 = vrot.lane.b32.xlu0 %v1117, 64
  %v1921 = vpop.permute.xlu0 %1920
  %1934 = vrot.lane.b32.xlu0 %v1124, 64
  %v1935 = vpop.permute.xlu0 %1934
  %1936 = vrot.lane.b32.xlu0 %v1125, 64
  %v1937 = vpop.permute.xlu0 %1936
  %1938 = vrot.lane.b32.xlu0 %v1126, 64
  %v1939 = vpop.permute.xlu0 %1938
  %1940 = vrot.lane.b32.xlu0 %v1127, 64
  %v1941 = vpop.permute.xlu0 %1940
  %1942 = vrot.lane.b32.xlu0 %v1128, 64
  %v1943 = vpop.permute.xlu0 %1942
  %1944 = vrot.lane.b32.xlu0 %v1129, 64
  %v1945 = vpop.permute.xlu0 %1944
  %1958 = vrot.lane.b32.xlu0 %v1136, 64
  %v1959 = vpop.permute.xlu0 %1958
  %1960 = vrot.lane.b32.xlu0 %v1137, 64
  %v1961 = vpop.permute.xlu0 %1960
  %1962 = vrot.lane.b32.xlu0 %v1138, 64
  %v1963 = vpop.permute.xlu0 %1962
  %1964 = vrot.lane.b32.xlu0 %v1139, 64
  %v1965 = vpop.permute.xlu0 %1964
  %1966 = vrot.lane.b32.xlu0 %v1140, 64
  %v1967 = vpop.permute.xlu0 %1966
  %1968 = vrot.lane.b32.xlu0 %v1141, 64
  %v1969 = vpop.permute.xlu0 %1968
  %1982 = vrot.lane.b32.xlu0 %v1148, 64
  %v1983 = vpop.permute.xlu0 %1982
  %1984 = vrot.lane.b32.xlu0 %v1149, 64
  %v1985 = vpop.permute.xlu0 %1984
  %1986 = vrot.lane.b32.xlu0 %v1150, 64
  %v1987 = vpop.permute.xlu0 %1986
  %1988 = vrot.lane.b32.xlu0 %v1151, 64
  %v1989 = vpop.permute.xlu0 %1988
  %1990 = vrot.lane.b32.xlu0 %v1152, 64
  %v1991 = vpop.permute.xlu0 %1990
  %1992 = vrot.lane.b32.xlu0 %v1153, 64
  %v1993 = vpop.permute.xlu0 %1992
  %v2000 = vsel %vm606, %v1034, %v1767
  %v2001 = vsel %vm606, %v1035, %v1769
  %v2002 = vsel %vm606, %v1036, %v1771
  %v2003 = vsel %vm606, %v1037, %v1773
  %v2004 = vsel %vm606, %v1038, %v1775
  %v2005 = vsel %vm606, %v1039, %v1777
  %v2006 = vsel %vm606, %v1046, %v1797
  %v2007 = vsel %vm606, %v1047, %v1799
  %v2008 = vsel %vm606, %v1048, %v1801
  %v2009 = vsel %vm606, %v1049, %v1803
  %v2010 = vsel %vm606, %v1050, %v1805
  %v2011 = vsel %vm606, %v1051, %v1807
  %v2012 = vsel %vm606, %v1052, %v1809
  %v2013 = vsel %vm606, %v1053, %v1811
  %v2014 = vsel %vm606, %v1054, %v1813
  %v2015 = vsel %vm606, %v1055, %v1815
  %v2016 = vsel %vm606, %v1056, %v1817
  %v2017 = vsel %vm606, %v1057, %v1819
  %v2018 = vsel %vm606, %v1064, %v1683
  %v2019 = vsel %vm606, %v1065, %v1839
  %v2020 = vsel %vm606, %v1066, %v1685
  %v2021 = vsel %vm606, %v1067, %v1841
  %v2022 = vsel %vm606, %v1068, %v1687
  %v2023 = vsel %vm606, %v1069, %v1843
  %v2024 = vsel %vm606, %v1070, %v1689
  %v2025 = vsel %vm606, %v1071, %v1845
  %v2026 = vsel %vm606, %v1072, %v1691
  %v2027 = vsel %vm606, %v1073, %v1847
  %v2028 = vsel %vm606, %v1074, %v1693
  %v2029 = vsel %vm606, %v1075, %v1849
  %v2030 = vsel %vm606, %v1082, %v1869
  %v2031 = vsel %vm606, %v1083, %v1871
  %v2032 = vsel %vm606, %v1084, %v1873
  %v2033 = vsel %vm606, %v1085, %v1875
  %v2034 = vsel %vm606, %v1086, %v1877
  %v2035 = vsel %vm606, %v1087, %v1879
  %v2036 = vsel %vm606, %v1088, %v1881
  %v2037 = vsel %vm606, %v1089, %v1883
  %v2038 = vsel %vm606, %v1090, %v1885
  %v2039 = vsel %vm606, %v1091, %v1887
  %v2040 = vsel %vm606, %v1092, %v1889
  %v2041 = vsel %vm606, %v1093, %v1891
  %v2042 = vsel %vm606, %v1100, %v1767
  %v2043 = vsel %vm606, %v1101, %v1911
  %v2044 = vsel %vm606, %v1102, %v1769
  %v2045 = vsel %vm606, %v1103, %v1913
  %v2046 = vsel %vm606, %v1104, %v1771
  %v2047 = vsel %vm606, %v1105, %v1915
  %v2048 = vsel %vm606, %v1106, %v1773
  %v2049 = vsel %vm606, %v1107, %v1917
  %v2050 = vsel %vm606, %v1108, %v1775
  %v2051 = vsel %vm606, %v1109, %v1919
  %v2052 = vsel %vm606, %v1110, %v1777
  %v2053 = vsel %vm606, %v1111, %v1921
  %v2054 = vsel %vm606, %v1118, %v1935
  %v2055 = vsel %vm606, %v1119, %v1937
  %v2056 = vsel %vm606, %v1120, %v1939
  %v2057 = vsel %vm606, %v1121, %v1941
  %v2058 = vsel %vm606, %v1122, %v1943
  %v2059 = vsel %vm606, %v1123, %v1945
  %v2060 = vsel %vm606, %v1130, %v1959
  %v2061 = vsel %vm606, %v1131, %v1961
  %v2062 = vsel %vm606, %v1132, %v1963
  %v2063 = vsel %vm606, %v1133, %v1965
  %v2064 = vsel %vm606, %v1134, %v1967
  %v2065 = vsel %vm606, %v1135, %v1969
  %v2066 = vsel %vm606, %v1142, %v1983
  %v2067 = vsel %vm606, %v1143, %v1985
  %v2068 = vsel %vm606, %v1144, %v1987
  %v2069 = vsel %vm606, %v1145, %v1989
  %v2070 = vsel %vm606, %v1146, %v1991
  %v2071 = vsel %vm606, %v1147, %v1993
  %2078 = vrot.lane.b32.xlu0 %v1160, 64
  %v2079 = vpop.permute.xlu0 %2078
  %2080 = vrot.lane.b32.xlu0 %v1161, 64
  %v2081 = vpop.permute.xlu0 %2080
  %2082 = vrot.lane.b32.xlu0 %v1162, 64
  %v2083 = vpop.permute.xlu0 %2082
  %2084 = vrot.lane.b32.xlu0 %v1163, 64
  %v2085 = vpop.permute.xlu0 %2084
  %2086 = vrot.lane.b32.xlu0 %v1164, 64
  %v2087 = vpop.permute.xlu0 %2086
  %2088 = vrot.lane.b32.xlu0 %v1165, 64
  %v2089 = vpop.permute.xlu0 %2088
  %2102 = vrot.lane.b32.xlu0 %v1172, 64
  %v2103 = vpop.permute.xlu0 %2102
  %2104 = vrot.lane.b32.xlu0 %v1173, 64
  %v2105 = vpop.permute.xlu0 %2104
  %2106 = vrot.lane.b32.xlu0 %v1174, 64
  %v2107 = vpop.permute.xlu0 %2106
  %2108 = vrot.lane.b32.xlu0 %v1175, 64
  %v2109 = vpop.permute.xlu0 %2108
  %2110 = vrot.lane.b32.xlu0 %v1176, 64
  %v2111 = vpop.permute.xlu0 %2110
  %2112 = vrot.lane.b32.xlu0 %v1177, 64
  %v2113 = vpop.permute.xlu0 %2112
  %2126 = vrot.lane.b32.xlu0 %v1184, 64
  %v2127 = vpop.permute.xlu0 %2126
  %2128 = vrot.lane.b32.xlu0 %v1185, 64
  %v2129 = vpop.permute.xlu0 %2128
  %2130 = vrot.lane.b32.xlu0 %v1186, 64
  %v2131 = vpop.permute.xlu0 %2130
  %2132 = vrot.lane.b32.xlu0 %v1187, 64
  %v2133 = vpop.permute.xlu0 %2132
  %2134 = vrot.lane.b32.xlu0 %v1188, 64
  %v2135 = vpop.permute.xlu0 %2134
  %2136 = vrot.lane.b32.xlu0 %v1189, 64
  %v2137 = vpop.permute.xlu0 %2136
  %2150 = vrot.lane.b32.xlu0 %v1196, 64
  %v2151 = vpop.permute.xlu0 %2150
  %2152 = vrot.lane.b32.xlu0 %v1197, 64
  %v2153 = vpop.permute.xlu0 %2152
  %2154 = vrot.lane.b32.xlu0 %v1198, 64
  %v2155 = vpop.permute.xlu0 %2154
  %2156 = vrot.lane.b32.xlu0 %v1199, 64
  %v2157 = vpop.permute.xlu0 %2156
  %2158 = vrot.lane.b32.xlu0 %v1200, 64
  %v2159 = vpop.permute.xlu0 %2158
  %2160 = vrot.lane.b32.xlu0 %v1201, 64
  %v2161 = vpop.permute.xlu0 %2160
  %2174 = vrot.lane.b32.xlu0 %v1208, 64
  %v2175 = vpop.permute.xlu0 %2174
  %2176 = vrot.lane.b32.xlu0 %v1209, 64
  %v2177 = vpop.permute.xlu0 %2176
  %2178 = vrot.lane.b32.xlu0 %v1210, 64
  %v2179 = vpop.permute.xlu0 %2178
  %2180 = vrot.lane.b32.xlu0 %v1211, 64
  %v2181 = vpop.permute.xlu0 %2180
  %2182 = vrot.lane.b32.xlu0 %v1212, 64
  %v2183 = vpop.permute.xlu0 %2182
  %2184 = vrot.lane.b32.xlu0 %v1213, 64
  %v2185 = vpop.permute.xlu0 %2184
  %2198 = vrot.lane.b32.xlu0 %v1220, 64
  %v2199 = vpop.permute.xlu0 %2198
  %2200 = vrot.lane.b32.xlu0 %v1221, 64
  %v2201 = vpop.permute.xlu0 %2200
  %2202 = vrot.lane.b32.xlu0 %v1222, 64
  %v2203 = vpop.permute.xlu0 %2202
  %2204 = vrot.lane.b32.xlu0 %v1223, 64
  %v2205 = vpop.permute.xlu0 %2204
  %2206 = vrot.lane.b32.xlu0 %v1224, 64
  %v2207 = vpop.permute.xlu0 %2206
  %2208 = vrot.lane.b32.xlu0 %v1225, 64
  %v2209 = vpop.permute.xlu0 %2208
  %2222 = vrot.lane.b32.xlu0 %v1232, 64
  %v2223 = vpop.permute.xlu0 %2222
  %2224 = vrot.lane.b32.xlu0 %v1233, 64
  %v2225 = vpop.permute.xlu0 %2224
  %2226 = vrot.lane.b32.xlu0 %v1234, 64
  %v2227 = vpop.permute.xlu0 %2226
  %2228 = vrot.lane.b32.xlu0 %v1235, 64
  %v2229 = vpop.permute.xlu0 %2228
  %2230 = vrot.lane.b32.xlu0 %v1236, 64
  %v2231 = vpop.permute.xlu0 %2230
  %2232 = vrot.lane.b32.xlu0 %v1237, 64
  %v2233 = vpop.permute.xlu0 %2232
  %2246 = vrot.lane.b32.xlu0 %v1244, 64
  %v2247 = vpop.permute.xlu0 %2246
  %2248 = vrot.lane.b32.xlu0 %v1245, 64
  %v2249 = vpop.permute.xlu0 %2248
  %2250 = vrot.lane.b32.xlu0 %v1246, 64
  %v2251 = vpop.permute.xlu0 %2250
  %2252 = vrot.lane.b32.xlu0 %v1247, 64
  %v2253 = vpop.permute.xlu0 %2252
  %2254 = vrot.lane.b32.xlu0 %v1248, 64
  %v2255 = vpop.permute.xlu0 %2254
  %2256 = vrot.lane.b32.xlu0 %v1249, 64
  %v2257 = vpop.permute.xlu0 %2256
  %v2264 = vsel %vm606, %v1154, %v2079
  %v2265 = vsel %vm606, %v1155, %v2081
  %v2266 = vsel %vm606, %v1156, %v2083
  %v2267 = vsel %vm606, %v1157, %v2085
  %v2268 = vsel %vm606, %v1158, %v2087
  %v2269 = vsel %vm606, %v1159, %v2089
  %v2270 = vsel %vm606, %v1166, %v2103
  %v2271 = vsel %vm606, %v1167, %v2105
  %v2272 = vsel %vm606, %v1168, %v2107
  %v2273 = vsel %vm606, %v1169, %v2109
  %v2274 = vsel %vm606, %v1170, %v2111
  %v2275 = vsel %vm606, %v1171, %v2113
  %v2276 = vsel %vm606, %v1178, %v2127
  %v2277 = vsel %vm606, %v1179, %v2129
  %v2278 = vsel %vm606, %v1180, %v2131
  %v2279 = vsel %vm606, %v1181, %v2133
  %v2280 = vsel %vm606, %v1182, %v2135
  %v2281 = vsel %vm606, %v1183, %v2137
  %v2282 = vsel %vm606, %v1190, %v2151
  %v2283 = vsel %vm606, %v1191, %v2153
  %v2284 = vsel %vm606, %v1192, %v2155
  %v2285 = vsel %vm606, %v1193, %v2157
  %v2286 = vsel %vm606, %v1194, %v2159
  %v2287 = vsel %vm606, %v1195, %v2161
  %v2288 = vsel %vm606, %v1202, %v2175
  %v2289 = vsel %vm606, %v1203, %v2177
  %v2290 = vsel %vm606, %v1204, %v2179
  %v2291 = vsel %vm606, %v1205, %v2181
  %v2292 = vsel %vm606, %v1206, %v2183
  %v2293 = vsel %vm606, %v1207, %v2185
  %v2294 = vsel %vm606, %v1214, %v2199
  %v2295 = vsel %vm606, %v1215, %v2201
  %v2296 = vsel %vm606, %v1216, %v2203
  %v2297 = vsel %vm606, %v1217, %v2205
  %v2298 = vsel %vm606, %v1218, %v2207
  %v2299 = vsel %vm606, %v1219, %v2209
  %v2300 = vsel %vm606, %v1226, %v2223
  %v2301 = vsel %vm606, %v1227, %v2225
  %v2302 = vsel %vm606, %v1228, %v2227
  %v2303 = vsel %vm606, %v1229, %v2229
  %v2304 = vsel %vm606, %v1230, %v2231
  %v2305 = vsel %vm606, %v1231, %v2233
  %v2306 = vsel %vm606, %v1238, %v2247
  %v2307 = vsel %vm606, %v1239, %v2249
  %v2308 = vsel %vm606, %v1240, %v2251
  %v2309 = vsel %vm606, %v1241, %v2253
  %v2310 = vsel %vm606, %v1242, %v2255
  %v2311 = vsel %vm606, %v1243, %v2257
  %2318 = vrot.lane.b32.xlu0 %v1256, 64
  %v2319 = vpop.permute.xlu0 %2318
  %2320 = vrot.lane.b32.xlu0 %v1257, 64
  %v2321 = vpop.permute.xlu0 %2320
  %2322 = vrot.lane.b32.xlu0 %v1258, 64
  %v2323 = vpop.permute.xlu0 %2322
  %2324 = vrot.lane.b32.xlu0 %v1259, 64
  %v2325 = vpop.permute.xlu0 %2324
  %2326 = vrot.lane.b32.xlu0 %v1260, 64
  %v2327 = vpop.permute.xlu0 %2326
  %2328 = vrot.lane.b32.xlu0 %v1261, 64
  %v2329 = vpop.permute.xlu0 %2328
  %2342 = vrot.lane.b32.xlu0 %v1268, 64
  %v2343 = vpop.permute.xlu0 %2342
  %2344 = vrot.lane.b32.xlu0 %v1269, 64
  %v2345 = vpop.permute.xlu0 %2344
  %2346 = vrot.lane.b32.xlu0 %v1270, 64
  %v2347 = vpop.permute.xlu0 %2346
  %2348 = vrot.lane.b32.xlu0 %v1271, 64
  %v2349 = vpop.permute.xlu0 %2348
  %2350 = vrot.lane.b32.xlu0 %v1272, 64
  %v2351 = vpop.permute.xlu0 %2350
  %2352 = vrot.lane.b32.xlu0 %v1273, 64
  %v2353 = vpop.permute.xlu0 %2352
  %2366 = vrot.lane.b32.xlu0 %v1280, 64
  %v2367 = vpop.permute.xlu0 %2366
  %2368 = vrot.lane.b32.xlu0 %v1281, 64
  %v2369 = vpop.permute.xlu0 %2368
  %2370 = vrot.lane.b32.xlu0 %v1282, 64
  %v2371 = vpop.permute.xlu0 %2370
  %2372 = vrot.lane.b32.xlu0 %v1283, 64
  %v2373 = vpop.permute.xlu0 %2372
  %2374 = vrot.lane.b32.xlu0 %v1284, 64
  %v2375 = vpop.permute.xlu0 %2374
  %2376 = vrot.lane.b32.xlu0 %v1285, 64
  %v2377 = vpop.permute.xlu0 %2376
  %2396 = vrot.lane.b32.xlu0 %v1322, 64
  %v2397 = vpop.permute.xlu0 %2396
  %2398 = vrot.lane.b32.xlu0 %v1323, 64
  %v2399 = vpop.permute.xlu0 %2398
  %2400 = vrot.lane.b32.xlu0 %v1324, 64
  %v2401 = vpop.permute.xlu0 %2400
  %2402 = vrot.lane.b32.xlu0 %v1325, 64
  %v2403 = vpop.permute.xlu0 %2402
  %2404 = vrot.lane.b32.xlu0 %v1326, 64
  %v2405 = vpop.permute.xlu0 %2404
  %2406 = vrot.lane.b32.xlu0 %v1327, 64
  %v2407 = vpop.permute.xlu0 %2406
  %2408 = vrot.lane.b32.xlu0 %v1328, 64
  %v2409 = vpop.permute.xlu0 %2408
  %2410 = vrot.lane.b32.xlu0 %v1329, 64
  %v2411 = vpop.permute.xlu0 %2410
  %2412 = vrot.lane.b32.xlu0 %v1330, 64
  %v2413 = vpop.permute.xlu0 %2412
  %2414 = vrot.lane.b32.xlu0 %v1331, 64
  %v2415 = vpop.permute.xlu0 %2414
  %2416 = vrot.lane.b32.xlu0 %v1332, 64
  %v2417 = vpop.permute.xlu0 %2416
  %2418 = vrot.lane.b32.xlu0 %v1333, 64
  %v2419 = vpop.permute.xlu0 %2418
  %2444 = vrot.lane.b32.xlu0 %v1346, 64
  %v2445 = vpop.permute.xlu0 %2444
  %2446 = vrot.lane.b32.xlu0 %v1347, 64
  %v2447 = vpop.permute.xlu0 %2446
  %2448 = vrot.lane.b32.xlu0 %v1348, 64
  %v2449 = vpop.permute.xlu0 %2448
  %2450 = vrot.lane.b32.xlu0 %v1349, 64
  %v2451 = vpop.permute.xlu0 %2450
  %2452 = vrot.lane.b32.xlu0 %v1350, 64
  %v2453 = vpop.permute.xlu0 %2452
  %2454 = vrot.lane.b32.xlu0 %v1351, 64
  %v2455 = vpop.permute.xlu0 %2454
  %2456 = vrot.lane.b32.xlu0 %v1352, 64
  %v2457 = vpop.permute.xlu0 %2456
  %2458 = vrot.lane.b32.xlu0 %v1353, 64
  %v2459 = vpop.permute.xlu0 %2458
  %2460 = vrot.lane.b32.xlu0 %v1354, 64
  %v2461 = vpop.permute.xlu0 %2460
  %2462 = vrot.lane.b32.xlu0 %v1355, 64
  %v2463 = vpop.permute.xlu0 %2462
  %2464 = vrot.lane.b32.xlu0 %v1356, 64
  %v2465 = vpop.permute.xlu0 %2464
  %2466 = vrot.lane.b32.xlu0 %v1357, 64
  %v2467 = vpop.permute.xlu0 %2466
  %2492 = vrot.lane.b32.xlu0 %v1382, 64
  %v2493 = vpop.permute.xlu0 %2492
  %2494 = vrot.lane.b32.xlu0 %v1383, 64
  %v2495 = vpop.permute.xlu0 %2494
  %2496 = vrot.lane.b32.xlu0 %v1384, 64
  %v2497 = vpop.permute.xlu0 %2496
  %2498 = vrot.lane.b32.xlu0 %v1385, 64
  %v2499 = vpop.permute.xlu0 %2498
  %2500 = vrot.lane.b32.xlu0 %v1386, 64
  %v2501 = vpop.permute.xlu0 %2500
  %2502 = vrot.lane.b32.xlu0 %v1387, 64
  %v2503 = vpop.permute.xlu0 %2502
  %2504 = vrot.lane.b32.xlu0 %v1388, 64
  %v2505 = vpop.permute.xlu0 %2504
  %2506 = vrot.lane.b32.xlu0 %v1389, 64
  %v2507 = vpop.permute.xlu0 %2506
  %2508 = vrot.lane.b32.xlu0 %v1390, 64
  %v2509 = vpop.permute.xlu0 %2508
  %2510 = vrot.lane.b32.xlu0 %v1391, 64
  %v2511 = vpop.permute.xlu0 %2510
  %2512 = vrot.lane.b32.xlu0 %v1392, 64
  %v2513 = vpop.permute.xlu0 %2512
  %2514 = vrot.lane.b32.xlu0 %v1393, 64
  %v2515 = vpop.permute.xlu0 %2514
  %2540 = vrot.lane.b32.xlu0 %v1418, 64
  %v2541 = vpop.permute.xlu0 %2540
  %2542 = vrot.lane.b32.xlu0 %v1419, 64
  %v2543 = vpop.permute.xlu0 %2542
  %2544 = vrot.lane.b32.xlu0 %v1420, 64
  %v2545 = vpop.permute.xlu0 %2544
  %2546 = vrot.lane.b32.xlu0 %v1421, 64
  %v2547 = vpop.permute.xlu0 %2546
  %2548 = vrot.lane.b32.xlu0 %v1422, 64
  %v2549 = vpop.permute.xlu0 %2548
  %2550 = vrot.lane.b32.xlu0 %v1423, 64
  %v2551 = vpop.permute.xlu0 %2550
  %2552 = vrot.lane.b32.xlu0 %v1424, 64
  %v2553 = vpop.permute.xlu0 %2552
  %2554 = vrot.lane.b32.xlu0 %v1425, 64
  %v2555 = vpop.permute.xlu0 %2554
  %2556 = vrot.lane.b32.xlu0 %v1426, 64
  %v2557 = vpop.permute.xlu0 %2556
  %2558 = vrot.lane.b32.xlu0 %v1427, 64
  %v2559 = vpop.permute.xlu0 %2558
  %2560 = vrot.lane.b32.xlu0 %v1428, 64
  %v2561 = vpop.permute.xlu0 %2560
  %2562 = vrot.lane.b32.xlu0 %v1429, 64
  %v2563 = vpop.permute.xlu0 %2562
  %2588 = vrot.lane.b32.xlu0 %v1448, 64
  %v2589 = vpop.permute.xlu0 %2588
  %2590 = vrot.lane.b32.xlu0 %v1449, 64
  %v2591 = vpop.permute.xlu0 %2590
  %2592 = vrot.lane.b32.xlu0 %v1450, 64
  %v2593 = vpop.permute.xlu0 %2592
  %2594 = vrot.lane.b32.xlu0 %v1451, 64
  %v2595 = vpop.permute.xlu0 %2594
  %2596 = vrot.lane.b32.xlu0 %v1452, 64
  %v2597 = vpop.permute.xlu0 %2596
  %2598 = vrot.lane.b32.xlu0 %v1453, 64
  %v2599 = vpop.permute.xlu0 %2598
  %2600 = vrot.lane.b32.xlu0 %v1454, 64
  %v2601 = vpop.permute.xlu0 %2600
  %2602 = vrot.lane.b32.xlu0 %v1455, 64
  %v2603 = vpop.permute.xlu0 %2602
  %2604 = vrot.lane.b32.xlu0 %v1456, 64
  %v2605 = vpop.permute.xlu0 %2604
  %2606 = vrot.lane.b32.xlu0 %v1457, 64
  %v2607 = vpop.permute.xlu0 %2606
  %2608 = vrot.lane.b32.xlu0 %v1458, 64
  %v2609 = vpop.permute.xlu0 %2608
  %2610 = vrot.lane.b32.xlu0 %v1459, 64
  %v2611 = vpop.permute.xlu0 %2610
  %v2624 = vsel %vm606, %v1250, %v2319
  %v2625 = vsel %vm606, %v1251, %v2321
  %v2626 = vsel %vm606, %v1252, %v2323
  %v2627 = vsel %vm606, %v1253, %v2325
  %v2628 = vsel %vm606, %v1254, %v2327
  %v2629 = vsel %vm606, %v1255, %v2329
  %v2630 = vsel %vm606, %v1262, %v2343
  %v2631 = vsel %vm606, %v1263, %v2345
  %v2632 = vsel %vm606, %v1264, %v2347
  %v2633 = vsel %vm606, %v1265, %v2349
  %v2634 = vsel %vm606, %v1266, %v2351
  %v2635 = vsel %vm606, %v1267, %v2353
  %v2636 = vsel %vm606, %v1274, %v2367
  %v2637 = vsel %vm606, %v1275, %v2369
  %v2638 = vsel %vm606, %v1276, %v2371
  %v2639 = vsel %vm606, %v1277, %v2373
  %v2640 = vsel %vm606, %v1278, %v2375
  %v2641 = vsel %vm606, %v1279, %v2377
  %v2642 = vsel %vm606, %v1298, %v2397
  %v2643 = vsel %vm606, %v1299, %v2399
  %v2644 = vsel %vm606, %v1300, %v2401
  %v2645 = vsel %vm606, %v1301, %v2403
  %v2646 = vsel %vm606, %v1302, %v2405
  %v2647 = vsel %vm606, %v1303, %v2407
  %v2648 = vsel %vm606, %v1304, %v2409
  %v2649 = vsel %vm606, %v1305, %v2411
  %v2650 = vsel %vm606, %v1306, %v2413
  %v2651 = vsel %vm606, %v1307, %v2415
  %v2652 = vsel %vm606, %v1308, %v2417
  %v2653 = vsel %vm606, %v1309, %v2419
  %v2654 = vsel %vm606, %v1334, %v2445
  %v2655 = vsel %vm606, %v1335, %v2447
  %v2656 = vsel %vm606, %v1336, %v2449
  %v2657 = vsel %vm606, %v1337, %v2451
  %v2658 = vsel %vm606, %v1338, %v2453
  %v2659 = vsel %vm606, %v1339, %v2455
  %v2660 = vsel %vm606, %v1340, %v2457
  %v2661 = vsel %vm606, %v1341, %v2459
  %v2662 = vsel %vm606, %v1342, %v2461
  %v2663 = vsel %vm606, %v1343, %v2463
  %v2664 = vsel %vm606, %v1344, %v2465
  %v2665 = vsel %vm606, %v1345, %v2467
  %v2666 = vsel %vm606, %v1358, %v2493
  %v2667 = vsel %vm606, %v1359, %v2495
  %v2668 = vsel %vm606, %v1360, %v2497
  %v2669 = vsel %vm606, %v1361, %v2499
  %v2670 = vsel %vm606, %v1362, %v2501
  %v2671 = vsel %vm606, %v1363, %v2503
  %v2672 = vsel %vm606, %v1364, %v2505
  %v2673 = vsel %vm606, %v1365, %v2507
  %v2674 = vsel %vm606, %v1366, %v2509
  %v2675 = vsel %vm606, %v1367, %v2511
  %v2676 = vsel %vm606, %v1368, %v2513
  %v2677 = vsel %vm606, %v1369, %v2515
  %v2678 = vsel %vm606, %v1406, %v2541
  %v2679 = vsel %vm606, %v1407, %v2543
  %v2680 = vsel %vm606, %v1408, %v2545
  %v2681 = vsel %vm606, %v1409, %v2547
  %v2682 = vsel %vm606, %v1410, %v2549
  %v2683 = vsel %vm606, %v1411, %v2551
  %v2684 = vsel %vm606, %v1412, %v2553
  %v2685 = vsel %vm606, %v1413, %v2555
  %v2686 = vsel %vm606, %v1414, %v2557
  %v2687 = vsel %vm606, %v1415, %v2559
  %v2688 = vsel %vm606, %v1416, %v2561
  %v2689 = vsel %vm606, %v1417, %v2563
  %v2690 = vsel %vm606, %v1430, %v2589
  %v2691 = vsel %vm606, %v1431, %v2591
  %v2692 = vsel %vm606, %v1432, %v2593
  %v2693 = vsel %vm606, %v1433, %v2595
  %v2694 = vsel %vm606, %v1434, %v2597
  %v2695 = vsel %vm606, %v1435, %v2599
  %v2696 = vsel %vm606, %v1436, %v2601
  %v2697 = vsel %vm606, %v1437, %v2603
  %v2698 = vsel %vm606, %v1438, %v2605
  %v2699 = vsel %vm606, %v1439, %v2607
  %v2700 = vsel %vm606, %v1440, %v2609
  %v2701 = vsel %vm606, %v1441, %v2611
  %v2702 = vpack.c.bf16 %v1701, %v1700
  %v2703 = vpack.c.bf16 %v1713, %v1712
  %v2704 = vpack.c.bf16 %v1724, %v1701
  %v2705 = vpack.c.bf16 %v1730, %v1713
  %v2706 = vpack.c.bf16 %v1736, %v1724
  %v2707 = vpack.c.bf16 %v1742, %v1730
  %v2708 = vpack.c.bf16 %v1748, %v1736
  %v2709 = vpack.c.bf16 %v1754, %v1742
  %v2710 = vpack.c.bf16 %v2000, %v1748
  %v2711 = vpack.c.bf16 %v2007, %v2006
  %v2712 = vpack.c.bf16 %v2019, %v2018
  %v2713 = vpack.c.bf16 %v2031, %v2030
  %v2714 = vpack.c.bf16 %v2043, %v2042
  %v2715 = vpack.c.bf16 %v2054, %v2007
  %v2716 = vpack.c.bf16 %v2060, %v2019
  %v2717 = vpack.c.bf16 %v2066, %v2031
  %v2718 = vpack.c.bf16 %v2264, %v2043
  %v2719 = vpack.c.bf16 %v2270, %v2054
  %v2720 = vpack.c.bf16 %v2276, %v2060
  %v2721 = vpack.c.bf16 %v2282, %v2066
  %v2722 = vpack.c.bf16 %v2288, %v2264
  %v2723 = vpack.c.bf16 %v2294, %v2270
  %v2724 = vpack.c.bf16 %v2300, %v2276
  %v2725 = vpack.c.bf16 %v2306, %v2282
  %v2726 = vpack.c.bf16 %v2624, %v2288
  %v2727 = vpack.c.bf16 %v2630, %v2294
  %v2728 = vpack.c.bf16 %v2636, %v2300
  %v2729 = vpack.c.bf16 %v2643, %v2642
  %v2730 = vpack.c.bf16 %v2655, %v2654
  %v2731 = vpack.c.bf16 %v2667, %v2666
  %v2732 = vpack.c.bf16 %v2679, %v2678
  %v2733 = vpack.c.bf16 %v2691, %v2690
  %v2734 = vpack.c.bf16 %v1703, %v1702
  %v2735 = vpack.c.bf16 %v1715, %v1714
  %v2736 = vpack.c.bf16 %v1725, %v1703
  %v2737 = vpack.c.bf16 %v1731, %v1715
  %v2738 = vpack.c.bf16 %v1737, %v1725
  %v2739 = vpack.c.bf16 %v1743, %v1731
  %v2740 = vpack.c.bf16 %v1749, %v1737
  %v2741 = vpack.c.bf16 %v1755, %v1743
  %v2742 = vpack.c.bf16 %v2001, %v1749
  %v2743 = vpack.c.bf16 %v2009, %v2008
  %v2744 = vpack.c.bf16 %v2021, %v2020
  %v2745 = vpack.c.bf16 %v2033, %v2032
  %v2746 = vpack.c.bf16 %v2045, %v2044
  %v2747 = vpack.c.bf16 %v2055, %v2009
  %v2748 = vpack.c.bf16 %v2061, %v2021
  %v2749 = vpack.c.bf16 %v2067, %v2033
  %v2750 = vpack.c.bf16 %v2265, %v2045
  %v2751 = vpack.c.bf16 %v2271, %v2055
  %v2752 = vpack.c.bf16 %v2277, %v2061
  %v2753 = vpack.c.bf16 %v2283, %v2067
  %v2754 = vpack.c.bf16 %v2289, %v2265
  %v2755 = vpack.c.bf16 %v2295, %v2271
  %v2756 = vpack.c.bf16 %v2301, %v2277
  %v2757 = vpack.c.bf16 %v2307, %v2283
  %v2758 = vpack.c.bf16 %v2625, %v2289
  %v2759 = vpack.c.bf16 %v2631, %v2295
  %v2760 = vpack.c.bf16 %v2637, %v2301
  %v2761 = vpack.c.bf16 %v2645, %v2644
  %v2762 = vpack.c.bf16 %v2657, %v2656
  %v2763 = vpack.c.bf16 %v2669, %v2668
  %v2764 = vpack.c.bf16 %v2681, %v2680
  %v2765 = vpack.c.bf16 %v2693, %v2692
  %v2766 = vpack.c.bf16 %v1705, %v1704
  %v2767 = vpack.c.bf16 %v1717, %v1716
  %v2768 = vpack.c.bf16 %v1726, %v1705
  %v2769 = vpack.c.bf16 %v1732, %v1717
  %v2770 = vpack.c.bf16 %v1738, %v1726
  %v2771 = vpack.c.bf16 %v1744, %v1732
  %v2772 = vpack.c.bf16 %v1750, %v1738
  %v2773 = vpack.c.bf16 %v1756, %v1744
  %v2774 = vpack.c.bf16 %v2002, %v1750
  %v2775 = vpack.c.bf16 %v2011, %v2010
  %v2776 = vpack.c.bf16 %v2023, %v2022
  %v2777 = vpack.c.bf16 %v2035, %v2034
  %v2778 = vpack.c.bf16 %v2047, %v2046
  %v2779 = vpack.c.bf16 %v2056, %v2011
  %v2780 = vpack.c.bf16 %v2062, %v2023
  %v2781 = vpack.c.bf16 %v2068, %v2035
  %v2782 = vpack.c.bf16 %v2266, %v2047
  %v2783 = vpack.c.bf16 %v2272, %v2056
  %v2784 = vpack.c.bf16 %v2278, %v2062
  %v2785 = vpack.c.bf16 %v2284, %v2068
  %v2786 = vpack.c.bf16 %v2290, %v2266
  %v2787 = vpack.c.bf16 %v2296, %v2272
  %v2788 = vpack.c.bf16 %v2302, %v2278
  %v2789 = vpack.c.bf16 %v2308, %v2284
  %v2790 = vpack.c.bf16 %v2626, %v2290
  %v2791 = vpack.c.bf16 %v2632, %v2296
  %v2792 = vpack.c.bf16 %v2638, %v2302
  %v2793 = vpack.c.bf16 %v2647, %v2646
  %v2794 = vpack.c.bf16 %v2659, %v2658
  %v2795 = vpack.c.bf16 %v2671, %v2670
  %v2796 = vpack.c.bf16 %v2683, %v2682
  %v2797 = vpack.c.bf16 %v2695, %v2694
  %v2798 = vpack.c.bf16 %v1707, %v1706
  %v2799 = vpack.c.bf16 %v1719, %v1718
  %v2800 = vpack.c.bf16 %v1727, %v1707
  %v2801 = vpack.c.bf16 %v1733, %v1719
  %v2802 = vpack.c.bf16 %v1739, %v1727
  %v2803 = vpack.c.bf16 %v1745, %v1733
  %v2804 = vpack.c.bf16 %v1751, %v1739
  %v2805 = vpack.c.bf16 %v1757, %v1745
  %v2806 = vpack.c.bf16 %v2003, %v1751
  %v2807 = vpack.c.bf16 %v2013, %v2012
  %v2808 = vpack.c.bf16 %v2025, %v2024
  %v2809 = vpack.c.bf16 %v2037, %v2036
  %v2810 = vpack.c.bf16 %v2049, %v2048
  %v2811 = vpack.c.bf16 %v2057, %v2013
  %v2812 = vpack.c.bf16 %v2063, %v2025
  %v2813 = vpack.c.bf16 %v2069, %v2037
  %v2814 = vpack.c.bf16 %v2267, %v2049
  %v2815 = vpack.c.bf16 %v2273, %v2057
  %v2816 = vpack.c.bf16 %v2279, %v2063
  %v2817 = vpack.c.bf16 %v2285, %v2069
  %v2818 = vpack.c.bf16 %v2291, %v2267
  %v2819 = vpack.c.bf16 %v2297, %v2273
  %v2820 = vpack.c.bf16 %v2303, %v2279
  %v2821 = vpack.c.bf16 %v2309, %v2285
  %v2822 = vpack.c.bf16 %v2627, %v2291
  %v2823 = vpack.c.bf16 %v2633, %v2297
  %v2824 = vpack.c.bf16 %v2639, %v2303
  %v2825 = vpack.c.bf16 %v2649, %v2648
  %v2826 = vpack.c.bf16 %v2661, %v2660
  %v2827 = vpack.c.bf16 %v2673, %v2672
  %v2828 = vpack.c.bf16 %v2685, %v2684
  %v2829 = vpack.c.bf16 %v2697, %v2696
  %v2830 = vpack.c.bf16 %v1709, %v1708
  %v2831 = vpack.c.bf16 %v1721, %v1720
  %v2832 = vpack.c.bf16 %v1728, %v1709
  %v2833 = vpack.c.bf16 %v1734, %v1721
  %v2834 = vpack.c.bf16 %v1740, %v1728
  %v2835 = vpack.c.bf16 %v1746, %v1734
  %v2836 = vpack.c.bf16 %v1752, %v1740
  %v2837 = vpack.c.bf16 %v1758, %v1746
  %v2838 = vpack.c.bf16 %v2004, %v1752
  %v2839 = vpack.c.bf16 %v2015, %v2014
  %v2840 = vpack.c.bf16 %v2027, %v2026
  %v2841 = vpack.c.bf16 %v2039, %v2038
  %v2842 = vpack.c.bf16 %v2051, %v2050
  %v2843 = vpack.c.bf16 %v2058, %v2015
  %v2844 = vpack.c.bf16 %v2064, %v2027
  %v2845 = vpack.c.bf16 %v2070, %v2039
  %v2846 = vpack.c.bf16 %v2268, %v2051
  %v2847 = vpack.c.bf16 %v2274, %v2058
  %v2848 = vpack.c.bf16 %v2280, %v2064
  %v2849 = vpack.c.bf16 %v2286, %v2070
  %v2850 = vpack.c.bf16 %v2292, %v2268
  %v2851 = vpack.c.bf16 %v2298, %v2274
  %v2852 = vpack.c.bf16 %v2304, %v2280
  %v2853 = vpack.c.bf16 %v2310, %v2286
  %v2854 = vpack.c.bf16 %v2628, %v2292
  %v2855 = vpack.c.bf16 %v2634, %v2298
  %v2856 = vpack.c.bf16 %v2640, %v2304
  %v2857 = vpack.c.bf16 %v2651, %v2650
  %v2858 = vpack.c.bf16 %v2663, %v2662
  %v2859 = vpack.c.bf16 %v2675, %v2674
  %v2860 = vpack.c.bf16 %v2687, %v2686
  %v2861 = vpack.c.bf16 %v2699, %v2698
  %v2862 = vpack.c.bf16 %v1711, %v1710
  %v2863 = vpack.c.bf16 %v1723, %v1722
  %v2864 = vpack.c.bf16 %v1729, %v1711
  %v2865 = vpack.c.bf16 %v1735, %v1723
  %v2866 = vpack.c.bf16 %v1741, %v1729
  %v2867 = vpack.c.bf16 %v1747, %v1735
  %v2868 = vpack.c.bf16 %v1753, %v1741
  %v2869 = vpack.c.bf16 %v1759, %v1747
  %v2870 = vpack.c.bf16 %v2005, %v1753
  %v2871 = vpack.c.bf16 %v2017, %v2016
  %v2872 = vpack.c.bf16 %v2029, %v2028
  %v2873 = vpack.c.bf16 %v2041, %v2040
  %v2874 = vpack.c.bf16 %v2053, %v2052
  %v2875 = vpack.c.bf16 %v2059, %v2017
  %v2876 = vpack.c.bf16 %v2065, %v2029
  %v2877 = vpack.c.bf16 %v2071, %v2041
  %v2878 = vpack.c.bf16 %v2269, %v2053
  %v2879 = vpack.c.bf16 %v2275, %v2059
  %v2880 = vpack.c.bf16 %v2281, %v2065
  %v2881 = vpack.c.bf16 %v2287, %v2071
  %v2882 = vpack.c.bf16 %v2293, %v2269
  %v2883 = vpack.c.bf16 %v2299, %v2275
  %v2884 = vpack.c.bf16 %v2305, %v2281
  %v2885 = vpack.c.bf16 %v2311, %v2287
  %v2886 = vpack.c.bf16 %v2629, %v2293
  %v2887 = vpack.c.bf16 %v2635, %v2299
  %v2888 = vpack.c.bf16 %v2641, %v2305
  %v2889 = vpack.c.bf16 %v2653, %v2652
  %v2890 = vpack.c.bf16 %v2665, %v2664
  %v2891 = vpack.c.bf16 %v2677, %v2676
  %v2892 = vpack.c.bf16 %v2689, %v2688
  %v2893 = vpack.c.bf16 %v2701, %v2700
  %v2894 = vld [vmem:[%s3] sm:$0xf]
  %v2895 = vld [vmem:[%s3 + $0x4] sm:$0xf]
  %v2896 = vld [vmem:[%s3 + $0x8] sm:$0xf]
  %v2897 = vld [vmem:[%s3 + $0xc] sm:$0xf]
  %v2898 = vld [vmem:[%s3 + $0x10] sm:$0xf]
  %v2899 = vld [vmem:[%s3 + $0x14] sm:$0xf]
  %v2900 = vld [vmem:[%s3 + $0x18] sm:$0xf]
  %v2901 = vld [vmem:[%s3 + $0x1c] sm:$0xf]
  %v2902 = vld [vmem:[%s3 + $0x20] sm:$0xf]
  %v2903 = vld [vmem:[%s3 + $0x24] sm:$0xf]
  %v2904 = vld [vmem:[%s3 + $0x28] sm:$0xf]
  %v2905 = vld [vmem:[%s3 + $0x2c] sm:$0xf]
  %v2906 = vld [vmem:[%s3 + $0x30] sm:$0xf]
  %v2907 = vld [vmem:[%s3 + $0x34] sm:$0xf]
  %v2908 = vld [vmem:[%s3 + $0x38] sm:$0xf]
  %v2909 = vld [vmem:[%s3 + $0x3c] sm:$0xf]
  %v2910 = vld [vmem:[%s3 + $0x40] sm:$0xf]
  %v2911 = vld [vmem:[%s3 + $0x44] sm:$0xf]
  %v2912 = vld [vmem:[%s3 + $0x48] sm:$0xf]
  %v2913 = vld [vmem:[%s3 + $0x4c] sm:$0xf]
  %v2914 = vld [vmem:[%s3 + $0x50] sm:$0xf]
  %v2915 = vld [vmem:[%s3 + $0x54] sm:$0xf]
  %v2916 = vld [vmem:[%s3 + $0x58] sm:$0xf]
  %v2917 = vld [vmem:[%s3 + $0x5c] sm:$0xf]
  %v2918 = vld [vmem:[%s3 + $0x60] sm:$0xf]
  %v2919 = vld [vmem:[%s3 + $0x64] sm:$0xf]
  %v2920 = vld [vmem:[%s3 + $0x68] sm:$0xf]
  %v2921 = vld [vmem:[%s3 + $0x6c] sm:$0xf]
  %v2922 = vld [vmem:[%s3 + $0x70] sm:$0xf]
  %v2923 = vld [vmem:[%s3 + $0x74] sm:$0xf]
  %v2924 = vld [vmem:[%s3 + $0x78] sm:$0xf]
  %v2925 = vld [vmem:[%s3 + $0x7c] sm:$0xf]
  %v2926 = vld [vmem:[%s3 + $0x80] sm:$0xf]
  %v2927 = vld [vmem:[%s3 + $0x84] sm:$0xf]
  %v2928 = vld [vmem:[%s3 + $0x88] sm:$0xf]
  %v2929 = vld [vmem:[%s3 + $0x8c] sm:$0xf]
  %v2930 = vld [vmem:[%s3 + $0x90] sm:$0xf]
  %v2931 = vld [vmem:[%s3 + $0x94] sm:$0xf]
  %v2932 = vld [vmem:[%s3 + $0x98] sm:$0xf]
  %v2933 = vld [vmem:[%s3 + $0x9c] sm:$0xf]
  %v2934 = vld [vmem:[%s3 + $0xa0] sm:$0xf]
  %v2935 = vld [vmem:[%s3 + $0xa4] sm:$0xf]
  %v2936 = vld [vmem:[%s3 + $0xa8] sm:$0xf]
  %v2937 = vld [vmem:[%s3 + $0xac] sm:$0xf]
  %v2938 = vld [vmem:[%s3 + $0xb0] sm:$0xf]
  %v2939 = vld [vmem:[%s3 + $0xb4] sm:$0xf]
  %v2940 = vld [vmem:[%s3 + $0xb8] sm:$0xf]
  %v2941 = vld [vmem:[%s3 + $0xbc] sm:$0xf]
  %v2942 = vld [vmem:[%s3 + $0xc0] sm:$0xf]
  %v2943 = vld [vmem:[%s3 + $0xc4] sm:$0xf]
  %v2944 = vld [vmem:[%s3 + $0xc8] sm:$0xf]
  %v2945 = vld [vmem:[%s3 + $0xcc] sm:$0xf]
  %v2946 = vld [vmem:[%s3 + $0xd0] sm:$0xf]
  %v2947 = vld [vmem:[%s3 + $0xd4] sm:$0xf]
  %v2948 = vld [vmem:[%s3 + $0xd8] sm:$0xf]
  %v2949 = vld [vmem:[%s3 + $0xdc] sm:$0xf]
  %v2950 = vld [vmem:[%s3 + $0xe0] sm:$0xf]
  %v2951 = vld [vmem:[%s3 + $0xe4] sm:$0xf]
  %v2952 = vld [vmem:[%s3 + $0xe8] sm:$0xf]
  %v2953 = vld [vmem:[%s3 + $0xec] sm:$0xf]
  %v2954 = vld [vmem:[%s3 + $0xf0] sm:$0xf]
  %v2955 = vld [vmem:[%s3 + $0xf4] sm:$0xf]
  %v2956 = vld [vmem:[%s3 + $0xf8] sm:$0xf]
  %v2957 = vld [vmem:[%s3 + $0xfc] sm:$0xf]
  %v2958 = vld [vmem:[%s3 + $0x100] sm:$0xf]
  %v2959 = vld [vmem:[%s3 + $0x104] sm:$0xf]
  %v2960 = vld [vmem:[%s3 + $0x108] sm:$0xf]
  %v2961 = vld [vmem:[%s3 + $0x10c] sm:$0xf]
  %v2962 = vld [vmem:[%s3 + $0x110] sm:$0xf]
  %v2963 = vld [vmem:[%s3 + $0x114] sm:$0xf]
  %v2964 = vld [vmem:[%s3 + $0x118] sm:$0xf]
  %v2965 = vld [vmem:[%s3 + $0x11c] sm:$0xf]
  %v2966 = vld [vmem:[%s3 + $0x120] sm:$0xf]
  %v2967 = vld [vmem:[%s3 + $0x124] sm:$0xf]
  %v2968 = vld [vmem:[%s3 + $0x128] sm:$0xf]
  %v2969 = vld [vmem:[%s3 + $0x12c] sm:$0xf]
  %v2970 = vld [vmem:[%s3 + $0x130] sm:$0xf]
  %v2971 = vld [vmem:[%s3 + $0x134] sm:$0xf]
  %v2972 = vld [vmem:[%s3 + $0x138] sm:$0xf]
  %v2973 = vld [vmem:[%s3 + $0x13c] sm:$0xf]
  %v2974 = vld [vmem:[%s3 + $0x140] sm:$0xf]
  %v2975 = vld [vmem:[%s3 + $0x144] sm:$0xf]
  %v2976 = vld [vmem:[%s3 + $0x148] sm:$0xf]
  %v2977 = vld [vmem:[%s3 + $0x14c] sm:$0xf]
  %v2978 = vld [vmem:[%s3 + $0x150] sm:$0xf]
  %v2979 = vld [vmem:[%s3 + $0x154] sm:$0xf]
  %v2980 = vld [vmem:[%s3 + $0x158] sm:$0xf]
  %v2981 = vld [vmem:[%s3 + $0x15c] sm:$0xf]
  %v2982 = vld [vmem:[%s3 + $0x160] sm:$0xf]
  %v2983 = vld [vmem:[%s3 + $0x164] sm:$0xf]
  %v2984 = vld [vmem:[%s3 + $0x168] sm:$0xf]
  %v2985 = vld [vmem:[%s3 + $0x16c] sm:$0xf]
  %v2986 = vld [vmem:[%s3 + $0x170] sm:$0xf]
  %v2987 = vld [vmem:[%s3 + $0x174] sm:$0xf]
  %v2988 = vld [vmem:[%s3 + $0x178] sm:$0xf]
  %v2989 = vld [vmem:[%s3 + $0x17c] sm:$0xf]
  %v2990 = vld [vmem:[%s3 + $0x180] sm:$0xf]
  %v2991 = vld [vmem:[%s3 + $0x184] sm:$0xf]
  %v2992 = vld [vmem:[%s3 + $0x188] sm:$0xf]
  %v2993 = vld [vmem:[%s3 + $0x18c] sm:$0xf]
  %v2994 = vld [vmem:[%s3 + $0x190] sm:$0xf]
  %v2995 = vld [vmem:[%s3 + $0x194] sm:$0xf]
  %v2996 = vld [vmem:[%s3 + $0x198] sm:$0xf]
  %v2997 = vld [vmem:[%s3 + $0x19c] sm:$0xf]
  %v2998 = vld [vmem:[%s3 + $0x1a0] sm:$0xf]
  %v2999 = vld [vmem:[%s3 + $0x1a4] sm:$0xf]
  %v3000 = vld [vmem:[%s3 + $0x1a8] sm:$0xf]
  %v3001 = vld [vmem:[%s3 + $0x1ac] sm:$0xf]
  %v3002 = vld [vmem:[%s3 + $0x1b0] sm:$0xf]
  %v3003 = vld [vmem:[%s3 + $0x1b4] sm:$0xf]
  %v3004 = vld [vmem:[%s3 + $0x1b8] sm:$0xf]
  %v3005 = vld [vmem:[%s3 + $0x1bc] sm:$0xf]
  %v3006 = vld [vmem:[%s3 + $0x1c0] sm:$0xf]
  %v3007 = vld [vmem:[%s3 + $0x1c4] sm:$0xf]
  %v3008 = vld [vmem:[%s3 + $0x1c8] sm:$0xf]
  %v3009 = vld [vmem:[%s3 + $0x1cc] sm:$0xf]
  %v3010 = vld [vmem:[%s3 + $0x1d0] sm:$0xf]
  %v3011 = vld [vmem:[%s3 + $0x1d4] sm:$0xf]
  %v3012 = vld [vmem:[%s3 + $0x1d8] sm:$0xf]
  %v3013 = vld [vmem:[%s3 + $0x1dc] sm:$0xf]
  %v3014 = vld [vmem:[%s3 + $0x1e0] sm:$0xf]
  %v3015 = vld [vmem:[%s3 + $0x1e4] sm:$0xf]
  %v3016 = vld [vmem:[%s3 + $0x1e8] sm:$0xf]
  %v3017 = vld [vmem:[%s3 + $0x1ec] sm:$0xf]
  %v3018 = vld [vmem:[%s3 + $0x1f0] sm:$0xf]
  %v3019 = vld [vmem:[%s3 + $0x1f4] sm:$0xf]
  %v3020 = vld [vmem:[%s3 + $0x1f8] sm:$0xf]
  %v3021 = vld [vmem:[%s3 + $0x1fc] sm:$0xf]
  %v3022 = vld [vmem:[%s3 + $0x200] sm:$0xf]
  %v3023 = vld [vmem:[%s3 + $0x204] sm:$0xf]
  %v3024 = vld [vmem:[%s3 + $0x208] sm:$0xf]
  %v3025 = vld [vmem:[%s3 + $0x20c] sm:$0xf]
  %v3026 = vld [vmem:[%s3 + $0x210] sm:$0xf]
  %v3027 = vld [vmem:[%s3 + $0x214] sm:$0xf]
  %v3028 = vld [vmem:[%s3 + $0x218] sm:$0xf]
  %v3029 = vld [vmem:[%s3 + $0x21c] sm:$0xf]
  %v3030 = vld [vmem:[%s3 + $0x220] sm:$0xf]
  %v3031 = vld [vmem:[%s3 + $0x224] sm:$0xf]
  %v3032 = vld [vmem:[%s3 + $0x228] sm:$0xf]
  %v3033 = vld [vmem:[%s3 + $0x22c] sm:$0xf]
  %v3034 = vld [vmem:[%s3 + $0x230] sm:$0xf]
  %v3035 = vld [vmem:[%s3 + $0x234] sm:$0xf]
  %v3036 = vld [vmem:[%s3 + $0x238] sm:$0xf]
  %v3037 = vld [vmem:[%s3 + $0x23c] sm:$0xf]
  %v3038 = vld [vmem:[%s3 + $0x240] sm:$0xf]
  %v3039 = vld [vmem:[%s3 + $0x244] sm:$0xf]
  %v3040 = vld [vmem:[%s3 + $0x248] sm:$0xf]
  %v3041 = vld [vmem:[%s3 + $0x24c] sm:$0xf]
  %v3042 = vld [vmem:[%s3 + $0x250] sm:$0xf]
  %v3043 = vld [vmem:[%s3 + $0x254] sm:$0xf]
  %v3044 = vld [vmem:[%s3 + $0x258] sm:$0xf]
  %v3045 = vld [vmem:[%s3 + $0x25c] sm:$0xf]
  %v3046 = vld [vmem:[%s3 + $0x260] sm:$0xf]
  %v3047 = vld [vmem:[%s3 + $0x264] sm:$0xf]
  %v3048 = vld [vmem:[%s3 + $0x268] sm:$0xf]
  %v3049 = vld [vmem:[%s3 + $0x26c] sm:$0xf]
  %v3050 = vld [vmem:[%s3 + $0x270] sm:$0xf]
  %v3051 = vld [vmem:[%s3 + $0x274] sm:$0xf]
  %v3052 = vld [vmem:[%s3 + $0x278] sm:$0xf]
  %v3053 = vld [vmem:[%s3 + $0x27c] sm:$0xf]
  %v3054 = vld [vmem:[%s3 + $0x280] sm:$0xf]
  %v3055 = vld [vmem:[%s3 + $0x284] sm:$0xf]
  %v3056 = vld [vmem:[%s3 + $0x288] sm:$0xf]
  %v3057 = vld [vmem:[%s3 + $0x28c] sm:$0xf]
  %v3058 = vld [vmem:[%s3 + $0x290] sm:$0xf]
  %v3059 = vld [vmem:[%s3 + $0x294] sm:$0xf]
  %v3060 = vld [vmem:[%s3 + $0x298] sm:$0xf]
  %v3061 = vld [vmem:[%s3 + $0x29c] sm:$0xf]
  %v3062 = vld [vmem:[%s3 + $0x2a0] sm:$0xf]
  %v3063 = vld [vmem:[%s3 + $0x2a4] sm:$0xf]
  %v3064 = vld [vmem:[%s3 + $0x2a8] sm:$0xf]
  %v3065 = vld [vmem:[%s3 + $0x2ac] sm:$0xf]
  %v3066 = vld [vmem:[%s3 + $0x2b0] sm:$0xf]
  %v3067 = vld [vmem:[%s3 + $0x2b4] sm:$0xf]
  %v3068 = vld [vmem:[%s3 + $0x2b8] sm:$0xf]
  %v3069 = vld [vmem:[%s3 + $0x2bc] sm:$0xf]
  %v3070 = vld [vmem:[%s3 + $0x2c0] sm:$0xf]
  %v3071 = vld [vmem:[%s3 + $0x2c4] sm:$0xf]
  %v3072 = vld [vmem:[%s3 + $0x2c8] sm:$0xf]
  %v3073 = vld [vmem:[%s3 + $0x2cc] sm:$0xf]
  %v3074 = vld [vmem:[%s3 + $0x2d0] sm:$0xf]
  %v3075 = vld [vmem:[%s3 + $0x2d4] sm:$0xf]
  %v3076 = vld [vmem:[%s3 + $0x2d8] sm:$0xf]
  %v3077 = vld [vmem:[%s3 + $0x2dc] sm:$0xf]
  %v3078 = vld [vmem:[%s3 + $0x2e0] sm:$0xf]
  %v3079 = vld [vmem:[%s3 + $0x2e4] sm:$0xf]
  %v3080 = vld [vmem:[%s3 + $0x2e8] sm:$0xf]
  %v3081 = vld [vmem:[%s3 + $0x2ec] sm:$0xf]
  %v3082 = vld [vmem:[%s3 + $0x2f0] sm:$0xf]
  %v3083 = vld [vmem:[%s3 + $0x2f4] sm:$0xf]
  %v3084 = vld [vmem:[%s3 + $0x2f8] sm:$0xf]
  %v3085 = vld [vmem:[%s3 + $0x2fc] sm:$0xf]
  %v3086 = vld [vmem:[%s3 + $0x300] sm:$0xf]
  %v3087 = vld [vmem:[%s3 + $0x304] sm:$0xf]
  %v3088 = vld [vmem:[%s3 + $0x308] sm:$0xf]
  %v3089 = vld [vmem:[%s3 + $0x30c] sm:$0xf]
  %v3090 = vld [vmem:[%s3 + $0x310] sm:$0xf]
  %v3091 = vld [vmem:[%s3 + $0x314] sm:$0xf]
  %v3092 = vld [vmem:[%s3 + $0x318] sm:$0xf]
  %v3093 = vld [vmem:[%s3 + $0x31c] sm:$0xf]
  %v3094 = vld [vmem:[%s3 + $0x320] sm:$0xf]
  %v3095 = vld [vmem:[%s3 + $0x324] sm:$0xf]
  %v3096 = vld [vmem:[%s3 + $0x328] sm:$0xf]
  %v3097 = vld [vmem:[%s3 + $0x32c] sm:$0xf]
  %v3098 = vld [vmem:[%s3 + $0x330] sm:$0xf]
  %v3099 = vld [vmem:[%s3 + $0x334] sm:$0xf]
  %v3100 = vld [vmem:[%s3 + $0x338] sm:$0xf]
  %v3101 = vld [vmem:[%s3 + $0x33c] sm:$0xf]
  %v3102 = vld [vmem:[%s3 + $0x340] sm:$0xf]
  %v3103 = vld [vmem:[%s3 + $0x344] sm:$0xf]
  %v3104 = vld [vmem:[%s3 + $0x348] sm:$0xf]
  %v3105 = vld [vmem:[%s3 + $0x34c] sm:$0xf]
  %v3106 = vld [vmem:[%s3 + $0x350] sm:$0xf]
  %v3107 = vld [vmem:[%s3 + $0x354] sm:$0xf]
  %v3108 = vld [vmem:[%s3 + $0x358] sm:$0xf]
  %v3109 = vld [vmem:[%s3 + $0x35c] sm:$0xf]
  %v3110 = vld [vmem:[%s3 + $0x360] sm:$0xf]
  %v3111 = vld [vmem:[%s3 + $0x364] sm:$0xf]
  %v3112 = vld [vmem:[%s3 + $0x368] sm:$0xf]
  %v3113 = vld [vmem:[%s3 + $0x36c] sm:$0xf]
  %v3114 = vld [vmem:[%s3 + $0x370] sm:$0xf]
  %v3115 = vld [vmem:[%s3 + $0x374] sm:$0xf]
  %v3116 = vld [vmem:[%s3 + $0x378] sm:$0xf]
  %v3117 = vld [vmem:[%s3 + $0x37c] sm:$0xf]
  %v3118 = vld [vmem:[%s3 + $0x380] sm:$0xf]
  %v3119 = vld [vmem:[%s3 + $0x384] sm:$0xf]
  %v3120 = vld [vmem:[%s3 + $0x388] sm:$0xf]
  %v3121 = vld [vmem:[%s3 + $0x38c] sm:$0xf]
  %v3122 = vld [vmem:[%s3 + $0x390] sm:$0xf]
  %v3123 = vld [vmem:[%s3 + $0x394] sm:$0xf]
  %v3124 = vld [vmem:[%s3 + $0x398] sm:$0xf]
  %v3125 = vld [vmem:[%s3 + $0x39c] sm:$0xf]
  %v3126 = vld [vmem:[%s3 + $0x3a0] sm:$0xf]
  %v3127 = vld [vmem:[%s3 + $0x3a4] sm:$0xf]
  %v3128 = vld [vmem:[%s3 + $0x3a8] sm:$0xf]
  %v3129 = vld [vmem:[%s3 + $0x3ac] sm:$0xf]
  %v3130 = vld [vmem:[%s3 + $0x3b0] sm:$0xf]
  %v3131 = vld [vmem:[%s3 + $0x3b4] sm:$0xf]
  %v3132 = vld [vmem:[%s3 + $0x3b8] sm:$0xf]
  %v3133 = vld [vmem:[%s3 + $0x3bc] sm:$0xf]
  %v3134 = vld [vmem:[%s3 + $0x3c0] sm:$0xf]
  %v3135 = vld [vmem:[%s3 + $0x3c4] sm:$0xf]
  %v3136 = vld [vmem:[%s3 + $0x3c8] sm:$0xf]
  %v3137 = vld [vmem:[%s3 + $0x3cc] sm:$0xf]
  %v3138 = vld [vmem:[%s3 + $0x3d0] sm:$0xf]
  %v3139 = vld [vmem:[%s3 + $0x3d4] sm:$0xf]
  %v3140 = vld [vmem:[%s3 + $0x3d8] sm:$0xf]
  %v3141 = vld [vmem:[%s3 + $0x3dc] sm:$0xf]
  %v3142 = vld [vmem:[%s3 + $0x3e0] sm:$0xf]
  %v3143 = vld [vmem:[%s3 + $0x3e4] sm:$0xf]
  %v3144 = vld [vmem:[%s3 + $0x3e8] sm:$0xf]
  %v3145 = vld [vmem:[%s3 + $0x3ec] sm:$0xf]
  %v3146 = vld [vmem:[%s3 + $0x3f0] sm:$0xf]
  %v3147 = vld [vmem:[%s3 + $0x3f4] sm:$0xf]
  %v3148 = vld [vmem:[%s3 + $0x3f8] sm:$0xf]
  %v3149 = vld [vmem:[%s3 + $0x3fc] sm:$0xf]
  %v3150 = vld [vmem:[%s3 + $0x400] sm:$0xf]
  %v3151 = vld [vmem:[%s3 + $0x404] sm:$0xf]
  %v3152 = vld [vmem:[%s3 + $0x408] sm:$0xf]
  %v3153 = vld [vmem:[%s3 + $0x40c] sm:$0xf]
  %v3154 = vld [vmem:[%s3 + $0x410] sm:$0xf]
  %v3155 = vld [vmem:[%s3 + $0x414] sm:$0xf]
  %v3156 = vld [vmem:[%s3 + $0x418] sm:$0xf]
  %v3157 = vld [vmem:[%s3 + $0x41c] sm:$0xf]
  %v3158 = vld [vmem:[%s3 + $0x420] sm:$0xf]
  %v3159 = vld [vmem:[%s3 + $0x424] sm:$0xf]
  %v3160 = vld [vmem:[%s3 + $0x428] sm:$0xf]
  %v3161 = vld [vmem:[%s3 + $0x42c] sm:$0xf]
  %v3162 = vld [vmem:[%s3 + $0x430] sm:$0xf]
  %v3163 = vld [vmem:[%s3 + $0x434] sm:$0xf]
  %v3164 = vld [vmem:[%s3 + $0x438] sm:$0xf]
  %v3165 = vld [vmem:[%s3 + $0x43c] sm:$0xf]
  %v3166 = vld [vmem:[%s3 + $0x440] sm:$0xf]
  %v3167 = vld [vmem:[%s3 + $0x444] sm:$0xf]
  %v3168 = vld [vmem:[%s3 + $0x448] sm:$0xf]
  %v3169 = vld [vmem:[%s3 + $0x44c] sm:$0xf]
  %v3170 = vld [vmem:[%s3 + $0x450] sm:$0xf]
  %v3171 = vld [vmem:[%s3 + $0x454] sm:$0xf]
  %v3172 = vld [vmem:[%s3 + $0x458] sm:$0xf]
  %v3173 = vld [vmem:[%s3 + $0x45c] sm:$0xf]
  %v3174 = vld [vmem:[%s3 + $0x460] sm:$0xf]
  %v3175 = vld [vmem:[%s3 + $0x464] sm:$0xf]
  %v3176 = vld [vmem:[%s3 + $0x468] sm:$0xf]
  %v3177 = vld [vmem:[%s3 + $0x46c] sm:$0xf]
  %v3178 = vld [vmem:[%s3 + $0x470] sm:$0xf]
  %v3179 = vld [vmem:[%s3 + $0x474] sm:$0xf]
  %v3180 = vld [vmem:[%s3 + $0x478] sm:$0xf]
  %v3181 = vld [vmem:[%s3 + $0x47c] sm:$0xf]
  %v3182 = vld [vmem:[%s3 + $0x480] sm:$0xf]
  %v3183 = vld [vmem:[%s3 + $0x484] sm:$0xf]
  %v3184 = vld [vmem:[%s3 + $0x488] sm:$0xf]
  %v3185 = vld [vmem:[%s3 + $0x48c] sm:$0xf]
  %v3186 = vld [vmem:[%s3 + $0x490] sm:$0xf]
  %v3187 = vld [vmem:[%s3 + $0x494] sm:$0xf]
  %v3188 = vld [vmem:[%s3 + $0x498] sm:$0xf]
  %v3189 = vld [vmem:[%s3 + $0x49c] sm:$0xf]
  %v3190 = vld [vmem:[%s3 + $0x4a0] sm:$0xf]
  %v3191 = vld [vmem:[%s3 + $0x4a4] sm:$0xf]
  %v3192 = vld [vmem:[%s3 + $0x4a8] sm:$0xf]
  %v3193 = vld [vmem:[%s3 + $0x4ac] sm:$0xf]
  %v3194 = vld [vmem:[%s3 + $0x4b0] sm:$0xf]
  %v3195 = vld [vmem:[%s3 + $0x4b4] sm:$0xf]
  %v3196 = vld [vmem:[%s3 + $0x4b8] sm:$0xf]
  %v3197 = vld [vmem:[%s3 + $0x4bc] sm:$0xf]
  %v3198 = vld [vmem:[%s3 + $0x4c0] sm:$0xf]
  %v3199 = vld [vmem:[%s3 + $0x4c4] sm:$0xf]
  %v3200 = vld [vmem:[%s3 + $0x4c8] sm:$0xf]
  %v3201 = vld [vmem:[%s3 + $0x4cc] sm:$0xf]
  %v3202 = vld [vmem:[%s3 + $0x4d0] sm:$0xf]
  %v3203 = vld [vmem:[%s3 + $0x4d4] sm:$0xf]
  %v3204 = vld [vmem:[%s3 + $0x4d8] sm:$0xf]
  %v3205 = vld [vmem:[%s3 + $0x4dc] sm:$0xf]
  %v3206 = vld [vmem:[%s3 + $0x4e0] sm:$0xf]
  %v3207 = vld [vmem:[%s3 + $0x4e4] sm:$0xf]
  %v3208 = vld [vmem:[%s3 + $0x4e8] sm:$0xf]
  %v3209 = vld [vmem:[%s3 + $0x4ec] sm:$0xf]
  %v3210 = vld [vmem:[%s3 + $0x4f0] sm:$0xf]
  %v3211 = vld [vmem:[%s3 + $0x4f4] sm:$0xf]
  %v3212 = vld [vmem:[%s3 + $0x4f8] sm:$0xf]
  %v3213 = vld [vmem:[%s3 + $0x4fc] sm:$0xf]
  %v3214 = vld [vmem:[%s3 + $0x500] sm:$0xf]
  %v3215 = vld [vmem:[%s3 + $0x504] sm:$0xf]
  %v3216 = vld [vmem:[%s3 + $0x508] sm:$0xf]
  %v3217 = vld [vmem:[%s3 + $0x50c] sm:$0xf]
  %v3218 = vld [vmem:[%s3 + $0x510] sm:$0xf]
  %v3219 = vld [vmem:[%s3 + $0x514] sm:$0xf]
  %v3220 = vld [vmem:[%s3 + $0x518] sm:$0xf]
  %v3221 = vld [vmem:[%s3 + $0x51c] sm:$0xf]
  %v3222 = vld [vmem:[%s3 + $0x520] sm:$0xf]
  %v3223 = vld [vmem:[%s3 + $0x524] sm:$0xf]
  %v3224 = vld [vmem:[%s3 + $0x528] sm:$0xf]
  %v3225 = vld [vmem:[%s3 + $0x52c] sm:$0xf]
  %v3226 = vld [vmem:[%s3 + $0x530] sm:$0xf]
  %v3227 = vld [vmem:[%s3 + $0x534] sm:$0xf]
  %v3228 = vld [vmem:[%s3 + $0x538] sm:$0xf]
  %v3229 = vld [vmem:[%s3 + $0x53c] sm:$0xf]
  %v3230 = vld [vmem:[%s3 + $0x540] sm:$0xf]
  %v3231 = vld [vmem:[%s3 + $0x544] sm:$0xf]
  %v3232 = vld [vmem:[%s3 + $0x548] sm:$0xf]
  %v3233 = vld [vmem:[%s3 + $0x54c] sm:$0xf]
  %v3234 = vld [vmem:[%s3 + $0x550] sm:$0xf]
  %v3235 = vld [vmem:[%s3 + $0x554] sm:$0xf]
  %v3236 = vld [vmem:[%s3 + $0x558] sm:$0xf]
  %v3237 = vld [vmem:[%s3 + $0x55c] sm:$0xf]
  %v3238 = vld [vmem:[%s3 + $0x560] sm:$0xf]
  %v3239 = vld [vmem:[%s3 + $0x564] sm:$0xf]
  %v3240 = vld [vmem:[%s3 + $0x568] sm:$0xf]
  %v3241 = vld [vmem:[%s3 + $0x56c] sm:$0xf]
  %v3242 = vld [vmem:[%s3 + $0x570] sm:$0xf]
  %v3243 = vld [vmem:[%s3 + $0x574] sm:$0xf]
  %v3244 = vld [vmem:[%s3 + $0x578] sm:$0xf]
  %v3245 = vld [vmem:[%s3 + $0x57c] sm:$0xf]
  %v3246 = vld [vmem:[%s3 + $0x580] sm:$0xf]
  %v3247 = vld [vmem:[%s3 + $0x584] sm:$0xf]
  %v3248 = vld [vmem:[%s3 + $0x588] sm:$0xf]
  %v3249 = vld [vmem:[%s3 + $0x58c] sm:$0xf]
  %v3250 = vld [vmem:[%s3 + $0x590] sm:$0xf]
  %v3251 = vld [vmem:[%s3 + $0x594] sm:$0xf]
  %v3252 = vld [vmem:[%s3 + $0x598] sm:$0xf]
  %v3253 = vld [vmem:[%s3 + $0x59c] sm:$0xf]
  %v3254 = vld [vmem:[%s3 + $0x5a0] sm:$0xf]
  %v3255 = vld [vmem:[%s3 + $0x5a4] sm:$0xf]
  %v3256 = vld [vmem:[%s3 + $0x5a8] sm:$0xf]
  %v3257 = vld [vmem:[%s3 + $0x5ac] sm:$0xf]
  %v3258 = vld [vmem:[%s3 + $0x5b0] sm:$0xf]
  %v3259 = vld [vmem:[%s3 + $0x5b4] sm:$0xf]
  %v3260 = vld [vmem:[%s3 + $0x5b8] sm:$0xf]
  %v3261 = vld [vmem:[%s3 + $0x5bc] sm:$0xf]
  %v3262 = vld [vmem:[%s3 + $0x5c0] sm:$0xf]
  %v3263 = vld [vmem:[%s3 + $0x5c4] sm:$0xf]
  %v3264 = vld [vmem:[%s3 + $0x5c8] sm:$0xf]
  %v3265 = vld [vmem:[%s3 + $0x5cc] sm:$0xf]
  %v3266 = vld [vmem:[%s3 + $0x5d0] sm:$0xf]
  %v3267 = vld [vmem:[%s3 + $0x5d4] sm:$0xf]
  %v3268 = vld [vmem:[%s3 + $0x5d8] sm:$0xf]
  %v3269 = vld [vmem:[%s3 + $0x5dc] sm:$0xf]
  %v3270 = vld [vmem:[%s3 + $0x5e0] sm:$0xf]
  %v3271 = vld [vmem:[%s3 + $0x5e4] sm:$0xf]
  %v3272 = vld [vmem:[%s3 + $0x5e8] sm:$0xf]
  %v3273 = vld [vmem:[%s3 + $0x5ec] sm:$0xf]
  %v3274 = vld [vmem:[%s3 + $0x5f0] sm:$0xf]
  %v3275 = vld [vmem:[%s3 + $0x5f4] sm:$0xf]
  %v3276 = vld [vmem:[%s3 + $0x5f8] sm:$0xf]
  %v3277 = vld [vmem:[%s3 + $0x5fc] sm:$0xf]
  %v3278 = vld [vmem:[%s3 + $0x600] sm:$0xf]
  %v3279 = vld [vmem:[%s3 + $0x604] sm:$0xf]
  %v3280 = vld [vmem:[%s3 + $0x608] sm:$0xf]
  %v3281 = vld [vmem:[%s3 + $0x60c] sm:$0xf]
  %v3282 = vld [vmem:[%s3 + $0x610] sm:$0xf]
  %v3283 = vld [vmem:[%s3 + $0x614] sm:$0xf]
  %v3284 = vld [vmem:[%s3 + $0x618] sm:$0xf]
  %v3285 = vld [vmem:[%s3 + $0x61c] sm:$0xf]
  %v3286 = vld [vmem:[%s3 + $0x620] sm:$0xf]
  %v3287 = vld [vmem:[%s3 + $0x624] sm:$0xf]
  %v3288 = vld [vmem:[%s3 + $0x628] sm:$0xf]
  %v3289 = vld [vmem:[%s3 + $0x62c] sm:$0xf]
  %v3290 = vld [vmem:[%s3 + $0x630] sm:$0xf]
  %v3291 = vld [vmem:[%s3 + $0x634] sm:$0xf]
  %v3292 = vld [vmem:[%s3 + $0x638] sm:$0xf]
  %v3293 = vld [vmem:[%s3 + $0x63c] sm:$0xf]
  %v3294 = vld [vmem:[%s3 + $0x640] sm:$0xf]
  %v3295 = vld [vmem:[%s3 + $0x644] sm:$0xf]
  %v3296 = vld [vmem:[%s3 + $0x648] sm:$0xf]
  %v3297 = vld [vmem:[%s3 + $0x64c] sm:$0xf]
  %v3298 = vld [vmem:[%s3 + $0x650] sm:$0xf]
  %v3299 = vld [vmem:[%s3 + $0x654] sm:$0xf]
  %v3300 = vld [vmem:[%s3 + $0x658] sm:$0xf]
  %v3301 = vld [vmem:[%s3 + $0x65c] sm:$0xf]
  %v3302 = vld [vmem:[%s3 + $0x660] sm:$0xf]
  %v3303 = vld [vmem:[%s3 + $0x664] sm:$0xf]
  %v3304 = vld [vmem:[%s3 + $0x668] sm:$0xf]
  %v3305 = vld [vmem:[%s3 + $0x66c] sm:$0xf]
  %v3306 = vld [vmem:[%s3 + $0x670] sm:$0xf]
  %v3307 = vld [vmem:[%s3 + $0x674] sm:$0xf]
  %v3308 = vld [vmem:[%s3 + $0x678] sm:$0xf]
  %v3309 = vld [vmem:[%s3 + $0x67c] sm:$0xf]
  %v3310 = vld [vmem:[%s3 + $0x680] sm:$0xf]
  %v3311 = vld [vmem:[%s3 + $0x684] sm:$0xf]
  %v3312 = vld [vmem:[%s3 + $0x688] sm:$0xf]
  %v3313 = vld [vmem:[%s3 + $0x68c] sm:$0xf]
  %v3314 = vld [vmem:[%s3 + $0x690] sm:$0xf]
  %v3315 = vld [vmem:[%s3 + $0x694] sm:$0xf]
  %v3316 = vld [vmem:[%s3 + $0x698] sm:$0xf]
  %v3317 = vld [vmem:[%s3 + $0x69c] sm:$0xf]
  %v3318 = vld [vmem:[%s3 + $0x6a0] sm:$0xf]
  %v3319 = vld [vmem:[%s3 + $0x6a4] sm:$0xf]
  %v3320 = vld [vmem:[%s3 + $0x6a8] sm:$0xf]
  %v3321 = vld [vmem:[%s3 + $0x6ac] sm:$0xf]
  %v3322 = vld [vmem:[%s3 + $0x6b0] sm:$0xf]
  %v3323 = vld [vmem:[%s3 + $0x6b4] sm:$0xf]
  %v3324 = vld [vmem:[%s3 + $0x6b8] sm:$0xf]
  %v3325 = vld [vmem:[%s3 + $0x6bc] sm:$0xf]
  %v3326 = vld [vmem:[%s3 + $0x6c0] sm:$0xf]
  %v3327 = vld [vmem:[%s3 + $0x6c4] sm:$0xf]
  %v3328 = vld [vmem:[%s3 + $0x6c8] sm:$0xf]
  %v3329 = vld [vmem:[%s3 + $0x6cc] sm:$0xf]
  %v3330 = vld [vmem:[%s3 + $0x6d0] sm:$0xf]
  %v3331 = vld [vmem:[%s3 + $0x6d4] sm:$0xf]
  %v3332 = vld [vmem:[%s3 + $0x6d8] sm:$0xf]
  %v3333 = vld [vmem:[%s3 + $0x6dc] sm:$0xf]
  %v3334 = vld [vmem:[%s3 + $0x6e0] sm:$0xf]
  %v3335 = vld [vmem:[%s3 + $0x6e4] sm:$0xf]
  %v3336 = vld [vmem:[%s3 + $0x6e8] sm:$0xf]
  %v3337 = vld [vmem:[%s3 + $0x6ec] sm:$0xf]
  %v3338 = vld [vmem:[%s3 + $0x6f0] sm:$0xf]
  %v3339 = vld [vmem:[%s3 + $0x6f4] sm:$0xf]
  %v3340 = vld [vmem:[%s3 + $0x6f8] sm:$0xf]
  %v3341 = vld [vmem:[%s3 + $0x6fc] sm:$0xf]
  %v3342 = vld [vmem:[%s3 + $0x700] sm:$0xf]
  %v3343 = vld [vmem:[%s3 + $0x704] sm:$0xf]
  %v3344 = vld [vmem:[%s3 + $0x708] sm:$0xf]
  %v3345 = vld [vmem:[%s3 + $0x70c] sm:$0xf]
  %v3346 = vld [vmem:[%s3 + $0x710] sm:$0xf]
  %v3347 = vld [vmem:[%s3 + $0x714] sm:$0xf]
  %v3348 = vld [vmem:[%s3 + $0x718] sm:$0xf]
  %v3349 = vld [vmem:[%s3 + $0x71c] sm:$0xf]
  %v3350 = vld [vmem:[%s3 + $0x720] sm:$0xf]
  %v3351 = vld [vmem:[%s3 + $0x724] sm:$0xf]
  %v3352 = vld [vmem:[%s3 + $0x728] sm:$0xf]
  %v3353 = vld [vmem:[%s3 + $0x72c] sm:$0xf]
  %v3354 = vld [vmem:[%s3 + $0x730] sm:$0xf]
  %v3355 = vld [vmem:[%s3 + $0x734] sm:$0xf]
  %v3356 = vld [vmem:[%s3 + $0x738] sm:$0xf]
  %v3357 = vld [vmem:[%s3 + $0x73c] sm:$0xf]
  %v3358 = vld [vmem:[%s3 + $0x740] sm:$0xf]
  %v3359 = vld [vmem:[%s3 + $0x744] sm:$0xf]
  %v3360 = vld [vmem:[%s3 + $0x748] sm:$0xf]
  %v3361 = vld [vmem:[%s3 + $0x74c] sm:$0xf]
  %v3362 = vld [vmem:[%s3 + $0x750] sm:$0xf]
  %v3363 = vld [vmem:[%s3 + $0x754] sm:$0xf]
  %v3364 = vld [vmem:[%s3 + $0x758] sm:$0xf]
  %v3365 = vld [vmem:[%s3 + $0x75c] sm:$0xf]
  %v3366 = vld [vmem:[%s3 + $0x760] sm:$0xf]
  %v3367 = vld [vmem:[%s3 + $0x764] sm:$0xf]
  %v3368 = vld [vmem:[%s3 + $0x768] sm:$0xf]
  %v3369 = vld [vmem:[%s3 + $0x76c] sm:$0xf]
  %v3370 = vld [vmem:[%s3 + $0x770] sm:$0xf]
  %v3371 = vld [vmem:[%s3 + $0x774] sm:$0xf]
  %v3372 = vld [vmem:[%s3 + $0x778] sm:$0xf]
  %v3373 = vld [vmem:[%s3 + $0x77c] sm:$0xf]
  %v3374 = vld [vmem:[%s3 + $0x780] sm:$0xf]
  %v3375 = vld [vmem:[%s3 + $0x784] sm:$0xf]
  %v3376 = vld [vmem:[%s3 + $0x788] sm:$0xf]
  %v3377 = vld [vmem:[%s3 + $0x78c] sm:$0xf]
  %v3378 = vld [vmem:[%s3 + $0x790] sm:$0xf]
  %v3379 = vld [vmem:[%s3 + $0x794] sm:$0xf]
  %v3380 = vld [vmem:[%s3 + $0x798] sm:$0xf]
  %v3381 = vld [vmem:[%s3 + $0x79c] sm:$0xf]
  %v3382 = vld [vmem:[%s3 + $0x7a0] sm:$0xf]
  %v3383 = vld [vmem:[%s3 + $0x7a4] sm:$0xf]
  %v3384 = vld [vmem:[%s3 + $0x7a8] sm:$0xf]
  %v3385 = vld [vmem:[%s3 + $0x7ac] sm:$0xf]
  %v3386 = vld [vmem:[%s3 + $0x7b0] sm:$0xf]
  %v3387 = vld [vmem:[%s3 + $0x7b4] sm:$0xf]
  %v3388 = vld [vmem:[%s3 + $0x7b8] sm:$0xf]
  %v3389 = vld [vmem:[%s3 + $0x7bc] sm:$0xf]
  %v3390 = vld [vmem:[%s3 + $0x7c0] sm:$0xf]
  %v3391 = vld [vmem:[%s3 + $0x7c4] sm:$0xf]
  %v3392 = vld [vmem:[%s3 + $0x7c8] sm:$0xf]
  %v3393 = vld [vmem:[%s3 + $0x7cc] sm:$0xf]
  %v3394 = vld [vmem:[%s3 + $0x7d0] sm:$0xf]
  %v3395 = vld [vmem:[%s3 + $0x7d4] sm:$0xf]
  %v3396 = vld [vmem:[%s3 + $0x7d8] sm:$0xf]
  %v3397 = vld [vmem:[%s3 + $0x7dc] sm:$0xf]
  %v3398 = vld [vmem:[%s3 + $0x7e0] sm:$0xf]
  %v3399 = vld [vmem:[%s3 + $0x7e4] sm:$0xf]
  %v3400 = vld [vmem:[%s3 + $0x7e8] sm:$0xf]
  %v3401 = vld [vmem:[%s3 + $0x7ec] sm:$0xf]
  %v3402 = vld [vmem:[%s3 + $0x7f0] sm:$0xf]
  %v3403 = vld [vmem:[%s3 + $0x7f4] sm:$0xf]
  %v3404 = vld [vmem:[%s3 + $0x7f8] sm:$0xf]
  %v3405 = vld [vmem:[%s3 + $0x7fc] sm:$0xf]
  %v3406 = vld [vmem:[%s4] sm:$0x1]
  %v3408 = vlaneseq
  %v3409 = vshrl.u32 %v3408, 7
  %v3410 = vsub.s32 0, %v3409
  %v3411 = vrot.slane %v3406, %v3410
  %v3925 = vunpack.c.l.b16 %v2894
  %v3926 = vunpack.c.l.b16 %v2895
  %v3927 = vunpack.c.l.b16 %v2896
  %v3928 = vunpack.c.l.b16 %v2897
  %v3929 = vunpack.c.l.b16 %v2898
  %v3930 = vunpack.c.l.b16 %v2899
  %v3931 = vunpack.c.l.b16 %v2900
  %v3932 = vunpack.c.l.b16 %v2901
  %v3933 = vunpack.c.l.b16 %v2902
  %v3934 = vunpack.c.l.b16 %v2903
  %v3935 = vunpack.c.l.b16 %v2904
  %v3936 = vunpack.c.l.b16 %v2905
  %v3937 = vunpack.c.l.b16 %v2906
  %v3938 = vunpack.c.l.b16 %v2907
  %v3939 = vunpack.c.l.b16 %v2908
  %v3940 = vunpack.c.l.b16 %v2909
  %v3941 = vunpack.c.l.b16 %v2910
  %v3942 = vunpack.c.l.b16 %v2911
  %v3943 = vunpack.c.l.b16 %v2912
  %v3944 = vunpack.c.l.b16 %v2913
  %v3945 = vunpack.c.l.b16 %v2914
  %v3946 = vunpack.c.l.b16 %v2915
  %v3947 = vunpack.c.l.b16 %v2916
  %v3948 = vunpack.c.l.b16 %v2917
  %v3949 = vunpack.c.l.b16 %v2918
  %v3950 = vunpack.c.l.b16 %v2919
  %v3951 = vunpack.c.l.b16 %v2920
  %v3952 = vunpack.c.l.b16 %v2921
  %v3953 = vunpack.c.l.b16 %v2922
  %v3954 = vunpack.c.l.b16 %v2923
  %v3955 = vunpack.c.l.b16 %v2924
  %v3956 = vunpack.c.l.b16 %v2925
  %v3957 = vunpack.c.l.b16 %v2926
  %v3958 = vunpack.c.l.b16 %v2927
  %v3959 = vunpack.c.l.b16 %v2928
  %v3960 = vunpack.c.l.b16 %v2929
  %v3961 = vunpack.c.l.b16 %v2930
  %v3962 = vunpack.c.l.b16 %v2931
  %v3963 = vunpack.c.l.b16 %v2932
  %v3964 = vunpack.c.l.b16 %v2933
  %v3965 = vunpack.c.l.b16 %v2934
  %v3966 = vunpack.c.l.b16 %v2935
  %v3967 = vunpack.c.l.b16 %v2936
  %v3968 = vunpack.c.l.b16 %v2937
  %v3969 = vunpack.c.l.b16 %v2938
  %v3970 = vunpack.c.l.b16 %v2939
  %v3971 = vunpack.c.l.b16 %v2940
  %v3972 = vunpack.c.l.b16 %v2941
  %v3973 = vunpack.c.l.b16 %v2942
  %v3974 = vunpack.c.l.b16 %v2943
  %v3975 = vunpack.c.l.b16 %v2944
  %v3976 = vunpack.c.l.b16 %v2945
  %v3977 = vunpack.c.l.b16 %v2946
  %v3978 = vunpack.c.l.b16 %v2947
  %v3979 = vunpack.c.l.b16 %v2948
  %v3980 = vunpack.c.l.b16 %v2949
  %v3981 = vunpack.c.l.b16 %v2950
  %v3982 = vunpack.c.l.b16 %v2951
  %v3983 = vunpack.c.l.b16 %v2952
  %v3984 = vunpack.c.l.b16 %v2953
  %v3985 = vunpack.c.l.b16 %v2954
  %v3986 = vunpack.c.l.b16 %v2955
  %v3987 = vunpack.c.l.b16 %v2956
  %v3988 = vunpack.c.l.b16 %v2957
  %v3989 = vunpack.c.l.b16 %v2958
  %v3990 = vunpack.c.l.b16 %v2959
  %v3991 = vunpack.c.l.b16 %v2960
  %v3992 = vunpack.c.l.b16 %v2961
  %v3993 = vunpack.c.l.b16 %v2962
  %v3994 = vunpack.c.l.b16 %v2963
  %v3995 = vunpack.c.l.b16 %v2964
  %v3996 = vunpack.c.l.b16 %v2965
  %v3997 = vunpack.c.l.b16 %v2966
  %v3998 = vunpack.c.l.b16 %v2967
  %v3999 = vunpack.c.l.b16 %v2968
  %v4000 = vunpack.c.l.b16 %v2969
  %v4001 = vunpack.c.l.b16 %v2970
  %v4002 = vunpack.c.l.b16 %v2971
  %v4003 = vunpack.c.l.b16 %v2972
  %v4004 = vunpack.c.l.b16 %v2973
  %v4005 = vunpack.c.l.b16 %v2974
  %v4006 = vunpack.c.l.b16 %v2975
  %v4007 = vunpack.c.l.b16 %v2976
  %v4008 = vunpack.c.l.b16 %v2977
  %v4009 = vunpack.c.l.b16 %v2978
  %v4010 = vunpack.c.l.b16 %v2979
  %v4011 = vunpack.c.l.b16 %v2980
  %v4012 = vunpack.c.l.b16 %v2981
  %v4013 = vunpack.c.l.b16 %v2982
  %v4014 = vunpack.c.l.b16 %v2983
  %v4015 = vunpack.c.l.b16 %v2984
  %v4016 = vunpack.c.l.b16 %v2985
  %v4017 = vunpack.c.l.b16 %v2986
  %v4018 = vunpack.c.l.b16 %v2987
  %v4019 = vunpack.c.l.b16 %v2988
  %v4020 = vunpack.c.l.b16 %v2989
  %v4021 = vunpack.c.l.b16 %v2990
  %v4022 = vunpack.c.l.b16 %v2991
  %v4023 = vunpack.c.l.b16 %v2992
  %v4024 = vunpack.c.l.b16 %v2993
  %v4025 = vunpack.c.l.b16 %v2994
  %v4026 = vunpack.c.l.b16 %v2995
  %v4027 = vunpack.c.l.b16 %v2996
  %v4028 = vunpack.c.l.b16 %v2997
  %v4029 = vunpack.c.l.b16 %v2998
  %v4030 = vunpack.c.l.b16 %v2999
  %v4031 = vunpack.c.l.b16 %v3000
  %v4032 = vunpack.c.l.b16 %v3001
  %v4033 = vunpack.c.l.b16 %v3002
  %v4034 = vunpack.c.l.b16 %v3003
  %v4035 = vunpack.c.l.b16 %v3004
  %v4036 = vunpack.c.l.b16 %v3005
  %v4037 = vunpack.c.l.b16 %v3006
  %v4038 = vunpack.c.l.b16 %v3007
  %v4039 = vunpack.c.l.b16 %v3008
  %v4040 = vunpack.c.l.b16 %v3009
  %v4041 = vunpack.c.l.b16 %v3010
  %v4042 = vunpack.c.l.b16 %v3011
  %v4043 = vunpack.c.l.b16 %v3012
  %v4044 = vunpack.c.l.b16 %v3013
  %v4045 = vunpack.c.l.b16 %v3014
  %v4046 = vunpack.c.l.b16 %v3015
  %v4047 = vunpack.c.l.b16 %v3016
  %v4048 = vunpack.c.l.b16 %v3017
  %v4049 = vunpack.c.l.b16 %v3018
  %v4050 = vunpack.c.l.b16 %v3019
  %v4051 = vunpack.c.l.b16 %v3020
  %v4052 = vunpack.c.l.b16 %v3021
  %v4053 = vunpack.c.l.b16 %v3022
  %v4054 = vunpack.c.l.b16 %v3023
  %v4055 = vunpack.c.l.b16 %v3024
  %v4056 = vunpack.c.l.b16 %v3025
  %v4057 = vunpack.c.l.b16 %v3026
  %v4058 = vunpack.c.l.b16 %v3027
  %v4059 = vunpack.c.l.b16 %v3028
  %v4060 = vunpack.c.l.b16 %v3029
  %v4061 = vunpack.c.l.b16 %v3030
  %v4062 = vunpack.c.l.b16 %v3031
  %v4063 = vunpack.c.l.b16 %v3032
  %v4064 = vunpack.c.l.b16 %v3033
  %v4065 = vunpack.c.l.b16 %v3034
  %v4066 = vunpack.c.l.b16 %v3035
  %v4067 = vunpack.c.l.b16 %v3036
  %v4068 = vunpack.c.l.b16 %v3037
  %v4069 = vunpack.c.l.b16 %v3038
  %v4070 = vunpack.c.l.b16 %v3039
  %v4071 = vunpack.c.l.b16 %v3040
  %v4072 = vunpack.c.l.b16 %v3041
  %v4073 = vunpack.c.l.b16 %v3042
  %v4074 = vunpack.c.l.b16 %v3043
  %v4075 = vunpack.c.l.b16 %v3044
  %v4076 = vunpack.c.l.b16 %v3045
  %v4077 = vunpack.c.l.b16 %v3046
  %v4078 = vunpack.c.l.b16 %v3047
  %v4079 = vunpack.c.l.b16 %v3048
  %v4080 = vunpack.c.l.b16 %v3049
  %v4081 = vunpack.c.l.b16 %v3050
  %v4082 = vunpack.c.l.b16 %v3051
  %v4083 = vunpack.c.l.b16 %v3052
  %v4084 = vunpack.c.l.b16 %v3053
  %v4085 = vunpack.c.l.b16 %v3054
  %v4086 = vunpack.c.l.b16 %v3055
  %v4087 = vunpack.c.l.b16 %v3056
  %v4088 = vunpack.c.l.b16 %v3057
  %v4089 = vunpack.c.l.b16 %v3058
  %v4090 = vunpack.c.l.b16 %v3059
  %v4091 = vunpack.c.l.b16 %v3060
  %v4092 = vunpack.c.l.b16 %v3061
  %v4093 = vunpack.c.l.b16 %v3062
  %v4094 = vunpack.c.l.b16 %v3063
  %v4095 = vunpack.c.l.b16 %v3064
  %v4096 = vunpack.c.l.b16 %v3065
  %v4097 = vunpack.c.l.b16 %v3066
  %v4098 = vunpack.c.l.b16 %v3067
  %v4099 = vunpack.c.l.b16 %v3068
  %v4100 = vunpack.c.l.b16 %v3069
  %v4101 = vunpack.c.l.b16 %v3070
  %v4102 = vunpack.c.l.b16 %v3071
  %v4103 = vunpack.c.l.b16 %v3072
  %v4104 = vunpack.c.l.b16 %v3073
  %v4105 = vunpack.c.l.b16 %v3074
  %v4106 = vunpack.c.l.b16 %v3075
  %v4107 = vunpack.c.l.b16 %v3076
  %v4108 = vunpack.c.l.b16 %v3077
  %v4109 = vunpack.c.l.b16 %v3078
  %v4110 = vunpack.c.l.b16 %v3079
  %v4111 = vunpack.c.l.b16 %v3080
  %v4112 = vunpack.c.l.b16 %v3081
  %v4113 = vunpack.c.l.b16 %v3082
  %v4114 = vunpack.c.l.b16 %v3083
  %v4115 = vunpack.c.l.b16 %v3084
  %v4116 = vunpack.c.l.b16 %v3085
  %v4117 = vunpack.c.l.b16 %v3086
  %v4118 = vunpack.c.l.b16 %v3087
  %v4119 = vunpack.c.l.b16 %v3088
  %v4120 = vunpack.c.l.b16 %v3089
  %v4121 = vunpack.c.l.b16 %v3090
  %v4122 = vunpack.c.l.b16 %v3091
  %v4123 = vunpack.c.l.b16 %v3092
  %v4124 = vunpack.c.l.b16 %v3093
  %v4125 = vunpack.c.l.b16 %v3094
  %v4126 = vunpack.c.l.b16 %v3095
  %v4127 = vunpack.c.l.b16 %v3096
  %v4128 = vunpack.c.l.b16 %v3097
  %v4129 = vunpack.c.l.b16 %v3098
  %v4130 = vunpack.c.l.b16 %v3099
  %v4131 = vunpack.c.l.b16 %v3100
  %v4132 = vunpack.c.l.b16 %v3101
  %v4133 = vunpack.c.l.b16 %v3102
  %v4134 = vunpack.c.l.b16 %v3103
  %v4135 = vunpack.c.l.b16 %v3104
  %v4136 = vunpack.c.l.b16 %v3105
  %v4137 = vunpack.c.l.b16 %v3106
  %v4138 = vunpack.c.l.b16 %v3107
  %v4139 = vunpack.c.l.b16 %v3108
  %v4140 = vunpack.c.l.b16 %v3109
  %v4141 = vunpack.c.l.b16 %v3110
  %v4142 = vunpack.c.l.b16 %v3111
  %v4143 = vunpack.c.l.b16 %v3112
  %v4144 = vunpack.c.l.b16 %v3113
  %v4145 = vunpack.c.l.b16 %v3114
  %v4146 = vunpack.c.l.b16 %v3115
  %v4147 = vunpack.c.l.b16 %v3116
  %v4148 = vunpack.c.l.b16 %v3117
  %v4149 = vunpack.c.l.b16 %v3118
  %v4150 = vunpack.c.l.b16 %v3119
  %v4151 = vunpack.c.l.b16 %v3120
  %v4152 = vunpack.c.l.b16 %v3121
  %v4153 = vunpack.c.l.b16 %v3122
  %v4154 = vunpack.c.l.b16 %v3123
  %v4155 = vunpack.c.l.b16 %v3124
  %v4156 = vunpack.c.l.b16 %v3125
  %v4157 = vunpack.c.l.b16 %v3126
  %v4158 = vunpack.c.l.b16 %v3127
  %v4159 = vunpack.c.l.b16 %v3128
  %v4160 = vunpack.c.l.b16 %v3129
  %v4161 = vunpack.c.l.b16 %v3130
  %v4162 = vunpack.c.l.b16 %v3131
  %v4163 = vunpack.c.l.b16 %v3132
  %v4164 = vunpack.c.l.b16 %v3133
  %v4165 = vunpack.c.l.b16 %v3134
  %v4166 = vunpack.c.l.b16 %v3135
  %v4167 = vunpack.c.l.b16 %v3136
  %v4168 = vunpack.c.l.b16 %v3137
  %v4169 = vunpack.c.l.b16 %v3138
  %v4170 = vunpack.c.l.b16 %v3139
  %v4171 = vunpack.c.l.b16 %v3140
  %v4172 = vunpack.c.l.b16 %v3141
  %v4173 = vunpack.c.l.b16 %v3142
  %v4174 = vunpack.c.l.b16 %v3143
  %v4175 = vunpack.c.l.b16 %v3144
  %v4176 = vunpack.c.l.b16 %v3145
  %v4177 = vunpack.c.l.b16 %v3146
  %v4178 = vunpack.c.l.b16 %v3147
  %v4179 = vunpack.c.l.b16 %v3148
  %v4180 = vunpack.c.l.b16 %v3149
  %v4181 = vunpack.c.l.b16 %v3150
  %v4182 = vunpack.c.l.b16 %v3151
  %v4183 = vunpack.c.l.b16 %v3152
  %v4184 = vunpack.c.l.b16 %v3153
  %v4185 = vunpack.c.l.b16 %v3154
  %v4186 = vunpack.c.l.b16 %v3155
  %v4187 = vunpack.c.l.b16 %v3156
  %v4188 = vunpack.c.l.b16 %v3157
  %v4189 = vunpack.c.l.b16 %v3158
  %v4190 = vunpack.c.l.b16 %v3159
  %v4191 = vunpack.c.l.b16 %v3160
  %v4192 = vunpack.c.l.b16 %v3161
  %v4193 = vunpack.c.l.b16 %v3162
  %v4194 = vunpack.c.l.b16 %v3163
  %v4195 = vunpack.c.l.b16 %v3164
  %v4196 = vunpack.c.l.b16 %v3165
  %v4197 = vunpack.c.l.b16 %v3166
  %v4198 = vunpack.c.l.b16 %v3167
  %v4199 = vunpack.c.l.b16 %v3168
  %v4200 = vunpack.c.l.b16 %v3169
  %v4201 = vunpack.c.l.b16 %v3170
  %v4202 = vunpack.c.l.b16 %v3171
  %v4203 = vunpack.c.l.b16 %v3172
  %v4204 = vunpack.c.l.b16 %v3173
  %v4205 = vunpack.c.l.b16 %v3174
  %v4206 = vunpack.c.l.b16 %v3175
  %v4207 = vunpack.c.l.b16 %v3176
  %v4208 = vunpack.c.l.b16 %v3177
  %v4209 = vunpack.c.l.b16 %v3178
  %v4210 = vunpack.c.l.b16 %v3179
  %v4211 = vunpack.c.l.b16 %v3180
  %v4212 = vunpack.c.l.b16 %v3181
  %v4213 = vunpack.c.l.b16 %v3182
  %v4214 = vunpack.c.l.b16 %v3183
  %v4215 = vunpack.c.l.b16 %v3184
  %v4216 = vunpack.c.l.b16 %v3185
  %v4217 = vunpack.c.l.b16 %v3186
  %v4218 = vunpack.c.l.b16 %v3187
  %v4219 = vunpack.c.l.b16 %v3188
  %v4220 = vunpack.c.l.b16 %v3189
  %v4221 = vunpack.c.l.b16 %v3190
  %v4222 = vunpack.c.l.b16 %v3191
  %v4223 = vunpack.c.l.b16 %v3192
  %v4224 = vunpack.c.l.b16 %v3193
  %v4225 = vunpack.c.l.b16 %v3194
  %v4226 = vunpack.c.l.b16 %v3195
  %v4227 = vunpack.c.l.b16 %v3196
  %v4228 = vunpack.c.l.b16 %v3197
  %v4229 = vunpack.c.l.b16 %v3198
  %v4230 = vunpack.c.l.b16 %v3199
  %v4231 = vunpack.c.l.b16 %v3200
  %v4232 = vunpack.c.l.b16 %v3201
  %v4233 = vunpack.c.l.b16 %v3202
  %v4234 = vunpack.c.l.b16 %v3203
  %v4235 = vunpack.c.l.b16 %v3204
  %v4236 = vunpack.c.l.b16 %v3205
  %v4237 = vunpack.c.l.b16 %v3206
  %v4238 = vunpack.c.l.b16 %v3207
  %v4239 = vunpack.c.l.b16 %v3208
  %v4240 = vunpack.c.l.b16 %v3209
  %v4241 = vunpack.c.l.b16 %v3210
  %v4242 = vunpack.c.l.b16 %v3211
  %v4243 = vunpack.c.l.b16 %v3212
  %v4244 = vunpack.c.l.b16 %v3213
  %v4245 = vunpack.c.l.b16 %v3214
  %v4246 = vunpack.c.l.b16 %v3215
  %v4247 = vunpack.c.l.b16 %v3216
  %v4248 = vunpack.c.l.b16 %v3217
  %v4249 = vunpack.c.l.b16 %v3218
  %v4250 = vunpack.c.l.b16 %v3219
  %v4251 = vunpack.c.l.b16 %v3220
  %v4252 = vunpack.c.l.b16 %v3221
  %v4253 = vunpack.c.l.b16 %v3222
  %v4254 = vunpack.c.l.b16 %v3223
  %v4255 = vunpack.c.l.b16 %v3224
  %v4256 = vunpack.c.l.b16 %v3225
  %v4257 = vunpack.c.l.b16 %v3226
  %v4258 = vunpack.c.l.b16 %v3227
  %v4259 = vunpack.c.l.b16 %v3228
  %v4260 = vunpack.c.l.b16 %v3229
  %v4261 = vunpack.c.l.b16 %v3230
  %v4262 = vunpack.c.l.b16 %v3231
  %v4263 = vunpack.c.l.b16 %v3232
  %v4264 = vunpack.c.l.b16 %v3233
  %v4265 = vunpack.c.l.b16 %v3234
  %v4266 = vunpack.c.l.b16 %v3235
  %v4267 = vunpack.c.l.b16 %v3236
  %v4268 = vunpack.c.l.b16 %v3237
  %v4269 = vunpack.c.l.b16 %v3238
  %v4270 = vunpack.c.l.b16 %v3239
  %v4271 = vunpack.c.l.b16 %v3240
  %v4272 = vunpack.c.l.b16 %v3241
  %v4273 = vunpack.c.l.b16 %v3242
  %v4274 = vunpack.c.l.b16 %v3243
  %v4275 = vunpack.c.l.b16 %v3244
  %v4276 = vunpack.c.l.b16 %v3245
  %v4277 = vunpack.c.l.b16 %v3246
  %v4278 = vunpack.c.l.b16 %v3247
  %v4279 = vunpack.c.l.b16 %v3248
  %v4280 = vunpack.c.l.b16 %v3249
  %v4281 = vunpack.c.l.b16 %v3250
  %v4282 = vunpack.c.l.b16 %v3251
  %v4283 = vunpack.c.l.b16 %v3252
  %v4284 = vunpack.c.l.b16 %v3253
  %v4285 = vunpack.c.l.b16 %v3254
  %v4286 = vunpack.c.l.b16 %v3255
  %v4287 = vunpack.c.l.b16 %v3256
  %v4288 = vunpack.c.l.b16 %v3257
  %v4289 = vunpack.c.l.b16 %v3258
  %v4290 = vunpack.c.l.b16 %v3259
  %v4291 = vunpack.c.l.b16 %v3260
  %v4292 = vunpack.c.l.b16 %v3261
  %v4293 = vunpack.c.l.b16 %v3262
  %v4294 = vunpack.c.l.b16 %v3263
  %v4295 = vunpack.c.l.b16 %v3264
  %v4296 = vunpack.c.l.b16 %v3265
  %v4297 = vunpack.c.l.b16 %v3266
  %v4298 = vunpack.c.l.b16 %v3267
  %v4299 = vunpack.c.l.b16 %v3268
  %v4300 = vunpack.c.l.b16 %v3269
  %v4301 = vunpack.c.l.b16 %v3270
  %v4302 = vunpack.c.l.b16 %v3271
  %v4303 = vunpack.c.l.b16 %v3272
  %v4304 = vunpack.c.l.b16 %v3273
  %v4305 = vunpack.c.l.b16 %v3274
  %v4306 = vunpack.c.l.b16 %v3275
  %v4307 = vunpack.c.l.b16 %v3276
  %v4308 = vunpack.c.l.b16 %v3277
  %v4309 = vunpack.c.l.b16 %v3278
  %v4310 = vunpack.c.l.b16 %v3279
  %v4311 = vunpack.c.l.b16 %v3280
  %v4312 = vunpack.c.l.b16 %v3281
  %v4313 = vunpack.c.l.b16 %v3282
  %v4314 = vunpack.c.l.b16 %v3283
  %v4315 = vunpack.c.l.b16 %v3284
  %v4316 = vunpack.c.l.b16 %v3285
  %v4317 = vunpack.c.l.b16 %v3286
  %v4318 = vunpack.c.l.b16 %v3287
  %v4319 = vunpack.c.l.b16 %v3288
  %v4320 = vunpack.c.l.b16 %v3289
  %v4321 = vunpack.c.l.b16 %v3290
  %v4322 = vunpack.c.l.b16 %v3291
  %v4323 = vunpack.c.l.b16 %v3292
  %v4324 = vunpack.c.l.b16 %v3293
  %v4325 = vunpack.c.l.b16 %v3294
  %v4326 = vunpack.c.l.b16 %v3295
  %v4327 = vunpack.c.l.b16 %v3296
  %v4328 = vunpack.c.l.b16 %v3297
  %v4329 = vunpack.c.l.b16 %v3298
  %v4330 = vunpack.c.l.b16 %v3299
  %v4331 = vunpack.c.l.b16 %v3300
  %v4332 = vunpack.c.l.b16 %v3301
  %v4333 = vunpack.c.l.b16 %v3302
  %v4334 = vunpack.c.l.b16 %v3303
  %v4335 = vunpack.c.l.b16 %v3304
  %v4336 = vunpack.c.l.b16 %v3305
  %v4337 = vunpack.c.l.b16 %v3306
  %v4338 = vunpack.c.l.b16 %v3307
  %v4339 = vunpack.c.l.b16 %v3308
  %v4340 = vunpack.c.l.b16 %v3309
  %v4341 = vunpack.c.l.b16 %v3310
  %v4342 = vunpack.c.l.b16 %v3311
  %v4343 = vunpack.c.l.b16 %v3312
  %v4344 = vunpack.c.l.b16 %v3313
  %v4345 = vunpack.c.l.b16 %v3314
  %v4346 = vunpack.c.l.b16 %v3315
  %v4347 = vunpack.c.l.b16 %v3316
  %v4348 = vunpack.c.l.b16 %v3317
  %v4349 = vunpack.c.l.b16 %v3318
  %v4350 = vunpack.c.l.b16 %v3319
  %v4351 = vunpack.c.l.b16 %v3320
  %v4352 = vunpack.c.l.b16 %v3321
  %v4353 = vunpack.c.l.b16 %v3322
  %v4354 = vunpack.c.l.b16 %v3323
  %v4355 = vunpack.c.l.b16 %v3324
  %v4356 = vunpack.c.l.b16 %v3325
  %v4357 = vunpack.c.l.b16 %v3326
  %v4358 = vunpack.c.l.b16 %v3327
  %v4359 = vunpack.c.l.b16 %v3328
  %v4360 = vunpack.c.l.b16 %v3329
  %v4361 = vunpack.c.l.b16 %v3330
  %v4362 = vunpack.c.l.b16 %v3331
  %v4363 = vunpack.c.l.b16 %v3332
  %v4364 = vunpack.c.l.b16 %v3333
  %v4365 = vunpack.c.l.b16 %v3334
  %v4366 = vunpack.c.l.b16 %v3335
  %v4367 = vunpack.c.l.b16 %v3336
  %v4368 = vunpack.c.l.b16 %v3337
  %v4369 = vunpack.c.l.b16 %v3338
  %v4370 = vunpack.c.l.b16 %v3339
  %v4371 = vunpack.c.l.b16 %v3340
  %v4372 = vunpack.c.l.b16 %v3341
  %v4373 = vunpack.c.l.b16 %v3342
  %v4374 = vunpack.c.l.b16 %v3343
  %v4375 = vunpack.c.l.b16 %v3344
  %v4376 = vunpack.c.l.b16 %v3345
  %v4377 = vunpack.c.l.b16 %v3346
  %v4378 = vunpack.c.l.b16 %v3347
  %v4379 = vunpack.c.l.b16 %v3348
  %v4380 = vunpack.c.l.b16 %v3349
  %v4381 = vunpack.c.l.b16 %v3350
  %v4382 = vunpack.c.l.b16 %v3351
  %v4383 = vunpack.c.l.b16 %v3352
  %v4384 = vunpack.c.l.b16 %v3353
  %v4385 = vunpack.c.l.b16 %v3354
  %v4386 = vunpack.c.l.b16 %v3355
  %v4387 = vunpack.c.l.b16 %v3356
  %v4388 = vunpack.c.l.b16 %v3357
  %v4389 = vunpack.c.l.b16 %v3358
  %v4390 = vunpack.c.l.b16 %v3359
  %v4391 = vunpack.c.l.b16 %v3360
  %v4392 = vunpack.c.l.b16 %v3361
  %v4393 = vunpack.c.l.b16 %v3362
  %v4394 = vunpack.c.l.b16 %v3363
  %v4395 = vunpack.c.l.b16 %v3364
  %v4396 = vunpack.c.l.b16 %v3365
  %v4397 = vunpack.c.l.b16 %v3366
  %v4398 = vunpack.c.l.b16 %v3367
  %v4399 = vunpack.c.l.b16 %v3368
  %v4400 = vunpack.c.l.b16 %v3369
  %v4401 = vunpack.c.l.b16 %v3370
  %v4402 = vunpack.c.l.b16 %v3371
  %v4403 = vunpack.c.l.b16 %v3372
  %v4404 = vunpack.c.l.b16 %v3373
  %v4405 = vunpack.c.l.b16 %v3374
  %v4406 = vunpack.c.l.b16 %v3375
  %v4407 = vunpack.c.l.b16 %v3376
  %v4408 = vunpack.c.l.b16 %v3377
  %v4409 = vunpack.c.l.b16 %v3378
  %v4410 = vunpack.c.l.b16 %v3379
  %v4411 = vunpack.c.l.b16 %v3380
  %v4412 = vunpack.c.l.b16 %v3381
  %v4413 = vunpack.c.l.b16 %v3382
  %v4414 = vunpack.c.l.b16 %v3383
  %v4415 = vunpack.c.l.b16 %v3384
  %v4416 = vunpack.c.l.b16 %v3385
  %v4417 = vunpack.c.l.b16 %v3386
  %v4418 = vunpack.c.l.b16 %v3387
  %v4419 = vunpack.c.l.b16 %v3388
  %v4420 = vunpack.c.l.b16 %v3389
  %v4421 = vunpack.c.l.b16 %v3390
  %v4422 = vunpack.c.l.b16 %v3391
  %v4423 = vunpack.c.l.b16 %v3392
  %v4424 = vunpack.c.l.b16 %v3393
  %v4425 = vunpack.c.l.b16 %v3394
  %v4426 = vunpack.c.l.b16 %v3395
  %v4427 = vunpack.c.l.b16 %v3396
  %v4428 = vunpack.c.l.b16 %v3397
  %v4429 = vunpack.c.l.b16 %v3398
  %v4430 = vunpack.c.l.b16 %v3399
  %v4431 = vunpack.c.l.b16 %v3400
  %v4432 = vunpack.c.l.b16 %v3401
  %v4433 = vunpack.c.l.b16 %v3402
  %v4434 = vunpack.c.l.b16 %v3403
  %v4435 = vunpack.c.l.b16 %v3404
  %v4436 = vunpack.c.l.b16 %v3405
  %v4437 = vpack.c.b16 %v3926, %v3925
  %v4438 = vpack.c.b16 %v3928, %v3927
  %v4439 = vpack.c.b16 %v3930, %v3929
  %v4440 = vpack.c.b16 %v3932, %v3931
  %v4441 = vpack.c.b16 %v3934, %v3933
  %v4442 = vpack.c.b16 %v3936, %v3935
  %v4443 = vpack.c.b16 %v3938, %v3937
  %v4444 = vpack.c.b16 %v3940, %v3939
  %v4445 = vpack.c.b16 %v3942, %v3941
  %v4446 = vpack.c.b16 %v3944, %v3943
  %v4447 = vpack.c.b16 %v3946, %v3945
  %v4448 = vpack.c.b16 %v3948, %v3947
  %v4449 = vpack.c.b16 %v3950, %v3949
  %v4450 = vpack.c.b16 %v3952, %v3951
  %v4451 = vpack.c.b16 %v3954, %v3953
  %v4452 = vpack.c.b16 %v3956, %v3955
  %v4453 = vpack.c.b16 %v3958, %v3957
  %v4454 = vpack.c.b16 %v3960, %v3959
  %v4455 = vpack.c.b16 %v3962, %v3961
  %v4456 = vpack.c.b16 %v3964, %v3963
  %v4457 = vpack.c.b16 %v3966, %v3965
  %v4458 = vpack.c.b16 %v3968, %v3967
  %v4459 = vpack.c.b16 %v3970, %v3969
  %v4460 = vpack.c.b16 %v3972, %v3971
  %v4461 = vpack.c.b16 %v3974, %v3973
  %v4462 = vpack.c.b16 %v3976, %v3975
  %v4463 = vpack.c.b16 %v3978, %v3977
  %v4464 = vpack.c.b16 %v3980, %v3979
  %v4465 = vpack.c.b16 %v3982, %v3981
  %v4466 = vpack.c.b16 %v3984, %v3983
  %v4467 = vpack.c.b16 %v3986, %v3985
  %v4468 = vpack.c.b16 %v3988, %v3987
  %v4469 = vpack.c.b16 %v3990, %v3989
  %v4470 = vpack.c.b16 %v3992, %v3991
  %v4471 = vpack.c.b16 %v3994, %v3993
  %v4472 = vpack.c.b16 %v3996, %v3995
  %v4473 = vpack.c.b16 %v3998, %v3997
  %v4474 = vpack.c.b16 %v4000, %v3999
  %v4475 = vpack.c.b16 %v4002, %v4001
  %v4476 = vpack.c.b16 %v4004, %v4003
  %v4477 = vpack.c.b16 %v4006, %v4005
  %v4478 = vpack.c.b16 %v4008, %v4007
  %v4479 = vpack.c.b16 %v4010, %v4009
  %v4480 = vpack.c.b16 %v4012, %v4011
  %v4481 = vpack.c.b16 %v4014, %v4013
  %v4482 = vpack.c.b16 %v4016, %v4015
  %v4483 = vpack.c.b16 %v4018, %v4017
  %v4484 = vpack.c.b16 %v4020, %v4019
  %v4485 = vpack.c.b16 %v4022, %v4021
  %v4486 = vpack.c.b16 %v4024, %v4023
  %v4487 = vpack.c.b16 %v4026, %v4025
  %v4488 = vpack.c.b16 %v4028, %v4027
  %v4489 = vpack.c.b16 %v4030, %v4029
  %v4490 = vpack.c.b16 %v4032, %v4031
  %v4491 = vpack.c.b16 %v4034, %v4033
  %v4492 = vpack.c.b16 %v4036, %v4035
  %v4493 = vpack.c.b16 %v4038, %v4037
  %v4494 = vpack.c.b16 %v4040, %v4039
  %v4495 = vpack.c.b16 %v4042, %v4041
  %v4496 = vpack.c.b16 %v4044, %v4043
  %v4497 = vpack.c.b16 %v4046, %v4045
  %v4498 = vpack.c.b16 %v4048, %v4047
  %v4499 = vpack.c.b16 %v4050, %v4049
  %v4500 = vpack.c.b16 %v4052, %v4051
  %v4501 = vpack.c.b16 %v4054, %v4053
  %v4502 = vpack.c.b16 %v4056, %v4055
  %v4503 = vpack.c.b16 %v4058, %v4057
  %v4504 = vpack.c.b16 %v4060, %v4059
  %v4505 = vpack.c.b16 %v4062, %v4061
  %v4506 = vpack.c.b16 %v4064, %v4063
  %v4507 = vpack.c.b16 %v4066, %v4065
  %v4508 = vpack.c.b16 %v4068, %v4067
  %v4509 = vpack.c.b16 %v4070, %v4069
  %v4510 = vpack.c.b16 %v4072, %v4071
  %v4511 = vpack.c.b16 %v4074, %v4073
  %v4512 = vpack.c.b16 %v4076, %v4075
  %v4513 = vpack.c.b16 %v4078, %v4077
  %v4514 = vpack.c.b16 %v4080, %v4079
  %v4515 = vpack.c.b16 %v4082, %v4081
  %v4516 = vpack.c.b16 %v4084, %v4083
  %v4517 = vpack.c.b16 %v4086, %v4085
  %v4518 = vpack.c.b16 %v4088, %v4087
  %v4519 = vpack.c.b16 %v4090, %v4089
  %v4520 = vpack.c.b16 %v4092, %v4091
  %v4521 = vpack.c.b16 %v4094, %v4093
  %v4522 = vpack.c.b16 %v4096, %v4095
  %v4523 = vpack.c.b16 %v4098, %v4097
  %v4524 = vpack.c.b16 %v4100, %v4099
  %v4525 = vpack.c.b16 %v4102, %v4101
  %v4526 = vpack.c.b16 %v4104, %v4103
  %v4527 = vpack.c.b16 %v4106, %v4105
  %v4528 = vpack.c.b16 %v4108, %v4107
  %v4529 = vpack.c.b16 %v4110, %v4109
  %v4530 = vpack.c.b16 %v4112, %v4111
  %v4531 = vpack.c.b16 %v4114, %v4113
  %v4532 = vpack.c.b16 %v4116, %v4115
  %v4533 = vpack.c.b16 %v4118, %v4117
  %v4534 = vpack.c.b16 %v4120, %v4119
  %v4535 = vpack.c.b16 %v4122, %v4121
  %v4536 = vpack.c.b16 %v4124, %v4123
  %v4537 = vpack.c.b16 %v4126, %v4125
  %v4538 = vpack.c.b16 %v4128, %v4127
  %v4539 = vpack.c.b16 %v4130, %v4129
  %v4540 = vpack.c.b16 %v4132, %v4131
  %v4541 = vpack.c.b16 %v4134, %v4133
  %v4542 = vpack.c.b16 %v4136, %v4135
  %v4543 = vpack.c.b16 %v4138, %v4137
  %v4544 = vpack.c.b16 %v4140, %v4139
  %v4545 = vpack.c.b16 %v4142, %v4141
  %v4546 = vpack.c.b16 %v4144, %v4143
  %v4547 = vpack.c.b16 %v4146, %v4145
  %v4548 = vpack.c.b16 %v4148, %v4147
  %v4549 = vpack.c.b16 %v4150, %v4149
  %v4550 = vpack.c.b16 %v4152, %v4151
  %v4551 = vpack.c.b16 %v4154, %v4153
  %v4552 = vpack.c.b16 %v4156, %v4155
  %v4553 = vpack.c.b16 %v4158, %v4157
  %v4554 = vpack.c.b16 %v4160, %v4159
  %v4555 = vpack.c.b16 %v4162, %v4161
  %v4556 = vpack.c.b16 %v4164, %v4163
  %v4557 = vpack.c.b16 %v4166, %v4165
  %v4558 = vpack.c.b16 %v4168, %v4167
  %v4559 = vpack.c.b16 %v4170, %v4169
  %v4560 = vpack.c.b16 %v4172, %v4171
  %v4561 = vpack.c.b16 %v4174, %v4173
  %v4562 = vpack.c.b16 %v4176, %v4175
  %v4563 = vpack.c.b16 %v4178, %v4177
  %v4564 = vpack.c.b16 %v4180, %v4179
  %v4565 = vpack.c.b16 %v4182, %v4181
  %v4566 = vpack.c.b16 %v4184, %v4183
  %v4567 = vpack.c.b16 %v4186, %v4185
  %v4568 = vpack.c.b16 %v4188, %v4187
  %v4569 = vpack.c.b16 %v4190, %v4189
  %v4570 = vpack.c.b16 %v4192, %v4191
  %v4571 = vpack.c.b16 %v4194, %v4193
  %v4572 = vpack.c.b16 %v4196, %v4195
  %v4573 = vpack.c.b16 %v4198, %v4197
  %v4574 = vpack.c.b16 %v4200, %v4199
  %v4575 = vpack.c.b16 %v4202, %v4201
  %v4576 = vpack.c.b16 %v4204, %v4203
  %v4577 = vpack.c.b16 %v4206, %v4205
  %v4578 = vpack.c.b16 %v4208, %v4207
  %v4579 = vpack.c.b16 %v4210, %v4209
  %v4580 = vpack.c.b16 %v4212, %v4211
  %v4581 = vpack.c.b16 %v4214, %v4213
  %v4582 = vpack.c.b16 %v4216, %v4215
  %v4583 = vpack.c.b16 %v4218, %v4217
  %v4584 = vpack.c.b16 %v4220, %v4219
  %v4585 = vpack.c.b16 %v4222, %v4221
  %v4586 = vpack.c.b16 %v4224, %v4223
  %v4587 = vpack.c.b16 %v4226, %v4225
  %v4588 = vpack.c.b16 %v4228, %v4227
  %v4589 = vpack.c.b16 %v4230, %v4229
  %v4590 = vpack.c.b16 %v4232, %v4231
  %v4591 = vpack.c.b16 %v4234, %v4233
  %v4592 = vpack.c.b16 %v4236, %v4235
  %v4593 = vpack.c.b16 %v4238, %v4237
  %v4594 = vpack.c.b16 %v4240, %v4239
  %v4595 = vpack.c.b16 %v4242, %v4241
  %v4596 = vpack.c.b16 %v4244, %v4243
  %v4597 = vpack.c.b16 %v4246, %v4245
  %v4598 = vpack.c.b16 %v4248, %v4247
  %v4599 = vpack.c.b16 %v4250, %v4249
  %v4600 = vpack.c.b16 %v4252, %v4251
  %v4601 = vpack.c.b16 %v4254, %v4253
  %v4602 = vpack.c.b16 %v4256, %v4255
  %v4603 = vpack.c.b16 %v4258, %v4257
  %v4604 = vpack.c.b16 %v4260, %v4259
  %v4605 = vpack.c.b16 %v4262, %v4261
  %v4606 = vpack.c.b16 %v4264, %v4263
  %v4607 = vpack.c.b16 %v4266, %v4265
  %v4608 = vpack.c.b16 %v4268, %v4267
  %v4609 = vpack.c.b16 %v4270, %v4269
  %v4610 = vpack.c.b16 %v4272, %v4271
  %v4611 = vpack.c.b16 %v4274, %v4273
  %v4612 = vpack.c.b16 %v4276, %v4275
  %v4613 = vpack.c.b16 %v4278, %v4277
  %v4614 = vpack.c.b16 %v4280, %v4279
  %v4615 = vpack.c.b16 %v4282, %v4281
  %v4616 = vpack.c.b16 %v4284, %v4283
  %v4617 = vpack.c.b16 %v4286, %v4285
  %v4618 = vpack.c.b16 %v4288, %v4287
  %v4619 = vpack.c.b16 %v4290, %v4289
  %v4620 = vpack.c.b16 %v4292, %v4291
  %v4621 = vpack.c.b16 %v4294, %v4293
  %v4622 = vpack.c.b16 %v4296, %v4295
  %v4623 = vpack.c.b16 %v4298, %v4297
  %v4624 = vpack.c.b16 %v4300, %v4299
  %v4625 = vpack.c.b16 %v4302, %v4301
  %v4626 = vpack.c.b16 %v4304, %v4303
  %v4627 = vpack.c.b16 %v4306, %v4305
  %v4628 = vpack.c.b16 %v4308, %v4307
  %v4629 = vpack.c.b16 %v4310, %v4309
  %v4630 = vpack.c.b16 %v4312, %v4311
  %v4631 = vpack.c.b16 %v4314, %v4313
  %v4632 = vpack.c.b16 %v4316, %v4315
  %v4633 = vpack.c.b16 %v4318, %v4317
  %v4634 = vpack.c.b16 %v4320, %v4319
  %v4635 = vpack.c.b16 %v4322, %v4321
  %v4636 = vpack.c.b16 %v4324, %v4323
  %v4637 = vpack.c.b16 %v4326, %v4325
  %v4638 = vpack.c.b16 %v4328, %v4327
  %v4639 = vpack.c.b16 %v4330, %v4329
  %v4640 = vpack.c.b16 %v4332, %v4331
  %v4641 = vpack.c.b16 %v4334, %v4333
  %v4642 = vpack.c.b16 %v4336, %v4335
  %v4643 = vpack.c.b16 %v4338, %v4337
  %v4644 = vpack.c.b16 %v4340, %v4339
  %v4645 = vpack.c.b16 %v4342, %v4341
  %v4646 = vpack.c.b16 %v4344, %v4343
  %v4647 = vpack.c.b16 %v4346, %v4345
  %v4648 = vpack.c.b16 %v4348, %v4347
  %v4649 = vpack.c.b16 %v4350, %v4349
  %v4650 = vpack.c.b16 %v4352, %v4351
  %v4651 = vpack.c.b16 %v4354, %v4353
  %v4652 = vpack.c.b16 %v4356, %v4355
  %v4653 = vpack.c.b16 %v4358, %v4357
  %v4654 = vpack.c.b16 %v4360, %v4359
  %v4655 = vpack.c.b16 %v4362, %v4361
  %v4656 = vpack.c.b16 %v4364, %v4363
  %v4657 = vpack.c.b16 %v4366, %v4365
  %v4658 = vpack.c.b16 %v4368, %v4367
  %v4659 = vpack.c.b16 %v4370, %v4369
  %v4660 = vpack.c.b16 %v4372, %v4371
  %v4661 = vpack.c.b16 %v4374, %v4373
  %v4662 = vpack.c.b16 %v4376, %v4375
  %v4663 = vpack.c.b16 %v4378, %v4377
  %v4664 = vpack.c.b16 %v4380, %v4379
  %v4665 = vpack.c.b16 %v4382, %v4381
  %v4666 = vpack.c.b16 %v4384, %v4383
  %v4667 = vpack.c.b16 %v4386, %v4385
  %v4668 = vpack.c.b16 %v4388, %v4387
  %v4669 = vpack.c.b16 %v4390, %v4389
  %v4670 = vpack.c.b16 %v4392, %v4391
  %v4671 = vpack.c.b16 %v4394, %v4393
  %v4672 = vpack.c.b16 %v4396, %v4395
  %v4673 = vpack.c.b16 %v4398, %v4397
  %v4674 = vpack.c.b16 %v4400, %v4399
  %v4675 = vpack.c.b16 %v4402, %v4401
  %v4676 = vpack.c.b16 %v4404, %v4403
  %v4677 = vpack.c.b16 %v4406, %v4405
  %v4678 = vpack.c.b16 %v4408, %v4407
  %v4679 = vpack.c.b16 %v4410, %v4409
  %v4680 = vpack.c.b16 %v4412, %v4411
  %v4681 = vpack.c.b16 %v4414, %v4413
  %v4682 = vpack.c.b16 %v4416, %v4415
  %v4683 = vpack.c.b16 %v4418, %v4417
  %v4684 = vpack.c.b16 %v4420, %v4419
  %v4685 = vpack.c.b16 %v4422, %v4421
  %v4686 = vpack.c.b16 %v4424, %v4423
  %v4687 = vpack.c.b16 %v4426, %v4425
  %v4688 = vpack.c.b16 %v4428, %v4427
  %v4689 = vpack.c.b16 %v4430, %v4429
  %v4690 = vpack.c.b16 %v4432, %v4431
  %v4691 = vpack.c.b16 %v4434, %v4433
  %v4692 = vpack.c.b16 %v4436, %v4435
  %4949 = vmatprep.subr.bf16.mxu0 0
  %4950 = vmatpush1.bf16.msra.mxu0 %v4437
  %4951 = vmatprep.subr.bf16.mxu0 0
  %4952 = vmatpush1.bf16.msra.mxu0 %v4438
  %4953 = vmatprep.subr.bf16.mxu0 0
  %4954 = vmatpush1.bf16.msra.mxu0 %v4439
  %4955 = vmatprep.subr.bf16.mxu0 0
  %4956 = vmatpush1.bf16.msra.mxu0 %v4440
  %4957 = vmatprep.subr.bf16.mxu0 0
  %4958 = vmatpush1.bf16.msra.mxu0 %v4441
  %4959 = vmatprep.subr.bf16.mxu0 0
  %4960 = vmatpush1.bf16.msra.mxu0 %v4442
  %4961 = vmatprep.subr.bf16.mxu0 0
  %4962 = vmatpush1.bf16.msra.mxu0 %v4443
  %4963 = vmatprep.subr.bf16.mxu0 0
  %4964 = vmatpush1.bf16.msra.mxu0 %v4444
  %4965 = vmatprep.subr.bf16.mxu0 0
  %4966 = vmatpush1.bf16.msra.mxu0 %v4445
  %4967 = vmatprep.subr.bf16.mxu0 0
  %4968 = vmatpush1.bf16.msra.mxu0 %v4446
  %4969 = vmatprep.subr.bf16.mxu0 0
  %4970 = vmatpush1.bf16.msra.mxu0 %v4447
  %4971 = vmatprep.subr.bf16.mxu0 0
  %4972 = vmatpush1.bf16.msra.mxu0 %v4448
  %4973 = vmatprep.subr.bf16.mxu0 0
  %4974 = vmatpush1.bf16.msra.mxu0 %v4449
  %4975 = vmatprep.subr.bf16.mxu0 0
  %4976 = vmatpush1.bf16.msra.mxu0 %v4450
  %4977 = vmatprep.subr.bf16.mxu0 0
  %4978 = vmatpush1.bf16.msra.mxu0 %v4451
  %4979 = vmatprep.subr.bf16.mxu0 0
  %4980 = vmatpush1.bf16.msra.mxu0 %v4452
  %4981 = vmatprep.mubr.bf16.mxu0 %v2703
  %4982 = vmatmul.mubr.bf16.gmra.mrb[0].mxu0 %v2702
  %v4983 = vpop.f32.mrb[0].mxu0
  %v4984 = vadd.f32 %v3411, %v4983
  %v4985 = vpop.f32.mrb[0].mxu0
  %v4986 = vpop.f32.mrb[0].mxu0
  %v4987 = vadd.f32 %v3411, %v4986
  %v4988 = vpop.f32.mrb[0].mxu0
  %4989 = vmatprep.mubr.bf16.mxu0 %v2735
  %4990 = vmatmul.mubr.bf16.gmra.mrb[0].mxu0 %v2734
  %v4991 = vpop.f32.mrb[0].mxu0
  %v4992 = vadd.f32 %v3411, %v4991
  %v4993 = vpop.f32.mrb[0].mxu0
  %v4994 = vpop.f32.mrb[0].mxu0
  %v4995 = vadd.f32 %v3411, %v4994
  %v4996 = vpop.f32.mrb[0].mxu0
  %4997 = vmatprep.mubr.bf16.mxu0 %v2767
  %4998 = vmatmul.mubr.bf16.gmra.mrb[0].mxu0 %v2766
  %v4999 = vpop.f32.mrb[0].mxu0
  %v5000 = vadd.f32 %v3411, %v4999
  %v5001 = vpop.f32.mrb[0].mxu0
  %v5002 = vpop.f32.mrb[0].mxu0
  %v5003 = vadd.f32 %v3411, %v5002
  %v5004 = vpop.f32.mrb[0].mxu0
  %5005 = vmatprep.mubr.bf16.mxu0 %v2799
  %5006 = vmatmul.mubr.bf16.gmra.mrb[0].mxu0 %v2798
  %v5007 = vpop.f32.mrb[0].mxu0
  %v5008 = vadd.f32 %v3411, %v5007
  %v5009 = vpop.f32.mrb[0].mxu0
  %v5010 = vpop.f32.mrb[0].mxu0
  %v5011 = vadd.f32 %v3411, %v5010
  %v5012 = vpop.f32.mrb[0].mxu0
  %5013 = vmatprep.mubr.bf16.mxu0 %v2831
  %5014 = vmatmul.mubr.bf16.gmra.mrb[0].mxu0 %v2830
  %v5015 = vpop.f32.mrb[0].mxu0
  %v5016 = vadd.f32 %v3411, %v5015
  %v5017 = vpop.f32.mrb[0].mxu0
  %v5018 = vpop.f32.mrb[0].mxu0
  %v5019 = vadd.f32 %v3411, %v5018
  %v5020 = vpop.f32.mrb[0].mxu0
  %5021 = vmatprep.mubr.bf16.mxu0 %v2863
  %5022 = vmatmul.mubr.bf16.gmra.mrb[0].mxu0 %v2862
  %v5023 = vpop.f32.mrb[0].mxu0
  %v5024 = vadd.f32 %v3411, %v5023
  %v5025 = vpop.f32.mrb[0].mxu0
  %v5026 = vpop.f32.mrb[0].mxu0
  %v5027 = vadd.f32 %v3411, %v5026
  %v5028 = vpop.f32.mrb[0].mxu0
  %5029 = vdwg.mxu0
  %5030 = vmatprep.subr.bf16.mxu0 0
  %5031 = vmatpush1.bf16.msra.mxu0 %v4453
  %5032 = vmatprep.subr.bf16.mxu0 0
  %5033 = vmatpush1.bf16.msra.mxu0 %v4454
  %5034 = vmatprep.subr.bf16.mxu0 0
  %5035 = vmatpush1.bf16.msra.mxu0 %v4455
  %5036 = vmatprep.subr.bf16.mxu0 0
  %5037 = vmatpush1.bf16.msra.mxu0 %v4456
  %5038 = vmatprep.subr.bf16.mxu0 0
  %5039 = vmatpush1.bf16.msra.mxu0 %v4457
  %5040 = vmatprep.subr.bf16.mxu0 0
  %5041 = vmatpush1.bf16.msra.mxu0 %v4458
  %5042 = vmatprep.subr.bf16.mxu0 0
  %5043 = vmatpush1.bf16.msra.mxu0 %v4459
  %5044 = vmatprep.subr.bf16.mxu0 0
  %5045 = vmatpush1.bf16.msra.mxu0 %v4460
  %5046 = vmatprep.subr.bf16.mxu0 0
  %5047 = vmatpush1.bf16.msra.mxu0 %v4461
  %5048 = vmatprep.subr.bf16.mxu0 0
  %5049 = vmatpush1.bf16.msra.mxu0 %v4462
  %5050 = vmatprep.subr.bf16.mxu0 0
  %5051 = vmatpush1.bf16.msra.mxu0 %v4463
  %5052 = vmatprep.subr.bf16.mxu0 0
  %5053 = vmatpush1.bf16.msra.mxu0 %v4464
  %5054 = vmatprep.subr.bf16.mxu0 0
  %5055 = vmatpush1.bf16.msra.mxu0 %v4465
  %5056 = vmatprep.subr.bf16.mxu0 0
  %5057 = vmatpush1.bf16.msra.mxu0 %v4466
  %5058 = vmatprep.subr.bf16.mxu0 0
  %5059 = vmatpush1.bf16.msra.mxu0 %v4467
  %5060 = vmatprep.subr.bf16.mxu0 0
  %5061 = vmatpush1.bf16.msra.mxu0 %v4468
  %5062 = vmatprep.mubr.bf16.mxu0 %v2705
  %5063 = vmatmul.mubr.bf16.gmra.mrb[0].mxu0 %v2704
  %v5064 = vpop.f32.mrb[0].mxu0
  %v5065 = vadd.f32 %v4984, %v5064
  %v5066 = vpop.f32.mrb[0].mxu0
  %v5067 = vpop.f32.mrb[0].mxu0
  %v5068 = vadd.f32 %v4987, %v5067
  %v5069 = vpop.f32.mrb[0].mxu0
  %5070 = vmatprep.mubr.bf16.mxu0 %v2737
  %5071 = vmatmul.mubr.bf16.gmra.mrb[0].mxu0 %v2736
  %v5072 = vpop.f32.mrb[0].mxu0
  %v5073 = vadd.f32 %v4992, %v5072
  %v5074 = vpop.f32.mrb[0].mxu0
  %v5075 = vpop.f32.mrb[0].mxu0
  %v5076 = vadd.f32 %v4995, %v5075
  %v5077 = vpop.f32.mrb[0].mxu0
  %5078 = vmatprep.mubr.bf16.mxu0 %v2769
  %5079 = vmatmul.mubr.bf16.gmra.mrb[0].mxu0 %v2768
  %v5080 = vpop.f32.mrb[0].mxu0
  %v5081 = vadd.f32 %v5000, %v5080
  %v5082 = vpop.f32.mrb[0].mxu0
  %v5083 = vpop.f32.mrb[0].mxu0
  %v5084 = vadd.f32 %v5003, %v5083
  %v5085 = vpop.f32.mrb[0].mxu0
  %5086 = vmatprep.mubr.bf16.mxu0 %v2801
  %5087 = vmatmul.mubr.bf16.gmra.mrb[0].mxu0 %v2800
  %v5088 = vpop.f32.mrb[0].mxu0
  %v5089 = vadd.f32 %v5008, %v5088
  %v5090 = vpop.f32.mrb[0].mxu0
  %v5091 = vpop.f32.mrb[0].mxu0
  %v5092 = vadd.f32 %v5011, %v5091
  %v5093 = vpop.f32.mrb[0].mxu0
  %5094 = vmatprep.mubr.bf16.mxu0 %v2833
  %5095 = vmatmul.mubr.bf16.gmra.mrb[0].mxu0 %v2832
  %v5096 = vpop.f32.mrb[0].mxu0
  %v5097 = vadd.f32 %v5016, %v5096
  %v5098 = vpop.f32.mrb[0].mxu0
  %v5099 = vpop.f32.mrb[0].mxu0
  %v5100 = vadd.f32 %v5019, %v5099
  %v5101 = vpop.f32.mrb[0].mxu0
  %5102 = vmatprep.mubr.bf16.mxu0 %v2865
  %5103 = vmatmul.mubr.bf16.gmra.mrb[0].mxu0 %v2864
  %v5104 = vpop.f32.mrb[0].mxu0
  %v5105 = vadd.f32 %v5024, %v5104
  %v5106 = vpop.f32.mrb[0].mxu0
  %v5107 = vpop.f32.mrb[0].mxu0
  %v5108 = vadd.f32 %v5027, %v5107
  %v5109 = vpop.f32.mrb[0].mxu0
  %5110 = vdwg.mxu0
  %5111 = vmatprep.subr.bf16.mxu0 0
  %5112 = vmatpush1.bf16.msra.mxu0 %v4469
  %5113 = vmatprep.subr.bf16.mxu0 0
  %5114 = vmatpush1.bf16.msra.mxu0 %v4470
  %5115 = vmatprep.subr.bf16.mxu0 0
  %5116 = vmatpush1.bf16.msra.mxu0 %v4471
  %5117 = vmatprep.subr.bf16.mxu0 0
  %5118 = vmatpush1.bf16.msra.mxu0 %v4472
  %5119 = vmatprep.subr.bf16.mxu0 0
  %5120 = vmatpush1.bf16.msra.mxu0 %v4473
  %5121 = vmatprep.subr.bf16.mxu0 0
  %5122 = vmatpush1.bf16.msra.mxu0 %v4474
  %5123 = vmatprep.subr.bf16.mxu0 0
  %5124 = vmatpush1.bf16.msra.mxu0 %v4475
  %5125 = vmatprep.subr.bf16.mxu0 0
  %5126 = vmatpush1.bf16.msra.mxu0 %v4476
  %5127 = vmatprep.subr.bf16.mxu0 0
  %5128 = vmatpush1.bf16.msra.mxu0 %v4477
  %5129 = vmatprep.subr.bf16.mxu0 0
  %5130 = vmatpush1.bf16.msra.mxu0 %v4478
  %5131 = vmatprep.subr.bf16.mxu0 0
  %5132 = vmatpush1.bf16.msra.mxu0 %v4479
  %5133 = vmatprep.subr.bf16.mxu0 0
  %5134 = vmatpush1.bf16.msra.mxu0 %v4480
  %5135 = vmatprep.subr.bf16.mxu0 0
  %5136 = vmatpush1.bf16.msra.mxu0 %v4481
  %5137 = vmatprep.subr.bf16.mxu0 0
  %5138 = vmatpush1.bf16.msra.mxu0 %v4482
  %5139 = vmatprep.subr.bf16.mxu0 0
  %5140 = vmatpush1.bf16.msra.mxu0 %v4483
  %5141 = vmatprep.subr.bf16.mxu0 0
  %5142 = vmatpush1.bf16.msra.mxu0 %v4484
  %5143 = vmatprep.mubr.bf16.mxu0 %v2707
  %5144 = vmatmul.mubr.bf16.gmra.mrb[0].mxu0 %v2706
  %v5145 = vpop.f32.mrb[0].mxu0
  %v5146 = vadd.f32 %v5065, %v5145
  %v5147 = vpop.f32.mrb[0].mxu0
  %v5148 = vpop.f32.mrb[0].mxu0
  %v5149 = vadd.f32 %v5068, %v5148
  %v5150 = vpop.f32.mrb[0].mxu0
  %5151 = vmatprep.mubr.bf16.mxu0 %v2739
  %5152 = vmatmul.mubr.bf16.gmra.mrb[0].mxu0 %v2738
  %v5153 = vpop.f32.mrb[0].mxu0
  %v5154 = vadd.f32 %v5073, %v5153
  %v5155 = vpop.f32.mrb[0].mxu0
  %v5156 = vpop.f32.mrb[0].mxu0
  %v5157 = vadd.f32 %v5076, %v5156
  %v5158 = vpop.f32.mrb[0].mxu0
  %5159 = vmatprep.mubr.bf16.mxu0 %v2771
  %5160 = vmatmul.mubr.bf16.gmra.mrb[0].mxu0 %v2770
  %v5161 = vpop.f32.mrb[0].mxu0
  %v5162 = vadd.f32 %v5081, %v5161
  %v5163 = vpop.f32.mrb[0].mxu0
  %v5164 = vpop.f32.mrb[0].mxu0
  %v5165 = vadd.f32 %v5084, %v5164
  %v5166 = vpop.f32.mrb[0].mxu0
  %5167 = vmatprep.mubr.bf16.mxu0 %v2803
  %5168 = vmatmul.mubr.bf16.gmra.mrb[0].mxu0 %v2802
  %v5169 = vpop.f32.mrb[0].mxu0
  %v5170 = vadd.f32 %v5089, %v5169
  %v5171 = vpop.f32.mrb[0].mxu0
  %v5172 = vpop.f32.mrb[0].mxu0
  %v5173 = vadd.f32 %v5092, %v5172
  %v5174 = vpop.f32.mrb[0].mxu0
  %5175 = vmatprep.mubr.bf16.mxu0 %v2835
  %5176 = vmatmul.mubr.bf16.gmra.mrb[0].mxu0 %v2834
  %v5177 = vpop.f32.mrb[0].mxu0
  %v5178 = vadd.f32 %v5097, %v5177
  %v5179 = vpop.f32.mrb[0].mxu0
  %v5180 = vpop.f32.mrb[0].mxu0
  %v5181 = vadd.f32 %v5100, %v5180
  %v5182 = vpop.f32.mrb[0].mxu0
  %5183 = vmatprep.mubr.bf16.mxu0 %v2867
  %5184 = vmatmul.mubr.bf16.gmra.mrb[0].mxu0 %v2866
  %v5185 = vpop.f32.mrb[0].mxu0
  %v5186 = vadd.f32 %v5105, %v5185
  %v5187 = vpop.f32.mrb[0].mxu0
  %v5188 = vpop.f32.mrb[0].mxu0
  %v5189 = vadd.f32 %v5108, %v5188
  %v5190 = vpop.f32.mrb[0].mxu0
  %5191 = vdwg.mxu0
  %5192 = vmatprep.subr.bf16.mxu0 0
  %5193 = vmatpush1.bf16.msra.mxu0 %v4485
  %5194 = vmatprep.subr.bf16.mxu0 0
  %5195 = vmatpush1.bf16.msra.mxu0 %v4486
  %5196 = vmatprep.subr.bf16.mxu0 0
  %5197 = vmatpush1.bf16.msra.mxu0 %v4487
  %5198 = vmatprep.subr.bf16.mxu0 0
  %5199 = vmatpush1.bf16.msra.mxu0 %v4488
  %5200 = vmatprep.subr.bf16.mxu0 0
  %5201 = vmatpush1.bf16.msra.mxu0 %v4489
  %5202 = vmatprep.subr.bf16.mxu0 0
  %5203 = vmatpush1.bf16.msra.mxu0 %v4490
  %5204 = vmatprep.subr.bf16.mxu0 0
  %5205 = vmatpush1.bf16.msra.mxu0 %v4491
  %5206 = vmatprep.subr.bf16.mxu0 0
  %5207 = vmatpush1.bf16.msra.mxu0 %v4492
  %5208 = vmatprep.subr.bf16.mxu0 0
  %5209 = vmatpush1.bf16.msra.mxu0 %v4493
  %5210 = vmatprep.subr.bf16.mxu0 0
  %5211 = vmatpush1.bf16.msra.mxu0 %v4494
  %5212 = vmatprep.subr.bf16.mxu0 0
  %5213 = vmatpush1.bf16.msra.mxu0 %v4495
  %5214 = vmatprep.subr.bf16.mxu0 0
  %5215 = vmatpush1.bf16.msra.mxu0 %v4496
  %5216 = vmatprep.subr.bf16.mxu0 0
  %5217 = vmatpush1.bf16.msra.mxu0 %v4497
  %5218 = vmatprep.subr.bf16.mxu0 0
  %5219 = vmatpush1.bf16.msra.mxu0 %v4498
  %5220 = vmatprep.subr.bf16.mxu0 0
  %5221 = vmatpush1.bf16.msra.mxu0 %v4499
  %5222 = vmatprep.subr.bf16.mxu0 0
  %5223 = vmatpush1.bf16.msra.mxu0 %v4500
  %5224 = vmatprep.mubr.bf16.mxu0 %v2709
  %5225 = vmatmul.mubr.bf16.gmra.mrb[0].mxu0 %v2708
  %v5226 = vpop.f32.mrb[0].mxu0
  %v5227 = vadd.f32 %v5146, %v5226
  %v5228 = vpop.f32.mrb[0].mxu0
  %v5229 = vpop.f32.mrb[0].mxu0
  %v5230 = vadd.f32 %v5149, %v5229
  %v5231 = vpop.f32.mrb[0].mxu0
  %5232 = vmatprep.mubr.bf16.mxu0 %v2741
  %5233 = vmatmul.mubr.bf16.gmra.mrb[0].mxu0 %v2740
  %v5234 = vpop.f32.mrb[0].mxu0
  %v5235 = vadd.f32 %v5154, %v5234
  %v5236 = vpop.f32.mrb[0].mxu0
  %v5237 = vpop.f32.mrb[0].mxu0
  %v5238 = vadd.f32 %v5157, %v5237
  %v5239 = vpop.f32.mrb[0].mxu0
  %5240 = vmatprep.mubr.bf16.mxu0 %v2773
  %5241 = vmatmul.mubr.bf16.gmra.mrb[0].mxu0 %v2772
  %v5242 = vpop.f32.mrb[0].mxu0
  %v5243 = vadd.f32 %v5162, %v5242
  %v5244 = vpop.f32.mrb[0].mxu0
  %v5245 = vpop.f32.mrb[0].mxu0
  %v5246 = vadd.f32 %v5165, %v5245
  %v5247 = vpop.f32.mrb[0].mxu0
  %5248 = vmatprep.mubr.bf16.mxu0 %v2805
  %5249 = vmatmul.mubr.bf16.gmra.mrb[0].mxu0 %v2804
  %v5250 = vpop.f32.mrb[0].mxu0
  %v5251 = vadd.f32 %v5170, %v5250
  %v5252 = vpop.f32.mrb[0].mxu0
  %v5253 = vpop.f32.mrb[0].mxu0
  %v5254 = vadd.f32 %v5173, %v5253
  %v5255 = vpop.f32.mrb[0].mxu0
  %5256 = vmatprep.mubr.bf16.mxu0 %v2837
  %5257 = vmatmul.mubr.bf16.gmra.mrb[0].mxu0 %v2836
  %v5258 = vpop.f32.mrb[0].mxu0
  %v5259 = vadd.f32 %v5178, %v5258
  %v5260 = vpop.f32.mrb[0].mxu0
  %v5261 = vpop.f32.mrb[0].mxu0
  %v5262 = vadd.f32 %v5181, %v5261
  %v5263 = vpop.f32.mrb[0].mxu0
  %5264 = vmatprep.mubr.bf16.mxu0 %v2869
  %5265 = vmatmul.mubr.bf16.gmra.mrb[0].mxu0 %v2868
  %v5266 = vpop.f32.mrb[0].mxu0
  %v5267 = vadd.f32 %v5186, %v5266
  %v5268 = vpop.f32.mrb[0].mxu0
  %v5269 = vpop.f32.mrb[0].mxu0
  %v5270 = vadd.f32 %v5189, %v5269
  %v5271 = vpop.f32.mrb[0].mxu0
  %5272 = vdwg.mxu0
  %5273 = vmatprep.subr.bf16.mxu0 0
  %5274 = vmatpush1.bf16.msra.mxu0 %v4501
  %5275 = vmatprep.subr.bf16.mxu0 0
  %5276 = vmatpush1.bf16.msra.mxu0 %v4502
  %5277 = vmatprep.subr.bf16.mxu0 0
  %5278 = vmatpush1.bf16.msra.mxu0 %v4503
  %5279 = vmatprep.subr.bf16.mxu0 0
  %5280 = vmatpush1.bf16.msra.mxu0 %v4504
  %5281 = vmatprep.subr.bf16.mxu0 0
  %5282 = vmatpush1.bf16.msra.mxu0 %v4505
  %5283 = vmatprep.subr.bf16.mxu0 0
  %5284 = vmatpush1.bf16.msra.mxu0 %v4506
  %5285 = vmatprep.subr.bf16.mxu0 0
  %5286 = vmatpush1.bf16.msra.mxu0 %v4507
  %5287 = vmatprep.subr.bf16.mxu0 0
  %5288 = vmatpush1.bf16.msra.mxu0 %v4508
  %5289 = vmatprep.subr.bf16.mxu0 0
  %5290 = vmatpush1.bf16.msra.mxu0 %v4509
  %5291 = vmatprep.subr.bf16.mxu0 0
  %5292 = vmatpush1.bf16.msra.mxu0 %v4510
  %5293 = vmatprep.subr.bf16.mxu0 0
  %5294 = vmatpush1.bf16.msra.mxu0 %v4511
  %5295 = vmatprep.subr.bf16.mxu0 0
  %5296 = vmatpush1.bf16.msra.mxu0 %v4512
  %5297 = vmatprep.subr.bf16.mxu0 0
  %5298 = vmatpush1.bf16.msra.mxu0 %v4513
  %5299 = vmatprep.subr.bf16.mxu0 0
  %5300 = vmatpush1.bf16.msra.mxu0 %v4514
  %5301 = vmatprep.subr.bf16.mxu0 0
  %5302 = vmatpush1.bf16.msra.mxu0 %v4515
  %5303 = vmatprep.subr.bf16.mxu0 0
  %5304 = vmatpush1.bf16.msra.mxu0 %v4516
  %5305 = vmatprep.mubr.bf16.mxu0 %v2711
  %5306 = vmatmul.mubr.bf16.gmra.mrb[0].mxu0 %v2710
  %v5307 = vpop.f32.mrb[0].mxu0
  %v5308 = vadd.f32 %v5227, %v5307
  %v5309 = vpop.f32.mrb[0].mxu0
  %v5310 = vpop.f32.mrb[0].mxu0
  %v5311 = vadd.f32 %v5230, %v5310
  %v5312 = vpop.f32.mrb[0].mxu0
  %5313 = vmatprep.mubr.bf16.mxu0 %v2743
  %5314 = vmatmul.mubr.bf16.gmra.mrb[0].mxu0 %v2742
  %v5315 = vpop.f32.mrb[0].mxu0
  %v5316 = vadd.f32 %v5235, %v5315
  %v5317 = vpop.f32.mrb[0].mxu0
  %v5318 = vpop.f32.mrb[0].mxu0
  %v5319 = vadd.f32 %v5238, %v5318
  %v5320 = vpop.f32.mrb[0].mxu0
  %5321 = vmatprep.mubr.bf16.mxu0 %v2775
  %5322 = vmatmul.mubr.bf16.gmra.mrb[0].mxu0 %v2774
  %v5323 = vpop.f32.mrb[0].mxu0
  %v5324 = vadd.f32 %v5243, %v5323
  %v5325 = vpop.f32.mrb[0].mxu0
  %v5326 = vpop.f32.mrb[0].mxu0
  %v5327 = vadd.f32 %v5246, %v5326
  %v5328 = vpop.f32.mrb[0].mxu0
  %5329 = vmatprep.mubr.bf16.mxu0 %v2807
  %5330 = vmatmul.mubr.bf16.gmra.mrb[0].mxu0 %v2806
  %v5331 = vpop.f32.mrb[0].mxu0
  %v5332 = vadd.f32 %v5251, %v5331
  %v5333 = vpop.f32.mrb[0].mxu0
  %v5334 = vpop.f32.mrb[0].mxu0
  %v5335 = vadd.f32 %v5254, %v5334
  %v5336 = vpop.f32.mrb[0].mxu0
  %5337 = vmatprep.mubr.bf16.mxu0 %v2839
  %5338 = vmatmul.mubr.bf16.gmra.mrb[0].mxu0 %v2838
  %v5339 = vpop.f32.mrb[0].mxu0
  %v5340 = vadd.f32 %v5259, %v5339
  %v5341 = vpop.f32.mrb[0].mxu0
  %v5342 = vpop.f32.mrb[0].mxu0
  %v5343 = vadd.f32 %v5262, %v5342
  %v5344 = vpop.f32.mrb[0].mxu0
  %5345 = vmatprep.mubr.bf16.mxu0 %v2871
  %5346 = vmatmul.mubr.bf16.gmra.mrb[0].mxu0 %v2870
  %v5347 = vpop.f32.mrb[0].mxu0
  %v5348 = vadd.f32 %v5267, %v5347
  %v5349 = vpop.f32.mrb[0].mxu0
  %v5350 = vpop.f32.mrb[0].mxu0
  %v5351 = vadd.f32 %v5270, %v5350
  %v5352 = vpop.f32.mrb[0].mxu0
  %5353 = vdwg.mxu0
  %5354 = vmatprep.subr.bf16.mxu0 0
  %5355 = vmatpush1.bf16.msra.mxu0 %v4517
  %5356 = vmatprep.subr.bf16.mxu0 0
  %5357 = vmatpush1.bf16.msra.mxu0 %v4518
  %5358 = vmatprep.subr.bf16.mxu0 0
  %5359 = vmatpush1.bf16.msra.mxu0 %v4519
  %5360 = vmatprep.subr.bf16.mxu0 0
  %5361 = vmatpush1.bf16.msra.mxu0 %v4520
  %5362 = vmatprep.subr.bf16.mxu0 0
  %5363 = vmatpush1.bf16.msra.mxu0 %v4521
  %5364 = vmatprep.subr.bf16.mxu0 0
  %5365 = vmatpush1.bf16.msra.mxu0 %v4522
  %5366 = vmatprep.subr.bf16.mxu0 0
  %5367 = vmatpush1.bf16.msra.mxu0 %v4523
  %5368 = vmatprep.subr.bf16.mxu0 0
  %5369 = vmatpush1.bf16.msra.mxu0 %v4524
  %5370 = vmatprep.subr.bf16.mxu0 0
  %5371 = vmatpush1.bf16.msra.mxu0 %v4525
  %5372 = vmatprep.subr.bf16.mxu0 0
  %5373 = vmatpush1.bf16.msra.mxu0 %v4526
  %5374 = vmatprep.subr.bf16.mxu0 0
  %5375 = vmatpush1.bf16.msra.mxu0 %v4527
  %5376 = vmatprep.subr.bf16.mxu0 0
  %5377 = vmatpush1.bf16.msra.mxu0 %v4528
  %5378 = vmatprep.subr.bf16.mxu0 0
  %5379 = vmatpush1.bf16.msra.mxu0 %v4529
  %5380 = vmatprep.subr.bf16.mxu0 0
  %5381 = vmatpush1.bf16.msra.mxu0 %v4530
  %5382 = vmatprep.subr.bf16.mxu0 0
  %5383 = vmatpush1.bf16.msra.mxu0 %v4531
  %5384 = vmatprep.subr.bf16.mxu0 0
  %5385 = vmatpush1.bf16.msra.mxu0 %v4532
  %5386 = vmatprep.mubr.bf16.mxu0 %v2713
  %5387 = vmatmul.mubr.bf16.gmra.mrb[0].mxu0 %v2712
  %v5388 = vpop.f32.mrb[0].mxu0
  %v5389 = vadd.f32 %v5308, %v5388
  %v5390 = vpop.f32.mrb[0].mxu0
  %v5391 = vpop.f32.mrb[0].mxu0
  %v5392 = vadd.f32 %v5311, %v5391
  %v5393 = vpop.f32.mrb[0].mxu0
  %5394 = vmatprep.mubr.bf16.mxu0 %v2745
  %5395 = vmatmul.mubr.bf16.gmra.mrb[0].mxu0 %v2744
  %v5396 = vpop.f32.mrb[0].mxu0
  %v5397 = vadd.f32 %v5316, %v5396
  %v5398 = vpop.f32.mrb[0].mxu0
  %v5399 = vpop.f32.mrb[0].mxu0
  %v5400 = vadd.f32 %v5319, %v5399
  %v5401 = vpop.f32.mrb[0].mxu0
  %5402 = vmatprep.mubr.bf16.mxu0 %v2777
  %5403 = vmatmul.mubr.bf16.gmra.mrb[0].mxu0 %v2776
  %v5404 = vpop.f32.mrb[0].mxu0
  %v5405 = vadd.f32 %v5324, %v5404
  %v5406 = vpop.f32.mrb[0].mxu0
  %v5407 = vpop.f32.mrb[0].mxu0
  %v5408 = vadd.f32 %v5327, %v5407
  %v5409 = vpop.f32.mrb[0].mxu0
  %5410 = vmatprep.mubr.bf16.mxu0 %v2809
  %5411 = vmatmul.mubr.bf16.gmra.mrb[0].mxu0 %v2808
  %v5412 = vpop.f32.mrb[0].mxu0
  %v5413 = vadd.f32 %v5332, %v5412
  %v5414 = vpop.f32.mrb[0].mxu0
  %v5415 = vpop.f32.mrb[0].mxu0
  %v5416 = vadd.f32 %v5335, %v5415
  %v5417 = vpop.f32.mrb[0].mxu0
  %5418 = vmatprep.mubr.bf16.mxu0 %v2841
  %5419 = vmatmul.mubr.bf16.gmra.mrb[0].mxu0 %v2840
  %v5420 = vpop.f32.mrb[0].mxu0
  %v5421 = vadd.f32 %v5340, %v5420
  %v5422 = vpop.f32.mrb[0].mxu0
  %v5423 = vpop.f32.mrb[0].mxu0
  %v5424 = vadd.f32 %v5343, %v5423
  %v5425 = vpop.f32.mrb[0].mxu0
  %5426 = vmatprep.mubr.bf16.mxu0 %v2873
  %5427 = vmatmul.mubr.bf16.gmra.mrb[0].mxu0 %v2872
  %v5428 = vpop.f32.mrb[0].mxu0
  %v5429 = vadd.f32 %v5348, %v5428
  %v5430 = vpop.f32.mrb[0].mxu0
  %v5431 = vpop.f32.mrb[0].mxu0
  %v5432 = vadd.f32 %v5351, %v5431
  %v5433 = vpop.f32.mrb[0].mxu0
  %5434 = vdwg.mxu0
  %5435 = vmatprep.subr.bf16.mxu0 0
  %5436 = vmatpush1.bf16.msra.mxu0 %v4533
  %5437 = vmatprep.subr.bf16.mxu0 0
  %5438 = vmatpush1.bf16.msra.mxu0 %v4534
  %5439 = vmatprep.subr.bf16.mxu0 0
  %5440 = vmatpush1.bf16.msra.mxu0 %v4535
  %5441 = vmatprep.subr.bf16.mxu0 0
  %5442 = vmatpush1.bf16.msra.mxu0 %v4536
  %5443 = vmatprep.subr.bf16.mxu0 0
  %5444 = vmatpush1.bf16.msra.mxu0 %v4537
  %5445 = vmatprep.subr.bf16.mxu0 0
  %5446 = vmatpush1.bf16.msra.mxu0 %v4538
  %5447 = vmatprep.subr.bf16.mxu0 0
  %5448 = vmatpush1.bf16.msra.mxu0 %v4539
  %5449 = vmatprep.subr.bf16.mxu0 0
  %5450 = vmatpush1.bf16.msra.mxu0 %v4540
  %5451 = vmatprep.subr.bf16.mxu0 0
  %5452 = vmatpush1.bf16.msra.mxu0 %v4541
  %5453 = vmatprep.subr.bf16.mxu0 0
  %5454 = vmatpush1.bf16.msra.mxu0 %v4542
  %5455 = vmatprep.subr.bf16.mxu0 0
  %5456 = vmatpush1.bf16.msra.mxu0 %v4543
  %5457 = vmatprep.subr.bf16.mxu0 0
  %5458 = vmatpush1.bf16.msra.mxu0 %v4544
  %5459 = vmatprep.subr.bf16.mxu0 0
  %5460 = vmatpush1.bf16.msra.mxu0 %v4545
  %5461 = vmatprep.subr.bf16.mxu0 0
  %5462 = vmatpush1.bf16.msra.mxu0 %v4546
  %5463 = vmatprep.subr.bf16.mxu0 0
  %5464 = vmatpush1.bf16.msra.mxu0 %v4547
  %5465 = vmatprep.subr.bf16.mxu0 0
  %5466 = vmatpush1.bf16.msra.mxu0 %v4548
  %5467 = vmatprep.mubr.bf16.mxu0 %v2715
  %5468 = vmatmul.mubr.bf16.gmra.mrb[0].mxu0 %v2714
  %v5469 = vpop.f32.mrb[0].mxu0
  %v5470 = vadd.f32 %v5389, %v5469
  %v5471 = vpop.f32.mrb[0].mxu0
  %v5472 = vpop.f32.mrb[0].mxu0
  %v5473 = vadd.f32 %v5392, %v5472
  %v5474 = vpop.f32.mrb[0].mxu0
  %5475 = vmatprep.mubr.bf16.mxu0 %v2747
  %5476 = vmatmul.mubr.bf16.gmra.mrb[0].mxu0 %v2746
  %v5477 = vpop.f32.mrb[0].mxu0
  %v5478 = vadd.f32 %v5397, %v5477
  %v5479 = vpop.f32.mrb[0].mxu0
  %v5480 = vpop.f32.mrb[0].mxu0
  %v5481 = vadd.f32 %v5400, %v5480
  %v5482 = vpop.f32.mrb[0].mxu0
  %5483 = vmatprep.mubr.bf16.mxu0 %v2779
  %5484 = vmatmul.mubr.bf16.gmra.mrb[0].mxu0 %v2778
  %v5485 = vpop.f32.mrb[0].mxu0
  %v5486 = vadd.f32 %v5405, %v5485
  %v5487 = vpop.f32.mrb[0].mxu0
  %v5488 = vpop.f32.mrb[0].mxu0
  %v5489 = vadd.f32 %v5408, %v5488
  %v5490 = vpop.f32.mrb[0].mxu0
  %5491 = vmatprep.mubr.bf16.mxu0 %v2811
  %5492 = vmatmul.mubr.bf16.gmra.mrb[0].mxu0 %v2810
  %v5493 = vpop.f32.mrb[0].mxu0
  %v5494 = vadd.f32 %v5413, %v5493
  %v5495 = vpop.f32.mrb[0].mxu0
  %v5496 = vpop.f32.mrb[0].mxu0
  %v5497 = vadd.f32 %v5416, %v5496
  %v5498 = vpop.f32.mrb[0].mxu0
  %5499 = vmatprep.mubr.bf16.mxu0 %v2843
  %5500 = vmatmul.mubr.bf16.gmra.mrb[0].mxu0 %v2842
  %v5501 = vpop.f32.mrb[0].mxu0
  %v5502 = vadd.f32 %v5421, %v5501
  %v5503 = vpop.f32.mrb[0].mxu0
  %v5504 = vpop.f32.mrb[0].mxu0
  %v5505 = vadd.f32 %v5424, %v5504
  %v5506 = vpop.f32.mrb[0].mxu0
  %5507 = vmatprep.mubr.bf16.mxu0 %v2875
  %5508 = vmatmul.mubr.bf16.gmra.mrb[0].mxu0 %v2874
  %v5509 = vpop.f32.mrb[0].mxu0
  %v5510 = vadd.f32 %v5429, %v5509
  %v5511 = vpop.f32.mrb[0].mxu0
  %v5512 = vpop.f32.mrb[0].mxu0
  %v5513 = vadd.f32 %v5432, %v5512
  %v5514 = vpop.f32.mrb[0].mxu0
  %5515 = vdwg.mxu0
  %5516 = vmatprep.subr.bf16.mxu0 0
  %5517 = vmatpush1.bf16.msra.mxu0 %v4549
  %5518 = vmatprep.subr.bf16.mxu0 0
  %5519 = vmatpush1.bf16.msra.mxu0 %v4550
  %5520 = vmatprep.subr.bf16.mxu0 0
  %5521 = vmatpush1.bf16.msra.mxu0 %v4551
  %5522 = vmatprep.subr.bf16.mxu0 0
  %5523 = vmatpush1.bf16.msra.mxu0 %v4552
  %5524 = vmatprep.subr.bf16.mxu0 0
  %5525 = vmatpush1.bf16.msra.mxu0 %v4553
  %5526 = vmatprep.subr.bf16.mxu0 0
  %5527 = vmatpush1.bf16.msra.mxu0 %v4554
  %5528 = vmatprep.subr.bf16.mxu0 0
  %5529 = vmatpush1.bf16.msra.mxu0 %v4555
  %5530 = vmatprep.subr.bf16.mxu0 0
  %5531 = vmatpush1.bf16.msra.mxu0 %v4556
  %5532 = vmatprep.subr.bf16.mxu0 0
  %5533 = vmatpush1.bf16.msra.mxu0 %v4557
  %5534 = vmatprep.subr.bf16.mxu0 0
  %5535 = vmatpush1.bf16.msra.mxu0 %v4558
  %5536 = vmatprep.subr.bf16.mxu0 0
  %5537 = vmatpush1.bf16.msra.mxu0 %v4559
  %5538 = vmatprep.subr.bf16.mxu0 0
  %5539 = vmatpush1.bf16.msra.mxu0 %v4560
  %5540 = vmatprep.subr.bf16.mxu0 0
  %5541 = vmatpush1.bf16.msra.mxu0 %v4561
  %5542 = vmatprep.subr.bf16.mxu0 0
  %5543 = vmatpush1.bf16.msra.mxu0 %v4562
  %5544 = vmatprep.subr.bf16.mxu0 0
  %5545 = vmatpush1.bf16.msra.mxu0 %v4563
  %5546 = vmatprep.subr.bf16.mxu0 0
  %5547 = vmatpush1.bf16.msra.mxu0 %v4564
  %5548 = vmatprep.mubr.bf16.mxu0 %v2717
  %5549 = vmatmul.mubr.bf16.gmra.mrb[0].mxu0 %v2716
  %v5550 = vpop.f32.mrb[0].mxu0
  %v5551 = vadd.f32 %v5470, %v5550
  %v5552 = vpop.f32.mrb[0].mxu0
  %v5553 = vpop.f32.mrb[0].mxu0
  %v5554 = vadd.f32 %v5473, %v5553
  %v5555 = vpop.f32.mrb[0].mxu0
  %5556 = vmatprep.mubr.bf16.mxu0 %v2749
  %5557 = vmatmul.mubr.bf16.gmra.mrb[0].mxu0 %v2748
  %v5558 = vpop.f32.mrb[0].mxu0
  %v5559 = vadd.f32 %v5478, %v5558
  %v5560 = vpop.f32.mrb[0].mxu0
  %v5561 = vpop.f32.mrb[0].mxu0
  %v5562 = vadd.f32 %v5481, %v5561
  %v5563 = vpop.f32.mrb[0].mxu0
  %5564 = vmatprep.mubr.bf16.mxu0 %v2781
  %5565 = vmatmul.mubr.bf16.gmra.mrb[0].mxu0 %v2780
  %v5566 = vpop.f32.mrb[0].mxu0
  %v5567 = vadd.f32 %v5486, %v5566
  %v5568 = vpop.f32.mrb[0].mxu0
  %v5569 = vpop.f32.mrb[0].mxu0
  %v5570 = vadd.f32 %v5489, %v5569
  %v5571 = vpop.f32.mrb[0].mxu0
  %5572 = vmatprep.mubr.bf16.mxu0 %v2813
  %5573 = vmatmul.mubr.bf16.gmra.mrb[0].mxu0 %v2812
  %v5574 = vpop.f32.mrb[0].mxu0
  %v5575 = vadd.f32 %v5494, %v5574
  %v5576 = vpop.f32.mrb[0].mxu0
  %v5577 = vpop.f32.mrb[0].mxu0
  %v5578 = vadd.f32 %v5497, %v5577
  %v5579 = vpop.f32.mrb[0].mxu0
  %5580 = vmatprep.mubr.bf16.mxu0 %v2845
  %5581 = vmatmul.mubr.bf16.gmra.mrb[0].mxu0 %v2844
  %v5582 = vpop.f32.mrb[0].mxu0
  %v5583 = vadd.f32 %v5502, %v5582
  %v5584 = vpop.f32.mrb[0].mxu0
  %v5585 = vpop.f32.mrb[0].mxu0
  %v5586 = vadd.f32 %v5505, %v5585
  %v5587 = vpop.f32.mrb[0].mxu0
  %5588 = vmatprep.mubr.bf16.mxu0 %v2877
  %5589 = vmatmul.mubr.bf16.gmra.mrb[0].mxu0 %v2876
  %v5590 = vpop.f32.mrb[0].mxu0
  %v5591 = vadd.f32 %v5510, %v5590
  %v5592 = vpop.f32.mrb[0].mxu0
  %v5593 = vpop.f32.mrb[0].mxu0
  %v5594 = vadd.f32 %v5513, %v5593
  %v5595 = vpop.f32.mrb[0].mxu0
  %5596 = vdwg.mxu0
  %5597 = vmatprep.subr.bf16.mxu0 0
  %5598 = vmatpush1.bf16.msra.mxu0 %v4565
  %5599 = vmatprep.subr.bf16.mxu0 0
  %5600 = vmatpush1.bf16.msra.mxu0 %v4566
  %5601 = vmatprep.subr.bf16.mxu0 0
  %5602 = vmatpush1.bf16.msra.mxu0 %v4567
  %5603 = vmatprep.subr.bf16.mxu0 0
  %5604 = vmatpush1.bf16.msra.mxu0 %v4568
  %5605 = vmatprep.subr.bf16.mxu0 0
  %5606 = vmatpush1.bf16.msra.mxu0 %v4569
  %5607 = vmatprep.subr.bf16.mxu0 0
  %5608 = vmatpush1.bf16.msra.mxu0 %v4570
  %5609 = vmatprep.subr.bf16.mxu0 0
  %5610 = vmatpush1.bf16.msra.mxu0 %v4571
  %5611 = vmatprep.subr.bf16.mxu0 0
  %5612 = vmatpush1.bf16.msra.mxu0 %v4572
  %5613 = vmatprep.subr.bf16.mxu0 0
  %5614 = vmatpush1.bf16.msra.mxu0 %v4573
  %5615 = vmatprep.subr.bf16.mxu0 0
  %5616 = vmatpush1.bf16.msra.mxu0 %v4574
  %5617 = vmatprep.subr.bf16.mxu0 0
  %5618 = vmatpush1.bf16.msra.mxu0 %v4575
  %5619 = vmatprep.subr.bf16.mxu0 0
  %5620 = vmatpush1.bf16.msra.mxu0 %v4576
  %5621 = vmatprep.subr.bf16.mxu0 0
  %5622 = vmatpush1.bf16.msra.mxu0 %v4577
  %5623 = vmatprep.subr.bf16.mxu0 0
  %5624 = vmatpush1.bf16.msra.mxu0 %v4578
  %5625 = vmatprep.subr.bf16.mxu0 0
  %5626 = vmatpush1.bf16.msra.mxu0 %v4579
  %5627 = vmatprep.subr.bf16.mxu0 0
  %5628 = vmatpush1.bf16.msra.mxu0 %v4580
  %5629 = vmatprep.mubr.bf16.mxu0 %v2719
  %5630 = vmatmul.mubr.bf16.gmra.mrb[0].mxu0 %v2718
  %v5631 = vpop.f32.mrb[0].mxu0
  %v5632 = vadd.f32 %v5551, %v5631
  %v5633 = vpop.f32.mrb[0].mxu0
  %v5634 = vpop.f32.mrb[0].mxu0
  %v5635 = vadd.f32 %v5554, %v5634
  %v5636 = vpop.f32.mrb[0].mxu0
  %5637 = vmatprep.mubr.bf16.mxu0 %v2751
  %5638 = vmatmul.mubr.bf16.gmra.mrb[0].mxu0 %v2750
  %v5639 = vpop.f32.mrb[0].mxu0
  %v5640 = vadd.f32 %v5559, %v5639
  %v5641 = vpop.f32.mrb[0].mxu0
  %v5642 = vpop.f32.mrb[0].mxu0
  %v5643 = vadd.f32 %v5562, %v5642
  %v5644 = vpop.f32.mrb[0].mxu0
  %5645 = vmatprep.mubr.bf16.mxu0 %v2783
  %5646 = vmatmul.mubr.bf16.gmra.mrb[0].mxu0 %v2782
  %v5647 = vpop.f32.mrb[0].mxu0
  %v5648 = vadd.f32 %v5567, %v5647
  %v5649 = vpop.f32.mrb[0].mxu0
  %v5650 = vpop.f32.mrb[0].mxu0
  %v5651 = vadd.f32 %v5570, %v5650
  %v5652 = vpop.f32.mrb[0].mxu0
  %5653 = vmatprep.mubr.bf16.mxu0 %v2815
  %5654 = vmatmul.mubr.bf16.gmra.mrb[0].mxu0 %v2814
  %v5655 = vpop.f32.mrb[0].mxu0
  %v5656 = vadd.f32 %v5575, %v5655
  %v5657 = vpop.f32.mrb[0].mxu0
  %v5658 = vpop.f32.mrb[0].mxu0
  %v5659 = vadd.f32 %v5578, %v5658
  %v5660 = vpop.f32.mrb[0].mxu0
  %5661 = vmatprep.mubr.bf16.mxu0 %v2847
  %5662 = vmatmul.mubr.bf16.gmra.mrb[0].mxu0 %v2846
  %v5663 = vpop.f32.mrb[0].mxu0
  %v5664 = vadd.f32 %v5583, %v5663
  %v5665 = vpop.f32.mrb[0].mxu0
  %v5666 = vpop.f32.mrb[0].mxu0
  %v5667 = vadd.f32 %v5586, %v5666
  %v5668 = vpop.f32.mrb[0].mxu0
  %5669 = vmatprep.mubr.bf16.mxu0 %v2879
  %5670 = vmatmul.mubr.bf16.gmra.mrb[0].mxu0 %v2878
  %v5671 = vpop.f32.mrb[0].mxu0
  %v5672 = vadd.f32 %v5591, %v5671
  %v5673 = vpop.f32.mrb[0].mxu0
  %v5674 = vpop.f32.mrb[0].mxu0
  %v5675 = vadd.f32 %v5594, %v5674
  %v5676 = vpop.f32.mrb[0].mxu0
  %5677 = vdwg.mxu0
  %5678 = vmatprep.subr.bf16.mxu0 0
  %5679 = vmatpush1.bf16.msra.mxu0 %v4581
  %5680 = vmatprep.subr.bf16.mxu0 0
  %5681 = vmatpush1.bf16.msra.mxu0 %v4582
  %5682 = vmatprep.subr.bf16.mxu0 0
  %5683 = vmatpush1.bf16.msra.mxu0 %v4583
  %5684 = vmatprep.subr.bf16.mxu0 0
  %5685 = vmatpush1.bf16.msra.mxu0 %v4584
  %5686 = vmatprep.subr.bf16.mxu0 0
  %5687 = vmatpush1.bf16.msra.mxu0 %v4585
  %5688 = vmatprep.subr.bf16.mxu0 0
  %5689 = vmatpush1.bf16.msra.mxu0 %v4586
  %5690 = vmatprep.subr.bf16.mxu0 0
  %5691 = vmatpush1.bf16.msra.mxu0 %v4587
  %5692 = vmatprep.subr.bf16.mxu0 0
  %5693 = vmatpush1.bf16.msra.mxu0 %v4588
  %5694 = vmatprep.subr.bf16.mxu0 0
  %5695 = vmatpush1.bf16.msra.mxu0 %v4589
  %5696 = vmatprep.subr.bf16.mxu0 0
  %5697 = vmatpush1.bf16.msra.mxu0 %v4590
  %5698 = vmatprep.subr.bf16.mxu0 0
  %5699 = vmatpush1.bf16.msra.mxu0 %v4591
  %5700 = vmatprep.subr.bf16.mxu0 0
  %5701 = vmatpush1.bf16.msra.mxu0 %v4592
  %5702 = vmatprep.subr.bf16.mxu0 0
  %5703 = vmatpush1.bf16.msra.mxu0 %v4593
  %5704 = vmatprep.subr.bf16.mxu0 0
  %5705 = vmatpush1.bf16.msra.mxu0 %v4594
  %5706 = vmatprep.subr.bf16.mxu0 0
  %5707 = vmatpush1.bf16.msra.mxu0 %v4595
  %5708 = vmatprep.subr.bf16.mxu0 0
  %5709 = vmatpush1.bf16.msra.mxu0 %v4596
  %5710 = vmatprep.mubr.bf16.mxu0 %v2721
  %5711 = vmatmul.mubr.bf16.gmra.mrb[0].mxu0 %v2720
  %v5712 = vpop.f32.mrb[0].mxu0
  %v5713 = vadd.f32 %v5632, %v5712
  %v5714 = vpop.f32.mrb[0].mxu0
  %v5715 = vpop.f32.mrb[0].mxu0
  %v5716 = vadd.f32 %v5635, %v5715
  %v5717 = vpop.f32.mrb[0].mxu0
  %5718 = vmatprep.mubr.bf16.mxu0 %v2753
  %5719 = vmatmul.mubr.bf16.gmra.mrb[0].mxu0 %v2752
  %v5720 = vpop.f32.mrb[0].mxu0
  %v5721 = vadd.f32 %v5640, %v5720
  %v5722 = vpop.f32.mrb[0].mxu0
  %v5723 = vpop.f32.mrb[0].mxu0
  %v5724 = vadd.f32 %v5643, %v5723
  %v5725 = vpop.f32.mrb[0].mxu0
  %5726 = vmatprep.mubr.bf16.mxu0 %v2785
  %5727 = vmatmul.mubr.bf16.gmra.mrb[0].mxu0 %v2784
  %v5728 = vpop.f32.mrb[0].mxu0
  %v5729 = vadd.f32 %v5648, %v5728
  %v5730 = vpop.f32.mrb[0].mxu0
  %v5731 = vpop.f32.mrb[0].mxu0
  %v5732 = vadd.f32 %v5651, %v5731
  %v5733 = vpop.f32.mrb[0].mxu0
  %5734 = vmatprep.mubr.bf16.mxu0 %v2817
  %5735 = vmatmul.mubr.bf16.gmra.mrb[0].mxu0 %v2816
  %v5736 = vpop.f32.mrb[0].mxu0
  %v5737 = vadd.f32 %v5656, %v5736
  %v5738 = vpop.f32.mrb[0].mxu0
  %v5739 = vpop.f32.mrb[0].mxu0
  %v5740 = vadd.f32 %v5659, %v5739
  %v5741 = vpop.f32.mrb[0].mxu0
  %5742 = vmatprep.mubr.bf16.mxu0 %v2849
  %5743 = vmatmul.mubr.bf16.gmra.mrb[0].mxu0 %v2848
  %v5744 = vpop.f32.mrb[0].mxu0
  %v5745 = vadd.f32 %v5664, %v5744
  %v5746 = vpop.f32.mrb[0].mxu0
  %v5747 = vpop.f32.mrb[0].mxu0
  %v5748 = vadd.f32 %v5667, %v5747
  %v5749 = vpop.f32.mrb[0].mxu0
  %5750 = vmatprep.mubr.bf16.mxu0 %v2881
  %5751 = vmatmul.mubr.bf16.gmra.mrb[0].mxu0 %v2880
  %v5752 = vpop.f32.mrb[0].mxu0
  %v5753 = vadd.f32 %v5672, %v5752
  %v5754 = vpop.f32.mrb[0].mxu0
  %v5755 = vpop.f32.mrb[0].mxu0
  %v5756 = vadd.f32 %v5675, %v5755
  %v5757 = vpop.f32.mrb[0].mxu0
  %5758 = vdwg.mxu0
  %5759 = vmatprep.subr.bf16.mxu0 0
  %5760 = vmatpush1.bf16.msra.mxu0 %v4597
  %5761 = vmatprep.subr.bf16.mxu0 0
  %5762 = vmatpush1.bf16.msra.mxu0 %v4598
  %5763 = vmatprep.subr.bf16.mxu0 0
  %5764 = vmatpush1.bf16.msra.mxu0 %v4599
  %5765 = vmatprep.subr.bf16.mxu0 0
  %5766 = vmatpush1.bf16.msra.mxu0 %v4600
  %5767 = vmatprep.subr.bf16.mxu0 0
  %5768 = vmatpush1.bf16.msra.mxu0 %v4601
  %5769 = vmatprep.subr.bf16.mxu0 0
  %5770 = vmatpush1.bf16.msra.mxu0 %v4602
  %5771 = vmatprep.subr.bf16.mxu0 0
  %5772 = vmatpush1.bf16.msra.mxu0 %v4603
  %5773 = vmatprep.subr.bf16.mxu0 0
  %5774 = vmatpush1.bf16.msra.mxu0 %v4604
  %5775 = vmatprep.subr.bf16.mxu0 0
  %5776 = vmatpush1.bf16.msra.mxu0 %v4605
  %5777 = vmatprep.subr.bf16.mxu0 0
  %5778 = vmatpush1.bf16.msra.mxu0 %v4606
  %5779 = vmatprep.subr.bf16.mxu0 0
  %5780 = vmatpush1.bf16.msra.mxu0 %v4607
  %5781 = vmatprep.subr.bf16.mxu0 0
  %5782 = vmatpush1.bf16.msra.mxu0 %v4608
  %5783 = vmatprep.subr.bf16.mxu0 0
  %5784 = vmatpush1.bf16.msra.mxu0 %v4609
  %5785 = vmatprep.subr.bf16.mxu0 0
  %5786 = vmatpush1.bf16.msra.mxu0 %v4610
  %5787 = vmatprep.subr.bf16.mxu0 0
  %5788 = vmatpush1.bf16.msra.mxu0 %v4611
  %5789 = vmatprep.subr.bf16.mxu0 0
  %5790 = vmatpush1.bf16.msra.mxu0 %v4612
  %5791 = vmatprep.mubr.bf16.mxu0 %v2723
  %5792 = vmatmul.mubr.bf16.gmra.mrb[0].mxu0 %v2722
  %v5793 = vpop.f32.mrb[0].mxu0
  %v5794 = vadd.f32 %v5713, %v5793
  %v5795 = vpop.f32.mrb[0].mxu0
  %v5796 = vpop.f32.mrb[0].mxu0
  %v5797 = vadd.f32 %v5716, %v5796
  %v5798 = vpop.f32.mrb[0].mxu0
  %5799 = vmatprep.mubr.bf16.mxu0 %v2755
  %5800 = vmatmul.mubr.bf16.gmra.mrb[0].mxu0 %v2754
  %v5801 = vpop.f32.mrb[0].mxu0
  %v5802 = vadd.f32 %v5721, %v5801
  %v5803 = vpop.f32.mrb[0].mxu0
  %v5804 = vpop.f32.mrb[0].mxu0
  %v5805 = vadd.f32 %v5724, %v5804
  %v5806 = vpop.f32.mrb[0].mxu0
  %5807 = vmatprep.mubr.bf16.mxu0 %v2787
  %5808 = vmatmul.mubr.bf16.gmra.mrb[0].mxu0 %v2786
  %v5809 = vpop.f32.mrb[0].mxu0
  %v5810 = vadd.f32 %v5729, %v5809
  %v5811 = vpop.f32.mrb[0].mxu0
  %v5812 = vpop.f32.mrb[0].mxu0
  %v5813 = vadd.f32 %v5732, %v5812
  %v5814 = vpop.f32.mrb[0].mxu0
  %5815 = vmatprep.mubr.bf16.mxu0 %v2819
  %5816 = vmatmul.mubr.bf16.gmra.mrb[0].mxu0 %v2818
  %v5817 = vpop.f32.mrb[0].mxu0
  %v5818 = vadd.f32 %v5737, %v5817
  %v5819 = vpop.f32.mrb[0].mxu0
  %v5820 = vpop.f32.mrb[0].mxu0
  %v5821 = vadd.f32 %v5740, %v5820
  %v5822 = vpop.f32.mrb[0].mxu0
  %5823 = vmatprep.mubr.bf16.mxu0 %v2851
  %5824 = vmatmul.mubr.bf16.gmra.mrb[0].mxu0 %v2850
  %v5825 = vpop.f32.mrb[0].mxu0
  %v5826 = vadd.f32 %v5745, %v5825
  %v5827 = vpop.f32.mrb[0].mxu0
  %v5828 = vpop.f32.mrb[0].mxu0
  %v5829 = vadd.f32 %v5748, %v5828
  %v5830 = vpop.f32.mrb[0].mxu0
  %5831 = vmatprep.mubr.bf16.mxu0 %v2883
  %5832 = vmatmul.mubr.bf16.gmra.mrb[0].mxu0 %v2882
  %v5833 = vpop.f32.mrb[0].mxu0
  %v5834 = vadd.f32 %v5753, %v5833
  %v5835 = vpop.f32.mrb[0].mxu0
  %v5836 = vpop.f32.mrb[0].mxu0
  %v5837 = vadd.f32 %v5756, %v5836
  %v5838 = vpop.f32.mrb[0].mxu0
  %5839 = vdwg.mxu0
  %5840 = vmatprep.subr.bf16.mxu0 0
  %5841 = vmatpush1.bf16.msra.mxu0 %v4613
  %5842 = vmatprep.subr.bf16.mxu0 0
  %5843 = vmatpush1.bf16.msra.mxu0 %v4614
  %5844 = vmatprep.subr.bf16.mxu0 0
  %5845 = vmatpush1.bf16.msra.mxu0 %v4615
  %5846 = vmatprep.subr.bf16.mxu0 0
  %5847 = vmatpush1.bf16.msra.mxu0 %v4616
  %5848 = vmatprep.subr.bf16.mxu0 0
  %5849 = vmatpush1.bf16.msra.mxu0 %v4617
  %5850 = vmatprep.subr.bf16.mxu0 0
  %5851 = vmatpush1.bf16.msra.mxu0 %v4618
  %5852 = vmatprep.subr.bf16.mxu0 0
  %5853 = vmatpush1.bf16.msra.mxu0 %v4619
  %5854 = vmatprep.subr.bf16.mxu0 0
  %5855 = vmatpush1.bf16.msra.mxu0 %v4620
  %5856 = vmatprep.subr.bf16.mxu0 0
  %5857 = vmatpush1.bf16.msra.mxu0 %v4621
  %5858 = vmatprep.subr.bf16.mxu0 0
  %5859 = vmatpush1.bf16.msra.mxu0 %v4622
  %5860 = vmatprep.subr.bf16.mxu0 0
  %5861 = vmatpush1.bf16.msra.mxu0 %v4623
  %5862 = vmatprep.subr.bf16.mxu0 0
  %5863 = vmatpush1.bf16.msra.mxu0 %v4624
  %5864 = vmatprep.subr.bf16.mxu0 0
  %5865 = vmatpush1.bf16.msra.mxu0 %v4625
  %5866 = vmatprep.subr.bf16.mxu0 0
  %5867 = vmatpush1.bf16.msra.mxu0 %v4626
  %5868 = vmatprep.subr.bf16.mxu0 0
  %5869 = vmatpush1.bf16.msra.mxu0 %v4627
  %5870 = vmatprep.subr.bf16.mxu0 0
  %5871 = vmatpush1.bf16.msra.mxu0 %v4628
  %5872 = vmatprep.mubr.bf16.mxu0 %v2725
  %5873 = vmatmul.mubr.bf16.gmra.mrb[0].mxu0 %v2724
  %v5874 = vpop.f32.mrb[0].mxu0
  %v5875 = vadd.f32 %v5794, %v5874
  %v5876 = vpop.f32.mrb[0].mxu0
  %v5877 = vpop.f32.mrb[0].mxu0
  %v5878 = vadd.f32 %v5797, %v5877
  %v5879 = vpop.f32.mrb[0].mxu0
  %5880 = vmatprep.mubr.bf16.mxu0 %v2757
  %5881 = vmatmul.mubr.bf16.gmra.mrb[0].mxu0 %v2756
  %v5882 = vpop.f32.mrb[0].mxu0
  %v5883 = vadd.f32 %v5802, %v5882
  %v5884 = vpop.f32.mrb[0].mxu0
  %v5885 = vpop.f32.mrb[0].mxu0
  %v5886 = vadd.f32 %v5805, %v5885
  %v5887 = vpop.f32.mrb[0].mxu0
  %5888 = vmatprep.mubr.bf16.mxu0 %v2789
  %5889 = vmatmul.mubr.bf16.gmra.mrb[0].mxu0 %v2788
  %v5890 = vpop.f32.mrb[0].mxu0
  %v5891 = vadd.f32 %v5810, %v5890
  %v5892 = vpop.f32.mrb[0].mxu0
  %v5893 = vpop.f32.mrb[0].mxu0
  %v5894 = vadd.f32 %v5813, %v5893
  %v5895 = vpop.f32.mrb[0].mxu0
  %5896 = vmatprep.mubr.bf16.mxu0 %v2821
  %5897 = vmatmul.mubr.bf16.gmra.mrb[0].mxu0 %v2820
  %v5898 = vpop.f32.mrb[0].mxu0
  %v5899 = vadd.f32 %v5818, %v5898
  %v5900 = vpop.f32.mrb[0].mxu0
  %v5901 = vpop.f32.mrb[0].mxu0
  %v5902 = vadd.f32 %v5821, %v5901
  %v5903 = vpop.f32.mrb[0].mxu0
  %5904 = vmatprep.mubr.bf16.mxu0 %v2853
  %5905 = vmatmul.mubr.bf16.gmra.mrb[0].mxu0 %v2852
  %v5906 = vpop.f32.mrb[0].mxu0
  %v5907 = vadd.f32 %v5826, %v5906
  %v5908 = vpop.f32.mrb[0].mxu0
  %v5909 = vpop.f32.mrb[0].mxu0
  %v5910 = vadd.f32 %v5829, %v5909
  %v5911 = vpop.f32.mrb[0].mxu0
  %5912 = vmatprep.mubr.bf16.mxu0 %v2885
  %5913 = vmatmul.mubr.bf16.gmra.mrb[0].mxu0 %v2884
  %v5914 = vpop.f32.mrb[0].mxu0
  %v5915 = vadd.f32 %v5834, %v5914
  %v5916 = vpop.f32.mrb[0].mxu0
  %v5917 = vpop.f32.mrb[0].mxu0
  %v5918 = vadd.f32 %v5837, %v5917
  %v5919 = vpop.f32.mrb[0].mxu0
  %5920 = vdwg.mxu0
  %5921 = vmatprep.subr.bf16.mxu0 0
  %5922 = vmatpush1.bf16.msra.mxu0 %v4629
  %5923 = vmatprep.subr.bf16.mxu0 0
  %5924 = vmatpush1.bf16.msra.mxu0 %v4630
  %5925 = vmatprep.subr.bf16.mxu0 0
  %5926 = vmatpush1.bf16.msra.mxu0 %v4631
  %5927 = vmatprep.subr.bf16.mxu0 0
  %5928 = vmatpush1.bf16.msra.mxu0 %v4632
  %5929 = vmatprep.subr.bf16.mxu0 0
  %5930 = vmatpush1.bf16.msra.mxu0 %v4633
  %5931 = vmatprep.subr.bf16.mxu0 0
  %5932 = vmatpush1.bf16.msra.mxu0 %v4634
  %5933 = vmatprep.subr.bf16.mxu0 0
  %5934 = vmatpush1.bf16.msra.mxu0 %v4635
  %5935 = vmatprep.subr.bf16.mxu0 0
  %5936 = vmatpush1.bf16.msra.mxu0 %v4636
  %5937 = vmatprep.subr.bf16.mxu0 0
  %5938 = vmatpush1.bf16.msra.mxu0 %v4637
  %5939 = vmatprep.subr.bf16.mxu0 0
  %5940 = vmatpush1.bf16.msra.mxu0 %v4638
  %5941 = vmatprep.subr.bf16.mxu0 0
  %5942 = vmatpush1.bf16.msra.mxu0 %v4639
  %5943 = vmatprep.subr.bf16.mxu0 0
  %5944 = vmatpush1.bf16.msra.mxu0 %v4640
  %5945 = vmatprep.subr.bf16.mxu0 0
  %5946 = vmatpush1.bf16.msra.mxu0 %v4641
  %5947 = vmatprep.subr.bf16.mxu0 0
  %5948 = vmatpush1.bf16.msra.mxu0 %v4642
  %5949 = vmatprep.subr.bf16.mxu0 0
  %5950 = vmatpush1.bf16.msra.mxu0 %v4643
  %5951 = vmatprep.subr.bf16.mxu0 0
  %5952 = vmatpush1.bf16.msra.mxu0 %v4644
  %5953 = vmatprep.mubr.bf16.mxu0 %v2727
  %5954 = vmatmul.mubr.bf16.gmra.mrb[0].mxu0 %v2726
  %v5955 = vpop.f32.mrb[0].mxu0
  %v5956 = vadd.f32 %v5875, %v5955
  %v5957 = vpop.f32.mrb[0].mxu0
  %v5958 = vpop.f32.mrb[0].mxu0
  %v5959 = vadd.f32 %v5878, %v5958
  %v5960 = vpop.f32.mrb[0].mxu0
  %5961 = vmatprep.mubr.bf16.mxu0 %v2759
  %5962 = vmatmul.mubr.bf16.gmra.mrb[0].mxu0 %v2758
  %v5963 = vpop.f32.mrb[0].mxu0
  %v5964 = vadd.f32 %v5883, %v5963
  %v5965 = vpop.f32.mrb[0].mxu0
  %v5966 = vpop.f32.mrb[0].mxu0
  %v5967 = vadd.f32 %v5886, %v5966
  %v5968 = vpop.f32.mrb[0].mxu0
  %5969 = vmatprep.mubr.bf16.mxu0 %v2791
  %5970 = vmatmul.mubr.bf16.gmra.mrb[0].mxu0 %v2790
  %v5971 = vpop.f32.mrb[0].mxu0
  %v5972 = vadd.f32 %v5891, %v5971
  %v5973 = vpop.f32.mrb[0].mxu0
  %v5974 = vpop.f32.mrb[0].mxu0
  %v5975 = vadd.f32 %v5894, %v5974
  %v5976 = vpop.f32.mrb[0].mxu0
  %5977 = vmatprep.mubr.bf16.mxu0 %v2823
  %5978 = vmatmul.mubr.bf16.gmra.mrb[0].mxu0 %v2822
  %v5979 = vpop.f32.mrb[0].mxu0
  %v5980 = vadd.f32 %v5899, %v5979
  %v5981 = vpop.f32.mrb[0].mxu0
  %v5982 = vpop.f32.mrb[0].mxu0
  %v5983 = vadd.f32 %v5902, %v5982
  %v5984 = vpop.f32.mrb[0].mxu0
  %5985 = vmatprep.mubr.bf16.mxu0 %v2855
  %5986 = vmatmul.mubr.bf16.gmra.mrb[0].mxu0 %v2854
  %v5987 = vpop.f32.mrb[0].mxu0
  %v5988 = vadd.f32 %v5907, %v5987
  %v5989 = vpop.f32.mrb[0].mxu0
  %v5990 = vpop.f32.mrb[0].mxu0
  %v5991 = vadd.f32 %v5910, %v5990
  %v5992 = vpop.f32.mrb[0].mxu0
  %5993 = vmatprep.mubr.bf16.mxu0 %v2887
  %5994 = vmatmul.mubr.bf16.gmra.mrb[0].mxu0 %v2886
  %v5995 = vpop.f32.mrb[0].mxu0
  %v5996 = vadd.f32 %v5915, %v5995
  %v5997 = vpop.f32.mrb[0].mxu0
  %v5998 = vpop.f32.mrb[0].mxu0
  %v5999 = vadd.f32 %v5918, %v5998
  %v6000 = vpop.f32.mrb[0].mxu0
  %6001 = vdwg.mxu0
  %6002 = vmatprep.subr.bf16.mxu0 0
  %6003 = vmatpush1.bf16.msra.mxu0 %v4645
  %6004 = vmatprep.subr.bf16.mxu0 0
  %6005 = vmatpush1.bf16.msra.mxu0 %v4646
  %6006 = vmatprep.subr.bf16.mxu0 0
  %6007 = vmatpush1.bf16.msra.mxu0 %v4647
  %6008 = vmatprep.subr.bf16.mxu0 0
  %6009 = vmatpush1.bf16.msra.mxu0 %v4648
  %6010 = vmatprep.subr.bf16.mxu0 0
  %6011 = vmatpush1.bf16.msra.mxu0 %v4649
  %6012 = vmatprep.subr.bf16.mxu0 0
  %6013 = vmatpush1.bf16.msra.mxu0 %v4650
  %6014 = vmatprep.subr.bf16.mxu0 0
  %6015 = vmatpush1.bf16.msra.mxu0 %v4651
  %6016 = vmatprep.subr.bf16.mxu0 0
  %6017 = vmatpush1.bf16.msra.mxu0 %v4652
  %6018 = vmatprep.subr.bf16.mxu0 0
  %6019 = vmatpush1.bf16.msra.mxu0 %v4653
  %6020 = vmatprep.subr.bf16.mxu0 0
  %6021 = vmatpush1.bf16.msra.mxu0 %v4654
  %6022 = vmatprep.subr.bf16.mxu0 0
  %6023 = vmatpush1.bf16.msra.mxu0 %v4655
  %6024 = vmatprep.subr.bf16.mxu0 0
  %6025 = vmatpush1.bf16.msra.mxu0 %v4656
  %6026 = vmatprep.subr.bf16.mxu0 0
  %6027 = vmatpush1.bf16.msra.mxu0 %v4657
  %6028 = vmatprep.subr.bf16.mxu0 0
  %6029 = vmatpush1.bf16.msra.mxu0 %v4658
  %6030 = vmatprep.subr.bf16.mxu0 0
  %6031 = vmatpush1.bf16.msra.mxu0 %v4659
  %6032 = vmatprep.subr.bf16.mxu0 0
  %6033 = vmatpush1.bf16.msra.mxu0 %v4660
  %6034 = vmatprep.mubr.bf16.mxu0 %v2729
  %6035 = vmatmul.mubr.bf16.gmra.mrb[0].mxu0 %v2728
  %v6036 = vpop.f32.mrb[0].mxu0
  %v6037 = vadd.f32 %v5956, %v6036
  %v6038 = vpop.f32.mrb[0].mxu0
  %v6039 = vpop.f32.mrb[0].mxu0
  %v6040 = vadd.f32 %v5959, %v6039
  %v6041 = vpop.f32.mrb[0].mxu0
  %6042 = vmatprep.mubr.bf16.mxu0 %v2761
  %6043 = vmatmul.mubr.bf16.gmra.mrb[0].mxu0 %v2760
  %v6044 = vpop.f32.mrb[0].mxu0
  %v6045 = vadd.f32 %v5964, %v6044
  %v6046 = vpop.f32.mrb[0].mxu0
  %v6047 = vpop.f32.mrb[0].mxu0
  %v6048 = vadd.f32 %v5967, %v6047
  %v6049 = vpop.f32.mrb[0].mxu0
  %6050 = vmatprep.mubr.bf16.mxu0 %v2793
  %6051 = vmatmul.mubr.bf16.gmra.mrb[0].mxu0 %v2792
  %v6052 = vpop.f32.mrb[0].mxu0
  %v6053 = vadd.f32 %v5972, %v6052
  %v6054 = vpop.f32.mrb[0].mxu0
  %v6055 = vpop.f32.mrb[0].mxu0
  %v6056 = vadd.f32 %v5975, %v6055
  %v6057 = vpop.f32.mrb[0].mxu0
  %6058 = vmatprep.mubr.bf16.mxu0 %v2825
  %6059 = vmatmul.mubr.bf16.gmra.mrb[0].mxu0 %v2824
  %v6060 = vpop.f32.mrb[0].mxu0
  %v6061 = vadd.f32 %v5980, %v6060
  %v6062 = vpop.f32.mrb[0].mxu0
  %v6063 = vpop.f32.mrb[0].mxu0
  %v6064 = vadd.f32 %v5983, %v6063
  %v6065 = vpop.f32.mrb[0].mxu0
  %6066 = vmatprep.mubr.bf16.mxu0 %v2857
  %6067 = vmatmul.mubr.bf16.gmra.mrb[0].mxu0 %v2856
  %v6068 = vpop.f32.mrb[0].mxu0
  %v6069 = vadd.f32 %v5988, %v6068
  %v6070 = vpop.f32.mrb[0].mxu0
  %v6071 = vpop.f32.mrb[0].mxu0
  %v6072 = vadd.f32 %v5991, %v6071
  %v6073 = vpop.f32.mrb[0].mxu0
  %6074 = vmatprep.mubr.bf16.mxu0 %v2889
  %6075 = vmatmul.mubr.bf16.gmra.mrb[0].mxu0 %v2888
  %v6076 = vpop.f32.mrb[0].mxu0
  %v6077 = vadd.f32 %v5996, %v6076
  %v6078 = vpop.f32.mrb[0].mxu0
  %v6079 = vpop.f32.mrb[0].mxu0
  %v6080 = vadd.f32 %v5999, %v6079
  %v6081 = vpop.f32.mrb[0].mxu0
  %6082 = vdwg.mxu0
  %6083 = vmatprep.subr.bf16.mxu0 0
  %6084 = vmatpush1.bf16.msra.mxu0 %v4661
  %6085 = vmatprep.subr.bf16.mxu0 0
  %6086 = vmatpush1.bf16.msra.mxu0 %v4662
  %6087 = vmatprep.subr.bf16.mxu0 0
  %6088 = vmatpush1.bf16.msra.mxu0 %v4663
  %6089 = vmatprep.subr.bf16.mxu0 0
  %6090 = vmatpush1.bf16.msra.mxu0 %v4664
  %6091 = vmatprep.subr.bf16.mxu0 0
  %6092 = vmatpush1.bf16.msra.mxu0 %v4665
  %6093 = vmatprep.subr.bf16.mxu0 0
  %6094 = vmatpush1.bf16.msra.mxu0 %v4666
  %6095 = vmatprep.subr.bf16.mxu0 0
  %6096 = vmatpush1.bf16.msra.mxu0 %v4667
  %6097 = vmatprep.subr.bf16.mxu0 0
  %6098 = vmatpush1.bf16.msra.mxu0 %v4668
  %6099 = vmatprep.subr.bf16.mxu0 0
  %6100 = vmatpush1.bf16.msra.mxu0 %v4669
  %6101 = vmatprep.subr.bf16.mxu0 0
  %6102 = vmatpush1.bf16.msra.mxu0 %v4670
  %6103 = vmatprep.subr.bf16.mxu0 0
  %6104 = vmatpush1.bf16.msra.mxu0 %v4671
  %6105 = vmatprep.subr.bf16.mxu0 0
  %6106 = vmatpush1.bf16.msra.mxu0 %v4672
  %6107 = vmatprep.subr.bf16.mxu0 0
  %6108 = vmatpush1.bf16.msra.mxu0 %v4673
  %6109 = vmatprep.subr.bf16.mxu0 0
  %6110 = vmatpush1.bf16.msra.mxu0 %v4674
  %6111 = vmatprep.subr.bf16.mxu0 0
  %6112 = vmatpush1.bf16.msra.mxu0 %v4675
  %6113 = vmatprep.subr.bf16.mxu0 0
  %6114 = vmatpush1.bf16.msra.mxu0 %v4676
  %6115 = vmatprep.mubr.bf16.mxu0 %v2731
  %6116 = vmatmul.mubr.bf16.gmra.mrb[0].mxu0 %v2730
  %v6117 = vpop.f32.mrb[0].mxu0
  %v6118 = vadd.f32 %v6037, %v6117
  %v6119 = vpop.f32.mrb[0].mxu0
  %v6120 = vpop.f32.mrb[0].mxu0
  %v6121 = vadd.f32 %v6040, %v6120
  %v6122 = vpop.f32.mrb[0].mxu0
  %6123 = vmatprep.mubr.bf16.mxu0 %v2763
  %6124 = vmatmul.mubr.bf16.gmra.mrb[0].mxu0 %v2762
  %v6125 = vpop.f32.mrb[0].mxu0
  %v6126 = vadd.f32 %v6045, %v6125
  %v6127 = vpop.f32.mrb[0].mxu0
  %v6128 = vpop.f32.mrb[0].mxu0
  %v6129 = vadd.f32 %v6048, %v6128
  %v6130 = vpop.f32.mrb[0].mxu0
  %6131 = vmatprep.mubr.bf16.mxu0 %v2795
  %6132 = vmatmul.mubr.bf16.gmra.mrb[0].mxu0 %v2794
  %v6133 = vpop.f32.mrb[0].mxu0
  %v6134 = vadd.f32 %v6053, %v6133
  %v6135 = vpop.f32.mrb[0].mxu0
  %v6136 = vpop.f32.mrb[0].mxu0
  %v6137 = vadd.f32 %v6056, %v6136
  %v6138 = vpop.f32.mrb[0].mxu0
  %6139 = vmatprep.mubr.bf16.mxu0 %v2827
  %6140 = vmatmul.mubr.bf16.gmra.mrb[0].mxu0 %v2826
  %v6141 = vpop.f32.mrb[0].mxu0
  %v6142 = vadd.f32 %v6061, %v6141
  %v6143 = vpop.f32.mrb[0].mxu0
  %v6144 = vpop.f32.mrb[0].mxu0
  %v6145 = vadd.f32 %v6064, %v6144
  %v6146 = vpop.f32.mrb[0].mxu0
  %6147 = vmatprep.mubr.bf16.mxu0 %v2859
  %6148 = vmatmul.mubr.bf16.gmra.mrb[0].mxu0 %v2858
  %v6149 = vpop.f32.mrb[0].mxu0
  %v6150 = vadd.f32 %v6069, %v6149
  %v6151 = vpop.f32.mrb[0].mxu0
  %v6152 = vpop.f32.mrb[0].mxu0
  %v6153 = vadd.f32 %v6072, %v6152
  %v6154 = vpop.f32.mrb[0].mxu0
  %6155 = vmatprep.mubr.bf16.mxu0 %v2891
  %6156 = vmatmul.mubr.bf16.gmra.mrb[0].mxu0 %v2890
  %v6157 = vpop.f32.mrb[0].mxu0
  %v6158 = vadd.f32 %v6077, %v6157
  %v6159 = vpop.f32.mrb[0].mxu0
  %v6160 = vpop.f32.mrb[0].mxu0
  %v6161 = vadd.f32 %v6080, %v6160
  %v6162 = vpop.f32.mrb[0].mxu0
  %6163 = vdwg.mxu0
  %6164 = vmatprep.subr.bf16.mxu0 0
  %6165 = vmatpush1.bf16.msra.mxu0 %v4677
  %6166 = vmatprep.subr.bf16.mxu0 0
  %6167 = vmatpush1.bf16.msra.mxu0 %v4678
  %6168 = vmatprep.subr.bf16.mxu0 0
  %6169 = vmatpush1.bf16.msra.mxu0 %v4679
  %6170 = vmatprep.subr.bf16.mxu0 0
  %6171 = vmatpush1.bf16.msra.mxu0 %v4680
  %6172 = vmatprep.subr.bf16.mxu0 0
  %6173 = vmatpush1.bf16.msra.mxu0 %v4681
  %6174 = vmatprep.subr.bf16.mxu0 0
  %6175 = vmatpush1.bf16.msra.mxu0 %v4682
  %6176 = vmatprep.subr.bf16.mxu0 0
  %6177 = vmatpush1.bf16.msra.mxu0 %v4683
  %6178 = vmatprep.subr.bf16.mxu0 0
  %6179 = vmatpush1.bf16.msra.mxu0 %v4684
  %6180 = vmatprep.subr.bf16.mxu0 0
  %6181 = vmatpush1.bf16.msra.mxu0 %v4685
  %6182 = vmatprep.subr.bf16.mxu0 0
  %6183 = vmatpush1.bf16.msra.mxu0 %v4686
  %6184 = vmatprep.subr.bf16.mxu0 0
  %6185 = vmatpush1.bf16.msra.mxu0 %v4687
  %6186 = vmatprep.subr.bf16.mxu0 0
  %6187 = vmatpush1.bf16.msra.mxu0 %v4688
  %6188 = vmatprep.subr.bf16.mxu0 0
  %6189 = vmatpush1.bf16.msra.mxu0 %v4689
  %6190 = vmatprep.subr.bf16.mxu0 0
  %6191 = vmatpush1.bf16.msra.mxu0 %v4690
  %6192 = vmatprep.subr.bf16.mxu0 0
  %6193 = vmatpush1.bf16.msra.mxu0 %v4691
  %6194 = vmatprep.subr.bf16.mxu0 0
  %6195 = vmatpush1.bf16.msra.mxu0 %v4692
  %6196 = vmatprep.mubr.bf16.mxu0 %v2733
  %6197 = vmatmul.mubr.bf16.gmra.mrb[0].mxu0 %v2732
  %v6198 = vpop.f32.mrb[0].mxu0
  %v6199 = vadd.f32 %v6118, %v6198
  %v6200 = vpop.f32.mrb[0].mxu0
  %v6201 = vpop.f32.mrb[0].mxu0
  %v6202 = vadd.f32 %v6121, %v6201
  %v6203 = vpop.f32.mrb[0].mxu0
  %6204 = vmatprep.mubr.bf16.mxu0 %v2765
  %6205 = vmatmul.mubr.bf16.gmra.mrb[0].mxu0 %v2764
  %v6206 = vpop.f32.mrb[0].mxu0
  %v6207 = vadd.f32 %v6126, %v6206
  %v6208 = vpop.f32.mrb[0].mxu0
  %v6209 = vpop.f32.mrb[0].mxu0
  %v6210 = vadd.f32 %v6129, %v6209
  %v6211 = vpop.f32.mrb[0].mxu0
  %6212 = vmatprep.mubr.bf16.mxu0 %v2797
  %6213 = vmatmul.mubr.bf16.gmra.mrb[0].mxu0 %v2796
  %v6214 = vpop.f32.mrb[0].mxu0
  %v6215 = vadd.f32 %v6134, %v6214
  %v6216 = vpop.f32.mrb[0].mxu0
  %v6217 = vpop.f32.mrb[0].mxu0
  %v6218 = vadd.f32 %v6137, %v6217
  %v6219 = vpop.f32.mrb[0].mxu0
  %6220 = vmatprep.mubr.bf16.mxu0 %v2829
  %6221 = vmatmul.mubr.bf16.gmra.mrb[0].mxu0 %v2828
  %v6222 = vpop.f32.mrb[0].mxu0
  %v6223 = vadd.f32 %v6142, %v6222
  %v6224 = vpop.f32.mrb[0].mxu0
  %v6225 = vpop.f32.mrb[0].mxu0
  %v6226 = vadd.f32 %v6145, %v6225
  %v6227 = vpop.f32.mrb[0].mxu0
  %6228 = vmatprep.mubr.bf16.mxu0 %v2861
  %6229 = vmatmul.mubr.bf16.gmra.mrb[0].mxu0 %v2860
  %v6230 = vpop.f32.mrb[0].mxu0
  %v6231 = vadd.f32 %v6150, %v6230
  %v6232 = vpop.f32.mrb[0].mxu0
  %v6233 = vpop.f32.mrb[0].mxu0
  %v6234 = vadd.f32 %v6153, %v6233
  %v6235 = vpop.f32.mrb[0].mxu0
  %6236 = vmatprep.mubr.bf16.mxu0 %v2893
  %6237 = vmatmul.mubr.bf16.gmra.mrb[0].mxu0 %v2892
  %v6238 = vpop.f32.mrb[0].mxu0
  %v6239 = vadd.f32 %v6158, %v6238
  %v6240 = vpop.f32.mrb[0].mxu0
  %v6241 = vpop.f32.mrb[0].mxu0
  %v6242 = vadd.f32 %v6161, %v6241
  %v6243 = vpop.f32.mrb[0].mxu0
  %6244 = vdwg.mxu0
  %v6245 = vpack.c.bf16 %v6202, %v6199
  %v6246 = vpack.c.bf16 %v6210, %v6207
  %v6247 = vpack.c.bf16 %v6218, %v6215
  %v6248 = vpack.c.bf16 %v6226, %v6223
  %v6249 = vpack.c.bf16 %v6234, %v6231
  %v6250 = vpack.c.bf16 %v6242, %v6239
  %v6251 = vld [vmem:[%s5] sm:$0xf]
  %v6252 = vld [vmem:[%s5 + $0x4] sm:$0xf]
  %v6253 = vld [vmem:[%s5 + $0x8] sm:$0xf]
  %v6254 = vld [vmem:[%s5 + $0xc] sm:$0xf]
  %v6255 = vld [vmem:[%s6] sm:$0x1]
  %v6257 = vlaneseq
  %v6258 = vshrl.u32 %v6257, 7
  %v6259 = vsub.s32 0, %v6258
  %v6260 = vrot.slane %v6255, %v6259
  %v6266 = vunpack.c.l.b16 %v6251
  %v6267 = vunpack.c.l.b16 %v6252
  %v6268 = vunpack.c.l.b16 %v6253
  %v6269 = vunpack.c.l.b16 %v6254
  %v6270 = vpack.c.b16 %v6267, %v6266
  %v6271 = vpack.c.b16 %v6269, %v6268
  %vm6274 = vcmask 261120
  %v6276 = vsel %vm6274, %v6245, 0
  %v6279 = vsel %vm6274, %v6246, 0
  %v6282 = vsel %vm6274, %v6247, 0
  %v6285 = vsel %vm6274, %v6248, 0
  %v6288 = vsel %vm6274, %v6249, 0
  %v6291 = vsel %vm6274, %v6250, 0
  %6293 = vmatprep.subr.bf16.mxu0 0
  %6294 = vmatpush1.bf16.msra.mxu0 %v6270
  %6295 = vmatprep.subr.bf16.mxu0 0
  %6296 = vmatpush1.bf16.msra.mxu0 %v6271
  %6297 = vmatprep.subr.bf16.mxu0 0
  %6298 = vmatpush1.bf16.msra.mxu0 0
  %6299 = vmatprep.subr.bf16.mxu0 0
  %6300 = vmatpush1.bf16.msra.mxu0 0
  %6301 = vmatprep.subr.bf16.mxu0 0
  %6302 = vmatpush1.bf16.msra.mxu0 0
  %6303 = vmatprep.subr.bf16.mxu0 0
  %6304 = vmatpush1.bf16.msra.mxu0 0
  %6305 = vmatprep.subr.bf16.mxu0 0
  %6306 = vmatpush1.bf16.msra.mxu0 0
  %6307 = vmatprep.subr.bf16.mxu0 0
  %6308 = vmatpush1.bf16.msra.mxu0 0
  %6309 = vmatprep.subr.bf16.mxu0 0
  %6310 = vmatpush1.bf16.msra.mxu0 0
  %6311 = vmatprep.subr.bf16.mxu0 0
  %6312 = vmatpush1.bf16.msra.mxu0 0
  %6313 = vmatprep.subr.bf16.mxu0 0
  %6314 = vmatpush1.bf16.msra.mxu0 0
  %6315 = vmatprep.subr.bf16.mxu0 0
  %6316 = vmatpush1.bf16.msra.mxu0 0
  %6317 = vmatprep.subr.bf16.mxu0 0
  %6318 = vmatpush1.bf16.msra.mxu0 0
  %6319 = vmatprep.subr.bf16.mxu0 0
  %6320 = vmatpush1.bf16.msra.mxu0 0
  %6321 = vmatprep.subr.bf16.mxu0 0
  %6322 = vmatpush1.bf16.msra.mxu0 0
  %6323 = vmatprep.subr.bf16.mxu0 0
  %6324 = vmatpush1.bf16.msra.mxu0 0
  %6325 = vmatprep.mubr.bf16.mxu0 0
  %6326 = vmatmul.mubr.bf16.gmra.mrb[0].mxu0 %v6276
  %v6327 = vpop.f32.mrb[0].mxu0
  %v6328 = vadd.f32 %v6260, %v6327
  %v6329 = vpop.f32.mrb[0].mxu0
  %v6330 = vpop.f32.mrb[0].mxu0
  %v6331 = vadd.f32 %v6260, %v6330
  %v6332 = vpop.f32.mrb[0].mxu0
  %6333 = vmatprep.mubr.bf16.mxu0 0
  %6334 = vmatmul.mubr.bf16.gmra.mrb[0].mxu0 %v6279
  %v6335 = vpop.f32.mrb[0].mxu0
  %v6336 = vadd.f32 %v6260, %v6335
  %v6337 = vpop.f32.mrb[0].mxu0
  %v6338 = vpop.f32.mrb[0].mxu0
  %v6339 = vadd.f32 %v6260, %v6338
  %v6340 = vpop.f32.mrb[0].mxu0
  %6341 = vmatprep.mubr.bf16.mxu0 0
  %6342 = vmatmul.mubr.bf16.gmra.mrb[0].mxu0 %v6282
  %v6343 = vpop.f32.mrb[0].mxu0
  %v6344 = vadd.f32 %v6260, %v6343
  %v6345 = vpop.f32.mrb[0].mxu0
  %v6346 = vpop.f32.mrb[0].mxu0
  %v6347 = vadd.f32 %v6260, %v6346
  %v6348 = vpop.f32.mrb[0].mxu0
  %6349 = vmatprep.mubr.bf16.mxu0 0
  %6350 = vmatmul.mubr.bf16.gmra.mrb[0].mxu0 %v6285
  %v6351 = vpop.f32.mrb[0].mxu0
  %v6352 = vadd.f32 %v6260, %v6351
  %v6353 = vpop.f32.mrb[0].mxu0
  %v6354 = vpop.f32.mrb[0].mxu0
  %v6355 = vadd.f32 %v6260, %v6354
  %v6356 = vpop.f32.mrb[0].mxu0
  %6357 = vmatprep.mubr.bf16.mxu0 0
  %6358 = vmatmul.mubr.bf16.gmra.mrb[0].mxu0 %v6288
  %v6359 = vpop.f32.mrb[0].mxu0
  %v6360 = vadd.f32 %v6260, %v6359
  %v6361 = vpop.f32.mrb[0].mxu0
  %v6362 = vpop.f32.mrb[0].mxu0
  %v6363 = vadd.f32 %v6260, %v6362
  %v6364 = vpop.f32.mrb[0].mxu0
  %6365 = vmatprep.mubr.bf16.mxu0 0
  %6366 = vmatmul.mubr.bf16.gmra.mrb[0].mxu0 %v6291
  %v6367 = vpop.f32.mrb[0].mxu0
  %v6368 = vadd.f32 %v6260, %v6367
  %v6369 = vpop.f32.mrb[0].mxu0
  %v6370 = vpop.f32.mrb[0].mxu0
  %v6371 = vadd.f32 %v6260, %v6370
  %v6372 = vpop.f32.mrb[0].mxu0
  %6373 = vdwg.mxu0
  %v6374 = vmul.f32 %v6328, 0.25
  %v6375 = vmul.f32 %v6331, 0.25
  %v6376 = vmul.f32 %v6336, 0.25
  %v6377 = vmul.f32 %v6339, 0.25
  %v6378 = vmul.f32 %v6344, 0.25
  %v6379 = vmul.f32 %v6347, 0.25
  %v6380 = vmul.f32 %v6352, 0.25
  %v6381 = vmul.f32 %v6355, 0.25
  %v6382 = vmul.f32 %v6360, 0.25
  %v6383 = vmul.f32 %v6363, 0.25
  %v6384 = vmul.f32 %v6368, 0.25
  %v6385 = vmul.f32 %v6371, 0.25
  %6388 = vrot.lane.b32.xlu0 %v6328, 96
  %v6389 = vpop.permute.xlu0 %6388
  %6390 = vrot.lane.b32.xlu0 %v6331, 96
  %v6391 = vpop.permute.xlu0 %6390
  %vm6392 = vcmask 130048
  %v6394 = vsel %vm6392, %v6374, 0
  %v6397 = vsel %vm6392, %v6375, 0
  %v6399 = vsel %vm6392, %v6389, 0
  %v6401 = vsel %vm6392, %v6391, 0
  %6403 = vmatprep.subr.mxu0 0.0
  %6404 = vmatpush1.xpose.msra.mxu0 %v6399
  %6405 = vmatprep.subr.mxu0 0.0
  %6406 = vmatpush1.xpose.msra.mxu0 %v6401
  %6407 = vmatprep.subr.mxu0 0.0
  %6408 = vmatpush1.xpose.msra.mxu0 0.0
  %6409 = vmatprep.subr.mxu0 0.0
  %6410 = vmatpush1.xpose.msra.mxu0 0.0
  %6411 = vmatprep.subr.mxu0 0.0
  %6412 = vmatpush1.xpose.msra.mxu0 0.0
  %6413 = vmatprep.subr.mxu0 0.0
  %6414 = vmatpush1.xpose.msra.mxu0 0.0
  %6415 = vmatprep.subr.mxu0 0.0
  %6416 = vmatpush1.xpose.msra.mxu0 0.0
  %6417 = vmatprep.subr.mxu0 0.0
  %6418 = vmatpush1.xpose.msra.mxu0 0.0
  %6419 = vmatprep.subr.mxu0 0.0
  %6420 = vmatpush1.xpose.msra.mxu0 0.0
  %6421 = vmatprep.subr.mxu0 0.0
  %6422 = vmatpush1.xpose.msra.mxu0 0.0
  %6423 = vmatprep.subr.mxu0 0.0
  %6424 = vmatpush1.xpose.msra.mxu0 0.0
  %6425 = vmatprep.subr.mxu0 0.0
  %6426 = vmatpush1.xpose.msra.mxu0 0.0
  %6427 = vmatprep.subr.mxu0 0.0
  %6428 = vmatpush1.xpose.msra.mxu0 0.0
  %6429 = vmatprep.subr.mxu0 0.0
  %6430 = vmatpush1.xpose.msra.mxu0 0.0
  %6431 = vmatprep.subr.mxu0 0.0
  %6432 = vmatpush1.xpose.msra.mxu0 0.0
  %6433 = vmatprep.subr.mxu0 0.0
  %6434 = vmatpush1.xpose.msra.mxu0 0.0
  %6435 = vmatprep.subr.mxu0 0.0
  %6436 = vmatpush1.xpose.msra.mxu0 0.0
  %6437 = vmatprep.subr.mxu0 0.0
  %6438 = vmatpush1.xpose.msra.mxu0 0.0
  %6439 = vmatprep.subr.mxu0 0.0
  %6440 = vmatpush1.xpose.msra.mxu0 0.0
  %6441 = vmatprep.subr.mxu0 0.0
  %6442 = vmatpush1.xpose.msra.mxu0 0.0
  %6443 = vmatprep.subr.mxu0 0.0
  %6444 = vmatpush1.xpose.msra.mxu0 0.0
  %6445 = vmatprep.subr.mxu0 0.0
  %6446 = vmatpush1.xpose.msra.mxu0 0.0
  %6447 = vmatprep.subr.mxu0 0.0
  %6448 = vmatpush1.xpose.msra.mxu0 0.0
  %6449 = vmatprep.subr.mxu0 0.0
  %6450 = vmatpush1.xpose.msra.mxu0 0.0
  %6451 = vmatprep.subr.mxu0 0.0
  %6452 = vmatpush1.xpose.msra.mxu0 0.0
  %6453 = vmatprep.subr.mxu0 0.0
  %6454 = vmatpush1.xpose.msra.mxu0 0.0
  %6455 = vmatprep.subr.mxu0 0.0
  %6456 = vmatpush1.xpose.msra.mxu0 0.0
  %6457 = vmatprep.subr.mxu0 0.0
  %6458 = vmatpush1.xpose.msra.mxu0 0.0
  %6459 = vmatprep.subr.mxu0 0.0
  %6460 = vmatpush1.xpose.msra.mxu0 0.0
  %6461 = vmatprep.subr.mxu0 0.0
  %6462 = vmatpush1.xpose.msra.mxu0 0.0
  %6463 = vmatprep.subr.mxu0 0.0
  %6464 = vmatpush1.xpose.msra.mxu0 0.0
  %6465 = vmatprep.subr.mxu0 0.0
  %6466 = vmatpush1.xpose.msra.mxu0 0.0
  %6467 = vmatprep.mubr.f32.mxu0 0.0
  %6468 = vmatmul.mubr.f32.gmra.mrb[0].mxu0 %v6394
  %v6469 = vpop.f32.mrb[0].mxu0
  %v6470 = vadd.f32 0.0, %v6469
  %v6471 = vpop.f32.mrb[0].mxu0
  %6472 = vmatprep.mubr.f32.mxu0 0.0
  %6473 = vmatmul.mubr.f32.gmra.mrb[0].mxu0 %v6397
  %v6474 = vpop.f32.mrb[0].mxu0
  %v6475 = vadd.f32 0.0, %v6474
  %v6476 = vpop.f32.mrb[0].mxu0
  %6477 = vdwg.mxu0
  %v6478 = vsel %vm6392, %v6470, -inf
  %6479 = vmax.xlane.f32.xlu0 %v6478
  %v6480 = vpop.xlane.xlu0 %6479
  %v6481 = vsel %vm6392, %v6475, -inf
  %6482 = vmax.xlane.f32.xlu0 %v6481
  %v6483 = vpop.xlane.xlu0 %6482
  %v6484 = vsub.f32 %v6470, %v6480
  %v6485 = vsub.f32 %v6475, %v6483
  %v6486 = vmul.f32 %v6484, 1.442695
  %v6487 = vpow.pop %v6486
  %v6488 = vmul.f32 %v6485, 1.442695
  %v6489 = vpow.pop %v6488
  %v6490 = vsel %vm6392, %v6487, 0.0
  %6491 = vadd.xlane.f32.xlu0 %v6490
  %v6492 = vpop.xlane.xlu0 %6491
  %v6493 = vsel %vm6392, %v6489, 0.0
  %6494 = vadd.xlane.f32.xlu0 %v6493
  %v6495 = vpop.xlane.xlu0 %6494
  %v6496 = vrcp.pop %v6492
  %v6497 = vrcp.pop %v6495
  %v6498 = vmul.f32 %v6487, %v6496
  %v6499 = vmul.f32 %v6489, %v6497
  %6500 = vrot.lane.b32.xlu0 %v6328, 64
  %v6501 = vpop.permute.xlu0 %6500
  %6502 = vrot.lane.b32.xlu0 %v6331, 64
  %v6503 = vpop.permute.xlu0 %6502
  %v6507 = vsel %vm6392, %v6498, 0
  %v6510 = vsel %vm6392, %v6499, 0
  %6512 = vmatprep.subr.mxu0 0.0
  %6513 = vmatpush1.msra.mxu0 %v6501
  %6514 = vmatprep.subr.mxu0 0.0
  %6515 = vmatpush1.msra.mxu0 %v6503
  %6516 = vmatprep.subr.mxu0 0.0
  %6517 = vmatpush1.msra.mxu0 0.0
  %6518 = vmatprep.subr.mxu0 0.0
  %6519 = vmatpush1.msra.mxu0 0.0
  %6520 = vmatprep.subr.mxu0 0.0
  %6521 = vmatpush1.msra.mxu0 0.0
  %6522 = vmatprep.subr.mxu0 0.0
  %6523 = vmatpush1.msra.mxu0 0.0
  %6524 = vmatprep.subr.mxu0 0.0
  %6525 = vmatpush1.msra.mxu0 0.0
  %6526 = vmatprep.subr.mxu0 0.0
  %6527 = vmatpush1.msra.mxu0 0.0
  %6528 = vmatprep.subr.mxu0 0.0
  %6529 = vmatpush1.msra.mxu0 0.0
  %6530 = vmatprep.subr.mxu0 0.0
  %6531 = vmatpush1.msra.mxu0 0.0
  %6532 = vmatprep.subr.mxu0 0.0
  %6533 = vmatpush1.msra.mxu0 0.0
  %6534 = vmatprep.subr.mxu0 0.0
  %6535 = vmatpush1.msra.mxu0 0.0
  %6536 = vmatprep.subr.mxu0 0.0
  %6537 = vmatpush1.msra.mxu0 0.0
  %6538 = vmatprep.subr.mxu0 0.0
  %6539 = vmatpush1.msra.mxu0 0.0
  %6540 = vmatprep.subr.mxu0 0.0
  %6541 = vmatpush1.msra.mxu0 0.0
  %6542 = vmatprep.subr.mxu0 0.0
  %6543 = vmatpush1.msra.mxu0 0.0
  %6544 = vmatprep.subr.mxu0 0.0
  %6545 = vmatpush1.msra.mxu0 0.0
  %6546 = vmatprep.subr.mxu0 0.0
  %6547 = vmatpush1.msra.mxu0 0.0
  %6548 = vmatprep.subr.mxu0 0.0
  %6549 = vmatpush1.msra.mxu0 0.0
  %6550 = vmatprep.subr.mxu0 0.0
  %6551 = vmatpush1.msra.mxu0 0.0
  %6552 = vmatprep.subr.mxu0 0.0
  %6553 = vmatpush1.msra.mxu0 0.0
  %6554 = vmatprep.subr.mxu0 0.0
  %6555 = vmatpush1.msra.mxu0 0.0
  %6556 = vmatprep.subr.mxu0 0.0
  %6557 = vmatpush1.msra.mxu0 0.0
  %6558 = vmatprep.subr.mxu0 0.0
  %6559 = vmatpush1.msra.mxu0 0.0
  %6560 = vmatprep.subr.mxu0 0.0
  %6561 = vmatpush1.msra.mxu0 0.0
  %6562 = vmatprep.subr.mxu0 0.0
  %6563 = vmatpush1.msra.mxu0 0.0
  %6564 = vmatprep.subr.mxu0 0.0
  %6565 = vmatpush1.msra.mxu0 0.0
  %6566 = vmatprep.subr.mxu0 0.0
  %6567 = vmatpush1.msra.mxu0 0.0
  %6568 = vmatprep.subr.mxu0 0.0
  %6569 = vmatpush1.msra.mxu0 0.0
  %6570 = vmatprep.subr.mxu0 0.0
  %6571 = vmatpush1.msra.mxu0 0.0
  %6572 = vmatprep.subr.mxu0 0.0
  %6573 = vmatpush1.msra.mxu0 0.0
  %6574 = vmatprep.subr.mxu0 0.0
  %6575 = vmatpush1.msra.mxu0 0.0
  %6576 = vmatprep.mubr.f32.mxu0 0.0
  %6577 = vmatmul.mubr.f32.gmra.mrb[0].mxu0 %v6507
  %v6578 = vpop.f32.mrb[0].mxu0
  %v6579 = vadd.f32 0.0, %v6578
  %v6580 = vpop.f32.mrb[0].mxu0
  %6581 = vmatprep.mubr.f32.mxu0 0.0
  %6582 = vmatmul.mubr.f32.gmra.mrb[0].mxu0 %v6510
  %v6583 = vpop.f32.mrb[0].mxu0
  %v6584 = vadd.f32 0.0, %v6583
  %v6585 = vpop.f32.mrb[0].mxu0
  %6586 = vdwg.mxu0
  %6587 = vrot.lane.b32.xlu0 %v6374, 112
  %v6588 = vpop.permute.xlu0 %6587
  %6589 = vrot.lane.b32.xlu0 %v6375, 112
  %v6590 = vpop.permute.xlu0 %6589
  %6591 = vrot.lane.b32.xlu0 %v6328, 80
  %v6592 = vpop.permute.xlu0 %6591
  %6593 = vrot.lane.b32.xlu0 %v6331, 80
  %v6594 = vpop.permute.xlu0 %6593
  %v6595 = vsel %vm6392, %v6588, 0
  %v6597 = vsel %vm6392, %v6590, 0
  %v6599 = vsel %vm6392, %v6592, 0
  %v6601 = vsel %vm6392, %v6594, 0
  %6603 = vmatprep.subr.mxu0 0.0
  %6604 = vmatpush1.xpose.msra.mxu0 %v6599
  %6605 = vmatprep.subr.mxu0 0.0
  %6606 = vmatpush1.xpose.msra.mxu0 %v6601
  %6607 = vmatprep.subr.mxu0 0.0
  %6608 = vmatpush1.xpose.msra.mxu0 0.0
  %6609 = vmatprep.subr.mxu0 0.0
  %6610 = vmatpush1.xpose.msra.mxu0 0.0
  %6611 = vmatprep.subr.mxu0 0.0
  %6612 = vmatpush1.xpose.msra.mxu0 0.0
  %6613 = vmatprep.subr.mxu0 0.0
  %6614 = vmatpush1.xpose.msra.mxu0 0.0
  %6615 = vmatprep.subr.mxu0 0.0
  %6616 = vmatpush1.xpose.msra.mxu0 0.0
  %6617 = vmatprep.subr.mxu0 0.0
  %6618 = vmatpush1.xpose.msra.mxu0 0.0
  %6619 = vmatprep.subr.mxu0 0.0
  %6620 = vmatpush1.xpose.msra.mxu0 0.0
  %6621 = vmatprep.subr.mxu0 0.0
  %6622 = vmatpush1.xpose.msra.mxu0 0.0
  %6623 = vmatprep.subr.mxu0 0.0
  %6624 = vmatpush1.xpose.msra.mxu0 0.0
  %6625 = vmatprep.subr.mxu0 0.0
  %6626 = vmatpush1.xpose.msra.mxu0 0.0
  %6627 = vmatprep.subr.mxu0 0.0
  %6628 = vmatpush1.xpose.msra.mxu0 0.0
  %6629 = vmatprep.subr.mxu0 0.0
  %6630 = vmatpush1.xpose.msra.mxu0 0.0
  %6631 = vmatprep.subr.mxu0 0.0
  %6632 = vmatpush1.xpose.msra.mxu0 0.0
  %6633 = vmatprep.subr.mxu0 0.0
  %6634 = vmatpush1.xpose.msra.mxu0 0.0
  %6635 = vmatprep.subr.mxu0 0.0
  %6636 = vmatpush1.xpose.msra.mxu0 0.0
  %6637 = vmatprep.subr.mxu0 0.0
  %6638 = vmatpush1.xpose.msra.mxu0 0.0
  %6639 = vmatprep.subr.mxu0 0.0
  %6640 = vmatpush1.xpose.msra.mxu0 0.0
  %6641 = vmatprep.subr.mxu0 0.0
  %6642 = vmatpush1.xpose.msra.mxu0 0.0
  %6643 = vmatprep.subr.mxu0 0.0
  %6644 = vmatpush1.xpose.msra.mxu0 0.0
  %6645 = vmatprep.subr.mxu0 0.0
  %6646 = vmatpush1.xpose.msra.mxu0 0.0
  %6647 = vmatprep.subr.mxu0 0.0
  %6648 = vmatpush1.xpose.msra.mxu0 0.0
  %6649 = vmatprep.subr.mxu0 0.0
  %6650 = vmatpush1.xpose.msra.mxu0 0.0
  %6651 = vmatprep.subr.mxu0 0.0
  %6652 = vmatpush1.xpose.msra.mxu0 0.0
  %6653 = vmatprep.subr.mxu0 0.0
  %6654 = vmatpush1.xpose.msra.mxu0 0.0
  %6655 = vmatprep.subr.mxu0 0.0
  %6656 = vmatpush1.xpose.msra.mxu0 0.0
  %6657 = vmatprep.subr.mxu0 0.0
  %6658 = vmatpush1.xpose.msra.mxu0 0.0
  %6659 = vmatprep.subr.mxu0 0.0
  %6660 = vmatpush1.xpose.msra.mxu0 0.0
  %6661 = vmatprep.subr.mxu0 0.0
  %6662 = vmatpush1.xpose.msra.mxu0 0.0
  %6663 = vmatprep.subr.mxu0 0.0
  %6664 = vmatpush1.xpose.msra.mxu0 0.0
  %6665 = vmatprep.subr.mxu0 0.0
  %6666 = vmatpush1.xpose.msra.mxu0 0.0
  %6667 = vmatprep.mubr.f32.mxu0 0.0
  %6668 = vmatmul.mubr.f32.gmra.mrb[0].mxu0 %v6595
  %v6669 = vpop.f32.mrb[0].mxu0
  %v6670 = vadd.f32 0.0, %v6669
  %v6671 = vpop.f32.mrb[0].mxu0
  %6672 = vmatprep.mubr.f32.mxu0 0.0
  %6673 = vmatmul.mubr.f32.gmra.mrb[0].mxu0 %v6597
  %v6674 = vpop.f32.mrb[0].mxu0
  %v6675 = vadd.f32 0.0, %v6674
  %v6676 = vpop.f32.mrb[0].mxu0
  %6677 = vdwg.mxu0
  %v6678 = vsel %vm6392, %v6670, -inf
  %6679 = vmax.xlane.f32.xlu0 %v6678
  %v6680 = vpop.xlane.xlu0 %6679
  %v6681 = vsel %vm6392, %v6675, -inf
  %6682 = vmax.xlane.f32.xlu0 %v6681
  %v6683 = vpop.xlane.xlu0 %6682
  %v6684 = vsub.f32 %v6670, %v6680
  %v6685 = vsub.f32 %v6675, %v6683
  %v6686 = vmul.f32 %v6684, 1.442695
  %v6687 = vpow.pop %v6686
  %v6688 = vmul.f32 %v6685, 1.442695
  %v6689 = vpow.pop %v6688
  %v6690 = vsel %vm6392, %v6687, 0.0
  %6691 = vadd.xlane.f32.xlu0 %v6690
  %v6692 = vpop.xlane.xlu0 %6691
  %v6693 = vsel %vm6392, %v6689, 0.0
  %6694 = vadd.xlane.f32.xlu0 %v6693
  %v6695 = vpop.xlane.xlu0 %6694
  %v6696 = vrcp.pop %v6692
  %v6697 = vrcp.pop %v6695
  %v6698 = vmul.f32 %v6687, %v6696
  %v6699 = vmul.f32 %v6689, %v6697
  %6700 = vrot.lane.b32.xlu0 %v6328, 48
  %v6701 = vpop.permute.xlu0 %6700
  %6702 = vrot.lane.b32.xlu0 %v6331, 48
  %v6703 = vpop.permute.xlu0 %6702
  %v6707 = vsel %vm6392, %v6698, 0
  %v6710 = vsel %vm6392, %v6699, 0
  %6712 = vmatprep.subr.mxu0 0.0
  %6713 = vmatpush1.msra.mxu0 %v6701
  %6714 = vmatprep.subr.mxu0 0.0
  %6715 = vmatpush1.msra.mxu0 %v6703
  %6716 = vmatprep.subr.mxu0 0.0
  %6717 = vmatpush1.msra.mxu0 0.0
  %6718 = vmatprep.subr.mxu0 0.0
  %6719 = vmatpush1.msra.mxu0 0.0
  %6720 = vmatprep.subr.mxu0 0.0
  %6721 = vmatpush1.msra.mxu0 0.0
  %6722 = vmatprep.subr.mxu0 0.0
  %6723 = vmatpush1.msra.mxu0 0.0
  %6724 = vmatprep.subr.mxu0 0.0
  %6725 = vmatpush1.msra.mxu0 0.0
  %6726 = vmatprep.subr.mxu0 0.0
  %6727 = vmatpush1.msra.mxu0 0.0
  %6728 = vmatprep.subr.mxu0 0.0
  %6729 = vmatpush1.msra.mxu0 0.0
  %6730 = vmatprep.subr.mxu0 0.0
  %6731 = vmatpush1.msra.mxu0 0.0
  %6732 = vmatprep.subr.mxu0 0.0
  %6733 = vmatpush1.msra.mxu0 0.0
  %6734 = vmatprep.subr.mxu0 0.0
  %6735 = vmatpush1.msra.mxu0 0.0
  %6736 = vmatprep.subr.mxu0 0.0
  %6737 = vmatpush1.msra.mxu0 0.0
  %6738 = vmatprep.subr.mxu0 0.0
  %6739 = vmatpush1.msra.mxu0 0.0
  %6740 = vmatprep.subr.mxu0 0.0
  %6741 = vmatpush1.msra.mxu0 0.0
  %6742 = vmatprep.subr.mxu0 0.0
  %6743 = vmatpush1.msra.mxu0 0.0
  %6744 = vmatprep.subr.mxu0 0.0
  %6745 = vmatpush1.msra.mxu0 0.0
  %6746 = vmatprep.subr.mxu0 0.0
  %6747 = vmatpush1.msra.mxu0 0.0
  %6748 = vmatprep.subr.mxu0 0.0
  %6749 = vmatpush1.msra.mxu0 0.0
  %6750 = vmatprep.subr.mxu0 0.0
  %6751 = vmatpush1.msra.mxu0 0.0
  %6752 = vmatprep.subr.mxu0 0.0
  %6753 = vmatpush1.msra.mxu0 0.0
  %6754 = vmatprep.subr.mxu0 0.0
  %6755 = vmatpush1.msra.mxu0 0.0
  %6756 = vmatprep.subr.mxu0 0.0
  %6757 = vmatpush1.msra.mxu0 0.0
  %6758 = vmatprep.subr.mxu0 0.0
  %6759 = vmatpush1.msra.mxu0 0.0
  %6760 = vmatprep.subr.mxu0 0.0
  %6761 = vmatpush1.msra.mxu0 0.0
  %6762 = vmatprep.subr.mxu0 0.0
  %6763 = vmatpush1.msra.mxu0 0.0
  %6764 = vmatprep.subr.mxu0 0.0
  %6765 = vmatpush1.msra.mxu0 0.0
  %6766 = vmatprep.subr.mxu0 0.0
  %6767 = vmatpush1.msra.mxu0 0.0
  %6768 = vmatprep.subr.mxu0 0.0
  %6769 = vmatpush1.msra.mxu0 0.0
  %6770 = vmatprep.subr.mxu0 0.0
  %6771 = vmatpush1.msra.mxu0 0.0
  %6772 = vmatprep.subr.mxu0 0.0
  %6773 = vmatpush1.msra.mxu0 0.0
  %6774 = vmatprep.subr.mxu0 0.0
  %6775 = vmatpush1.msra.mxu0 0.0
  %6776 = vmatprep.mubr.f32.mxu0 0.0
  %6777 = vmatmul.mubr.f32.gmra.mrb[0].mxu0 %v6707
  %v6778 = vpop.f32.mrb[0].mxu0
  %v6779 = vadd.f32 0.0, %v6778
  %v6780 = vpop.f32.mrb[0].mxu0
  %6781 = vmatprep.mubr.f32.mxu0 0.0
  %6782 = vmatmul.mubr.f32.gmra.mrb[0].mxu0 %v6710
  %v6783 = vpop.f32.mrb[0].mxu0
  %v6784 = vadd.f32 0.0, %v6783
  %v6785 = vpop.f32.mrb[0].mxu0
  %6786 = vdwg.mxu0
  %6789 = vrot.lane.b32.xlu0 %v6779, 16
  %v6790 = vpop.permute.xlu0 %6789
  %6791 = vrot.lane.b32.xlu0 %v6784, 16
  %v6792 = vpop.permute.xlu0 %6791
  %v6795 = vsel %vm6392, %v6579, %v6790
  %v6796 = vsel %vm6392, %v6584, %v6792
  %6799 = vrot.lane.b32.xlu0 %v6336, 96
  %v6800 = vpop.permute.xlu0 %6799
  %6801 = vrot.lane.b32.xlu0 %v6339, 96
  %v6802 = vpop.permute.xlu0 %6801
  %v6804 = vsel %vm6392, %v6376, 0
  %v6807 = vsel %vm6392, %v6377, 0
  %v6809 = vsel %vm6392, %v6800, 0
  %v6811 = vsel %vm6392, %v6802, 0
  %6813 = vmatprep.subr.mxu0 0.0
  %6814 = vmatpush1.xpose.msra.mxu0 %v6809
  %6815 = vmatprep.subr.mxu0 0.0
  %6816 = vmatpush1.xpose.msra.mxu0 %v6811
  %6817 = vmatprep.subr.mxu0 0.0
  %6818 = vmatpush1.xpose.msra.mxu0 0.0
  %6819 = vmatprep.subr.mxu0 0.0
  %6820 = vmatpush1.xpose.msra.mxu0 0.0
  %6821 = vmatprep.subr.mxu0 0.0
  %6822 = vmatpush1.xpose.msra.mxu0 0.0
  %6823 = vmatprep.subr.mxu0 0.0
  %6824 = vmatpush1.xpose.msra.mxu0 0.0
  %6825 = vmatprep.subr.mxu0 0.0
  %6826 = vmatpush1.xpose.msra.mxu0 0.0
  %6827 = vmatprep.subr.mxu0 0.0
  %6828 = vmatpush1.xpose.msra.mxu0 0.0
  %6829 = vmatprep.subr.mxu0 0.0
  %6830 = vmatpush1.xpose.msra.mxu0 0.0
  %6831 = vmatprep.subr.mxu0 0.0
  %6832 = vmatpush1.xpose.msra.mxu0 0.0
  %6833 = vmatprep.subr.mxu0 0.0
  %6834 = vmatpush1.xpose.msra.mxu0 0.0
  %6835 = vmatprep.subr.mxu0 0.0
  %6836 = vmatpush1.xpose.msra.mxu0 0.0
  %6837 = vmatprep.subr.mxu0 0.0
  %6838 = vmatpush1.xpose.msra.mxu0 0.0
  %6839 = vmatprep.subr.mxu0 0.0
  %6840 = vmatpush1.xpose.msra.mxu0 0.0
  %6841 = vmatprep.subr.mxu0 0.0
  %6842 = vmatpush1.xpose.msra.mxu0 0.0
  %6843 = vmatprep.subr.mxu0 0.0
  %6844 = vmatpush1.xpose.msra.mxu0 0.0
  %6845 = vmatprep.subr.mxu0 0.0
  %6846 = vmatpush1.xpose.msra.mxu0 0.0
  %6847 = vmatprep.subr.mxu0 0.0
  %6848 = vmatpush1.xpose.msra.mxu0 0.0
  %6849 = vmatprep.subr.mxu0 0.0
  %6850 = vmatpush1.xpose.msra.mxu0 0.0
  %6851 = vmatprep.subr.mxu0 0.0
  %6852 = vmatpush1.xpose.msra.mxu0 0.0
  %6853 = vmatprep.subr.mxu0 0.0
  %6854 = vmatpush1.xpose.msra.mxu0 0.0
  %6855 = vmatprep.subr.mxu0 0.0
  %6856 = vmatpush1.xpose.msra.mxu0 0.0
  %6857 = vmatprep.subr.mxu0 0.0
  %6858 = vmatpush1.xpose.msra.mxu0 0.0
  %6859 = vmatprep.subr.mxu0 0.0
  %6860 = vmatpush1.xpose.msra.mxu0 0.0
  %6861 = vmatprep.subr.mxu0 0.0
  %6862 = vmatpush1.xpose.msra.mxu0 0.0
  %6863 = vmatprep.subr.mxu0 0.0
  %6864 = vmatpush1.xpose.msra.mxu0 0.0
  %6865 = vmatprep.subr.mxu0 0.0
  %6866 = vmatpush1.xpose.msra.mxu0 0.0
  %6867 = vmatprep.subr.mxu0 0.0
  %6868 = vmatpush1.xpose.msra.mxu0 0.0
  %6869 = vmatprep.subr.mxu0 0.0
  %6870 = vmatpush1.xpose.msra.mxu0 0.0
  %6871 = vmatprep.subr.mxu0 0.0
  %6872 = vmatpush1.xpose.msra.mxu0 0.0
  %6873 = vmatprep.subr.mxu0 0.0
  %6874 = vmatpush1.xpose.msra.mxu0 0.0
  %6875 = vmatprep.subr.mxu0 0.0
  %6876 = vmatpush1.xpose.msra.mxu0 0.0
  %6877 = vmatprep.mubr.f32.mxu0 0.0
  %6878 = vmatmul.mubr.f32.gmra.mrb[0].mxu0 %v6804
  %v6879 = vpop.f32.mrb[0].mxu0
  %v6880 = vadd.f32 0.0, %v6879
  %v6881 = vpop.f32.mrb[0].mxu0
  %6882 = vmatprep.mubr.f32.mxu0 0.0
  %6883 = vmatmul.mubr.f32.gmra.mrb[0].mxu0 %v6807
  %v6884 = vpop.f32.mrb[0].mxu0
  %v6885 = vadd.f32 0.0, %v6884
  %v6886 = vpop.f32.mrb[0].mxu0
  %6887 = vdwg.mxu0
  %v6888 = vsel %vm6392, %v6880, -inf
  %6889 = vmax.xlane.f32.xlu0 %v6888
  %v6890 = vpop.xlane.xlu0 %6889
  %v6891 = vsel %vm6392, %v6885, -inf
  %6892 = vmax.xlane.f32.xlu0 %v6891
  %v6893 = vpop.xlane.xlu0 %6892
  %v6894 = vsub.f32 %v6880, %v6890
  %v6895 = vsub.f32 %v6885, %v6893
  %v6896 = vmul.f32 %v6894, 1.442695
  %v6897 = vpow.pop %v6896
  %v6898 = vmul.f32 %v6895, 1.442695
  %v6899 = vpow.pop %v6898
  %v6900 = vsel %vm6392, %v6897, 0.0
  %6901 = vadd.xlane.f32.xlu0 %v6900
  %v6902 = vpop.xlane.xlu0 %6901
  %v6903 = vsel %vm6392, %v6899, 0.0
  %6904 = vadd.xlane.f32.xlu0 %v6903
  %v6905 = vpop.xlane.xlu0 %6904
  %v6906 = vrcp.pop %v6902
  %v6907 = vrcp.pop %v6905
  %v6908 = vmul.f32 %v6897, %v6906
  %v6909 = vmul.f32 %v6899, %v6907
  %6910 = vrot.lane.b32.xlu0 %v6336, 64
  %v6911 = vpop.permute.xlu0 %6910
  %6912 = vrot.lane.b32.xlu0 %v6339, 64
  %v6913 = vpop.permute.xlu0 %6912
  %v6917 = vsel %vm6392, %v6908, 0
  %v6920 = vsel %vm6392, %v6909, 0
  %6922 = vmatprep.subr.mxu0 0.0
  %6923 = vmatpush1.msra.mxu0 %v6911
  %6924 = vmatprep.subr.mxu0 0.0
  %6925 = vmatpush1.msra.mxu0 %v6913
  %6926 = vmatprep.subr.mxu0 0.0
  %6927 = vmatpush1.msra.mxu0 0.0
  %6928 = vmatprep.subr.mxu0 0.0
  %6929 = vmatpush1.msra.mxu0 0.0
  %6930 = vmatprep.subr.mxu0 0.0
  %6931 = vmatpush1.msra.mxu0 0.0
  %6932 = vmatprep.subr.mxu0 0.0
  %6933 = vmatpush1.msra.mxu0 0.0
  %6934 = vmatprep.subr.mxu0 0.0
  %6935 = vmatpush1.msra.mxu0 0.0
  %6936 = vmatprep.subr.mxu0 0.0
  %6937 = vmatpush1.msra.mxu0 0.0
  %6938 = vmatprep.subr.mxu0 0.0
  %6939 = vmatpush1.msra.mxu0 0.0
  %6940 = vmatprep.subr.mxu0 0.0
  %6941 = vmatpush1.msra.mxu0 0.0
  %6942 = vmatprep.subr.mxu0 0.0
  %6943 = vmatpush1.msra.mxu0 0.0
  %6944 = vmatprep.subr.mxu0 0.0
  %6945 = vmatpush1.msra.mxu0 0.0
  %6946 = vmatprep.subr.mxu0 0.0
  %6947 = vmatpush1.msra.mxu0 0.0
  %6948 = vmatprep.subr.mxu0 0.0
  %6949 = vmatpush1.msra.mxu0 0.0
  %6950 = vmatprep.subr.mxu0 0.0
  %6951 = vmatpush1.msra.mxu0 0.0
  %6952 = vmatprep.subr.mxu0 0.0
  %6953 = vmatpush1.msra.mxu0 0.0
  %6954 = vmatprep.subr.mxu0 0.0
  %6955 = vmatpush1.msra.mxu0 0.0
  %6956 = vmatprep.subr.mxu0 0.0
  %6957 = vmatpush1.msra.mxu0 0.0
  %6958 = vmatprep.subr.mxu0 0.0
  %6959 = vmatpush1.msra.mxu0 0.0
  %6960 = vmatprep.subr.mxu0 0.0
  %6961 = vmatpush1.msra.mxu0 0.0
  %6962 = vmatprep.subr.mxu0 0.0
  %6963 = vmatpush1.msra.mxu0 0.0
  %6964 = vmatprep.subr.mxu0 0.0
  %6965 = vmatpush1.msra.mxu0 0.0
  %6966 = vmatprep.subr.mxu0 0.0
  %6967 = vmatpush1.msra.mxu0 0.0
  %6968 = vmatprep.subr.mxu0 0.0
  %6969 = vmatpush1.msra.mxu0 0.0
  %6970 = vmatprep.subr.mxu0 0.0
  %6971 = vmatpush1.msra.mxu0 0.0
  %6972 = vmatprep.subr.mxu0 0.0
  %6973 = vmatpush1.msra.mxu0 0.0
  %6974 = vmatprep.subr.mxu0 0.0
  %6975 = vmatpush1.msra.mxu0 0.0
  %6976 = vmatprep.subr.mxu0 0.0
  %6977 = vmatpush1.msra.mxu0 0.0
  %6978 = vmatprep.subr.mxu0 0.0
  %6979 = vmatpush1.msra.mxu0 0.0
  %6980 = vmatprep.subr.mxu0 0.0
  %6981 = vmatpush1.msra.mxu0 0.0
  %6982 = vmatprep.subr.mxu0 0.0
  %6983 = vmatpush1.msra.mxu0 0.0
  %6984 = vmatprep.subr.mxu0 0.0
  %6985 = vmatpush1.msra.mxu0 0.0
  %6986 = vmatprep.mubr.f32.mxu0 0.0
  %6987 = vmatmul.mubr.f32.gmra.mrb[0].mxu0 %v6917
  %v6988 = vpop.f32.mrb[0].mxu0
  %v6989 = vadd.f32 0.0, %v6988
  %v6990 = vpop.f32.mrb[0].mxu0
  %6991 = vmatprep.mubr.f32.mxu0 0.0
  %6992 = vmatmul.mubr.f32.gmra.mrb[0].mxu0 %v6920
  %v6993 = vpop.f32.mrb[0].mxu0
  %v6994 = vadd.f32 0.0, %v6993
  %v6995 = vpop.f32.mrb[0].mxu0
  %6996 = vdwg.mxu0
  %6997 = vrot.lane.b32.xlu0 %v6376, 112
  %v6998 = vpop.permute.xlu0 %6997
  %6999 = vrot.lane.b32.xlu0 %v6377, 112
  %v7000 = vpop.permute.xlu0 %6999
  %7001 = vrot.lane.b32.xlu0 %v6336, 80
  %v7002 = vpop.permute.xlu0 %7001
  %7003 = vrot.lane.b32.xlu0 %v6339, 80
  %v7004 = vpop.permute.xlu0 %7003
  %v7005 = vsel %vm6392, %v6998, 0
  %v7007 = vsel %vm6392, %v7000, 0
  %v7009 = vsel %vm6392, %v7002, 0
  %v7011 = vsel %vm6392, %v7004, 0
  %7013 = vmatprep.subr.mxu0 0.0
  %7014 = vmatpush1.xpose.msra.mxu0 %v7009
  %7015 = vmatprep.subr.mxu0 0.0
  %7016 = vmatpush1.xpose.msra.mxu0 %v7011
  %7017 = vmatprep.subr.mxu0 0.0
  %7018 = vmatpush1.xpose.msra.mxu0 0.0
  %7019 = vmatprep.subr.mxu0 0.0
  %7020 = vmatpush1.xpose.msra.mxu0 0.0
  %7021 = vmatprep.subr.mxu0 0.0
  %7022 = vmatpush1.xpose.msra.mxu0 0.0
  %7023 = vmatprep.subr.mxu0 0.0
  %7024 = vmatpush1.xpose.msra.mxu0 0.0
  %7025 = vmatprep.subr.mxu0 0.0
  %7026 = vmatpush1.xpose.msra.mxu0 0.0
  %7027 = vmatprep.subr.mxu0 0.0
  %7028 = vmatpush1.xpose.msra.mxu0 0.0
  %7029 = vmatprep.subr.mxu0 0.0
  %7030 = vmatpush1.xpose.msra.mxu0 0.0
  %7031 = vmatprep.subr.mxu0 0.0
  %7032 = vmatpush1.xpose.msra.mxu0 0.0
  %7033 = vmatprep.subr.mxu0 0.0
  %7034 = vmatpush1.xpose.msra.mxu0 0.0
  %7035 = vmatprep.subr.mxu0 0.0
  %7036 = vmatpush1.xpose.msra.mxu0 0.0
  %7037 = vmatprep.subr.mxu0 0.0
  %7038 = vmatpush1.xpose.msra.mxu0 0.0
  %7039 = vmatprep.subr.mxu0 0.0
  %7040 = vmatpush1.xpose.msra.mxu0 0.0
  %7041 = vmatprep.subr.mxu0 0.0
  %7042 = vmatpush1.xpose.msra.mxu0 0.0
  %7043 = vmatprep.subr.mxu0 0.0
  %7044 = vmatpush1.xpose.msra.mxu0 0.0
  %7045 = vmatprep.subr.mxu0 0.0
  %7046 = vmatpush1.xpose.msra.mxu0 0.0
  %7047 = vmatprep.subr.mxu0 0.0
  %7048 = vmatpush1.xpose.msra.mxu0 0.0
  %7049 = vmatprep.subr.mxu0 0.0
  %7050 = vmatpush1.xpose.msra.mxu0 0.0
  %7051 = vmatprep.subr.mxu0 0.0
  %7052 = vmatpush1.xpose.msra.mxu0 0.0
  %7053 = vmatprep.subr.mxu0 0.0
  %7054 = vmatpush1.xpose.msra.mxu0 0.0
  %7055 = vmatprep.subr.mxu0 0.0
  %7056 = vmatpush1.xpose.msra.mxu0 0.0
  %7057 = vmatprep.subr.mxu0 0.0
  %7058 = vmatpush1.xpose.msra.mxu0 0.0
  %7059 = vmatprep.subr.mxu0 0.0
  %7060 = vmatpush1.xpose.msra.mxu0 0.0
  %7061 = vmatprep.subr.mxu0 0.0
  %7062 = vmatpush1.xpose.msra.mxu0 0.0
  %7063 = vmatprep.subr.mxu0 0.0
  %7064 = vmatpush1.xpose.msra.mxu0 0.0
  %7065 = vmatprep.subr.mxu0 0.0
  %7066 = vmatpush1.xpose.msra.mxu0 0.0
  %7067 = vmatprep.subr.mxu0 0.0
  %7068 = vmatpush1.xpose.msra.mxu0 0.0
  %7069 = vmatprep.subr.mxu0 0.0
  %7070 = vmatpush1.xpose.msra.mxu0 0.0
  %7071 = vmatprep.subr.mxu0 0.0
  %7072 = vmatpush1.xpose.msra.mxu0 0.0
  %7073 = vmatprep.subr.mxu0 0.0
  %7074 = vmatpush1.xpose.msra.mxu0 0.0
  %7075 = vmatprep.subr.mxu0 0.0
  %7076 = vmatpush1.xpose.msra.mxu0 0.0
  %7077 = vmatprep.mubr.f32.mxu0 0.0
  %7078 = vmatmul.mubr.f32.gmra.mrb[0].mxu0 %v7005
  %v7079 = vpop.f32.mrb[0].mxu0
  %v7080 = vadd.f32 0.0, %v7079
  %v7081 = vpop.f32.mrb[0].mxu0
  %7082 = vmatprep.mubr.f32.mxu0 0.0
  %7083 = vmatmul.mubr.f32.gmra.mrb[0].mxu0 %v7007
  %v7084 = vpop.f32.mrb[0].mxu0
  %v7085 = vadd.f32 0.0, %v7084
  %v7086 = vpop.f32.mrb[0].mxu0
  %7087 = vdwg.mxu0
  %v7088 = vsel %vm6392, %v7080, -inf
  %7089 = vmax.xlane.f32.xlu0 %v7088
  %v7090 = vpop.xlane.xlu0 %7089
  %v7091 = vsel %vm6392, %v7085, -inf
  %7092 = vmax.xlane.f32.xlu0 %v7091
  %v7093 = vpop.xlane.xlu0 %7092
  %v7094 = vsub.f32 %v7080, %v7090
  %v7095 = vsub.f32 %v7085, %v7093
  %v7096 = vmul.f32 %v7094, 1.442695
  %v7097 = vpow.pop %v7096
  %v7098 = vmul.f32 %v7095, 1.442695
  %v7099 = vpow.pop %v7098
  %v7100 = vsel %vm6392, %v7097, 0.0
  %7101 = vadd.xlane.f32.xlu0 %v7100
  %v7102 = vpop.xlane.xlu0 %7101
  %v7103 = vsel %vm6392, %v7099, 0.0
  %7104 = vadd.xlane.f32.xlu0 %v7103
  %v7105 = vpop.xlane.xlu0 %7104
  %v7106 = vrcp.pop %v7102
  %v7107 = vrcp.pop %v7105
  %v7108 = vmul.f32 %v7097, %v7106
  %v7109 = vmul.f32 %v7099, %v7107
  %7110 = vrot.lane.b32.xlu0 %v6336, 48
  %v7111 = vpop.permute.xlu0 %7110
  %7112 = vrot.lane.b32.xlu0 %v6339, 48
  %v7113 = vpop.permute.xlu0 %7112
  %v7117 = vsel %vm6392, %v7108, 0
  %v7120 = vsel %vm6392, %v7109, 0
  %7122 = vmatprep.subr.mxu0 0.0
  %7123 = vmatpush1.msra.mxu0 %v7111
  %7124 = vmatprep.subr.mxu0 0.0
  %7125 = vmatpush1.msra.mxu0 %v7113
  %7126 = vmatprep.subr.mxu0 0.0
  %7127 = vmatpush1.msra.mxu0 0.0
  %7128 = vmatprep.subr.mxu0 0.0
  %7129 = vmatpush1.msra.mxu0 0.0
  %7130 = vmatprep.subr.mxu0 0.0
  %7131 = vmatpush1.msra.mxu0 0.0
  %7132 = vmatprep.subr.mxu0 0.0
  %7133 = vmatpush1.msra.mxu0 0.0
  %7134 = vmatprep.subr.mxu0 0.0
  %7135 = vmatpush1.msra.mxu0 0.0
  %7136 = vmatprep.subr.mxu0 0.0
  %7137 = vmatpush1.msra.mxu0 0.0
  %7138 = vmatprep.subr.mxu0 0.0
  %7139 = vmatpush1.msra.mxu0 0.0
  %7140 = vmatprep.subr.mxu0 0.0
  %7141 = vmatpush1.msra.mxu0 0.0
  %7142 = vmatprep.subr.mxu0 0.0
  %7143 = vmatpush1.msra.mxu0 0.0
  %7144 = vmatprep.subr.mxu0 0.0
  %7145 = vmatpush1.msra.mxu0 0.0
  %7146 = vmatprep.subr.mxu0 0.0
  %7147 = vmatpush1.msra.mxu0 0.0
  %7148 = vmatprep.subr.mxu0 0.0
  %7149 = vmatpush1.msra.mxu0 0.0
  %7150 = vmatprep.subr.mxu0 0.0
  %7151 = vmatpush1.msra.mxu0 0.0
  %7152 = vmatprep.subr.mxu0 0.0
  %7153 = vmatpush1.msra.mxu0 0.0
  %7154 = vmatprep.subr.mxu0 0.0
  %7155 = vmatpush1.msra.mxu0 0.0
  %7156 = vmatprep.subr.mxu0 0.0
  %7157 = vmatpush1.msra.mxu0 0.0
  %7158 = vmatprep.subr.mxu0 0.0
  %7159 = vmatpush1.msra.mxu0 0.0
  %7160 = vmatprep.subr.mxu0 0.0
  %7161 = vmatpush1.msra.mxu0 0.0
  %7162 = vmatprep.subr.mxu0 0.0
  %7163 = vmatpush1.msra.mxu0 0.0
  %7164 = vmatprep.subr.mxu0 0.0
  %7165 = vmatpush1.msra.mxu0 0.0
  %7166 = vmatprep.subr.mxu0 0.0
  %7167 = vmatpush1.msra.mxu0 0.0
  %7168 = vmatprep.subr.mxu0 0.0
  %7169 = vmatpush1.msra.mxu0 0.0
  %7170 = vmatprep.subr.mxu0 0.0
  %7171 = vmatpush1.msra.mxu0 0.0
  %7172 = vmatprep.subr.mxu0 0.0
  %7173 = vmatpush1.msra.mxu0 0.0
  %7174 = vmatprep.subr.mxu0 0.0
  %7175 = vmatpush1.msra.mxu0 0.0
  %7176 = vmatprep.subr.mxu0 0.0
  %7177 = vmatpush1.msra.mxu0 0.0
  %7178 = vmatprep.subr.mxu0 0.0
  %7179 = vmatpush1.msra.mxu0 0.0
  %7180 = vmatprep.subr.mxu0 0.0
  %7181 = vmatpush1.msra.mxu0 0.0
  %7182 = vmatprep.subr.mxu0 0.0
  %7183 = vmatpush1.msra.mxu0 0.0
  %7184 = vmatprep.subr.mxu0 0.0
  %7185 = vmatpush1.msra.mxu0 0.0
  %7186 = vmatprep.mubr.f32.mxu0 0.0
  %7187 = vmatmul.mubr.f32.gmra.mrb[0].mxu0 %v7117
  %v7188 = vpop.f32.mrb[0].mxu0
  %v7189 = vadd.f32 0.0, %v7188
  %v7190 = vpop.f32.mrb[0].mxu0
  %7191 = vmatprep.mubr.f32.mxu0 0.0
  %7192 = vmatmul.mubr.f32.gmra.mrb[0].mxu0 %v7120
  %v7193 = vpop.f32.mrb[0].mxu0
  %v7194 = vadd.f32 0.0, %v7193
  %v7195 = vpop.f32.mrb[0].mxu0
  %7196 = vdwg.mxu0
  %7199 = vrot.lane.b32.xlu0 %v7189, 16
  %v7200 = vpop.permute.xlu0 %7199
  %7201 = vrot.lane.b32.xlu0 %v7194, 16
  %v7202 = vpop.permute.xlu0 %7201
  %v7205 = vsel %vm6392, %v6989, %v7200
  %v7206 = vsel %vm6392, %v6994, %v7202
  %7209 = vrot.lane.b32.xlu0 %v6344, 96
  %v7210 = vpop.permute.xlu0 %7209
  %7211 = vrot.lane.b32.xlu0 %v6347, 96
  %v7212 = vpop.permute.xlu0 %7211
  %v7214 = vsel %vm6392, %v6378, 0
  %v7217 = vsel %vm6392, %v6379, 0
  %v7219 = vsel %vm6392, %v7210, 0
  %v7221 = vsel %vm6392, %v7212, 0
  %7223 = vmatprep.subr.mxu0 0.0
  %7224 = vmatpush1.xpose.msra.mxu0 %v7219
  %7225 = vmatprep.subr.mxu0 0.0
  %7226 = vmatpush1.xpose.msra.mxu0 %v7221
  %7227 = vmatprep.subr.mxu0 0.0
  %7228 = vmatpush1.xpose.msra.mxu0 0.0
  %7229 = vmatprep.subr.mxu0 0.0
  %7230 = vmatpush1.xpose.msra.mxu0 0.0
  %7231 = vmatprep.subr.mxu0 0.0
  %7232 = vmatpush1.xpose.msra.mxu0 0.0
  %7233 = vmatprep.subr.mxu0 0.0
  %7234 = vmatpush1.xpose.msra.mxu0 0.0
  %7235 = vmatprep.subr.mxu0 0.0
  %7236 = vmatpush1.xpose.msra.mxu0 0.0
  %7237 = vmatprep.subr.mxu0 0.0
  %7238 = vmatpush1.xpose.msra.mxu0 0.0
  %7239 = vmatprep.subr.mxu0 0.0
  %7240 = vmatpush1.xpose.msra.mxu0 0.0
  %7241 = vmatprep.subr.mxu0 0.0
  %7242 = vmatpush1.xpose.msra.mxu0 0.0
  %7243 = vmatprep.subr.mxu0 0.0
  %7244 = vmatpush1.xpose.msra.mxu0 0.0
  %7245 = vmatprep.subr.mxu0 0.0
  %7246 = vmatpush1.xpose.msra.mxu0 0.0
  %7247 = vmatprep.subr.mxu0 0.0
  %7248 = vmatpush1.xpose.msra.mxu0 0.0
  %7249 = vmatprep.subr.mxu0 0.0
  %7250 = vmatpush1.xpose.msra.mxu0 0.0
  %7251 = vmatprep.subr.mxu0 0.0
  %7252 = vmatpush1.xpose.msra.mxu0 0.0
  %7253 = vmatprep.subr.mxu0 0.0
  %7254 = vmatpush1.xpose.msra.mxu0 0.0
  %7255 = vmatprep.subr.mxu0 0.0
  %7256 = vmatpush1.xpose.msra.mxu0 0.0
  %7257 = vmatprep.subr.mxu0 0.0
  %7258 = vmatpush1.xpose.msra.mxu0 0.0
  %7259 = vmatprep.subr.mxu0 0.0
  %7260 = vmatpush1.xpose.msra.mxu0 0.0
  %7261 = vmatprep.subr.mxu0 0.0
  %7262 = vmatpush1.xpose.msra.mxu0 0.0
  %7263 = vmatprep.subr.mxu0 0.0
  %7264 = vmatpush1.xpose.msra.mxu0 0.0
  %7265 = vmatprep.subr.mxu0 0.0
  %7266 = vmatpush1.xpose.msra.mxu0 0.0
  %7267 = vmatprep.subr.mxu0 0.0
  %7268 = vmatpush1.xpose.msra.mxu0 0.0
  %7269 = vmatprep.subr.mxu0 0.0
  %7270 = vmatpush1.xpose.msra.mxu0 0.0
  %7271 = vmatprep.subr.mxu0 0.0
  %7272 = vmatpush1.xpose.msra.mxu0 0.0
  %7273 = vmatprep.subr.mxu0 0.0
  %7274 = vmatpush1.xpose.msra.mxu0 0.0
  %7275 = vmatprep.subr.mxu0 0.0
  %7276 = vmatpush1.xpose.msra.mxu0 0.0
  %7277 = vmatprep.subr.mxu0 0.0
  %7278 = vmatpush1.xpose.msra.mxu0 0.0
  %7279 = vmatprep.subr.mxu0 0.0
  %7280 = vmatpush1.xpose.msra.mxu0 0.0
  %7281 = vmatprep.subr.mxu0 0.0
  %7282 = vmatpush1.xpose.msra.mxu0 0.0
  %7283 = vmatprep.subr.mxu0 0.0
  %7284 = vmatpush1.xpose.msra.mxu0 0.0
  %7285 = vmatprep.subr.mxu0 0.0
  %7286 = vmatpush1.xpose.msra.mxu0 0.0
  %7287 = vmatprep.mubr.f32.mxu0 0.0
  %7288 = vmatmul.mubr.f32.gmra.mrb[0].mxu0 %v7214
  %v7289 = vpop.f32.mrb[0].mxu0
  %v7290 = vadd.f32 0.0, %v7289
  %v7291 = vpop.f32.mrb[0].mxu0
  %7292 = vmatprep.mubr.f32.mxu0 0.0
  %7293 = vmatmul.mubr.f32.gmra.mrb[0].mxu0 %v7217
  %v7294 = vpop.f32.mrb[0].mxu0
  %v7295 = vadd.f32 0.0, %v7294
  %v7296 = vpop.f32.mrb[0].mxu0
  %7297 = vdwg.mxu0
  %v7298 = vsel %vm6392, %v7290, -inf
  %7299 = vmax.xlane.f32.xlu0 %v7298
  %v7300 = vpop.xlane.xlu0 %7299
  %v7301 = vsel %vm6392, %v7295, -inf
  %7302 = vmax.xlane.f32.xlu0 %v7301
  %v7303 = vpop.xlane.xlu0 %7302
  %v7304 = vsub.f32 %v7290, %v7300
  %v7305 = vsub.f32 %v7295, %v7303
  %v7306 = vmul.f32 %v7304, 1.442695
  %v7307 = vpow.pop %v7306
  %v7308 = vmul.f32 %v7305, 1.442695
  %v7309 = vpow.pop %v7308
  %v7310 = vsel %vm6392, %v7307, 0.0
  %7311 = vadd.xlane.f32.xlu0 %v7310
  %v7312 = vpop.xlane.xlu0 %7311
  %v7313 = vsel %vm6392, %v7309, 0.0
  %7314 = vadd.xlane.f32.xlu0 %v7313
  %v7315 = vpop.xlane.xlu0 %7314
  %v7316 = vrcp.pop %v7312
  %v7317 = vrcp.pop %v7315
  %v7318 = vmul.f32 %v7307, %v7316
  %v7319 = vmul.f32 %v7309, %v7317
  %7320 = vrot.lane.b32.xlu0 %v6344, 64
  %v7321 = vpop.permute.xlu0 %7320
  %7322 = vrot.lane.b32.xlu0 %v6347, 64
  %v7323 = vpop.permute.xlu0 %7322
  %v7327 = vsel %vm6392, %v7318, 0
  %v7330 = vsel %vm6392, %v7319, 0
  %7332 = vmatprep.subr.mxu0 0.0
  %7333 = vmatpush1.msra.mxu0 %v7321
  %7334 = vmatprep.subr.mxu0 0.0
  %7335 = vmatpush1.msra.mxu0 %v7323
  %7336 = vmatprep.subr.mxu0 0.0
  %7337 = vmatpush1.msra.mxu0 0.0
  %7338 = vmatprep.subr.mxu0 0.0
  %7339 = vmatpush1.msra.mxu0 0.0
  %7340 = vmatprep.subr.mxu0 0.0
  %7341 = vmatpush1.msra.mxu0 0.0
  %7342 = vmatprep.subr.mxu0 0.0
  %7343 = vmatpush1.msra.mxu0 0.0
  %7344 = vmatprep.subr.mxu0 0.0
  %7345 = vmatpush1.msra.mxu0 0.0
  %7346 = vmatprep.subr.mxu0 0.0
  %7347 = vmatpush1.msra.mxu0 0.0
  %7348 = vmatprep.subr.mxu0 0.0
  %7349 = vmatpush1.msra.mxu0 0.0
  %7350 = vmatprep.subr.mxu0 0.0
  %7351 = vmatpush1.msra.mxu0 0.0
  %7352 = vmatprep.subr.mxu0 0.0
  %7353 = vmatpush1.msra.mxu0 0.0
  %7354 = vmatprep.subr.mxu0 0.0
  %7355 = vmatpush1.msra.mxu0 0.0
  %7356 = vmatprep.subr.mxu0 0.0
  %7357 = vmatpush1.msra.mxu0 0.0
  %7358 = vmatprep.subr.mxu0 0.0
  %7359 = vmatpush1.msra.mxu0 0.0
  %7360 = vmatprep.subr.mxu0 0.0
  %7361 = vmatpush1.msra.mxu0 0.0
  %7362 = vmatprep.subr.mxu0 0.0
  %7363 = vmatpush1.msra.mxu0 0.0
  %7364 = vmatprep.subr.mxu0 0.0
  %7365 = vmatpush1.msra.mxu0 0.0
  %7366 = vmatprep.subr.mxu0 0.0
  %7367 = vmatpush1.msra.mxu0 0.0
  %7368 = vmatprep.subr.mxu0 0.0
  %7369 = vmatpush1.msra.mxu0 0.0
  %7370 = vmatprep.subr.mxu0 0.0
  %7371 = vmatpush1.msra.mxu0 0.0
  %7372 = vmatprep.subr.mxu0 0.0
  %7373 = vmatpush1.msra.mxu0 0.0
  %7374 = vmatprep.subr.mxu0 0.0
  %7375 = vmatpush1.msra.mxu0 0.0
  %7376 = vmatprep.subr.mxu0 0.0
  %7377 = vmatpush1.msra.mxu0 0.0
  %7378 = vmatprep.subr.mxu0 0.0
  %7379 = vmatpush1.msra.mxu0 0.0
  %7380 = vmatprep.subr.mxu0 0.0
  %7381 = vmatpush1.msra.mxu0 0.0
  %7382 = vmatprep.subr.mxu0 0.0
  %7383 = vmatpush1.msra.mxu0 0.0
  %7384 = vmatprep.subr.mxu0 0.0
  %7385 = vmatpush1.msra.mxu0 0.0
  %7386 = vmatprep.subr.mxu0 0.0
  %7387 = vmatpush1.msra.mxu0 0.0
  %7388 = vmatprep.subr.mxu0 0.0
  %7389 = vmatpush1.msra.mxu0 0.0
  %7390 = vmatprep.subr.mxu0 0.0
  %7391 = vmatpush1.msra.mxu0 0.0
  %7392 = vmatprep.subr.mxu0 0.0
  %7393 = vmatpush1.msra.mxu0 0.0
  %7394 = vmatprep.subr.mxu0 0.0
  %7395 = vmatpush1.msra.mxu0 0.0
  %7396 = vmatprep.mubr.f32.mxu0 0.0
  %7397 = vmatmul.mubr.f32.gmra.mrb[0].mxu0 %v7327
  %v7398 = vpop.f32.mrb[0].mxu0
  %v7399 = vadd.f32 0.0, %v7398
  %v7400 = vpop.f32.mrb[0].mxu0
  %7401 = vmatprep.mubr.f32.mxu0 0.0
  %7402 = vmatmul.mubr.f32.gmra.mrb[0].mxu0 %v7330
  %v7403 = vpop.f32.mrb[0].mxu0
  %v7404 = vadd.f32 0.0, %v7403
  %v7405 = vpop.f32.mrb[0].mxu0
  %7406 = vdwg.mxu0
  %7407 = vrot.lane.b32.xlu0 %v6378, 112
  %v7408 = vpop.permute.xlu0 %7407
  %7409 = vrot.lane.b32.xlu0 %v6379, 112
  %v7410 = vpop.permute.xlu0 %7409
  %7411 = vrot.lane.b32.xlu0 %v6344, 80
  %v7412 = vpop.permute.xlu0 %7411
  %7413 = vrot.lane.b32.xlu0 %v6347, 80
  %v7414 = vpop.permute.xlu0 %7413
  %v7415 = vsel %vm6392, %v7408, 0
  %v7417 = vsel %vm6392, %v7410, 0
  %v7419 = vsel %vm6392, %v7412, 0
  %v7421 = vsel %vm6392, %v7414, 0
  %7423 = vmatprep.subr.mxu0 0.0
  %7424 = vmatpush1.xpose.msra.mxu0 %v7419
  %7425 = vmatprep.subr.mxu0 0.0
  %7426 = vmatpush1.xpose.msra.mxu0 %v7421
  %7427 = vmatprep.subr.mxu0 0.0
  %7428 = vmatpush1.xpose.msra.mxu0 0.0
  %7429 = vmatprep.subr.mxu0 0.0
  %7430 = vmatpush1.xpose.msra.mxu0 0.0
  %7431 = vmatprep.subr.mxu0 0.0
  %7432 = vmatpush1.xpose.msra.mxu0 0.0
  %7433 = vmatprep.subr.mxu0 0.0
  %7434 = vmatpush1.xpose.msra.mxu0 0.0
  %7435 = vmatprep.subr.mxu0 0.0
  %7436 = vmatpush1.xpose.msra.mxu0 0.0
  %7437 = vmatprep.subr.mxu0 0.0
  %7438 = vmatpush1.xpose.msra.mxu0 0.0
  %7439 = vmatprep.subr.mxu0 0.0
  %7440 = vmatpush1.xpose.msra.mxu0 0.0
  %7441 = vmatprep.subr.mxu0 0.0
  %7442 = vmatpush1.xpose.msra.mxu0 0.0
  %7443 = vmatprep.subr.mxu0 0.0
  %7444 = vmatpush1.xpose.msra.mxu0 0.0
  %7445 = vmatprep.subr.mxu0 0.0
  %7446 = vmatpush1.xpose.msra.mxu0 0.0
  %7447 = vmatprep.subr.mxu0 0.0
  %7448 = vmatpush1.xpose.msra.mxu0 0.0
  %7449 = vmatprep.subr.mxu0 0.0
  %7450 = vmatpush1.xpose.msra.mxu0 0.0
  %7451 = vmatprep.subr.mxu0 0.0
  %7452 = vmatpush1.xpose.msra.mxu0 0.0
  %7453 = vmatprep.subr.mxu0 0.0
  %7454 = vmatpush1.xpose.msra.mxu0 0.0
  %7455 = vmatprep.subr.mxu0 0.0
  %7456 = vmatpush1.xpose.msra.mxu0 0.0
  %7457 = vmatprep.subr.mxu0 0.0
  %7458 = vmatpush1.xpose.msra.mxu0 0.0
  %7459 = vmatprep.subr.mxu0 0.0
  %7460 = vmatpush1.xpose.msra.mxu0 0.0
  %7461 = vmatprep.subr.mxu0 0.0
  %7462 = vmatpush1.xpose.msra.mxu0 0.0
  %7463 = vmatprep.subr.mxu0 0.0
  %7464 = vmatpush1.xpose.msra.mxu0 0.0
  %7465 = vmatprep.subr.mxu0 0.0
  %7466 = vmatpush1.xpose.msra.mxu0 0.0
  %7467 = vmatprep.subr.mxu0 0.0
  %7468 = vmatpush1.xpose.msra.mxu0 0.0
  %7469 = vmatprep.subr.mxu0 0.0
  %7470 = vmatpush1.xpose.msra.mxu0 0.0
  %7471 = vmatprep.subr.mxu0 0.0
  %7472 = vmatpush1.xpose.msra.mxu0 0.0
  %7473 = vmatprep.subr.mxu0 0.0
  %7474 = vmatpush1.xpose.msra.mxu0 0.0
  %7475 = vmatprep.subr.mxu0 0.0
  %7476 = vmatpush1.xpose.msra.mxu0 0.0
  %7477 = vmatprep.subr.mxu0 0.0
  %7478 = vmatpush1.xpose.msra.mxu0 0.0
  %7479 = vmatprep.subr.mxu0 0.0
  %7480 = vmatpush1.xpose.msra.mxu0 0.0
  %7481 = vmatprep.subr.mxu0 0.0
  %7482 = vmatpush1.xpose.msra.mxu0 0.0
  %7483 = vmatprep.subr.mxu0 0.0
  %7484 = vmatpush1.xpose.msra.mxu0 0.0
  %7485 = vmatprep.subr.mxu0 0.0
  %7486 = vmatpush1.xpose.msra.mxu0 0.0
  %7487 = vmatprep.mubr.f32.mxu0 0.0
  %7488 = vmatmul.mubr.f32.gmra.mrb[0].mxu0 %v7415
  %v7489 = vpop.f32.mrb[0].mxu0
  %v7490 = vadd.f32 0.0, %v7489
  %v7491 = vpop.f32.mrb[0].mxu0
  %7492 = vmatprep.mubr.f32.mxu0 0.0
  %7493 = vmatmul.mubr.f32.gmra.mrb[0].mxu0 %v7417
  %v7494 = vpop.f32.mrb[0].mxu0
  %v7495 = vadd.f32 0.0, %v7494
  %v7496 = vpop.f32.mrb[0].mxu0
  %7497 = vdwg.mxu0
  %v7498 = vsel %vm6392, %v7490, -inf
  %7499 = vmax.xlane.f32.xlu0 %v7498
  %v7500 = vpop.xlane.xlu0 %7499
  %v7501 = vsel %vm6392, %v7495, -inf
  %7502 = vmax.xlane.f32.xlu0 %v7501
  %v7503 = vpop.xlane.xlu0 %7502
  %v7504 = vsub.f32 %v7490, %v7500
  %v7505 = vsub.f32 %v7495, %v7503
  %v7506 = vmul.f32 %v7504, 1.442695
  %v7507 = vpow.pop %v7506
  %v7508 = vmul.f32 %v7505, 1.442695
  %v7509 = vpow.pop %v7508
  %v7510 = vsel %vm6392, %v7507, 0.0
  %7511 = vadd.xlane.f32.xlu0 %v7510
  %v7512 = vpop.xlane.xlu0 %7511
  %v7513 = vsel %vm6392, %v7509, 0.0
  %7514 = vadd.xlane.f32.xlu0 %v7513
  %v7515 = vpop.xlane.xlu0 %7514
  %v7516 = vrcp.pop %v7512
  %v7517 = vrcp.pop %v7515
  %v7518 = vmul.f32 %v7507, %v7516
  %v7519 = vmul.f32 %v7509, %v7517
  %7520 = vrot.lane.b32.xlu0 %v6344, 48
  %v7521 = vpop.permute.xlu0 %7520
  %7522 = vrot.lane.b32.xlu0 %v6347, 48
  %v7523 = vpop.permute.xlu0 %7522
  %v7527 = vsel %vm6392, %v7518, 0
  %v7530 = vsel %vm6392, %v7519, 0
  %7532 = vmatprep.subr.mxu0 0.0
  %7533 = vmatpush1.msra.mxu0 %v7521
  %7534 = vmatprep.subr.mxu0 0.0
  %7535 = vmatpush1.msra.mxu0 %v7523
  %7536 = vmatprep.subr.mxu0 0.0
  %7537 = vmatpush1.msra.mxu0 0.0
  %7538 = vmatprep.subr.mxu0 0.0
  %7539 = vmatpush1.msra.mxu0 0.0
  %7540 = vmatprep.subr.mxu0 0.0
  %7541 = vmatpush1.msra.mxu0 0.0
  %7542 = vmatprep.subr.mxu0 0.0
  %7543 = vmatpush1.msra.mxu0 0.0
  %7544 = vmatprep.subr.mxu0 0.0
  %7545 = vmatpush1.msra.mxu0 0.0
  %7546 = vmatprep.subr.mxu0 0.0
  %7547 = vmatpush1.msra.mxu0 0.0
  %7548 = vmatprep.subr.mxu0 0.0
  %7549 = vmatpush1.msra.mxu0 0.0
  %7550 = vmatprep.subr.mxu0 0.0
  %7551 = vmatpush1.msra.mxu0 0.0
  %7552 = vmatprep.subr.mxu0 0.0
  %7553 = vmatpush1.msra.mxu0 0.0
  %7554 = vmatprep.subr.mxu0 0.0
  %7555 = vmatpush1.msra.mxu0 0.0
  %7556 = vmatprep.subr.mxu0 0.0
  %7557 = vmatpush1.msra.mxu0 0.0
  %7558 = vmatprep.subr.mxu0 0.0
  %7559 = vmatpush1.msra.mxu0 0.0
  %7560 = vmatprep.subr.mxu0 0.0
  %7561 = vmatpush1.msra.mxu0 0.0
  %7562 = vmatprep.subr.mxu0 0.0
  %7563 = vmatpush1.msra.mxu0 0.0
  %7564 = vmatprep.subr.mxu0 0.0
  %7565 = vmatpush1.msra.mxu0 0.0
  %7566 = vmatprep.subr.mxu0 0.0
  %7567 = vmatpush1.msra.mxu0 0.0
  %7568 = vmatprep.subr.mxu0 0.0
  %7569 = vmatpush1.msra.mxu0 0.0
  %7570 = vmatprep.subr.mxu0 0.0
  %7571 = vmatpush1.msra.mxu0 0.0
  %7572 = vmatprep.subr.mxu0 0.0
  %7573 = vmatpush1.msra.mxu0 0.0
  %7574 = vmatprep.subr.mxu0 0.0
  %7575 = vmatpush1.msra.mxu0 0.0
  %7576 = vmatprep.subr.mxu0 0.0
  %7577 = vmatpush1.msra.mxu0 0.0
  %7578 = vmatprep.subr.mxu0 0.0
  %7579 = vmatpush1.msra.mxu0 0.0
  %7580 = vmatprep.subr.mxu0 0.0
  %7581 = vmatpush1.msra.mxu0 0.0
  %7582 = vmatprep.subr.mxu0 0.0
  %7583 = vmatpush1.msra.mxu0 0.0
  %7584 = vmatprep.subr.mxu0 0.0
  %7585 = vmatpush1.msra.mxu0 0.0
  %7586 = vmatprep.subr.mxu0 0.0
  %7587 = vmatpush1.msra.mxu0 0.0
  %7588 = vmatprep.subr.mxu0 0.0
  %7589 = vmatpush1.msra.mxu0 0.0
  %7590 = vmatprep.subr.mxu0 0.0
  %7591 = vmatpush1.msra.mxu0 0.0
  %7592 = vmatprep.subr.mxu0 0.0
  %7593 = vmatpush1.msra.mxu0 0.0
  %7594 = vmatprep.subr.mxu0 0.0
  %7595 = vmatpush1.msra.mxu0 0.0
  %7596 = vmatprep.mubr.f32.mxu0 0.0
  %7597 = vmatmul.mubr.f32.gmra.mrb[0].mxu0 %v7527
  %v7598 = vpop.f32.mrb[0].mxu0
  %v7599 = vadd.f32 0.0, %v7598
  %v7600 = vpop.f32.mrb[0].mxu0
  %7601 = vmatprep.mubr.f32.mxu0 0.0
  %7602 = vmatmul.mubr.f32.gmra.mrb[0].mxu0 %v7530
  %v7603 = vpop.f32.mrb[0].mxu0
  %v7604 = vadd.f32 0.0, %v7603
  %v7605 = vpop.f32.mrb[0].mxu0
  %7606 = vdwg.mxu0
  %7609 = vrot.lane.b32.xlu0 %v7599, 16
  %v7610 = vpop.permute.xlu0 %7609
  %7611 = vrot.lane.b32.xlu0 %v7604, 16
  %v7612 = vpop.permute.xlu0 %7611
  %v7615 = vsel %vm6392, %v7399, %v7610
  %v7616 = vsel %vm6392, %v7404, %v7612
  %7619 = vrot.lane.b32.xlu0 %v6352, 96
  %v7620 = vpop.permute.xlu0 %7619
  %7621 = vrot.lane.b32.xlu0 %v6355, 96
  %v7622 = vpop.permute.xlu0 %7621
  %v7624 = vsel %vm6392, %v6380, 0
  %v7627 = vsel %vm6392, %v6381, 0
  %v7629 = vsel %vm6392, %v7620, 0
  %v7631 = vsel %vm6392, %v7622, 0
  %7633 = vmatprep.subr.mxu0 0.0
  %7634 = vmatpush1.xpose.msra.mxu0 %v7629
  %7635 = vmatprep.subr.mxu0 0.0
  %7636 = vmatpush1.xpose.msra.mxu0 %v7631
  %7637 = vmatprep.subr.mxu0 0.0
  %7638 = vmatpush1.xpose.msra.mxu0 0.0
  %7639 = vmatprep.subr.mxu0 0.0
  %7640 = vmatpush1.xpose.msra.mxu0 0.0
  %7641 = vmatprep.subr.mxu0 0.0
  %7642 = vmatpush1.xpose.msra.mxu0 0.0
  %7643 = vmatprep.subr.mxu0 0.0
  %7644 = vmatpush1.xpose.msra.mxu0 0.0
  %7645 = vmatprep.subr.mxu0 0.0
  %7646 = vmatpush1.xpose.msra.mxu0 0.0
  %7647 = vmatprep.subr.mxu0 0.0
  %7648 = vmatpush1.xpose.msra.mxu0 0.0
  %7649 = vmatprep.subr.mxu0 0.0
  %7650 = vmatpush1.xpose.msra.mxu0 0.0
  %7651 = vmatprep.subr.mxu0 0.0
  %7652 = vmatpush1.xpose.msra.mxu0 0.0
  %7653 = vmatprep.subr.mxu0 0.0
  %7654 = vmatpush1.xpose.msra.mxu0 0.0
  %7655 = vmatprep.subr.mxu0 0.0
  %7656 = vmatpush1.xpose.msra.mxu0 0.0
  %7657 = vmatprep.subr.mxu0 0.0
  %7658 = vmatpush1.xpose.msra.mxu0 0.0
  %7659 = vmatprep.subr.mxu0 0.0
  %7660 = vmatpush1.xpose.msra.mxu0 0.0
  %7661 = vmatprep.subr.mxu0 0.0
  %7662 = vmatpush1.xpose.msra.mxu0 0.0
  %7663 = vmatprep.subr.mxu0 0.0
  %7664 = vmatpush1.xpose.msra.mxu0 0.0
  %7665 = vmatprep.subr.mxu0 0.0
  %7666 = vmatpush1.xpose.msra.mxu0 0.0
  %7667 = vmatprep.subr.mxu0 0.0
  %7668 = vmatpush1.xpose.msra.mxu0 0.0
  %7669 = vmatprep.subr.mxu0 0.0
  %7670 = vmatpush1.xpose.msra.mxu0 0.0
  %7671 = vmatprep.subr.mxu0 0.0
  %7672 = vmatpush1.xpose.msra.mxu0 0.0
  %7673 = vmatprep.subr.mxu0 0.0
  %7674 = vmatpush1.xpose.msra.mxu0 0.0
  %7675 = vmatprep.subr.mxu0 0.0
  %7676 = vmatpush1.xpose.msra.mxu0 0.0
  %7677 = vmatprep.subr.mxu0 0.0
  %7678 = vmatpush1.xpose.msra.mxu0 0.0
  %7679 = vmatprep.subr.mxu0 0.0
  %7680 = vmatpush1.xpose.msra.mxu0 0.0
  %7681 = vmatprep.subr.mxu0 0.0
  %7682 = vmatpush1.xpose.msra.mxu0 0.0
  %7683 = vmatprep.subr.mxu0 0.0
  %7684 = vmatpush1.xpose.msra.mxu0 0.0
  %7685 = vmatprep.subr.mxu0 0.0
  %7686 = vmatpush1.xpose.msra.mxu0 0.0
  %7687 = vmatprep.subr.mxu0 0.0
  %7688 = vmatpush1.xpose.msra.mxu0 0.0
  %7689 = vmatprep.subr.mxu0 0.0
  %7690 = vmatpush1.xpose.msra.mxu0 0.0
  %7691 = vmatprep.subr.mxu0 0.0
  %7692 = vmatpush1.xpose.msra.mxu0 0.0
  %7693 = vmatprep.subr.mxu0 0.0
  %7694 = vmatpush1.xpose.msra.mxu0 0.0
  %7695 = vmatprep.subr.mxu0 0.0
  %7696 = vmatpush1.xpose.msra.mxu0 0.0
  %7697 = vmatprep.mubr.f32.mxu0 0.0
  %7698 = vmatmul.mubr.f32.gmra.mrb[0].mxu0 %v7624
  %v7699 = vpop.f32.mrb[0].mxu0
  %v7700 = vadd.f32 0.0, %v7699
  %v7701 = vpop.f32.mrb[0].mxu0
  %7702 = vmatprep.mubr.f32.mxu0 0.0
  %7703 = vmatmul.mubr.f32.gmra.mrb[0].mxu0 %v7627
  %v7704 = vpop.f32.mrb[0].mxu0
  %v7705 = vadd.f32 0.0, %v7704
  %v7706 = vpop.f32.mrb[0].mxu0
  %7707 = vdwg.mxu0
  %v7708 = vsel %vm6392, %v7700, -inf
  %7709 = vmax.xlane.f32.xlu0 %v7708
  %v7710 = vpop.xlane.xlu0 %7709
  %v7711 = vsel %vm6392, %v7705, -inf
  %7712 = vmax.xlane.f32.xlu0 %v7711
  %v7713 = vpop.xlane.xlu0 %7712
  %v7714 = vsub.f32 %v7700, %v7710
  %v7715 = vsub.f32 %v7705, %v7713
  %v7716 = vmul.f32 %v7714, 1.442695
  %v7717 = vpow.pop %v7716
  %v7718 = vmul.f32 %v7715, 1.442695
  %v7719 = vpow.pop %v7718
  %v7720 = vsel %vm6392, %v7717, 0.0
  %7721 = vadd.xlane.f32.xlu0 %v7720
  %v7722 = vpop.xlane.xlu0 %7721
  %v7723 = vsel %vm6392, %v7719, 0.0
  %7724 = vadd.xlane.f32.xlu0 %v7723
  %v7725 = vpop.xlane.xlu0 %7724
  %v7726 = vrcp.pop %v7722
  %v7727 = vrcp.pop %v7725
  %v7728 = vmul.f32 %v7717, %v7726
  %v7729 = vmul.f32 %v7719, %v7727
  %7730 = vrot.lane.b32.xlu0 %v6352, 64
  %v7731 = vpop.permute.xlu0 %7730
  %7732 = vrot.lane.b32.xlu0 %v6355, 64
  %v7733 = vpop.permute.xlu0 %7732
  %v7737 = vsel %vm6392, %v7728, 0
  %v7740 = vsel %vm6392, %v7729, 0
  %7742 = vmatprep.subr.mxu0 0.0
  %7743 = vmatpush1.msra.mxu0 %v7731
  %7744 = vmatprep.subr.mxu0 0.0
  %7745 = vmatpush1.msra.mxu0 %v7733
  %7746 = vmatprep.subr.mxu0 0.0
  %7747 = vmatpush1.msra.mxu0 0.0
  %7748 = vmatprep.subr.mxu0 0.0
  %7749 = vmatpush1.msra.mxu0 0.0
  %7750 = vmatprep.subr.mxu0 0.0
  %7751 = vmatpush1.msra.mxu0 0.0
  %7752 = vmatprep.subr.mxu0 0.0
  %7753 = vmatpush1.msra.mxu0 0.0
  %7754 = vmatprep.subr.mxu0 0.0
  %7755 = vmatpush1.msra.mxu0 0.0
  %7756 = vmatprep.subr.mxu0 0.0
  %7757 = vmatpush1.msra.mxu0 0.0
  %7758 = vmatprep.subr.mxu0 0.0
  %7759 = vmatpush1.msra.mxu0 0.0
  %7760 = vmatprep.subr.mxu0 0.0
  %7761 = vmatpush1.msra.mxu0 0.0
  %7762 = vmatprep.subr.mxu0 0.0
  %7763 = vmatpush1.msra.mxu0 0.0
  %7764 = vmatprep.subr.mxu0 0.0
  %7765 = vmatpush1.msra.mxu0 0.0
  %7766 = vmatprep.subr.mxu0 0.0
  %7767 = vmatpush1.msra.mxu0 0.0
  %7768 = vmatprep.subr.mxu0 0.0
  %7769 = vmatpush1.msra.mxu0 0.0
  %7770 = vmatprep.subr.mxu0 0.0
  %7771 = vmatpush1.msra.mxu0 0.0
  %7772 = vmatprep.subr.mxu0 0.0
  %7773 = vmatpush1.msra.mxu0 0.0
  %7774 = vmatprep.subr.mxu0 0.0
  %7775 = vmatpush1.msra.mxu0 0.0
  %7776 = vmatprep.subr.mxu0 0.0
  %7777 = vmatpush1.msra.mxu0 0.0
  %7778 = vmatprep.subr.mxu0 0.0
  %7779 = vmatpush1.msra.mxu0 0.0
  %7780 = vmatprep.subr.mxu0 0.0
  %7781 = vmatpush1.msra.mxu0 0.0
  %7782 = vmatprep.subr.mxu0 0.0
  %7783 = vmatpush1.msra.mxu0 0.0
  %7784 = vmatprep.subr.mxu0 0.0
  %7785 = vmatpush1.msra.mxu0 0.0
  %7786 = vmatprep.subr.mxu0 0.0
  %7787 = vmatpush1.msra.mxu0 0.0
  %7788 = vmatprep.subr.mxu0 0.0
  %7789 = vmatpush1.msra.mxu0 0.0
  %7790 = vmatprep.subr.mxu0 0.0
  %7791 = vmatpush1.msra.mxu0 0.0
  %7792 = vmatprep.subr.mxu0 0.0
  %7793 = vmatpush1.msra.mxu0 0.0
  %7794 = vmatprep.subr.mxu0 0.0
  %7795 = vmatpush1.msra.mxu0 0.0
  %7796 = vmatprep.subr.mxu0 0.0
  %7797 = vmatpush1.msra.mxu0 0.0
  %7798 = vmatprep.subr.mxu0 0.0
  %7799 = vmatpush1.msra.mxu0 0.0
  %7800 = vmatprep.subr.mxu0 0.0
  %7801 = vmatpush1.msra.mxu0 0.0
  %7802 = vmatprep.subr.mxu0 0.0
  %7803 = vmatpush1.msra.mxu0 0.0
  %7804 = vmatprep.subr.mxu0 0.0
  %7805 = vmatpush1.msra.mxu0 0.0
  %7806 = vmatprep.mubr.f32.mxu0 0.0
  %7807 = vmatmul.mubr.f32.gmra.mrb[0].mxu0 %v7737
  %v7808 = vpop.f32.mrb[0].mxu0
  %v7809 = vadd.f32 0.0, %v7808
  %v7810 = vpop.f32.mrb[0].mxu0
  %7811 = vmatprep.mubr.f32.mxu0 0.0
  %7812 = vmatmul.mubr.f32.gmra.mrb[0].mxu0 %v7740
  %v7813 = vpop.f32.mrb[0].mxu0
  %v7814 = vadd.f32 0.0, %v7813
  %v7815 = vpop.f32.mrb[0].mxu0
  %7816 = vdwg.mxu0
  %7817 = vrot.lane.b32.xlu0 %v6380, 112
  %v7818 = vpop.permute.xlu0 %7817
  %7819 = vrot.lane.b32.xlu0 %v6381, 112
  %v7820 = vpop.permute.xlu0 %7819
  %7821 = vrot.lane.b32.xlu0 %v6352, 80
  %v7822 = vpop.permute.xlu0 %7821
  %7823 = vrot.lane.b32.xlu0 %v6355, 80
  %v7824 = vpop.permute.xlu0 %7823
  %v7825 = vsel %vm6392, %v7818, 0
  %v7827 = vsel %vm6392, %v7820, 0
  %v7829 = vsel %vm6392, %v7822, 0
  %v7831 = vsel %vm6392, %v7824, 0
  %7833 = vmatprep.subr.mxu0 0.0
  %7834 = vmatpush1.xpose.msra.mxu0 %v7829
  %7835 = vmatprep.subr.mxu0 0.0
  %7836 = vmatpush1.xpose.msra.mxu0 %v7831
  %7837 = vmatprep.subr.mxu0 0.0
  %7838 = vmatpush1.xpose.msra.mxu0 0.0
  %7839 = vmatprep.subr.mxu0 0.0
  %7840 = vmatpush1.xpose.msra.mxu0 0.0
  %7841 = vmatprep.subr.mxu0 0.0
  %7842 = vmatpush1.xpose.msra.mxu0 0.0
  %7843 = vmatprep.subr.mxu0 0.0
  %7844 = vmatpush1.xpose.msra.mxu0 0.0
  %7845 = vmatprep.subr.mxu0 0.0
  %7846 = vmatpush1.xpose.msra.mxu0 0.0
  %7847 = vmatprep.subr.mxu0 0.0
  %7848 = vmatpush1.xpose.msra.mxu0 0.0
  %7849 = vmatprep.subr.mxu0 0.0
  %7850 = vmatpush1.xpose.msra.mxu0 0.0
  %7851 = vmatprep.subr.mxu0 0.0
  %7852 = vmatpush1.xpose.msra.mxu0 0.0
  %7853 = vmatprep.subr.mxu0 0.0
  %7854 = vmatpush1.xpose.msra.mxu0 0.0
  %7855 = vmatprep.subr.mxu0 0.0
  %7856 = vmatpush1.xpose.msra.mxu0 0.0
  %7857 = vmatprep.subr.mxu0 0.0
  %7858 = vmatpush1.xpose.msra.mxu0 0.0
  %7859 = vmatprep.subr.mxu0 0.0
  %7860 = vmatpush1.xpose.msra.mxu0 0.0
  %7861 = vmatprep.subr.mxu0 0.0
  %7862 = vmatpush1.xpose.msra.mxu0 0.0
  %7863 = vmatprep.subr.mxu0 0.0
  %7864 = vmatpush1.xpose.msra.mxu0 0.0
  %7865 = vmatprep.subr.mxu0 0.0
  %7866 = vmatpush1.xpose.msra.mxu0 0.0
  %7867 = vmatprep.subr.mxu0 0.0
  %7868 = vmatpush1.xpose.msra.mxu0 0.0
  %7869 = vmatprep.subr.mxu0 0.0
  %7870 = vmatpush1.xpose.msra.mxu0 0.0
  %7871 = vmatprep.subr.mxu0 0.0
  %7872 = vmatpush1.xpose.msra.mxu0 0.0
  %7873 = vmatprep.subr.mxu0 0.0
  %7874 = vmatpush1.xpose.msra.mxu0 0.0
  %7875 = vmatprep.subr.mxu0 0.0
  %7876 = vmatpush1.xpose.msra.mxu0 0.0
  %7877 = vmatprep.subr.mxu0 0.0
  %7878 = vmatpush1.xpose.msra.mxu0 0.0
  %7879 = vmatprep.subr.mxu0 0.0
  %7880 = vmatpush1.xpose.msra.mxu0 0.0
  %7881 = vmatprep.subr.mxu0 0.0
  %7882 = vmatpush1.xpose.msra.mxu0 0.0
  %7883 = vmatprep.subr.mxu0 0.0
  %7884 = vmatpush1.xpose.msra.mxu0 0.0
  %7885 = vmatprep.subr.mxu0 0.0
  %7886 = vmatpush1.xpose.msra.mxu0 0.0
  %7887 = vmatprep.subr.mxu0 0.0
  %7888 = vmatpush1.xpose.msra.mxu0 0.0
  %7889 = vmatprep.subr.mxu0 0.0
  %7890 = vmatpush1.xpose.msra.mxu0 0.0
  %7891 = vmatprep.subr.mxu0 0.0
  %7892 = vmatpush1.xpose.msra.mxu0 0.0
  %7893 = vmatprep.subr.mxu0 0.0
  %7894 = vmatpush1.xpose.msra.mxu0 0.0
  %7895 = vmatprep.subr.mxu0 0.0
  %7896 = vmatpush1.xpose.msra.mxu0 0.0
  %7897 = vmatprep.mubr.f32.mxu0 0.0
  %7898 = vmatmul.mubr.f32.gmra.mrb[0].mxu0 %v7825
  %v7899 = vpop.f32.mrb[0].mxu0
  %v7900 = vadd.f32 0.0, %v7899
  %v7901 = vpop.f32.mrb[0].mxu0
  %7902 = vmatprep.mubr.f32.mxu0 0.0
  %7903 = vmatmul.mubr.f32.gmra.mrb[0].mxu0 %v7827
  %v7904 = vpop.f32.mrb[0].mxu0
  %v7905 = vadd.f32 0.0, %v7904
  %v7906 = vpop.f32.mrb[0].mxu0
  %7907 = vdwg.mxu0
  %v7908 = vsel %vm6392, %v7900, -inf
  %7909 = vmax.xlane.f32.xlu0 %v7908
  %v7910 = vpop.xlane.xlu0 %7909
  %v7911 = vsel %vm6392, %v7905, -inf
  %7912 = vmax.xlane.f32.xlu0 %v7911
  %v7913 = vpop.xlane.xlu0 %7912
  %v7914 = vsub.f32 %v7900, %v7910
  %v7915 = vsub.f32 %v7905, %v7913
  %v7916 = vmul.f32 %v7914, 1.442695
  %v7917 = vpow.pop %v7916
  %v7918 = vmul.f32 %v7915, 1.442695
  %v7919 = vpow.pop %v7918
  %v7920 = vsel %vm6392, %v7917, 0.0
  %7921 = vadd.xlane.f32.xlu0 %v7920
  %v7922 = vpop.xlane.xlu0 %7921
  %v7923 = vsel %vm6392, %v7919, 0.0
  %7924 = vadd.xlane.f32.xlu0 %v7923
  %v7925 = vpop.xlane.xlu0 %7924
  %v7926 = vrcp.pop %v7922
  %v7927 = vrcp.pop %v7925
  %v7928 = vmul.f32 %v7917, %v7926
  %v7929 = vmul.f32 %v7919, %v7927
  %7930 = vrot.lane.b32.xlu0 %v6352, 48
  %v7931 = vpop.permute.xlu0 %7930
  %7932 = vrot.lane.b32.xlu0 %v6355, 48
  %v7933 = vpop.permute.xlu0 %7932
  %v7937 = vsel %vm6392, %v7928, 0
  %v7940 = vsel %vm6392, %v7929, 0
  %7942 = vmatprep.subr.mxu0 0.0
  %7943 = vmatpush1.msra.mxu0 %v7931
  %7944 = vmatprep.subr.mxu0 0.0
  %7945 = vmatpush1.msra.mxu0 %v7933
  %7946 = vmatprep.subr.mxu0 0.0
  %7947 = vmatpush1.msra.mxu0 0.0
  %7948 = vmatprep.subr.mxu0 0.0
  %7949 = vmatpush1.msra.mxu0 0.0
  %7950 = vmatprep.subr.mxu0 0.0
  %7951 = vmatpush1.msra.mxu0 0.0
  %7952 = vmatprep.subr.mxu0 0.0
  %7953 = vmatpush1.msra.mxu0 0.0
  %7954 = vmatprep.subr.mxu0 0.0
  %7955 = vmatpush1.msra.mxu0 0.0
  %7956 = vmatprep.subr.mxu0 0.0
  %7957 = vmatpush1.msra.mxu0 0.0
  %7958 = vmatprep.subr.mxu0 0.0
  %7959 = vmatpush1.msra.mxu0 0.0
  %7960 = vmatprep.subr.mxu0 0.0
  %7961 = vmatpush1.msra.mxu0 0.0
  %7962 = vmatprep.subr.mxu0 0.0
  %7963 = vmatpush1.msra.mxu0 0.0
  %7964 = vmatprep.subr.mxu0 0.0
  %7965 = vmatpush1.msra.mxu0 0.0
  %7966 = vmatprep.subr.mxu0 0.0
  %7967 = vmatpush1.msra.mxu0 0.0
  %7968 = vmatprep.subr.mxu0 0.0
  %7969 = vmatpush1.msra.mxu0 0.0
  %7970 = vmatprep.subr.mxu0 0.0
  %7971 = vmatpush1.msra.mxu0 0.0
  %7972 = vmatprep.subr.mxu0 0.0
  %7973 = vmatpush1.msra.mxu0 0.0
  %7974 = vmatprep.subr.mxu0 0.0
  %7975 = vmatpush1.msra.mxu0 0.0
  %7976 = vmatprep.subr.mxu0 0.0
  %7977 = vmatpush1.msra.mxu0 0.0
  %7978 = vmatprep.subr.mxu0 0.0
  %7979 = vmatpush1.msra.mxu0 0.0
  %7980 = vmatprep.subr.mxu0 0.0
  %7981 = vmatpush1.msra.mxu0 0.0
  %7982 = vmatprep.subr.mxu0 0.0
  %7983 = vmatpush1.msra.mxu0 0.0
  %7984 = vmatprep.subr.mxu0 0.0
  %7985 = vmatpush1.msra.mxu0 0.0
  %7986 = vmatprep.subr.mxu0 0.0
  %7987 = vmatpush1.msra.mxu0 0.0
  %7988 = vmatprep.subr.mxu0 0.0
  %7989 = vmatpush1.msra.mxu0 0.0
  %7990 = vmatprep.subr.mxu0 0.0
  %7991 = vmatpush1.msra.mxu0 0.0
  %7992 = vmatprep.subr.mxu0 0.0
  %7993 = vmatpush1.msra.mxu0 0.0
  %7994 = vmatprep.subr.mxu0 0.0
  %7995 = vmatpush1.msra.mxu0 0.0
  %7996 = vmatprep.subr.mxu0 0.0
  %7997 = vmatpush1.msra.mxu0 0.0
  %7998 = vmatprep.subr.mxu0 0.0
  %7999 = vmatpush1.msra.mxu0 0.0
  %8000 = vmatprep.subr.mxu0 0.0
  %8001 = vmatpush1.msra.mxu0 0.0
  %8002 = vmatprep.subr.mxu0 0.0
  %8003 = vmatpush1.msra.mxu0 0.0
  %8004 = vmatprep.subr.mxu0 0.0
  %8005 = vmatpush1.msra.mxu0 0.0
  %8006 = vmatprep.mubr.f32.mxu0 0.0
  %8007 = vmatmul.mubr.f32.gmra.mrb[0].mxu0 %v7937
  %v8008 = vpop.f32.mrb[0].mxu0
  %v8009 = vadd.f32 0.0, %v8008
  %v8010 = vpop.f32.mrb[0].mxu0
  %8011 = vmatprep.mubr.f32.mxu0 0.0
  %8012 = vmatmul.mubr.f32.gmra.mrb[0].mxu0 %v7940
  %v8013 = vpop.f32.mrb[0].mxu0
  %v8014 = vadd.f32 0.0, %v8013
  %v8015 = vpop.f32.mrb[0].mxu0
  %8016 = vdwg.mxu0
  %8019 = vrot.lane.b32.xlu0 %v8009, 16
  %v8020 = vpop.permute.xlu0 %8019
  %8021 = vrot.lane.b32.xlu0 %v8014, 16
  %v8022 = vpop.permute.xlu0 %8021
  %v8025 = vsel %vm6392, %v7809, %v8020
  %v8026 = vsel %vm6392, %v7814, %v8022
  %8029 = vrot.lane.b32.xlu0 %v6360, 96
  %v8030 = vpop.permute.xlu0 %8029
  %8031 = vrot.lane.b32.xlu0 %v6363, 96
  %v8032 = vpop.permute.xlu0 %8031
  %v8034 = vsel %vm6392, %v6382, 0
  %v8037 = vsel %vm6392, %v6383, 0
  %v8039 = vsel %vm6392, %v8030, 0
  %v8041 = vsel %vm6392, %v8032, 0
  %8043 = vmatprep.subr.mxu0 0.0
  %8044 = vmatpush1.xpose.msra.mxu0 %v8039
  %8045 = vmatprep.subr.mxu0 0.0
  %8046 = vmatpush1.xpose.msra.mxu0 %v8041
  %8047 = vmatprep.subr.mxu0 0.0
  %8048 = vmatpush1.xpose.msra.mxu0 0.0
  %8049 = vmatprep.subr.mxu0 0.0
  %8050 = vmatpush1.xpose.msra.mxu0 0.0
  %8051 = vmatprep.subr.mxu0 0.0
  %8052 = vmatpush1.xpose.msra.mxu0 0.0
  %8053 = vmatprep.subr.mxu0 0.0
  %8054 = vmatpush1.xpose.msra.mxu0 0.0
  %8055 = vmatprep.subr.mxu0 0.0
  %8056 = vmatpush1.xpose.msra.mxu0 0.0
  %8057 = vmatprep.subr.mxu0 0.0
  %8058 = vmatpush1.xpose.msra.mxu0 0.0
  %8059 = vmatprep.subr.mxu0 0.0
  %8060 = vmatpush1.xpose.msra.mxu0 0.0
  %8061 = vmatprep.subr.mxu0 0.0
  %8062 = vmatpush1.xpose.msra.mxu0 0.0
  %8063 = vmatprep.subr.mxu0 0.0
  %8064 = vmatpush1.xpose.msra.mxu0 0.0
  %8065 = vmatprep.subr.mxu0 0.0
  %8066 = vmatpush1.xpose.msra.mxu0 0.0
  %8067 = vmatprep.subr.mxu0 0.0
  %8068 = vmatpush1.xpose.msra.mxu0 0.0
  %8069 = vmatprep.subr.mxu0 0.0
  %8070 = vmatpush1.xpose.msra.mxu0 0.0
  %8071 = vmatprep.subr.mxu0 0.0
  %8072 = vmatpush1.xpose.msra.mxu0 0.0
  %8073 = vmatprep.subr.mxu0 0.0
  %8074 = vmatpush1.xpose.msra.mxu0 0.0
  %8075 = vmatprep.subr.mxu0 0.0
  %8076 = vmatpush1.xpose.msra.mxu0 0.0
  %8077 = vmatprep.subr.mxu0 0.0
  %8078 = vmatpush1.xpose.msra.mxu0 0.0
  %8079 = vmatprep.subr.mxu0 0.0
  %8080 = vmatpush1.xpose.msra.mxu0 0.0
  %8081 = vmatprep.subr.mxu0 0.0
  %8082 = vmatpush1.xpose.msra.mxu0 0.0
  %8083 = vmatprep.subr.mxu0 0.0
  %8084 = vmatpush1.xpose.msra.mxu0 0.0
  %8085 = vmatprep.subr.mxu0 0.0
  %8086 = vmatpush1.xpose.msra.mxu0 0.0
  %8087 = vmatprep.subr.mxu0 0.0
  %8088 = vmatpush1.xpose.msra.mxu0 0.0
  %8089 = vmatprep.subr.mxu0 0.0
  %8090 = vmatpush1.xpose.msra.mxu0 0.0
  %8091 = vmatprep.subr.mxu0 0.0
  %8092 = vmatpush1.xpose.msra.mxu0 0.0
  %8093 = vmatprep.subr.mxu0 0.0
  %8094 = vmatpush1.xpose.msra.mxu0 0.0
  %8095 = vmatprep.subr.mxu0 0.0
  %8096 = vmatpush1.xpose.msra.mxu0 0.0
  %8097 = vmatprep.subr.mxu0 0.0
  %8098 = vmatpush1.xpose.msra.mxu0 0.0
  %8099 = vmatprep.subr.mxu0 0.0
  %8100 = vmatpush1.xpose.msra.mxu0 0.0
  %8101 = vmatprep.subr.mxu0 0.0
  %8102 = vmatpush1.xpose.msra.mxu0 0.0
  %8103 = vmatprep.subr.mxu0 0.0
  %8104 = vmatpush1.xpose.msra.mxu0 0.0
  %8105 = vmatprep.subr.mxu0 0.0
  %8106 = vmatpush1.xpose.msra.mxu0 0.0
  %8107 = vmatprep.mubr.f32.mxu0 0.0
  %8108 = vmatmul.mubr.f32.gmra.mrb[0].mxu0 %v8034
  %v8109 = vpop.f32.mrb[0].mxu0
  %v8110 = vadd.f32 0.0, %v8109
  %v8111 = vpop.f32.mrb[0].mxu0
  %8112 = vmatprep.mubr.f32.mxu0 0.0
  %8113 = vmatmul.mubr.f32.gmra.mrb[0].mxu0 %v8037
  %v8114 = vpop.f32.mrb[0].mxu0
  %v8115 = vadd.f32 0.0, %v8114
  %v8116 = vpop.f32.mrb[0].mxu0
  %8117 = vdwg.mxu0
  %v8118 = vsel %vm6392, %v8110, -inf
  %8119 = vmax.xlane.f32.xlu0 %v8118
  %v8120 = vpop.xlane.xlu0 %8119
  %v8121 = vsel %vm6392, %v8115, -inf
  %8122 = vmax.xlane.f32.xlu0 %v8121
  %v8123 = vpop.xlane.xlu0 %8122
  %v8124 = vsub.f32 %v8110, %v8120
  %v8125 = vsub.f32 %v8115, %v8123
  %v8126 = vmul.f32 %v8124, 1.442695
  %v8127 = vpow.pop %v8126
  %v8128 = vmul.f32 %v8125, 1.442695
  %v8129 = vpow.pop %v8128
  %v8130 = vsel %vm6392, %v8127, 0.0
  %8131 = vadd.xlane.f32.xlu0 %v8130
  %v8132 = vpop.xlane.xlu0 %8131
  %v8133 = vsel %vm6392, %v8129, 0.0
  %8134 = vadd.xlane.f32.xlu0 %v8133
  %v8135 = vpop.xlane.xlu0 %8134
  %v8136 = vrcp.pop %v8132
  %v8137 = vrcp.pop %v8135
  %v8138 = vmul.f32 %v8127, %v8136
  %v8139 = vmul.f32 %v8129, %v8137
  %8140 = vrot.lane.b32.xlu0 %v6360, 64
  %v8141 = vpop.permute.xlu0 %8140
  %8142 = vrot.lane.b32.xlu0 %v6363, 64
  %v8143 = vpop.permute.xlu0 %8142
  %v8147 = vsel %vm6392, %v8138, 0
  %v8150 = vsel %vm6392, %v8139, 0
  %8152 = vmatprep.subr.mxu0 0.0
  %8153 = vmatpush1.msra.mxu0 %v8141
  %8154 = vmatprep.subr.mxu0 0.0
  %8155 = vmatpush1.msra.mxu0 %v8143
  %8156 = vmatprep.subr.mxu0 0.0
  %8157 = vmatpush1.msra.mxu0 0.0
  %8158 = vmatprep.subr.mxu0 0.0
  %8159 = vmatpush1.msra.mxu0 0.0
  %8160 = vmatprep.subr.mxu0 0.0
  %8161 = vmatpush1.msra.mxu0 0.0
  %8162 = vmatprep.subr.mxu0 0.0
  %8163 = vmatpush1.msra.mxu0 0.0
  %8164 = vmatprep.subr.mxu0 0.0
  %8165 = vmatpush1.msra.mxu0 0.0
  %8166 = vmatprep.subr.mxu0 0.0
  %8167 = vmatpush1.msra.mxu0 0.0
  %8168 = vmatprep.subr.mxu0 0.0
  %8169 = vmatpush1.msra.mxu0 0.0
  %8170 = vmatprep.subr.mxu0 0.0
  %8171 = vmatpush1.msra.mxu0 0.0
  %8172 = vmatprep.subr.mxu0 0.0
  %8173 = vmatpush1.msra.mxu0 0.0
  %8174 = vmatprep.subr.mxu0 0.0
  %8175 = vmatpush1.msra.mxu0 0.0
  %8176 = vmatprep.subr.mxu0 0.0
  %8177 = vmatpush1.msra.mxu0 0.0
  %8178 = vmatprep.subr.mxu0 0.0
  %8179 = vmatpush1.msra.mxu0 0.0
  %8180 = vmatprep.subr.mxu0 0.0
  %8181 = vmatpush1.msra.mxu0 0.0
  %8182 = vmatprep.subr.mxu0 0.0
  %8183 = vmatpush1.msra.mxu0 0.0
  %8184 = vmatprep.subr.mxu0 0.0
  %8185 = vmatpush1.msra.mxu0 0.0
  %8186 = vmatprep.subr.mxu0 0.0
  %8187 = vmatpush1.msra.mxu0 0.0
  %8188 = vmatprep.subr.mxu0 0.0
  %8189 = vmatpush1.msra.mxu0 0.0
  %8190 = vmatprep.subr.mxu0 0.0
  %8191 = vmatpush1.msra.mxu0 0.0
  %8192 = vmatprep.subr.mxu0 0.0
  %8193 = vmatpush1.msra.mxu0 0.0
  %8194 = vmatprep.subr.mxu0 0.0
  %8195 = vmatpush1.msra.mxu0 0.0
  %8196 = vmatprep.subr.mxu0 0.0
  %8197 = vmatpush1.msra.mxu0 0.0
  %8198 = vmatprep.subr.mxu0 0.0
  %8199 = vmatpush1.msra.mxu0 0.0
  %8200 = vmatprep.subr.mxu0 0.0
  %8201 = vmatpush1.msra.mxu0 0.0
  %8202 = vmatprep.subr.mxu0 0.0
  %8203 = vmatpush1.msra.mxu0 0.0
  %8204 = vmatprep.subr.mxu0 0.0
  %8205 = vmatpush1.msra.mxu0 0.0
  %8206 = vmatprep.subr.mxu0 0.0
  %8207 = vmatpush1.msra.mxu0 0.0
  %8208 = vmatprep.subr.mxu0 0.0
  %8209 = vmatpush1.msra.mxu0 0.0
  %8210 = vmatprep.subr.mxu0 0.0
  %8211 = vmatpush1.msra.mxu0 0.0
  %8212 = vmatprep.subr.mxu0 0.0
  %8213 = vmatpush1.msra.mxu0 0.0
  %8214 = vmatprep.subr.mxu0 0.0
  %8215 = vmatpush1.msra.mxu0 0.0
  %8216 = vmatprep.mubr.f32.mxu0 0.0
  %8217 = vmatmul.mubr.f32.gmra.mrb[0].mxu0 %v8147
  %v8218 = vpop.f32.mrb[0].mxu0
  %v8219 = vadd.f32 0.0, %v8218
  %v8220 = vpop.f32.mrb[0].mxu0
  %8221 = vmatprep.mubr.f32.mxu0 0.0
  %8222 = vmatmul.mubr.f32.gmra.mrb[0].mxu0 %v8150
  %v8223 = vpop.f32.mrb[0].mxu0
  %v8224 = vadd.f32 0.0, %v8223
  %v8225 = vpop.f32.mrb[0].mxu0
  %8226 = vdwg.mxu0
  %8227 = vrot.lane.b32.xlu0 %v6382, 112
  %v8228 = vpop.permute.xlu0 %8227
  %8229 = vrot.lane.b32.xlu0 %v6383, 112
  %v8230 = vpop.permute.xlu0 %8229
  %8231 = vrot.lane.b32.xlu0 %v6360, 80
  %v8232 = vpop.permute.xlu0 %8231
  %8233 = vrot.lane.b32.xlu0 %v6363, 80
  %v8234 = vpop.permute.xlu0 %8233
  %v8235 = vsel %vm6392, %v8228, 0
  %v8237 = vsel %vm6392, %v8230, 0
  %v8239 = vsel %vm6392, %v8232, 0
  %v8241 = vsel %vm6392, %v8234, 0
  %8243 = vmatprep.subr.mxu0 0.0
  %8244 = vmatpush1.xpose.msra.mxu0 %v8239
  %8245 = vmatprep.subr.mxu0 0.0
  %8246 = vmatpush1.xpose.msra.mxu0 %v8241
  %8247 = vmatprep.subr.mxu0 0.0
  %8248 = vmatpush1.xpose.msra.mxu0 0.0
  %8249 = vmatprep.subr.mxu0 0.0
  %8250 = vmatpush1.xpose.msra.mxu0 0.0
  %8251 = vmatprep.subr.mxu0 0.0
  %8252 = vmatpush1.xpose.msra.mxu0 0.0
  %8253 = vmatprep.subr.mxu0 0.0
  %8254 = vmatpush1.xpose.msra.mxu0 0.0
  %8255 = vmatprep.subr.mxu0 0.0
  %8256 = vmatpush1.xpose.msra.mxu0 0.0
  %8257 = vmatprep.subr.mxu0 0.0
  %8258 = vmatpush1.xpose.msra.mxu0 0.0
  %8259 = vmatprep.subr.mxu0 0.0
  %8260 = vmatpush1.xpose.msra.mxu0 0.0
  %8261 = vmatprep.subr.mxu0 0.0
  %8262 = vmatpush1.xpose.msra.mxu0 0.0
  %8263 = vmatprep.subr.mxu0 0.0
  %8264 = vmatpush1.xpose.msra.mxu0 0.0
  %8265 = vmatprep.subr.mxu0 0.0
  %8266 = vmatpush1.xpose.msra.mxu0 0.0
  %8267 = vmatprep.subr.mxu0 0.0
  %8268 = vmatpush1.xpose.msra.mxu0 0.0
  %8269 = vmatprep.subr.mxu0 0.0
  %8270 = vmatpush1.xpose.msra.mxu0 0.0
  %8271 = vmatprep.subr.mxu0 0.0
  %8272 = vmatpush1.xpose.msra.mxu0 0.0
  %8273 = vmatprep.subr.mxu0 0.0
  %8274 = vmatpush1.xpose.msra.mxu0 0.0
  %8275 = vmatprep.subr.mxu0 0.0
  %8276 = vmatpush1.xpose.msra.mxu0 0.0
  %8277 = vmatprep.subr.mxu0 0.0
  %8278 = vmatpush1.xpose.msra.mxu0 0.0
  %8279 = vmatprep.subr.mxu0 0.0
  %8280 = vmatpush1.xpose.msra.mxu0 0.0
  %8281 = vmatprep.subr.mxu0 0.0
  %8282 = vmatpush1.xpose.msra.mxu0 0.0
  %8283 = vmatprep.subr.mxu0 0.0
  %8284 = vmatpush1.xpose.msra.mxu0 0.0
  %8285 = vmatprep.subr.mxu0 0.0
  %8286 = vmatpush1.xpose.msra.mxu0 0.0
  %8287 = vmatprep.subr.mxu0 0.0
  %8288 = vmatpush1.xpose.msra.mxu0 0.0
  %8289 = vmatprep.subr.mxu0 0.0
  %8290 = vmatpush1.xpose.msra.mxu0 0.0
  %8291 = vmatprep.subr.mxu0 0.0
  %8292 = vmatpush1.xpose.msra.mxu0 0.0
  %8293 = vmatprep.subr.mxu0 0.0
  %8294 = vmatpush1.xpose.msra.mxu0 0.0
  %8295 = vmatprep.subr.mxu0 0.0
  %8296 = vmatpush1.xpose.msra.mxu0 0.0
  %8297 = vmatprep.subr.mxu0 0.0
  %8298 = vmatpush1.xpose.msra.mxu0 0.0
  %8299 = vmatprep.subr.mxu0 0.0
  %8300 = vmatpush1.xpose.msra.mxu0 0.0
  %8301 = vmatprep.subr.mxu0 0.0
  %8302 = vmatpush1.xpose.msra.mxu0 0.0
  %8303 = vmatprep.subr.mxu0 0.0
  %8304 = vmatpush1.xpose.msra.mxu0 0.0
  %8305 = vmatprep.subr.mxu0 0.0
  %8306 = vmatpush1.xpose.msra.mxu0 0.0
  %8307 = vmatprep.mubr.f32.mxu0 0.0
  %8308 = vmatmul.mubr.f32.gmra.mrb[0].mxu0 %v8235
  %v8309 = vpop.f32.mrb[0].mxu0
  %v8310 = vadd.f32 0.0, %v8309
  %v8311 = vpop.f32.mrb[0].mxu0
  %8312 = vmatprep.mubr.f32.mxu0 0.0
  %8313 = vmatmul.mubr.f32.gmra.mrb[0].mxu0 %v8237
  %v8314 = vpop.f32.mrb[0].mxu0
  %v8315 = vadd.f32 0.0, %v8314
  %v8316 = vpop.f32.mrb[0].mxu0
  %8317 = vdwg.mxu0
  %v8318 = vsel %vm6392, %v8310, -inf
  %8319 = vmax.xlane.f32.xlu0 %v8318
  %v8320 = vpop.xlane.xlu0 %8319
  %v8321 = vsel %vm6392, %v8315, -inf
  %8322 = vmax.xlane.f32.xlu0 %v8321
  %v8323 = vpop.xlane.xlu0 %8322
  %v8324 = vsub.f32 %v8310, %v8320
  %v8325 = vsub.f32 %v8315, %v8323
  %v8326 = vmul.f32 %v8324, 1.442695
  %v8327 = vpow.pop %v8326
  %v8328 = vmul.f32 %v8325, 1.442695
  %v8329 = vpow.pop %v8328
  %v8330 = vsel %vm6392, %v8327, 0.0
  %8331 = vadd.xlane.f32.xlu0 %v8330
  %v8332 = vpop.xlane.xlu0 %8331
  %v8333 = vsel %vm6392, %v8329, 0.0
  %8334 = vadd.xlane.f32.xlu0 %v8333
  %v8335 = vpop.xlane.xlu0 %8334
  %v8336 = vrcp.pop %v8332
  %v8337 = vrcp.pop %v8335
  %v8338 = vmul.f32 %v8327, %v8336
  %v8339 = vmul.f32 %v8329, %v8337
  %8340 = vrot.lane.b32.xlu0 %v6360, 48
  %v8341 = vpop.permute.xlu0 %8340
  %8342 = vrot.lane.b32.xlu0 %v6363, 48
  %v8343 = vpop.permute.xlu0 %8342
  %v8347 = vsel %vm6392, %v8338, 0
  %v8350 = vsel %vm6392, %v8339, 0
  %8352 = vmatprep.subr.mxu0 0.0
  %8353 = vmatpush1.msra.mxu0 %v8341
  %8354 = vmatprep.subr.mxu0 0.0
  %8355 = vmatpush1.msra.mxu0 %v8343
  %8356 = vmatprep.subr.mxu0 0.0
  %8357 = vmatpush1.msra.mxu0 0.0
  %8358 = vmatprep.subr.mxu0 0.0
  %8359 = vmatpush1.msra.mxu0 0.0
  %8360 = vmatprep.subr.mxu0 0.0
  %8361 = vmatpush1.msra.mxu0 0.0
  %8362 = vmatprep.subr.mxu0 0.0
  %8363 = vmatpush1.msra.mxu0 0.0
  %8364 = vmatprep.subr.mxu0 0.0
  %8365 = vmatpush1.msra.mxu0 0.0
  %8366 = vmatprep.subr.mxu0 0.0
  %8367 = vmatpush1.msra.mxu0 0.0
  %8368 = vmatprep.subr.mxu0 0.0
  %8369 = vmatpush1.msra.mxu0 0.0
  %8370 = vmatprep.subr.mxu0 0.0
  %8371 = vmatpush1.msra.mxu0 0.0
  %8372 = vmatprep.subr.mxu0 0.0
  %8373 = vmatpush1.msra.mxu0 0.0
  %8374 = vmatprep.subr.mxu0 0.0
  %8375 = vmatpush1.msra.mxu0 0.0
  %8376 = vmatprep.subr.mxu0 0.0
  %8377 = vmatpush1.msra.mxu0 0.0
  %8378 = vmatprep.subr.mxu0 0.0
  %8379 = vmatpush1.msra.mxu0 0.0
  %8380 = vmatprep.subr.mxu0 0.0
  %8381 = vmatpush1.msra.mxu0 0.0
  %8382 = vmatprep.subr.mxu0 0.0
  %8383 = vmatpush1.msra.mxu0 0.0
  %8384 = vmatprep.subr.mxu0 0.0
  %8385 = vmatpush1.msra.mxu0 0.0
  %8386 = vmatprep.subr.mxu0 0.0
  %8387 = vmatpush1.msra.mxu0 0.0
  %8388 = vmatprep.subr.mxu0 0.0
  %8389 = vmatpush1.msra.mxu0 0.0
  %8390 = vmatprep.subr.mxu0 0.0
  %8391 = vmatpush1.msra.mxu0 0.0
  %8392 = vmatprep.subr.mxu0 0.0
  %8393 = vmatpush1.msra.mxu0 0.0
  %8394 = vmatprep.subr.mxu0 0.0
  %8395 = vmatpush1.msra.mxu0 0.0
  %8396 = vmatprep.subr.mxu0 0.0
  %8397 = vmatpush1.msra.mxu0 0.0
  %8398 = vmatprep.subr.mxu0 0.0
  %8399 = vmatpush1.msra.mxu0 0.0
  %8400 = vmatprep.subr.mxu0 0.0
  %8401 = vmatpush1.msra.mxu0 0.0
  %8402 = vmatprep.subr.mxu0 0.0
  %8403 = vmatpush1.msra.mxu0 0.0
  %8404 = vmatprep.subr.mxu0 0.0
  %8405 = vmatpush1.msra.mxu0 0.0
  %8406 = vmatprep.subr.mxu0 0.0
  %8407 = vmatpush1.msra.mxu0 0.0
  %8408 = vmatprep.subr.mxu0 0.0
  %8409 = vmatpush1.msra.mxu0 0.0
  %8410 = vmatprep.subr.mxu0 0.0
  %8411 = vmatpush1.msra.mxu0 0.0
  %8412 = vmatprep.subr.mxu0 0.0
  %8413 = vmatpush1.msra.mxu0 0.0
  %8414 = vmatprep.subr.mxu0 0.0
  %8415 = vmatpush1.msra.mxu0 0.0
  %8416 = vmatprep.mubr.f32.mxu0 0.0
  %8417 = vmatmul.mubr.f32.gmra.mrb[0].mxu0 %v8347
  %v8418 = vpop.f32.mrb[0].mxu0
  %v8419 = vadd.f32 0.0, %v8418
  %v8420 = vpop.f32.mrb[0].mxu0
  %8421 = vmatprep.mubr.f32.mxu0 0.0
  %8422 = vmatmul.mubr.f32.gmra.mrb[0].mxu0 %v8350
  %v8423 = vpop.f32.mrb[0].mxu0
  %v8424 = vadd.f32 0.0, %v8423
  %v8425 = vpop.f32.mrb[0].mxu0
  %8426 = vdwg.mxu0
  %8429 = vrot.lane.b32.xlu0 %v8419, 16
  %v8430 = vpop.permute.xlu0 %8429
  %8431 = vrot.lane.b32.xlu0 %v8424, 16
  %v8432 = vpop.permute.xlu0 %8431
  %v8435 = vsel %vm6392, %v8219, %v8430
  %v8436 = vsel %vm6392, %v8224, %v8432
  %8439 = vrot.lane.b32.xlu0 %v6368, 96
  %v8440 = vpop.permute.xlu0 %8439
  %8441 = vrot.lane.b32.xlu0 %v6371, 96
  %v8442 = vpop.permute.xlu0 %8441
  %v8444 = vsel %vm6392, %v6384, 0
  %v8447 = vsel %vm6392, %v6385, 0
  %v8449 = vsel %vm6392, %v8440, 0
  %v8451 = vsel %vm6392, %v8442, 0
  %8453 = vmatprep.subr.mxu0 0.0
  %8454 = vmatpush1.xpose.msra.mxu0 %v8449
  %8455 = vmatprep.subr.mxu0 0.0
  %8456 = vmatpush1.xpose.msra.mxu0 %v8451
  %8457 = vmatprep.subr.mxu0 0.0
  %8458 = vmatpush1.xpose.msra.mxu0 0.0
  %8459 = vmatprep.subr.mxu0 0.0
  %8460 = vmatpush1.xpose.msra.mxu0 0.0
  %8461 = vmatprep.subr.mxu0 0.0
  %8462 = vmatpush1.xpose.msra.mxu0 0.0
  %8463 = vmatprep.subr.mxu0 0.0
  %8464 = vmatpush1.xpose.msra.mxu0 0.0
  %8465 = vmatprep.subr.mxu0 0.0
  %8466 = vmatpush1.xpose.msra.mxu0 0.0
  %8467 = vmatprep.subr.mxu0 0.0
  %8468 = vmatpush1.xpose.msra.mxu0 0.0
  %8469 = vmatprep.subr.mxu0 0.0
  %8470 = vmatpush1.xpose.msra.mxu0 0.0
  %8471 = vmatprep.subr.mxu0 0.0
  %8472 = vmatpush1.xpose.msra.mxu0 0.0
  %8473 = vmatprep.subr.mxu0 0.0
  %8474 = vmatpush1.xpose.msra.mxu0 0.0
  %8475 = vmatprep.subr.mxu0 0.0
  %8476 = vmatpush1.xpose.msra.mxu0 0.0
  %8477 = vmatprep.subr.mxu0 0.0
  %8478 = vmatpush1.xpose.msra.mxu0 0.0
  %8479 = vmatprep.subr.mxu0 0.0
  %8480 = vmatpush1.xpose.msra.mxu0 0.0
  %8481 = vmatprep.subr.mxu0 0.0
  %8482 = vmatpush1.xpose.msra.mxu0 0.0
  %8483 = vmatprep.subr.mxu0 0.0
  %8484 = vmatpush1.xpose.msra.mxu0 0.0
  %8485 = vmatprep.subr.mxu0 0.0
  %8486 = vmatpush1.xpose.msra.mxu0 0.0
  %8487 = vmatprep.subr.mxu0 0.0
  %8488 = vmatpush1.xpose.msra.mxu0 0.0
  %8489 = vmatprep.subr.mxu0 0.0
  %8490 = vmatpush1.xpose.msra.mxu0 0.0
  %8491 = vmatprep.subr.mxu0 0.0
  %8492 = vmatpush1.xpose.msra.mxu0 0.0
  %8493 = vmatprep.subr.mxu0 0.0
  %8494 = vmatpush1.xpose.msra.mxu0 0.0
  %8495 = vmatprep.subr.mxu0 0.0
  %8496 = vmatpush1.xpose.msra.mxu0 0.0
  %8497 = vmatprep.subr.mxu0 0.0
  %8498 = vmatpush1.xpose.msra.mxu0 0.0
  %8499 = vmatprep.subr.mxu0 0.0
  %8500 = vmatpush1.xpose.msra.mxu0 0.0
  %8501 = vmatprep.subr.mxu0 0.0
  %8502 = vmatpush1.xpose.msra.mxu0 0.0
  %8503 = vmatprep.subr.mxu0 0.0
  %8504 = vmatpush1.xpose.msra.mxu0 0.0
  %8505 = vmatprep.subr.mxu0 0.0
  %8506 = vmatpush1.xpose.msra.mxu0 0.0
  %8507 = vmatprep.subr.mxu0 0.0
  %8508 = vmatpush1.xpose.msra.mxu0 0.0
  %8509 = vmatprep.subr.mxu0 0.0
  %8510 = vmatpush1.xpose.msra.mxu0 0.0
  %8511 = vmatprep.subr.mxu0 0.0
  %8512 = vmatpush1.xpose.msra.mxu0 0.0
  %8513 = vmatprep.subr.mxu0 0.0
  %8514 = vmatpush1.xpose.msra.mxu0 0.0
  %8515 = vmatprep.subr.mxu0 0.0
  %8516 = vmatpush1.xpose.msra.mxu0 0.0
  %8517 = vmatprep.mubr.f32.mxu0 0.0
  %8518 = vmatmul.mubr.f32.gmra.mrb[0].mxu0 %v8444
  %v8519 = vpop.f32.mrb[0].mxu0
  %v8520 = vadd.f32 0.0, %v8519
  %v8521 = vpop.f32.mrb[0].mxu0
  %8522 = vmatprep.mubr.f32.mxu0 0.0
  %8523 = vmatmul.mubr.f32.gmra.mrb[0].mxu0 %v8447
  %v8524 = vpop.f32.mrb[0].mxu0
  %v8525 = vadd.f32 0.0, %v8524
  %v8526 = vpop.f32.mrb[0].mxu0
  %8527 = vdwg.mxu0
  %v8528 = vsel %vm6392, %v8520, -inf
  %8529 = vmax.xlane.f32.xlu0 %v8528
  %v8530 = vpop.xlane.xlu0 %8529
  %v8531 = vsel %vm6392, %v8525, -inf
  %8532 = vmax.xlane.f32.xlu0 %v8531
  %v8533 = vpop.xlane.xlu0 %8532
  %v8534 = vsub.f32 %v8520, %v8530
  %v8535 = vsub.f32 %v8525, %v8533
  %v8536 = vmul.f32 %v8534, 1.442695
  %v8537 = vpow.pop %v8536
  %v8538 = vmul.f32 %v8535, 1.442695
  %v8539 = vpow.pop %v8538
  %v8540 = vsel %vm6392, %v8537, 0.0
  %8541 = vadd.xlane.f32.xlu0 %v8540
  %v8542 = vpop.xlane.xlu0 %8541
  %v8543 = vsel %vm6392, %v8539, 0.0
  %8544 = vadd.xlane.f32.xlu0 %v8543
  %v8545 = vpop.xlane.xlu0 %8544
  %v8546 = vrcp.pop %v8542
  %v8547 = vrcp.pop %v8545
  %v8548 = vmul.f32 %v8537, %v8546
  %v8549 = vmul.f32 %v8539, %v8547
  %8550 = vrot.lane.b32.xlu0 %v6368, 64
  %v8551 = vpop.permute.xlu0 %8550
  %8552 = vrot.lane.b32.xlu0 %v6371, 64
  %v8553 = vpop.permute.xlu0 %8552
  %v8557 = vsel %vm6392, %v8548, 0
  %v8560 = vsel %vm6392, %v8549, 0
  %8562 = vmatprep.subr.mxu0 0.0
  %8563 = vmatpush1.msra.mxu0 %v8551
  %8564 = vmatprep.subr.mxu0 0.0
  %8565 = vmatpush1.msra.mxu0 %v8553
  %8566 = vmatprep.subr.mxu0 0.0
  %8567 = vmatpush1.msra.mxu0 0.0
  %8568 = vmatprep.subr.mxu0 0.0
  %8569 = vmatpush1.msra.mxu0 0.0
  %8570 = vmatprep.subr.mxu0 0.0
  %8571 = vmatpush1.msra.mxu0 0.0
  %8572 = vmatprep.subr.mxu0 0.0
  %8573 = vmatpush1.msra.mxu0 0.0
  %8574 = vmatprep.subr.mxu0 0.0
  %8575 = vmatpush1.msra.mxu0 0.0
  %8576 = vmatprep.subr.mxu0 0.0
  %8577 = vmatpush1.msra.mxu0 0.0
  %8578 = vmatprep.subr.mxu0 0.0
  %8579 = vmatpush1.msra.mxu0 0.0
  %8580 = vmatprep.subr.mxu0 0.0
  %8581 = vmatpush1.msra.mxu0 0.0
  %8582 = vmatprep.subr.mxu0 0.0
  %8583 = vmatpush1.msra.mxu0 0.0
  %8584 = vmatprep.subr.mxu0 0.0
  %8585 = vmatpush1.msra.mxu0 0.0
  %8586 = vmatprep.subr.mxu0 0.0
  %8587 = vmatpush1.msra.mxu0 0.0
  %8588 = vmatprep.subr.mxu0 0.0
  %8589 = vmatpush1.msra.mxu0 0.0
  %8590 = vmatprep.subr.mxu0 0.0
  %8591 = vmatpush1.msra.mxu0 0.0
  %8592 = vmatprep.subr.mxu0 0.0
  %8593 = vmatpush1.msra.mxu0 0.0
  %8594 = vmatprep.subr.mxu0 0.0
  %8595 = vmatpush1.msra.mxu0 0.0
  %8596 = vmatprep.subr.mxu0 0.0
  %8597 = vmatpush1.msra.mxu0 0.0
  %8598 = vmatprep.subr.mxu0 0.0
  %8599 = vmatpush1.msra.mxu0 0.0
  %8600 = vmatprep.subr.mxu0 0.0
  %8601 = vmatpush1.msra.mxu0 0.0
  %8602 = vmatprep.subr.mxu0 0.0
  %8603 = vmatpush1.msra.mxu0 0.0
  %8604 = vmatprep.subr.mxu0 0.0
  %8605 = vmatpush1.msra.mxu0 0.0
  %8606 = vmatprep.subr.mxu0 0.0
  %8607 = vmatpush1.msra.mxu0 0.0
  %8608 = vmatprep.subr.mxu0 0.0
  %8609 = vmatpush1.msra.mxu0 0.0
  %8610 = vmatprep.subr.mxu0 0.0
  %8611 = vmatpush1.msra.mxu0 0.0
  %8612 = vmatprep.subr.mxu0 0.0
  %8613 = vmatpush1.msra.mxu0 0.0
  %8614 = vmatprep.subr.mxu0 0.0
  %8615 = vmatpush1.msra.mxu0 0.0
  %8616 = vmatprep.subr.mxu0 0.0
  %8617 = vmatpush1.msra.mxu0 0.0
  %8618 = vmatprep.subr.mxu0 0.0
  %8619 = vmatpush1.msra.mxu0 0.0
  %8620 = vmatprep.subr.mxu0 0.0
  %8621 = vmatpush1.msra.mxu0 0.0
  %8622 = vmatprep.subr.mxu0 0.0
  %8623 = vmatpush1.msra.mxu0 0.0
  %8624 = vmatprep.subr.mxu0 0.0
  %8625 = vmatpush1.msra.mxu0 0.0
  %8626 = vmatprep.mubr.f32.mxu0 0.0
  %8627 = vmatmul.mubr.f32.gmra.mrb[0].mxu0 %v8557
  %v8628 = vpop.f32.mrb[0].mxu0
  %v8629 = vadd.f32 0.0, %v8628
  %v8630 = vpop.f32.mrb[0].mxu0
  %8631 = vmatprep.mubr.f32.mxu0 0.0
  %8632 = vmatmul.mubr.f32.gmra.mrb[0].mxu0 %v8560
  %v8633 = vpop.f32.mrb[0].mxu0
  %v8634 = vadd.f32 0.0, %v8633
  %v8635 = vpop.f32.mrb[0].mxu0
  %8636 = vdwg.mxu0
  %8637 = vrot.lane.b32.xlu0 %v6384, 112
  %v8638 = vpop.permute.xlu0 %8637
  %8639 = vrot.lane.b32.xlu0 %v6385, 112
  %v8640 = vpop.permute.xlu0 %8639
  %8641 = vrot.lane.b32.xlu0 %v6368, 80
  %v8642 = vpop.permute.xlu0 %8641
  %8643 = vrot.lane.b32.xlu0 %v6371, 80
  %v8644 = vpop.permute.xlu0 %8643
  %v8645 = vsel %vm6392, %v8638, 0
  %v8647 = vsel %vm6392, %v8640, 0
  %v8649 = vsel %vm6392, %v8642, 0
  %v8651 = vsel %vm6392, %v8644, 0
  %8653 = vmatprep.subr.mxu0 0.0
  %8654 = vmatpush1.xpose.msra.mxu0 %v8649
  %8655 = vmatprep.subr.mxu0 0.0
  %8656 = vmatpush1.xpose.msra.mxu0 %v8651
  %8657 = vmatprep.subr.mxu0 0.0
  %8658 = vmatpush1.xpose.msra.mxu0 0.0
  %8659 = vmatprep.subr.mxu0 0.0
  %8660 = vmatpush1.xpose.msra.mxu0 0.0
  %8661 = vmatprep.subr.mxu0 0.0
  %8662 = vmatpush1.xpose.msra.mxu0 0.0
  %8663 = vmatprep.subr.mxu0 0.0
  %8664 = vmatpush1.xpose.msra.mxu0 0.0
  %8665 = vmatprep.subr.mxu0 0.0
  %8666 = vmatpush1.xpose.msra.mxu0 0.0
  %8667 = vmatprep.subr.mxu0 0.0
  %8668 = vmatpush1.xpose.msra.mxu0 0.0
  %8669 = vmatprep.subr.mxu0 0.0
  %8670 = vmatpush1.xpose.msra.mxu0 0.0
  %8671 = vmatprep.subr.mxu0 0.0
  %8672 = vmatpush1.xpose.msra.mxu0 0.0
  %8673 = vmatprep.subr.mxu0 0.0
  %8674 = vmatpush1.xpose.msra.mxu0 0.0
  %8675 = vmatprep.subr.mxu0 0.0
  %8676 = vmatpush1.xpose.msra.mxu0 0.0
  %8677 = vmatprep.subr.mxu0 0.0
  %8678 = vmatpush1.xpose.msra.mxu0 0.0
  %8679 = vmatprep.subr.mxu0 0.0
  %8680 = vmatpush1.xpose.msra.mxu0 0.0
  %8681 = vmatprep.subr.mxu0 0.0
  %8682 = vmatpush1.xpose.msra.mxu0 0.0
  %8683 = vmatprep.subr.mxu0 0.0
  %8684 = vmatpush1.xpose.msra.mxu0 0.0
  %8685 = vmatprep.subr.mxu0 0.0
  %8686 = vmatpush1.xpose.msra.mxu0 0.0
  %8687 = vmatprep.subr.mxu0 0.0
  %8688 = vmatpush1.xpose.msra.mxu0 0.0
  %8689 = vmatprep.subr.mxu0 0.0
  %8690 = vmatpush1.xpose.msra.mxu0 0.0
  %8691 = vmatprep.subr.mxu0 0.0
  %8692 = vmatpush1.xpose.msra.mxu0 0.0
  %8693 = vmatprep.subr.mxu0 0.0
  %8694 = vmatpush1.xpose.msra.mxu0 0.0
  %8695 = vmatprep.subr.mxu0 0.0
  %8696 = vmatpush1.xpose.msra.mxu0 0.0
  %8697 = vmatprep.subr.mxu0 0.0
  %8698 = vmatpush1.xpose.msra.mxu0 0.0
  %8699 = vmatprep.subr.mxu0 0.0
  %8700 = vmatpush1.xpose.msra.mxu0 0.0
  %8701 = vmatprep.subr.mxu0 0.0
  %8702 = vmatpush1.xpose.msra.mxu0 0.0
  %8703 = vmatprep.subr.mxu0 0.0
  %8704 = vmatpush1.xpose.msra.mxu0 0.0
  %8705 = vmatprep.subr.mxu0 0.0
  %8706 = vmatpush1.xpose.msra.mxu0 0.0
  %8707 = vmatprep.subr.mxu0 0.0
  %8708 = vmatpush1.xpose.msra.mxu0 0.0
  %8709 = vmatprep.subr.mxu0 0.0
  %8710 = vmatpush1.xpose.msra.mxu0 0.0
  %8711 = vmatprep.subr.mxu0 0.0
  %8712 = vmatpush1.xpose.msra.mxu0 0.0
  %8713 = vmatprep.subr.mxu0 0.0
  %8714 = vmatpush1.xpose.msra.mxu0 0.0
  %8715 = vmatprep.subr.mxu0 0.0
  %8716 = vmatpush1.xpose.msra.mxu0 0.0
  %8717 = vmatprep.mubr.f32.mxu0 0.0
  %8718 = vmatmul.mubr.f32.gmra.mrb[0].mxu0 %v8645
  %v8719 = vpop.f32.mrb[0].mxu0
  %v8720 = vadd.f32 0.0, %v8719
  %v8721 = vpop.f32.mrb[0].mxu0
  %8722 = vmatprep.mubr.f32.mxu0 0.0
  %8723 = vmatmul.mubr.f32.gmra.mrb[0].mxu0 %v8647
  %v8724 = vpop.f32.mrb[0].mxu0
  %v8725 = vadd.f32 0.0, %v8724
  %v8726 = vpop.f32.mrb[0].mxu0
  %8727 = vdwg.mxu0
  %v8728 = vsel %vm6392, %v8720, -inf
  %8729 = vmax.xlane.f32.xlu0 %v8728
  %v8730 = vpop.xlane.xlu0 %8729
  %v8731 = vsel %vm6392, %v8725, -inf
  %8732 = vmax.xlane.f32.xlu0 %v8731
  %v8733 = vpop.xlane.xlu0 %8732
  %v8734 = vsub.f32 %v8720, %v8730
  %v8735 = vsub.f32 %v8725, %v8733
  %v8736 = vmul.f32 %v8734, 1.442695
  %v8737 = vpow.pop %v8736
  %v8738 = vmul.f32 %v8735, 1.442695
  %v8739 = vpow.pop %v8738
  %v8740 = vsel %vm6392, %v8737, 0.0
  %8741 = vadd.xlane.f32.xlu0 %v8740
  %v8742 = vpop.xlane.xlu0 %8741
  %v8743 = vsel %vm6392, %v8739, 0.0
  %8744 = vadd.xlane.f32.xlu0 %v8743
  %v8745 = vpop.xlane.xlu0 %8744
  %v8746 = vrcp.pop %v8742
  %v8747 = vrcp.pop %v8745
  %v8748 = vmul.f32 %v8737, %v8746
  %v8749 = vmul.f32 %v8739, %v8747
  %8750 = vrot.lane.b32.xlu0 %v6368, 48
  %v8751 = vpop.permute.xlu0 %8750
  %8752 = vrot.lane.b32.xlu0 %v6371, 48
  %v8753 = vpop.permute.xlu0 %8752
  %v8757 = vsel %vm6392, %v8748, 0
  %v8760 = vsel %vm6392, %v8749, 0
  %8762 = vmatprep.subr.mxu0 0.0
  %8763 = vmatpush1.msra.mxu0 %v8751
  %8764 = vmatprep.subr.mxu0 0.0
  %8765 = vmatpush1.msra.mxu0 %v8753
  %8766 = vmatprep.subr.mxu0 0.0
  %8767 = vmatpush1.msra.mxu0 0.0
  %8768 = vmatprep.subr.mxu0 0.0
  %8769 = vmatpush1.msra.mxu0 0.0
  %8770 = vmatprep.subr.mxu0 0.0
  %8771 = vmatpush1.msra.mxu0 0.0
  %8772 = vmatprep.subr.mxu0 0.0
  %8773 = vmatpush1.msra.mxu0 0.0
  %8774 = vmatprep.subr.mxu0 0.0
  %8775 = vmatpush1.msra.mxu0 0.0
  %8776 = vmatprep.subr.mxu0 0.0
  %8777 = vmatpush1.msra.mxu0 0.0
  %8778 = vmatprep.subr.mxu0 0.0
  %8779 = vmatpush1.msra.mxu0 0.0
  %8780 = vmatprep.subr.mxu0 0.0
  %8781 = vmatpush1.msra.mxu0 0.0
  %8782 = vmatprep.subr.mxu0 0.0
  %8783 = vmatpush1.msra.mxu0 0.0
  %8784 = vmatprep.subr.mxu0 0.0
  %8785 = vmatpush1.msra.mxu0 0.0
  %8786 = vmatprep.subr.mxu0 0.0
  %8787 = vmatpush1.msra.mxu0 0.0
  %8788 = vmatprep.subr.mxu0 0.0
  %8789 = vmatpush1.msra.mxu0 0.0
  %8790 = vmatprep.subr.mxu0 0.0
  %8791 = vmatpush1.msra.mxu0 0.0
  %8792 = vmatprep.subr.mxu0 0.0
  %8793 = vmatpush1.msra.mxu0 0.0
  %8794 = vmatprep.subr.mxu0 0.0
  %8795 = vmatpush1.msra.mxu0 0.0
  %8796 = vmatprep.subr.mxu0 0.0
  %8797 = vmatpush1.msra.mxu0 0.0
  %8798 = vmatprep.subr.mxu0 0.0
  %8799 = vmatpush1.msra.mxu0 0.0
  %8800 = vmatprep.subr.mxu0 0.0
  %8801 = vmatpush1.msra.mxu0 0.0
  %8802 = vmatprep.subr.mxu0 0.0
  %8803 = vmatpush1.msra.mxu0 0.0
  %8804 = vmatprep.subr.mxu0 0.0
  %8805 = vmatpush1.msra.mxu0 0.0
  %8806 = vmatprep.subr.mxu0 0.0
  %8807 = vmatpush1.msra.mxu0 0.0
  %8808 = vmatprep.subr.mxu0 0.0
  %8809 = vmatpush1.msra.mxu0 0.0
  %8810 = vmatprep.subr.mxu0 0.0
  %8811 = vmatpush1.msra.mxu0 0.0
  %8812 = vmatprep.subr.mxu0 0.0
  %8813 = vmatpush1.msra.mxu0 0.0
  %8814 = vmatprep.subr.mxu0 0.0
  %8815 = vmatpush1.msra.mxu0 0.0
  %8816 = vmatprep.subr.mxu0 0.0
  %8817 = vmatpush1.msra.mxu0 0.0
  %8818 = vmatprep.subr.mxu0 0.0
  %8819 = vmatpush1.msra.mxu0 0.0
  %8820 = vmatprep.subr.mxu0 0.0
  %8821 = vmatpush1.msra.mxu0 0.0
  %8822 = vmatprep.subr.mxu0 0.0
  %8823 = vmatpush1.msra.mxu0 0.0
  %8824 = vmatprep.subr.mxu0 0.0
  %8825 = vmatpush1.msra.mxu0 0.0
  %8826 = vmatprep.mubr.f32.mxu0 0.0
  %8827 = vmatmul.mubr.f32.gmra.mrb[0].mxu0 %v8757
  %v8828 = vpop.f32.mrb[0].mxu0
  %v8829 = vadd.f32 0.0, %v8828
  %v8830 = vpop.f32.mrb[0].mxu0
  %8831 = vmatprep.mubr.f32.mxu0 0.0
  %8832 = vmatmul.mubr.f32.gmra.mrb[0].mxu0 %v8760
  %v8833 = vpop.f32.mrb[0].mxu0
  %v8834 = vadd.f32 0.0, %v8833
  %v8835 = vpop.f32.mrb[0].mxu0
  %8836 = vdwg.mxu0
  %8839 = vrot.lane.b32.xlu0 %v8829, 16
  %v8840 = vpop.permute.xlu0 %8839
  %8841 = vrot.lane.b32.xlu0 %v8834, 16
  %v8842 = vpop.permute.xlu0 %8841
  %v8845 = vsel %vm6392, %v8629, %v8840
  %v8846 = vsel %vm6392, %v8634, %v8842
  %v8847 = vpack.c.bf16 %v6796, %v6795
  %v8848 = vpack.c.bf16 %v7206, %v7205
  %v8849 = vpack.c.bf16 %v7616, %v7615
  %v8850 = vpack.c.bf16 %v8026, %v8025
  %v8851 = vpack.c.bf16 %v8436, %v8435
  %v8852 = vpack.c.bf16 %v8846, %v8845
  %v8853 = vld [vmem:[%s7] sm:$0xf]
  %v8854 = vld [vmem:[%s7 + $0x4] sm:$0xf]
  %v8855 = vld [vmem:[%s7 + $0x8] sm:$0xf]
  %v8856 = vld [vmem:[%s7 + $0xc] sm:$0xf]
  %v8857 = vld [vmem:[%s8] sm:$0x1]
  %v8859 = vlaneseq
  %v8860 = vshrl.u32 %v8859, 7
  %v8861 = vsub.s32 0, %v8860
  %v8862 = vrot.slane %v8857, %v8861
  %v8868 = vunpack.c.l.b16 %v8853
  %v8869 = vunpack.c.l.b16 %v8854
  %v8870 = vunpack.c.l.b16 %v8855
  %v8871 = vunpack.c.l.b16 %v8856
  %v8872 = vpack.c.b16 %v8869, %v8868
  %v8873 = vpack.c.b16 %v8871, %v8870
  %v8877 = vsel %vm6274, %v8847, 0
  %v8880 = vsel %vm6274, %v8848, 0
  %v8883 = vsel %vm6274, %v8849, 0
  %v8886 = vsel %vm6274, %v8850, 0
  %v8889 = vsel %vm6274, %v8851, 0
  %v8892 = vsel %vm6274, %v8852, 0
  %8894 = vmatprep.subr.bf16.mxu0 0
  %8895 = vmatpush1.bf16.msra.mxu0 %v8872
  %8896 = vmatprep.subr.bf16.mxu0 0
  %8897 = vmatpush1.bf16.msra.mxu0 %v8873
  %8898 = vmatprep.subr.bf16.mxu0 0
  %8899 = vmatpush1.bf16.msra.mxu0 0
  %8900 = vmatprep.subr.bf16.mxu0 0
  %8901 = vmatpush1.bf16.msra.mxu0 0
  %8902 = vmatprep.subr.bf16.mxu0 0
  %8903 = vmatpush1.bf16.msra.mxu0 0
  %8904 = vmatprep.subr.bf16.mxu0 0
  %8905 = vmatpush1.bf16.msra.mxu0 0
  %8906 = vmatprep.subr.bf16.mxu0 0
  %8907 = vmatpush1.bf16.msra.mxu0 0
  %8908 = vmatprep.subr.bf16.mxu0 0
  %8909 = vmatpush1.bf16.msra.mxu0 0
  %8910 = vmatprep.subr.bf16.mxu0 0
  %8911 = vmatpush1.bf16.msra.mxu0 0
  %8912 = vmatprep.subr.bf16.mxu0 0
  %8913 = vmatpush1.bf16.msra.mxu0 0
  %8914 = vmatprep.subr.bf16.mxu0 0
  %8915 = vmatpush1.bf16.msra.mxu0 0
  %8916 = vmatprep.subr.bf16.mxu0 0
  %8917 = vmatpush1.bf16.msra.mxu0 0
  %8918 = vmatprep.subr.bf16.mxu0 0
  %8919 = vmatpush1.bf16.msra.mxu0 0
  %8920 = vmatprep.subr.bf16.mxu0 0
  %8921 = vmatpush1.bf16.msra.mxu0 0
  %8922 = vmatprep.subr.bf16.mxu0 0
  %8923 = vmatpush1.bf16.msra.mxu0 0
  %8924 = vmatprep.subr.bf16.mxu0 0
  %8925 = vmatpush1.bf16.msra.mxu0 0
  %8926 = vmatprep.mubr.bf16.mxu0 0
  %8927 = vmatmul.mubr.bf16.gmra.mrb[0].mxu0 %v8877
  %v8928 = vpop.f32.mrb[0].mxu0
  %v8929 = vadd.f32 %v8862, %v8928
  %v8930 = vpop.f32.mrb[0].mxu0
  %v8931 = vpop.f32.mrb[0].mxu0
  %v8932 = vadd.f32 %v8862, %v8931
  %v8933 = vpop.f32.mrb[0].mxu0
  %8934 = vmatprep.mubr.bf16.mxu0 0
  %8935 = vmatmul.mubr.bf16.gmra.mrb[0].mxu0 %v8880
  %v8936 = vpop.f32.mrb[0].mxu0
  %v8937 = vadd.f32 %v8862, %v8936
  %v8938 = vpop.f32.mrb[0].mxu0
  %v8939 = vpop.f32.mrb[0].mxu0
  %v8940 = vadd.f32 %v8862, %v8939
  %v8941 = vpop.f32.mrb[0].mxu0
  %8942 = vmatprep.mubr.bf16.mxu0 0
  %8943 = vmatmul.mubr.bf16.gmra.mrb[0].mxu0 %v8883
  %v8944 = vpop.f32.mrb[0].mxu0
  %v8945 = vadd.f32 %v8862, %v8944
  %v8946 = vpop.f32.mrb[0].mxu0
  %v8947 = vpop.f32.mrb[0].mxu0
  %v8948 = vadd.f32 %v8862, %v8947
  %v8949 = vpop.f32.mrb[0].mxu0
  %8950 = vmatprep.mubr.bf16.mxu0 0
  %8951 = vmatmul.mubr.bf16.gmra.mrb[0].mxu0 %v8886
  %v8952 = vpop.f32.mrb[0].mxu0
  %v8953 = vadd.f32 %v8862, %v8952
  %v8954 = vpop.f32.mrb[0].mxu0
  %v8955 = vpop.f32.mrb[0].mxu0
  %v8956 = vadd.f32 %v8862, %v8955
  %v8957 = vpop.f32.mrb[0].mxu0
  %8958 = vmatprep.mubr.bf16.mxu0 0
  %8959 = vmatmul.mubr.bf16.gmra.mrb[0].mxu0 %v8889
  %v8960 = vpop.f32.mrb[0].mxu0
  %v8961 = vadd.f32 %v8862, %v8960
  %v8962 = vpop.f32.mrb[0].mxu0
  %v8963 = vpop.f32.mrb[0].mxu0
  %v8964 = vadd.f32 %v8862, %v8963
  %v8965 = vpop.f32.mrb[0].mxu0
  %8966 = vmatprep.mubr.bf16.mxu0 0
  %8967 = vmatmul.mubr.bf16.gmra.mrb[0].mxu0 %v8892
  %v8968 = vpop.f32.mrb[0].mxu0
  %v8969 = vadd.f32 %v8862, %v8968
  %v8970 = vpop.f32.mrb[0].mxu0
  %v8971 = vpop.f32.mrb[0].mxu0
  %v8972 = vadd.f32 %v8862, %v8971
  %v8973 = vpop.f32.mrb[0].mxu0
  %8974 = vdwg.mxu0
  %v8975 = vmul.f32 %v6199, %v8929
  %v8976 = vmul.f32 %v6202, %v8932
  %v8977 = vmul.f32 %v6207, %v8937
  %v8978 = vmul.f32 %v6210, %v8940
  %v8979 = vmul.f32 %v6215, %v8945
  %v8980 = vmul.f32 %v6218, %v8948
  %v8981 = vmul.f32 %v6223, %v8953
  %v8982 = vmul.f32 %v6226, %v8956
  %v8983 = vmul.f32 %v6231, %v8961
  %v8984 = vmul.f32 %v6234, %v8964
  %v8985 = vmul.f32 %v6239, %v8969
  %v8986 = vmul.f32 %v6242, %v8972
  %v8987 = vld [vmem:[%s9] sm:$0xff]
  %v8988 = vld [vmem:[%s9 + $0x8] sm:$0xff]
  %v8989 = vld [vmem:[%s9 + $0x10] sm:$0xff]
  %v8990 = vld [vmem:[%s9 + $0x18] sm:$0xff]
  %v8991 = vld [vmem:[%s9 + $0x20] sm:$0xff]
  %v8992 = vld [vmem:[%s9 + $0x28] sm:$0xff]
  %v8993 = vld [vmem:[%s9 + $0x30] sm:$0xff]
  %v8994 = vld [vmem:[%s9 + $0x38] sm:$0xff]
  %v8995 = vld [vmem:[%s9 + $0x40] sm:$0xff]
  %v8996 = vld [vmem:[%s9 + $0x48] sm:$0xff]
  %v8997 = vld [vmem:[%s9 + $0x50] sm:$0xff]
  %v8998 = vld [vmem:[%s9 + $0x58] sm:$0xff]
  %vm8999 = vcmask 785408
  %v9001 = vsel %vm8999, %v8987, 0
  %v9004 = vsel %vm8999, %v8988, 0
  %v9007 = vsel %vm8999, %v8989, 0
  %v9010 = vsel %vm8999, %v8990, 0
  %v9013 = vsel %vm8999, %v8991, 0
  %v9016 = vsel %vm8999, %v8992, 0
  %v9019 = vsel %vm8999, %v8993, 0
  %v9022 = vsel %vm8999, %v8994, 0
  %v9025 = vsel %vm8999, %v8995, 0
  %v9028 = vsel %vm8999, %v8996, 0
  %v9031 = vsel %vm8999, %v8997, 0
  %v9034 = vsel %vm8999, %v8998, 0
  %9036 = vmatprep.subr.mxu0 0.0
  %9037 = vmatpush1.msra.mxu0 %v8975
  %9038 = vmatprep.subr.mxu0 0.0
  %9039 = vmatpush1.msra.mxu0 %v8976
  %9040 = vmatprep.subr.mxu0 0.0
  %9041 = vmatpush1.msra.mxu0 %v8977
  %9042 = vmatprep.subr.mxu0 0.0
  %9043 = vmatpush1.msra.mxu0 %v8978
  %9044 = vmatprep.subr.mxu0 0.0
  %9045 = vmatpush1.msra.mxu0 %v8979
  %9046 = vmatprep.subr.mxu0 0.0
  %9047 = vmatpush1.msra.mxu0 %v8980
  %9048 = vmatprep.subr.mxu0 0.0
  %9049 = vmatpush1.msra.mxu0 %v8981
  %9050 = vmatprep.subr.mxu0 0.0
  %9051 = vmatpush1.msra.mxu0 %v8982
  %9052 = vmatprep.subr.mxu0 0.0
  %9053 = vmatpush1.msra.mxu0 %v8983
  %9054 = vmatprep.subr.mxu0 0.0
  %9055 = vmatpush1.msra.mxu0 %v8984
  %9056 = vmatprep.subr.mxu0 0.0
  %9057 = vmatpush1.msra.mxu0 %v8985
  %9058 = vmatprep.subr.mxu0 0.0
  %9059 = vmatpush1.msra.mxu0 %v8986
  %9060 = vmatprep.subr.mxu0 0.0
  %9061 = vmatpush1.msra.mxu0 0.0
  %9062 = vmatprep.subr.mxu0 0.0
  %9063 = vmatpush1.msra.mxu0 0.0
  %9064 = vmatprep.subr.mxu0 0.0
  %9065 = vmatpush1.msra.mxu0 0.0
  %9066 = vmatprep.subr.mxu0 0.0
  %9067 = vmatpush1.msra.mxu0 0.0
  %9068 = vmatprep.subr.mxu0 0.0
  %9069 = vmatpush1.msra.mxu0 0.0
  %9070 = vmatprep.subr.mxu0 0.0
  %9071 = vmatpush1.msra.mxu0 0.0
  %9072 = vmatprep.subr.mxu0 0.0
  %9073 = vmatpush1.msra.mxu0 0.0
  %9074 = vmatprep.subr.mxu0 0.0
  %9075 = vmatpush1.msra.mxu0 0.0
  %9076 = vmatprep.subr.mxu0 0.0
  %9077 = vmatpush1.msra.mxu0 0.0
  %9078 = vmatprep.subr.mxu0 0.0
  %9079 = vmatpush1.msra.mxu0 0.0
  %9080 = vmatprep.subr.mxu0 0.0
  %9081 = vmatpush1.msra.mxu0 0.0
  %9082 = vmatprep.subr.mxu0 0.0
  %9083 = vmatpush1.msra.mxu0 0.0
  %9084 = vmatprep.subr.mxu0 0.0
  %9085 = vmatpush1.msra.mxu0 0.0
  %9086 = vmatprep.subr.mxu0 0.0
  %9087 = vmatpush1.msra.mxu0 0.0
  %9088 = vmatprep.subr.mxu0 0.0
  %9089 = vmatpush1.msra.mxu0 0.0
  %9090 = vmatprep.subr.mxu0 0.0
  %9091 = vmatpush1.msra.mxu0 0.0
  %9092 = vmatprep.subr.mxu0 0.0
  %9093 = vmatpush1.msra.mxu0 0.0
  %9094 = vmatprep.subr.mxu0 0.0
  %9095 = vmatpush1.msra.mxu0 0.0
  %9096 = vmatprep.subr.mxu0 0.0
  %9097 = vmatpush1.msra.mxu0 0.0
  %9098 = vmatprep.subr.mxu0 0.0
  %9099 = vmatpush1.msra.mxu0 0.0
  %9100 = vmatprep.mubr.f32.mxu0 0.0
  %9101 = vmatmul.mubr.f32.gmra.mrb[0].mxu0 %v9001
  %v9102 = vpop.f32.mrb[0].mxu0
  %v9103 = vadd.f32 0.0, %v9102
  %v9104 = vpop.f32.mrb[0].mxu0
  %9105 = vmatprep.mubr.f32.mxu0 0.0
  %9106 = vmatmul.mubr.f32.gmra.mrb[0].mxu0 %v9004
  %v9107 = vpop.f32.mrb[0].mxu0
  %v9108 = vadd.f32 0.0, %v9107
  %v9109 = vpop.f32.mrb[0].mxu0
  %9110 = vmatprep.mubr.f32.mxu0 0.0
  %9111 = vmatmul.mubr.f32.gmra.mrb[0].mxu0 %v9007
  %v9112 = vpop.f32.mrb[0].mxu0
  %v9113 = vadd.f32 0.0, %v9112
  %v9114 = vpop.f32.mrb[0].mxu0
  %9115 = vmatprep.mubr.f32.mxu0 0.0
  %9116 = vmatmul.mubr.f32.gmra.mrb[0].mxu0 %v9010
  %v9117 = vpop.f32.mrb[0].mxu0
  %v9118 = vadd.f32 0.0, %v9117
  %v9119 = vpop.f32.mrb[0].mxu0
  %9120 = vmatprep.mubr.f32.mxu0 0.0
  %9121 = vmatmul.mubr.f32.gmra.mrb[0].mxu0 %v9013
  %v9122 = vpop.f32.mrb[0].mxu0
  %v9123 = vadd.f32 0.0, %v9122
  %v9124 = vpop.f32.mrb[0].mxu0
  %9125 = vmatprep.mubr.f32.mxu0 0.0
  %9126 = vmatmul.mubr.f32.gmra.mrb[0].mxu0 %v9016
  %v9127 = vpop.f32.mrb[0].mxu0
  %v9128 = vadd.f32 0.0, %v9127
  %v9129 = vpop.f32.mrb[0].mxu0
  %9130 = vmatprep.mubr.f32.mxu0 0.0
  %9131 = vmatmul.mubr.f32.gmra.mrb[0].mxu0 %v9019
  %v9132 = vpop.f32.mrb[0].mxu0
  %v9133 = vadd.f32 0.0, %v9132
  %v9134 = vpop.f32.mrb[0].mxu0
  %9135 = vmatprep.mubr.f32.mxu0 0.0
  %9136 = vmatmul.mubr.f32.gmra.mrb[0].mxu0 %v9022
  %v9137 = vpop.f32.mrb[0].mxu0
  %v9138 = vadd.f32 0.0, %v9137
  %v9139 = vpop.f32.mrb[0].mxu0
  %9140 = vmatprep.mubr.f32.mxu0 0.0
  %9141 = vmatmul.mubr.f32.gmra.mrb[0].mxu0 %v9025
  %v9142 = vpop.f32.mrb[0].mxu0
  %v9143 = vadd.f32 0.0, %v9142
  %v9144 = vpop.f32.mrb[0].mxu0
  %9145 = vmatprep.mubr.f32.mxu0 0.0
  %9146 = vmatmul.mubr.f32.gmra.mrb[0].mxu0 %v9028
  %v9147 = vpop.f32.mrb[0].mxu0
  %v9148 = vadd.f32 0.0, %v9147
  %v9149 = vpop.f32.mrb[0].mxu0
  %9150 = vmatprep.mubr.f32.mxu0 0.0
  %9151 = vmatmul.mubr.f32.gmra.mrb[0].mxu0 %v9031
  %v9152 = vpop.f32.mrb[0].mxu0
  %v9153 = vadd.f32 0.0, %v9152
  %v9154 = vpop.f32.mrb[0].mxu0
  %9155 = vmatprep.mubr.f32.mxu0 0.0
  %9156 = vmatmul.mubr.f32.gmra.mrb[0].mxu0 %v9034
  %v9157 = vpop.f32.mrb[0].mxu0
  %v9158 = vadd.f32 0.0, %v9157
  %v9159 = vpop.f32.mrb[0].mxu0
  %9160 = vdwg.mxu0
  %v9161 = vpack.c.bf16 %v9108, %v9103
  %v9162 = vpack.c.bf16 %v9118, %v9113
  %v9163 = vpack.c.bf16 %v9128, %v9123
  %v9164 = vpack.c.bf16 %v9138, %v9133
  %v9165 = vpack.c.bf16 %v9148, %v9143
  %v9166 = vpack.c.bf16 %v9158, %v9153
  %v9167 = vld [vmem:[%s10] sm:$0xf]
  %v9168 = vld [vmem:[%s10 + $0x4] sm:$0xf]
  %v9169 = vld [vmem:[%s10 + $0x8] sm:$0xf]
  %v9170 = vld [vmem:[%s10 + $0xc] sm:$0xf]
  %v9171 = vld [vmem:[%s11] sm:$0x1]
  %v9173 = vlaneseq
  %v9174 = vshrl.u32 %v9173, 7
  %v9175 = vsub.s32 0, %v9174
  %v9176 = vrot.slane %v9171, %v9175
  %v9182 = vunpack.c.l.b16 %v9167
  %v9183 = vunpack.c.l.b16 %v9168
  %v9184 = vunpack.c.l.b16 %v9169
  %v9185 = vunpack.c.l.b16 %v9170
  %v9186 = vpack.c.b16 %v9183, %v9182
  %v9187 = vpack.c.b16 %v9185, %v9184
  %v9191 = vsel %vm6274, %v9161, 0
  %v9194 = vsel %vm6274, %v9162, 0
  %v9197 = vsel %vm6274, %v9163, 0
  %v9200 = vsel %vm6274, %v9164, 0
  %v9203 = vsel %vm6274, %v9165, 0
  %v9206 = vsel %vm6274, %v9166, 0
  %9208 = vmatprep.subr.bf16.mxu0 0
  %9209 = vmatpush1.bf16.msra.mxu0 %v9186
  %9210 = vmatprep.subr.bf16.mxu0 0
  %9211 = vmatpush1.bf16.msra.mxu0 %v9187
  %9212 = vmatprep.subr.bf16.mxu0 0
  %9213 = vmatpush1.bf16.msra.mxu0 0
  %9214 = vmatprep.subr.bf16.mxu0 0
  %9215 = vmatpush1.bf16.msra.mxu0 0
  %9216 = vmatprep.subr.bf16.mxu0 0
  %9217 = vmatpush1.bf16.msra.mxu0 0
  %9218 = vmatprep.subr.bf16.mxu0 0
  %9219 = vmatpush1.bf16.msra.mxu0 0
  %9220 = vmatprep.subr.bf16.mxu0 0
  %9221 = vmatpush1.bf16.msra.mxu0 0
  %9222 = vmatprep.subr.bf16.mxu0 0
  %9223 = vmatpush1.bf16.msra.mxu0 0
  %9224 = vmatprep.subr.bf16.mxu0 0
  %9225 = vmatpush1.bf16.msra.mxu0 0
  %9226 = vmatprep.subr.bf16.mxu0 0
  %9227 = vmatpush1.bf16.msra.mxu0 0
  %9228 = vmatprep.subr.bf16.mxu0 0
  %9229 = vmatpush1.bf16.msra.mxu0 0
  %9230 = vmatprep.subr.bf16.mxu0 0
  %9231 = vmatpush1.bf16.msra.mxu0 0
  %9232 = vmatprep.subr.bf16.mxu0 0
  %9233 = vmatpush1.bf16.msra.mxu0 0
  %9234 = vmatprep.subr.bf16.mxu0 0
  %9235 = vmatpush1.bf16.msra.mxu0 0
  %9236 = vmatprep.subr.bf16.mxu0 0
  %9237 = vmatpush1.bf16.msra.mxu0 0
  %9238 = vmatprep.subr.bf16.mxu0 0
  %9239 = vmatpush1.bf16.msra.mxu0 0
  %9240 = vmatprep.mubr.bf16.mxu0 0
  %9241 = vmatmul.mubr.bf16.gmra.mrb[0].mxu0 %v9191
  %v9242 = vpop.f32.mrb[0].mxu0
  %v9243 = vadd.f32 %v9176, %v9242
  %v9244 = vpop.f32.mrb[0].mxu0
  %v9245 = vpop.f32.mrb[0].mxu0
  %v9246 = vadd.f32 %v9176, %v9245
  %v9247 = vpop.f32.mrb[0].mxu0
  %9248 = vmatprep.mubr.bf16.mxu0 0
  %9249 = vmatmul.mubr.bf16.gmra.mrb[0].mxu0 %v9194
  %v9250 = vpop.f32.mrb[0].mxu0
  %v9251 = vadd.f32 %v9176, %v9250
  %v9252 = vpop.f32.mrb[0].mxu0
  %v9253 = vpop.f32.mrb[0].mxu0
  %v9254 = vadd.f32 %v9176, %v9253
  %v9255 = vpop.f32.mrb[0].mxu0
  %9256 = vmatprep.mubr.bf16.mxu0 0
  %9257 = vmatmul.mubr.bf16.gmra.mrb[0].mxu0 %v9197
  %v9258 = vpop.f32.mrb[0].mxu0
  %v9259 = vadd.f32 %v9176, %v9258
  %v9260 = vpop.f32.mrb[0].mxu0
  %v9261 = vpop.f32.mrb[0].mxu0
  %v9262 = vadd.f32 %v9176, %v9261
  %v9263 = vpop.f32.mrb[0].mxu0
  %9264 = vmatprep.mubr.bf16.mxu0 0
  %9265 = vmatmul.mubr.bf16.gmra.mrb[0].mxu0 %v9200
  %v9266 = vpop.f32.mrb[0].mxu0
  %v9267 = vadd.f32 %v9176, %v9266
  %v9268 = vpop.f32.mrb[0].mxu0
  %v9269 = vpop.f32.mrb[0].mxu0
  %v9270 = vadd.f32 %v9176, %v9269
  %v9271 = vpop.f32.mrb[0].mxu0
  %9272 = vmatprep.mubr.bf16.mxu0 0
  %9273 = vmatmul.mubr.bf16.gmra.mrb[0].mxu0 %v9203
  %v9274 = vpop.f32.mrb[0].mxu0
  %v9275 = vadd.f32 %v9176, %v9274
  %v9276 = vpop.f32.mrb[0].mxu0
  %v9277 = vpop.f32.mrb[0].mxu0
  %v9278 = vadd.f32 %v9176, %v9277
  %v9279 = vpop.f32.mrb[0].mxu0
  %9280 = vmatprep.mubr.bf16.mxu0 0
  %9281 = vmatmul.mubr.bf16.gmra.mrb[0].mxu0 %v9206
  %v9282 = vpop.f32.mrb[0].mxu0
  %v9283 = vadd.f32 %v9176, %v9282
  %v9284 = vpop.f32.mrb[0].mxu0
  %v9285 = vpop.f32.mrb[0].mxu0
  %v9286 = vadd.f32 %v9176, %v9285
  %v9287 = vpop.f32.mrb[0].mxu0
  %9288 = vdwg.mxu0
  %v9289 = vld [vmem:[%s12] sm:$0xf]
  %v9290 = vld [vmem:[%s12 + $0x4] sm:$0xf]
  %v9291 = vld [vmem:[%s12 + $0x8] sm:$0xf]
  %v9292 = vld [vmem:[%s12 + $0xc] sm:$0xf]
  %v9293 = vld [vmem:[%s13] sm:$0x1]
  %v9294 = vld [vmem:[%s14] sm:$0x1]
  %v9295 = vld [vmem:[#allocation3] sm:$0x1]
  %v9297 = vlaneseq
  %v9298 = vshrl.u32 %v9297, 7
  %v9299 = vsub.s32 0, %v9298
  %v9300 = vrot.slane %v9293, %v9299
  %v9306 = vunpack.c.l.b16 %v9289
  %v9307 = vunpack.c.l.b16 %v9290
  %v9308 = vunpack.c.l.b16 %v9291
  %v9309 = vunpack.c.l.b16 %v9292
  %v9310 = vpack.c.b16 %v9307, %v9306
  %v9311 = vpack.c.b16 %v9309, %v9308
  %v9315 = vsel %vm6274, 0, 0
  %9317 = vmatprep.subr.bf16.mxu0 0
  %9318 = vmatpush1.bf16.msra.mxu0 %v9310
  %9319 = vmatprep.subr.bf16.mxu0 0
  %9320 = vmatpush1.bf16.msra.mxu0 %v9311
  %9321 = vmatprep.subr.bf16.mxu0 0
  %9322 = vmatpush1.bf16.msra.mxu0 0
  %9323 = vmatprep.subr.bf16.mxu0 0
  %9324 = vmatpush1.bf16.msra.mxu0 0
  %9325 = vmatprep.subr.bf16.mxu0 0
  %9326 = vmatpush1.bf16.msra.mxu0 0
  %9327 = vmatprep.subr.bf16.mxu0 0
  %9328 = vmatpush1.bf16.msra.mxu0 0
  %9329 = vmatprep.subr.bf16.mxu0 0
  %9330 = vmatpush1.bf16.msra.mxu0 0
  %9331 = vmatprep.subr.bf16.mxu0 0
  %9332 = vmatpush1.bf16.msra.mxu0 0
  %9333 = vmatprep.subr.bf16.mxu0 0
  %9334 = vmatpush1.bf16.msra.mxu0 0
  %9335 = vmatprep.subr.bf16.mxu0 0
  %9336 = vmatpush1.bf16.msra.mxu0 0
  %9337 = vmatprep.subr.bf16.mxu0 0
  %9338 = vmatpush1.bf16.msra.mxu0 0
  %9339 = vmatprep.subr.bf16.mxu0 0
  %9340 = vmatpush1.bf16.msra.mxu0 0
  %9341 = vmatprep.subr.bf16.mxu0 0
  %9342 = vmatpush1.bf16.msra.mxu0 0
  %9343 = vmatprep.subr.bf16.mxu0 0
  %9344 = vmatpush1.bf16.msra.mxu0 0
  %9345 = vmatprep.subr.bf16.mxu0 0
  %9346 = vmatpush1.bf16.msra.mxu0 0
  %9347 = vmatprep.subr.bf16.mxu0 0
  %9348 = vmatpush1.bf16.msra.mxu0 0
  %9349 = vmatprep.mubr.bf16.mxu0 0
  %9350 = vmatmul.mubr.bf16.gmra.mrb[0].mxu0 %v9315
  %v9351 = vpop.f32.mrb[0].mxu0
  %v9352 = vadd.f32 %v9300, %v9351
  %v9353 = vpop.f32.mrb[0].mxu0
  %v9354 = vpop.f32.mrb[0].mxu0
  %v9355 = vpop.f32.mrb[0].mxu0
  %9356 = vdwg.mxu0
  %v9357 = vadd.f32 %v9243, %v9352
  %v9358 = vxor.u32 %v9357, 2147483648
  %v9359 = vmul.f32 %v9358, 1.442695
  %v9360 = vpow.pop %v9359
  %v9361 = vadd.f32 %v9360, 1.0
  %v9362 = vrcp.pop %v9361
  %v9363 = vmul.f32 1.0, %v9362
  %9365 = vrot.lane.b32.xlu0 %v9352, 64
  %v9366 = vpop.permute.xlu0 %9365
  %v9368 = vmul.f32 %v9363, %v9366
  %9370 = vrot.lane.b32.xlu0 %v9368, 64
  %v9371 = vpop.permute.xlu0 %9370
  %v9373 = vadd.f32 %v9243, %v9371
  %v9374 = vtanh.pop %v9373
  %v9375 = vsub.f32 1.0, %v9363
  %9377 = vrot.lane.b32.xlu0 %v9374, 96
  %v9378 = vpop.permute.xlu0 %9377
  %v9380 = vmul.f32 %v9375, %v9378
  %v9381 = vmul.f32 %v9363, 0.0
  %v9382 = vadd.f32 %v9380, %v9381
  %v9383 = vpack.c.bf16 %v9382, %v9382
  %9385 = vrot.lane.b32.xlu0 %v9383, 96
  %v9386 = vpop.permute.xlu0 %9385
  %v9388 = vsel %vm6274, %v9386, 0
  %9390 = vmatprep.subr.bf16.mxu0 0
  %9391 = vmatpush1.bf16.msra.mxu0 %v9310
  %9392 = vmatprep.subr.bf16.mxu0 0
  %9393 = vmatpush1.bf16.msra.mxu0 %v9311
  %9394 = vmatprep.subr.bf16.mxu0 0
  %9395 = vmatpush1.bf16.msra.mxu0 0
  %9396 = vmatprep.subr.bf16.mxu0 0
  %9397 = vmatpush1.bf16.msra.mxu0 0
  %9398 = vmatprep.subr.bf16.mxu0 0
  %9399 = vmatpush1.bf16.msra.mxu0 0
  %9400 = vmatprep.subr.bf16.mxu0 0
  %9401 = vmatpush1.bf16.msra.mxu0 0
  %9402 = vmatprep.subr.bf16.mxu0 0
  %9403 = vmatpush1.bf16.msra.mxu0 0
  %9404 = vmatprep.subr.bf16.mxu0 0
  %9405 = vmatpush1.bf16.msra.mxu0 0
  %9406 = vmatprep.subr.bf16.mxu0 0
  %9407 = vmatpush1.bf16.msra.mxu0 0
  %9408 = vmatprep.subr.bf16.mxu0 0
  %9409 = vmatpush1.bf16.msra.mxu0 0
  %9410 = vmatprep.subr.bf16.mxu0 0
  %9411 = vmatpush1.bf16.msra.mxu0 0
  %9412 = vmatprep.subr.bf16.mxu0 0
  %9413 = vmatpush1.bf16.msra.mxu0 0
  %9414 = vmatprep.subr.bf16.mxu0 0
  %9415 = vmatpush1.bf16.msra.mxu0 0
  %9416 = vmatprep.subr.bf16.mxu0 0
  %9417 = vmatpush1.bf16.msra.mxu0 0
  %9418 = vmatprep.subr.bf16.mxu0 0
  %9419 = vmatpush1.bf16.msra.mxu0 0
  %9420 = vmatprep.subr.bf16.mxu0 0
  %9421 = vmatpush1.bf16.msra.mxu0 0
  %9422 = vmatprep.mubr.bf16.mxu0 0
  %9423 = vmatmul.mubr.bf16.gmra.mrb[0].mxu0 %v9388
  %v9424 = vpop.f32.mrb[0].mxu0
  %v9425 = vadd.f32 %v9300, %v9424
  %v9426 = vpop.f32.mrb[0].mxu0
  %v9427 = vpop.f32.mrb[0].mxu0
  %v9428 = vpop.f32.mrb[0].mxu0
  %9429 = vdwg.mxu0
  %v9431 = vrot.slane %v9425, 2
  %v9433 = vadd.f32 %v9243, %v9431
  %v9434 = vadd.f32 %v9246, %v9431
  %v9435 = vxor.u32 %v9433, 2147483648
  %v9436 = vxor.u32 %v9434, 2147483648
  %v9437 = vmul.f32 %v9435, 1.442695
  %v9438 = vpow.pop %v9437
  %v9439 = vmul.f32 %v9436, 1.442695
  %v9440 = vpow.pop %v9439
  %v9441 = vadd.f32 %v9438, 1.0
  %v9442 = vadd.f32 %v9440, 1.0
  %v9443 = vrcp.pop %v9441
  %v9444 = vmul.f32 1.0, %v9443
  %v9445 = vrcp.pop %v9442
  %v9446 = vmul.f32 1.0, %v9445
  %9447 = vrot.lane.b32.xlu0 %v9431, 64
  %v9448 = vpop.permute.xlu0 %9447
  %v9450 = vmul.f32 %v9444, %v9448
  %v9451 = vmul.f32 %v9446, %v9448
  %9454 = vrot.lane.b32.xlu0 %v9450, 64
  %v9455 = vpop.permute.xlu0 %9454
  %9456 = vrot.lane.b32.xlu0 %v9451, 64
  %v9457 = vpop.permute.xlu0 %9456
  %v9460 = vadd.f32 %v9243, %v9455
  %v9461 = vadd.f32 %v9246, %v9457
  %v9462 = vtanh.pop %v9460
  %v9463 = vtanh.pop %v9461
  %v9464 = vsub.f32 1.0, %v9444
  %v9465 = vsub.f32 1.0, %v9446
  %9468 = vrot.lane.b32.xlu0 %v9462, 96
  %v9469 = vpop.permute.xlu0 %9468
  %9470 = vrot.lane.b32.xlu0 %v9463, 96
  %v9471 = vpop.permute.xlu0 %9470
  %v9474 = vmul.f32 %v9464, %v9469
  %v9475 = vmul.f32 %v9465, %v9471
  %v9477 = vrot.slane %v9382, 2
  %v9479 = vmul.f32 %v9444, %v9477
  %v9480 = vmul.f32 %v9446, %v9477
  %v9481 = vadd.f32 %v9474, %v9479
  %v9482 = vadd.f32 %v9475, %v9480
  %v9483 = vpack.c.bf16 %v9482, %v9481
  %v9485 = vrot.slane %v9483, 3
  %9486 = vrot.lane.b32.xlu0 %v9485, 96
  %v9487 = vpop.permute.xlu0 %9486
  %v9489 = vsel %vm6274, %v9487, 0
  %9491 = vmatprep.subr.bf16.mxu0 0
  %9492 = vmatpush1.bf16.msra.mxu0 %v9310
  %9493 = vmatprep.subr.bf16.mxu0 0
  %9494 = vmatpush1.bf16.msra.mxu0 %v9311
  %9495 = vmatprep.subr.bf16.mxu0 0
  %9496 = vmatpush1.bf16.msra.mxu0 0
  %9497 = vmatprep.subr.bf16.mxu0 0
  %9498 = vmatpush1.bf16.msra.mxu0 0
  %9499 = vmatprep.subr.bf16.mxu0 0
  %9500 = vmatpush1.bf16.msra.mxu0 0
  %9501 = vmatprep.subr.bf16.mxu0 0
  %9502 = vmatpush1.bf16.msra.mxu0 0
  %9503 = vmatprep.subr.bf16.mxu0 0
  %9504 = vmatpush1.bf16.msra.mxu0 0
  %9505 = vmatprep.subr.bf16.mxu0 0
  %9506 = vmatpush1.bf16.msra.mxu0 0
  %9507 = vmatprep.subr.bf16.mxu0 0
  %9508 = vmatpush1.bf16.msra.mxu0 0
  %9509 = vmatprep.subr.bf16.mxu0 0
  %9510 = vmatpush1.bf16.msra.mxu0 0
  %9511 = vmatprep.subr.bf16.mxu0 0
  %9512 = vmatpush1.bf16.msra.mxu0 0
  %9513 = vmatprep.subr.bf16.mxu0 0
  %9514 = vmatpush1.bf16.msra.mxu0 0
  %9515 = vmatprep.subr.bf16.mxu0 0
  %9516 = vmatpush1.bf16.msra.mxu0 0
  %9517 = vmatprep.subr.bf16.mxu0 0
  %9518 = vmatpush1.bf16.msra.mxu0 0
  %9519 = vmatprep.subr.bf16.mxu0 0
  %9520 = vmatpush1.bf16.msra.mxu0 0
  %9521 = vmatprep.subr.bf16.mxu0 0
  %9522 = vmatpush1.bf16.msra.mxu0 0
  %9523 = vmatprep.mubr.bf16.mxu0 0
  %9524 = vmatmul.mubr.bf16.gmra.mrb[0].mxu0 %v9489
  %v9525 = vpop.f32.mrb[0].mxu0
  %v9526 = vadd.f32 %v9300, %v9525
  %v9527 = vpop.f32.mrb[0].mxu0
  %v9528 = vpop.f32.mrb[0].mxu0
  %v9529 = vpop.f32.mrb[0].mxu0
  %9530 = vdwg.mxu0
  %v9532 = vrot.slane %v9526, 4
  %v9534 = vadd.f32 %v9246, %v9532
  %v9535 = vadd.f32 %v9251, %v9532
  %v9536 = vxor.u32 %v9534, 2147483648
  %v9537 = vxor.u32 %v9535, 2147483648
  %v9538 = vmul.f32 %v9536, 1.442695
  %v9539 = vpow.pop %v9538
  %v9540 = vmul.f32 %v9537, 1.442695
  %v9541 = vpow.pop %v9540
  %v9542 = vadd.f32 %v9539, 1.0
  %v9543 = vadd.f32 %v9541, 1.0
  %v9544 = vrcp.pop %v9542
  %v9545 = vmul.f32 1.0, %v9544
  %v9546 = vrcp.pop %v9543
  %v9547 = vmul.f32 1.0, %v9546
  %9548 = vrot.lane.b32.xlu0 %v9532, 64
  %v9549 = vpop.permute.xlu0 %9548
  %v9551 = vmul.f32 %v9545, %v9549
  %v9552 = vmul.f32 %v9547, %v9549
  %9555 = vrot.lane.b32.xlu0 %v9551, 64
  %v9556 = vpop.permute.xlu0 %9555
  %9557 = vrot.lane.b32.xlu0 %v9552, 64
  %v9558 = vpop.permute.xlu0 %9557
  %v9561 = vadd.f32 %v9246, %v9556
  %v9562 = vadd.f32 %v9251, %v9558
  %v9563 = vtanh.pop %v9561
  %v9564 = vtanh.pop %v9562
  %v9565 = vsub.f32 1.0, %v9545
  %v9566 = vsub.f32 1.0, %v9547
  %9569 = vrot.lane.b32.xlu0 %v9563, 96
  %v9570 = vpop.permute.xlu0 %9569
  %9571 = vrot.lane.b32.xlu0 %v9564, 96
  %v9572 = vpop.permute.xlu0 %9571
  %v9575 = vmul.f32 %v9565, %v9570
  %v9576 = vmul.f32 %v9566, %v9572
  %vm9579 = vcmask 1045504
  %v9580 = vrot.slane %v9481, 2
  %v9581 = vrot.slane %v9482, 2
  %v9582 = vsel %vm9579, %v9580, %v9581
  %v9585 = vmul.f32 %v9545, %v9582
  %v9586 = vmul.f32 %v9547, %v9581
  %v9587 = vadd.f32 %v9575, %v9585
  %v9588 = vadd.f32 %v9576, %v9586
  %v9589 = vpack.c.bf16 %v9588, %v9587
  %v9591 = vrot.slane %v9589, 2
  %9592 = vrot.lane.b32.xlu0 %v9591, 96
  %v9593 = vpop.permute.xlu0 %9592
  %v9595 = vsel %vm6274, %v9593, 0
  %9597 = vmatprep.subr.bf16.mxu0 0
  %9598 = vmatpush1.bf16.msra.mxu0 %v9310
  %9599 = vmatprep.subr.bf16.mxu0 0
  %9600 = vmatpush1.bf16.msra.mxu0 %v9311
  %9601 = vmatprep.subr.bf16.mxu0 0
  %9602 = vmatpush1.bf16.msra.mxu0 0
  %9603 = vmatprep.subr.bf16.mxu0 0
  %9604 = vmatpush1.bf16.msra.mxu0 0
  %9605 = vmatprep.subr.bf16.mxu0 0
  %9606 = vmatpush1.bf16.msra.mxu0 0
  %9607 = vmatprep.subr.bf16.mxu0 0
  %9608 = vmatpush1.bf16.msra.mxu0 0
  %9609 = vmatprep.subr.bf16.mxu0 0
  %9610 = vmatpush1.bf16.msra.mxu0 0
  %9611 = vmatprep.subr.bf16.mxu0 0
  %9612 = vmatpush1.bf16.msra.mxu0 0
  %9613 = vmatprep.subr.bf16.mxu0 0
  %9614 = vmatpush1.bf16.msra.mxu0 0
  %9615 = vmatprep.subr.bf16.mxu0 0
  %9616 = vmatpush1.bf16.msra.mxu0 0
  %9617 = vmatprep.subr.bf16.mxu0 0
  %9618 = vmatpush1.bf16.msra.mxu0 0
  %9619 = vmatprep.subr.bf16.mxu0 0
  %9620 = vmatpush1.bf16.msra.mxu0 0
  %9621 = vmatprep.subr.bf16.mxu0 0
  %9622 = vmatpush1.bf16.msra.mxu0 0
  %9623 = vmatprep.subr.bf16.mxu0 0
  %9624 = vmatpush1.bf16.msra.mxu0 0
  %9625 = vmatprep.subr.bf16.mxu0 0
  %9626 = vmatpush1.bf16.msra.mxu0 0
  %9627 = vmatprep.subr.bf16.mxu0 0
  %9628 = vmatpush1.bf16.msra.mxu0 0
  %9629 = vmatprep.mubr.bf16.mxu0 0
  %9630 = vmatmul.mubr.bf16.gmra.mrb[0].mxu0 %v9595
  %v9631 = vpop.f32.mrb[0].mxu0
  %v9632 = vadd.f32 %v9300, %v9631
  %v9633 = vpop.f32.mrb[0].mxu0
  %v9634 = vpop.f32.mrb[0].mxu0
  %v9635 = vpop.f32.mrb[0].mxu0
  %9636 = vdwg.mxu0
  %v9638 = vrot.slane %v9632, 6
  %v9640 = vadd.f32 %v9251, %v9638
  %v9641 = vxor.u32 %v9640, 2147483648
  %v9642 = vmul.f32 %v9641, 1.442695
  %v9643 = vpow.pop %v9642
  %v9644 = vadd.f32 %v9643, 1.0
  %v9645 = vrcp.pop %v9644
  %v9646 = vmul.f32 1.0, %v9645
  %9647 = vrot.lane.b32.xlu0 %v9638, 64
  %v9648 = vpop.permute.xlu0 %9647
  %v9650 = vmul.f32 %v9646, %v9648
  %9652 = vrot.lane.b32.xlu0 %v9650, 64
  %v9653 = vpop.permute.xlu0 %9652
  %v9655 = vadd.f32 %v9251, %v9653
  %v9656 = vtanh.pop %v9655
  %v9657 = vsub.f32 1.0, %v9646
  %9659 = vrot.lane.b32.xlu0 %v9656, 96
  %v9660 = vpop.permute.xlu0 %9659
  %v9662 = vmul.f32 %v9657, %v9660
  %v9665 = vrot.slane %v9587, 2
  %v9666 = vrot.slane %v9588, 2
  %v9667 = vsel %vm9579, %v9665, %v9666
  %v9669 = vmul.f32 %v9646, %v9667
  %v9670 = vadd.f32 %v9662, %v9669
  %v9671 = vpack.c.bf16 %v9670, %v9670
  %v9673 = vrot.slane %v9671, 1
  %9674 = vrot.lane.b32.xlu0 %v9673, 96
  %v9675 = vpop.permute.xlu0 %9674
  %v9677 = vsel %vm6274, %v9675, 0
  %9679 = vmatprep.subr.bf16.mxu0 0
  %9680 = vmatpush1.bf16.msra.mxu0 %v9310
  %9681 = vmatprep.subr.bf16.mxu0 0
  %9682 = vmatpush1.bf16.msra.mxu0 %v9311
  %9683 = vmatprep.subr.bf16.mxu0 0
  %9684 = vmatpush1.bf16.msra.mxu0 0
  %9685 = vmatprep.subr.bf16.mxu0 0
  %9686 = vmatpush1.bf16.msra.mxu0 0
  %9687 = vmatprep.subr.bf16.mxu0 0
  %9688 = vmatpush1.bf16.msra.mxu0 0
  %9689 = vmatprep.subr.bf16.mxu0 0
  %9690 = vmatpush1.bf16.msra.mxu0 0
  %9691 = vmatprep.subr.bf16.mxu0 0
  %9692 = vmatpush1.bf16.msra.mxu0 0
  %9693 = vmatprep.subr.bf16.mxu0 0
  %9694 = vmatpush1.bf16.msra.mxu0 0
  %9695 = vmatprep.subr.bf16.mxu0 0
  %9696 = vmatpush1.bf16.msra.mxu0 0
  %9697 = vmatprep.subr.bf16.mxu0 0
  %9698 = vmatpush1.bf16.msra.mxu0 0
  %9699 = vmatprep.subr.bf16.mxu0 0
  %9700 = vmatpush1.bf16.msra.mxu0 0
  %9701 = vmatprep.subr.bf16.mxu0 0
  %9702 = vmatpush1.bf16.msra.mxu0 0
  %9703 = vmatprep.subr.bf16.mxu0 0
  %9704 = vmatpush1.bf16.msra.mxu0 0
  %9705 = vmatprep.subr.bf16.mxu0 0
  %9706 = vmatpush1.bf16.msra.mxu0 0
  %9707 = vmatprep.subr.bf16.mxu0 0
  %9708 = vmatpush1.bf16.msra.mxu0 0
  %9709 = vmatprep.subr.bf16.mxu0 0
  %9710 = vmatpush1.bf16.msra.mxu0 0
  %9711 = vmatprep.mubr.bf16.mxu0 0
  %9712 = vmatmul.mubr.bf16.gmra.mrb[0].mxu0 %v9677
  %v9713 = vpop.f32.mrb[0].mxu0
  %v9714 = vadd.f32 %v9300, %v9713
  %v9715 = vpop.f32.mrb[0].mxu0
  %v9716 = vpop.f32.mrb[0].mxu0
  %v9717 = vpop.f32.mrb[0].mxu0
  %9718 = vdwg.mxu0
  %v9719 = vadd.f32 %v9254, %v9714
  %v9720 = vxor.u32 %v9719, 2147483648
  %v9721 = vmul.f32 %v9720, 1.442695
  %v9722 = vpow.pop %v9721
  %v9723 = vadd.f32 %v9722, 1.0
  %v9724 = vrcp.pop %v9723
  %v9725 = vmul.f32 1.0, %v9724
  %9727 = vrot.lane.b32.xlu0 %v9714, 64
  %v9728 = vpop.permute.xlu0 %9727
  %v9730 = vmul.f32 %v9725, %v9728
  %9732 = vrot.lane.b32.xlu0 %v9730, 64
  %v9733 = vpop.permute.xlu0 %9732
  %v9735 = vadd.f32 %v9254, %v9733
  %v9736 = vtanh.pop %v9735
  %v9737 = vsub.f32 1.0, %v9725
  %9739 = vrot.lane.b32.xlu0 %v9736, 96
  %v9740 = vpop.permute.xlu0 %9739
  %v9742 = vmul.f32 %v9737, %v9740
  %v9744 = vrot.slane %v9670, 2
  %v9746 = vmul.f32 %v9725, %v9744
  %v9747 = vadd.f32 %v9742, %v9746
  %v9748 = vpack.c.bf16 %v9747, %v9747
  %9750 = vrot.lane.b32.xlu0 %v9748, 96
  %v9751 = vpop.permute.xlu0 %9750
  %v9753 = vsel %vm6274, %v9751, 0
  %9755 = vmatprep.subr.bf16.mxu0 0
  %9756 = vmatpush1.bf16.msra.mxu0 %v9310
  %9757 = vmatprep.subr.bf16.mxu0 0
  %9758 = vmatpush1.bf16.msra.mxu0 %v9311
  %9759 = vmatprep.subr.bf16.mxu0 0
  %9760 = vmatpush1.bf16.msra.mxu0 0
  %9761 = vmatprep.subr.bf16.mxu0 0
  %9762 = vmatpush1.bf16.msra.mxu0 0
  %9763 = vmatprep.subr.bf16.mxu0 0
  %9764 = vmatpush1.bf16.msra.mxu0 0
  %9765 = vmatprep.subr.bf16.mxu0 0
  %9766 = vmatpush1.bf16.msra.mxu0 0
  %9767 = vmatprep.subr.bf16.mxu0 0
  %9768 = vmatpush1.bf16.msra.mxu0 0
  %9769 = vmatprep.subr.bf16.mxu0 0
  %9770 = vmatpush1.bf16.msra.mxu0 0
  %9771 = vmatprep.subr.bf16.mxu0 0
  %9772 = vmatpush1.bf16.msra.mxu0 0
  %9773 = vmatprep.subr.bf16.mxu0 0
  %9774 = vmatpush1.bf16.msra.mxu0 0
  %9775 = vmatprep.subr.bf16.mxu0 0
  %9776 = vmatpush1.bf16.msra.mxu0 0
  %9777 = vmatprep.subr.bf16.mxu0 0
  %9778 = vmatpush1.bf16.msra.mxu0 0
  %9779 = vmatprep.subr.bf16.mxu0 0
  %9780 = vmatpush1.bf16.msra.mxu0 0
  %9781 = vmatprep.subr.bf16.mxu0 0
  %9782 = vmatpush1.bf16.msra.mxu0 0
  %9783 = vmatprep.subr.bf16.mxu0 0
  %9784 = vmatpush1.bf16.msra.mxu0 0
  %9785 = vmatprep.subr.bf16.mxu0 0
  %9786 = vmatpush1.bf16.msra.mxu0 0
  %9787 = vmatprep.mubr.bf16.mxu0 0
  %9788 = vmatmul.mubr.bf16.gmra.mrb[0].mxu0 %v9753
  %v9789 = vpop.f32.mrb[0].mxu0
  %v9790 = vadd.f32 %v9300, %v9789
  %v9791 = vpop.f32.mrb[0].mxu0
  %v9792 = vpop.f32.mrb[0].mxu0
  %v9793 = vpop.f32.mrb[0].mxu0
  %9794 = vdwg.mxu0
  %v9796 = vrot.slane %v9790, 2
  %v9798 = vadd.f32 %v9254, %v9796
  %v9799 = vadd.f32 %v9259, %v9796
  %v9800 = vxor.u32 %v9798, 2147483648
  %v9801 = vxor.u32 %v9799, 2147483648
  %v9802 = vmul.f32 %v9800, 1.442695
  %v9803 = vpow.pop %v9802
  %v9804 = vmul.f32 %v9801, 1.442695
  %v9805 = vpow.pop %v9804
  %v9806 = vadd.f32 %v9803, 1.0
  %v9807 = vadd.f32 %v9805, 1.0
  %v9808 = vrcp.pop %v9806
  %v9809 = vmul.f32 1.0, %v9808
  %v9810 = vrcp.pop %v9807
  %v9811 = vmul.f32 1.0, %v9810
  %9812 = vrot.lane.b32.xlu0 %v9796, 64
  %v9813 = vpop.permute.xlu0 %9812
  %v9815 = vmul.f32 %v9809, %v9813
  %v9816 = vmul.f32 %v9811, %v9813
  %9819 = vrot.lane.b32.xlu0 %v9815, 64
  %v9820 = vpop.permute.xlu0 %9819
  %9821 = vrot.lane.b32.xlu0 %v9816, 64
  %v9822 = vpop.permute.xlu0 %9821
  %v9825 = vadd.f32 %v9254, %v9820
  %v9826 = vadd.f32 %v9259, %v9822
  %v9827 = vtanh.pop %v9825
  %v9828 = vtanh.pop %v9826
  %v9829 = vsub.f32 1.0, %v9809
  %v9830 = vsub.f32 1.0, %v9811
  %9833 = vrot.lane.b32.xlu0 %v9827, 96
  %v9834 = vpop.permute.xlu0 %9833
  %9835 = vrot.lane.b32.xlu0 %v9828, 96
  %v9836 = vpop.permute.xlu0 %9835
  %v9839 = vmul.f32 %v9829, %v9834
  %v9840 = vmul.f32 %v9830, %v9836
  %v9842 = vrot.slane %v9747, 2
  %v9844 = vmul.f32 %v9809, %v9842
  %v9845 = vmul.f32 %v9811, %v9842
  %v9846 = vadd.f32 %v9839, %v9844
  %v9847 = vadd.f32 %v9840, %v9845
  %v9848 = vpack.c.bf16 %v9847, %v9846
  %v9850 = vrot.slane %v9848, 3
  %9851 = vrot.lane.b32.xlu0 %v9850, 96
  %v9852 = vpop.permute.xlu0 %9851
  %v9854 = vsel %vm6274, %v9852, 0
  %9856 = vmatprep.subr.bf16.mxu0 0
  %9857 = vmatpush1.bf16.msra.mxu0 %v9310
  %9858 = vmatprep.subr.bf16.mxu0 0
  %9859 = vmatpush1.bf16.msra.mxu0 %v9311
  %9860 = vmatprep.subr.bf16.mxu0 0
  %9861 = vmatpush1.bf16.msra.mxu0 0
  %9862 = vmatprep.subr.bf16.mxu0 0
  %9863 = vmatpush1.bf16.msra.mxu0 0
  %9864 = vmatprep.subr.bf16.mxu0 0
  %9865 = vmatpush1.bf16.msra.mxu0 0
  %9866 = vmatprep.subr.bf16.mxu0 0
  %9867 = vmatpush1.bf16.msra.mxu0 0
  %9868 = vmatprep.subr.bf16.mxu0 0
  %9869 = vmatpush1.bf16.msra.mxu0 0
  %9870 = vmatprep.subr.bf16.mxu0 0
  %9871 = vmatpush1.bf16.msra.mxu0 0
  %9872 = vmatprep.subr.bf16.mxu0 0
  %9873 = vmatpush1.bf16.msra.mxu0 0
  %9874 = vmatprep.subr.bf16.mxu0 0
  %9875 = vmatpush1.bf16.msra.mxu0 0
  %9876 = vmatprep.subr.bf16.mxu0 0
  %9877 = vmatpush1.bf16.msra.mxu0 0
  %9878 = vmatprep.subr.bf16.mxu0 0
  %9879 = vmatpush1.bf16.msra.mxu0 0
  %9880 = vmatprep.subr.bf16.mxu0 0
  %9881 = vmatpush1.bf16.msra.mxu0 0
  %9882 = vmatprep.subr.bf16.mxu0 0
  %9883 = vmatpush1.bf16.msra.mxu0 0
  %9884 = vmatprep.subr.bf16.mxu0 0
  %9885 = vmatpush1.bf16.msra.mxu0 0
  %9886 = vmatprep.subr.bf16.mxu0 0
  %9887 = vmatpush1.bf16.msra.mxu0 0
  %9888 = vmatprep.mubr.bf16.mxu0 0
  %9889 = vmatmul.mubr.bf16.gmra.mrb[0].mxu0 %v9854
  %v9890 = vpop.f32.mrb[0].mxu0
  %v9891 = vadd.f32 %v9300, %v9890
  %v9892 = vpop.f32.mrb[0].mxu0
  %v9893 = vpop.f32.mrb[0].mxu0
  %v9894 = vpop.f32.mrb[0].mxu0
  %9895 = vdwg.mxu0
  %v9897 = vrot.slane %v9891, 4
  %v9899 = vadd.f32 %v9259, %v9897
  %v9900 = vadd.f32 %v9262, %v9897
  %v9901 = vxor.u32 %v9899, 2147483648
  %v9902 = vxor.u32 %v9900, 2147483648
  %v9903 = vmul.f32 %v9901, 1.442695
  %v9904 = vpow.pop %v9903
  %v9905 = vmul.f32 %v9902, 1.442695
  %v9906 = vpow.pop %v9905
  %v9907 = vadd.f32 %v9904, 1.0
  %v9908 = vadd.f32 %v9906, 1.0
  %v9909 = vrcp.pop %v9907
  %v9910 = vmul.f32 1.0, %v9909
  %v9911 = vrcp.pop %v9908
  %v9912 = vmul.f32 1.0, %v9911
  %9913 = vrot.lane.b32.xlu0 %v9897, 64
  %v9914 = vpop.permute.xlu0 %9913
  %v9916 = vmul.f32 %v9910, %v9914
  %v9917 = vmul.f32 %v9912, %v9914
  %9920 = vrot.lane.b32.xlu0 %v9916, 64
  %v9921 = vpop.permute.xlu0 %9920
  %9922 = vrot.lane.b32.xlu0 %v9917, 64
  %v9923 = vpop.permute.xlu0 %9922
  %v9926 = vadd.f32 %v9259, %v9921
  %v9927 = vadd.f32 %v9262, %v9923
  %v9928 = vtanh.pop %v9926
  %v9929 = vtanh.pop %v9927
  %v9930 = vsub.f32 1.0, %v9910
  %v9931 = vsub.f32 1.0, %v9912
  %9934 = vrot.lane.b32.xlu0 %v9928, 96
  %v9935 = vpop.permute.xlu0 %9934
  %9936 = vrot.lane.b32.xlu0 %v9929, 96
  %v9937 = vpop.permute.xlu0 %9936
  %v9940 = vmul.f32 %v9930, %v9935
  %v9941 = vmul.f32 %v9931, %v9937
  %v9944 = vrot.slane %v9846, 2
  %v9945 = vrot.slane %v9847, 2
  %v9946 = vsel %vm9579, %v9944, %v9945
  %v9949 = vmul.f32 %v9910, %v9946
  %v9950 = vmul.f32 %v9912, %v9945
  %v9951 = vadd.f32 %v9940, %v9949
  %v9952 = vadd.f32 %v9941, %v9950
  %v9953 = vpack.c.bf16 %v9952, %v9951
  %v9955 = vrot.slane %v9953, 2
  %9956 = vrot.lane.b32.xlu0 %v9955, 96
  %v9957 = vpop.permute.xlu0 %9956
  %v9959 = vsel %vm6274, %v9957, 0
  %9961 = vmatprep.subr.bf16.mxu0 0
  %9962 = vmatpush1.bf16.msra.mxu0 %v9310
  %9963 = vmatprep.subr.bf16.mxu0 0
  %9964 = vmatpush1.bf16.msra.mxu0 %v9311
  %9965 = vmatprep.subr.bf16.mxu0 0
  %9966 = vmatpush1.bf16.msra.mxu0 0
  %9967 = vmatprep.subr.bf16.mxu0 0
  %9968 = vmatpush1.bf16.msra.mxu0 0
  %9969 = vmatprep.subr.bf16.mxu0 0
  %9970 = vmatpush1.bf16.msra.mxu0 0
  %9971 = vmatprep.subr.bf16.mxu0 0
  %9972 = vmatpush1.bf16.msra.mxu0 0
  %9973 = vmatprep.subr.bf16.mxu0 0
  %9974 = vmatpush1.bf16.msra.mxu0 0
  %9975 = vmatprep.subr.bf16.mxu0 0
  %9976 = vmatpush1.bf16.msra.mxu0 0
  %9977 = vmatprep.subr.bf16.mxu0 0
  %9978 = vmatpush1.bf16.msra.mxu0 0
  %9979 = vmatprep.subr.bf16.mxu0 0
  %9980 = vmatpush1.bf16.msra.mxu0 0
  %9981 = vmatprep.subr.bf16.mxu0 0
  %9982 = vmatpush1.bf16.msra.mxu0 0
  %9983 = vmatprep.subr.bf16.mxu0 0
  %9984 = vmatpush1.bf16.msra.mxu0 0
  %9985 = vmatprep.subr.bf16.mxu0 0
  %9986 = vmatpush1.bf16.msra.mxu0 0
  %9987 = vmatprep.subr.bf16.mxu0 0
  %9988 = vmatpush1.bf16.msra.mxu0 0
  %9989 = vmatprep.subr.bf16.mxu0 0
  %9990 = vmatpush1.bf16.msra.mxu0 0
  %9991 = vmatprep.subr.bf16.mxu0 0
  %9992 = vmatpush1.bf16.msra.mxu0 0
  %9993 = vmatprep.mubr.bf16.mxu0 0
  %9994 = vmatmul.mubr.bf16.gmra.mrb[0].mxu0 %v9959
  %v9995 = vpop.f32.mrb[0].mxu0
  %v9996 = vadd.f32 %v9300, %v9995
  %v9997 = vpop.f32.mrb[0].mxu0
  %v9998 = vpop.f32.mrb[0].mxu0
  %v9999 = vpop.f32.mrb[0].mxu0
  %10000 = vdwg.mxu0
  %v10002 = vrot.slane %v9996, 6
  %v10004 = vadd.f32 %v9262, %v10002
  %v10005 = vxor.u32 %v10004, 2147483648
  %v10006 = vmul.f32 %v10005, 1.442695
  %v10007 = vpow.pop %v10006
  %v10008 = vadd.f32 %v10007, 1.0
  %v10009 = vrcp.pop %v10008
  %v10010 = vmul.f32 1.0, %v10009
  %10011 = vrot.lane.b32.xlu0 %v10002, 64
  %v10012 = vpop.permute.xlu0 %10011
  %v10014 = vmul.f32 %v10010, %v10012
  %10016 = vrot.lane.b32.xlu0 %v10014, 64
  %v10017 = vpop.permute.xlu0 %10016
  %v10019 = vadd.f32 %v9262, %v10017
  %v10020 = vtanh.pop %v10019
  %v10021 = vsub.f32 1.0, %v10010
  %10023 = vrot.lane.b32.xlu0 %v10020, 96
  %v10024 = vpop.permute.xlu0 %10023
  %v10026 = vmul.f32 %v10021, %v10024
  %v10029 = vrot.slane %v9951, 2
  %v10030 = vrot.slane %v9952, 2
  %v10031 = vsel %vm9579, %v10029, %v10030
  %v10033 = vmul.f32 %v10010, %v10031
  %v10034 = vadd.f32 %v10026, %v10033
  %v10035 = vpack.c.bf16 %v10034, %v10034
  %v10037 = vrot.slane %v10035, 1
  %10038 = vrot.lane.b32.xlu0 %v10037, 96
  %v10039 = vpop.permute.xlu0 %10038
  %v10041 = vsel %vm6274, %v10039, 0
  %10043 = vmatprep.subr.bf16.mxu0 0
  %10044 = vmatpush1.bf16.msra.mxu0 %v9310
  %10045 = vmatprep.subr.bf16.mxu0 0
  %10046 = vmatpush1.bf16.msra.mxu0 %v9311
  %10047 = vmatprep.subr.bf16.mxu0 0
  %10048 = vmatpush1.bf16.msra.mxu0 0
  %10049 = vmatprep.subr.bf16.mxu0 0
  %10050 = vmatpush1.bf16.msra.mxu0 0
  %10051 = vmatprep.subr.bf16.mxu0 0
  %10052 = vmatpush1.bf16.msra.mxu0 0
  %10053 = vmatprep.subr.bf16.mxu0 0
  %10054 = vmatpush1.bf16.msra.mxu0 0
  %10055 = vmatprep.subr.bf16.mxu0 0
  %10056 = vmatpush1.bf16.msra.mxu0 0
  %10057 = vmatprep.subr.bf16.mxu0 0
  %10058 = vmatpush1.bf16.msra.mxu0 0
  %10059 = vmatprep.subr.bf16.mxu0 0
  %10060 = vmatpush1.bf16.msra.mxu0 0
  %10061 = vmatprep.subr.bf16.mxu0 0
  %10062 = vmatpush1.bf16.msra.mxu0 0
  %10063 = vmatprep.subr.bf16.mxu0 0
  %10064 = vmatpush1.bf16.msra.mxu0 0
  %10065 = vmatprep.subr.bf16.mxu0 0
  %10066 = vmatpush1.bf16.msra.mxu0 0
  %10067 = vmatprep.subr.bf16.mxu0 0
  %10068 = vmatpush1.bf16.msra.mxu0 0
  %10069 = vmatprep.subr.bf16.mxu0 0
  %10070 = vmatpush1.bf16.msra.mxu0 0
  %10071 = vmatprep.subr.bf16.mxu0 0
  %10072 = vmatpush1.bf16.msra.mxu0 0
  %10073 = vmatprep.subr.bf16.mxu0 0
  %10074 = vmatpush1.bf16.msra.mxu0 0
  %10075 = vmatprep.mubr.bf16.mxu0 0
  %10076 = vmatmul.mubr.bf16.gmra.mrb[0].mxu0 %v10041
  %v10077 = vpop.f32.mrb[0].mxu0
  %v10078 = vadd.f32 %v9300, %v10077
  %v10079 = vpop.f32.mrb[0].mxu0
  %v10080 = vpop.f32.mrb[0].mxu0
  %v10081 = vpop.f32.mrb[0].mxu0
  %10082 = vdwg.mxu0
  %v10083 = vadd.f32 %v9267, %v10078
  %v10084 = vxor.u32 %v10083, 2147483648
  %v10085 = vmul.f32 %v10084, 1.442695
  %v10086 = vpow.pop %v10085
  %v10087 = vadd.f32 %v10086, 1.0
  %v10088 = vrcp.pop %v10087
  %v10089 = vmul.f32 1.0, %v10088
  %10091 = vrot.lane.b32.xlu0 %v10078, 64
  %v10092 = vpop.permute.xlu0 %10091
  %v10094 = vmul.f32 %v10089, %v10092
  %10096 = vrot.lane.b32.xlu0 %v10094, 64
  %v10097 = vpop.permute.xlu0 %10096
  %v10099 = vadd.f32 %v9267, %v10097
  %v10100 = vtanh.pop %v10099
  %v10101 = vsub.f32 1.0, %v10089
  %10103 = vrot.lane.b32.xlu0 %v10100, 96
  %v10104 = vpop.permute.xlu0 %10103
  %v10106 = vmul.f32 %v10101, %v10104
  %v10108 = vrot.slane %v10034, 2
  %v10110 = vmul.f32 %v10089, %v10108
  %v10111 = vadd.f32 %v10106, %v10110
  %v10113 = vlaneseq
  %v10114 = vshrl.u32 %v10113, 7
  %v10115 = vsub.s32 0, %v10114
  %v10116 = vrot.slane %v9294, %v10115
  %10117 = vrot.lane.b32.xlu0 %v10116, 32
  %v10118 = vpop.permute.xlu0 %10117
  %v10120 = vmul.f32 %v10111, %v10118
  %10122 = vrot.lane.b32.xlu0 %v10120, 96
  %v10123 = vpop.permute.xlu0 %10122
  %vm10125 = vcmask 259072
  %v10126 = vsel %vm10125, %v10123, 0.0
  %10127 = vadd.xlane.f32.xlu0 %v10126
  %v10128 = vpop.xlane.xlu0 %10127
  %v10130 = vlaneseq
  %v10131 = vshrl.u32 %v10130, 7
  %v10132 = vsub.s32 0, %v10131
  %v10133 = vrot.slane %v9295, %v10132
  %v10135 = vadd.f32 %v10128, %v10133
  %v10136 = vpack.c.bf16 %v10111, %v10111
  %10138 = vrot.lane.b32.xlu0 %v10136, 96
  %v10139 = vpop.permute.xlu0 %10138
  %v10141 = vsel %vm6274, %v10139, 0
  %10143 = vmatprep.subr.bf16.mxu0 0
  %10144 = vmatpush1.bf16.msra.mxu0 %v9310
  %10145 = vmatprep.subr.bf16.mxu0 0
  %10146 = vmatpush1.bf16.msra.mxu0 %v9311
  %10147 = vmatprep.subr.bf16.mxu0 0
  %10148 = vmatpush1.bf16.msra.mxu0 0
  %10149 = vmatprep.subr.bf16.mxu0 0
  %10150 = vmatpush1.bf16.msra.mxu0 0
  %10151 = vmatprep.subr.bf16.mxu0 0
  %10152 = vmatpush1.bf16.msra.mxu0 0
  %10153 = vmatprep.subr.bf16.mxu0 0
  %10154 = vmatpush1.bf16.msra.mxu0 0
  %10155 = vmatprep.subr.bf16.mxu0 0
  %10156 = vmatpush1.bf16.msra.mxu0 0
  %10157 = vmatprep.subr.bf16.mxu0 0
  %10158 = vmatpush1.bf16.msra.mxu0 0
  %10159 = vmatprep.subr.bf16.mxu0 0
  %10160 = vmatpush1.bf16.msra.mxu0 0
  %10161 = vmatprep.subr.bf16.mxu0 0
  %10162 = vmatpush1.bf16.msra.mxu0 0
  %10163 = vmatprep.subr.bf16.mxu0 0
  %10164 = vmatpush1.bf16.msra.mxu0 0
  %10165 = vmatprep.subr.bf16.mxu0 0
  %10166 = vmatpush1.bf16.msra.mxu0 0
  %10167 = vmatprep.subr.bf16.mxu0 0
  %10168 = vmatpush1.bf16.msra.mxu0 0
  %10169 = vmatprep.subr.bf16.mxu0 0
  %10170 = vmatpush1.bf16.msra.mxu0 0
  %10171 = vmatprep.subr.bf16.mxu0 0
  %10172 = vmatpush1.bf16.msra.mxu0 0
  %10173 = vmatprep.subr.bf16.mxu0 0
  %10174 = vmatpush1.bf16.msra.mxu0 0
  %10175 = vmatprep.mubr.bf16.mxu0 0
  %10176 = vmatmul.mubr.bf16.gmra.mrb[0].mxu0 %v10141
  %v10177 = vpop.f32.mrb[0].mxu0
  %v10178 = vadd.f32 %v9300, %v10177
  %v10179 = vpop.f32.mrb[0].mxu0
  %v10180 = vpop.f32.mrb[0].mxu0
  %v10181 = vpop.f32.mrb[0].mxu0
  %10182 = vdwg.mxu0
  %v10184 = vrot.slane %v10178, 2
  %v10186 = vadd.f32 %v9267, %v10184
  %v10187 = vadd.f32 %v9270, %v10184
  %v10188 = vxor.u32 %v10186, 2147483648
  %v10189 = vxor.u32 %v10187, 2147483648
  %v10190 = vmul.f32 %v10188, 1.442695
  %v10191 = vpow.pop %v10190
  %v10192 = vmul.f32 %v10189, 1.442695
  %v10193 = vpow.pop %v10192
  %v10194 = vadd.f32 %v10191, 1.0
  %v10195 = vadd.f32 %v10193, 1.0
  %v10196 = vrcp.pop %v10194
  %v10197 = vmul.f32 1.0, %v10196
  %v10198 = vrcp.pop %v10195
  %v10199 = vmul.f32 1.0, %v10198
  %10200 = vrot.lane.b32.xlu0 %v10184, 64
  %v10201 = vpop.permute.xlu0 %10200
  %v10203 = vmul.f32 %v10197, %v10201
  %v10204 = vmul.f32 %v10199, %v10201
  %10207 = vrot.lane.b32.xlu0 %v10203, 64
  %v10208 = vpop.permute.xlu0 %10207
  %10209 = vrot.lane.b32.xlu0 %v10204, 64
  %v10210 = vpop.permute.xlu0 %10209
  %v10213 = vadd.f32 %v9267, %v10208
  %v10214 = vadd.f32 %v9270, %v10210
  %v10215 = vtanh.pop %v10213
  %v10216 = vtanh.pop %v10214
  %v10217 = vsub.f32 1.0, %v10197
  %v10218 = vsub.f32 1.0, %v10199
  %10221 = vrot.lane.b32.xlu0 %v10215, 96
  %v10222 = vpop.permute.xlu0 %10221
  %10223 = vrot.lane.b32.xlu0 %v10216, 96
  %v10224 = vpop.permute.xlu0 %10223
  %v10227 = vmul.f32 %v10217, %v10222
  %v10228 = vmul.f32 %v10218, %v10224
  %v10230 = vrot.slane %v10111, 2
  %v10232 = vmul.f32 %v10197, %v10230
  %v10233 = vmul.f32 %v10199, %v10230
  %v10234 = vadd.f32 %v10227, %v10232
  %v10235 = vadd.f32 %v10228, %v10233
  %v10236 = vmul.f32 %v10234, %v10118
  %v10237 = vmul.f32 %v10235, %v10118
  %10240 = vrot.lane.b32.xlu0 %v10236, 96
  %v10241 = vpop.permute.xlu0 %10240
  %10242 = vrot.lane.b32.xlu0 %v10237, 96
  %v10243 = vpop.permute.xlu0 %10242
  %vm10246 = vcmask 261126
  %v10247 = vsel %vm10246, %v10241, 0.0
  %10248 = vadd.xlane.f32.xlu0 %v10247
  %v10249 = vpop.xlane.xlu0 %10248
  %vm10250 = vcmask 257024
  %v10251 = vsel %vm10250, %v10243, 0.0
  %10252 = vadd.xlane.f32.xlu0 %v10251
  %v10253 = vpop.xlane.xlu0 %10252
  %v10254 = vadd.f32 %v10249, %v10133
  %v10255 = vadd.f32 %v10253, %v10133
  %v10256 = vpack.c.bf16 %v10235, %v10234
  %v10258 = vrot.slane %v10256, 3
  %10259 = vrot.lane.b32.xlu0 %v10258, 96
  %v10260 = vpop.permute.xlu0 %10259
  %v10262 = vsel %vm6274, %v10260, 0
  %10264 = vmatprep.subr.bf16.mxu0 0
  %10265 = vmatpush1.bf16.msra.mxu0 %v9310
  %10266 = vmatprep.subr.bf16.mxu0 0
  %10267 = vmatpush1.bf16.msra.mxu0 %v9311
  %10268 = vmatprep.subr.bf16.mxu0 0
  %10269 = vmatpush1.bf16.msra.mxu0 0
  %10270 = vmatprep.subr.bf16.mxu0 0
  %10271 = vmatpush1.bf16.msra.mxu0 0
  %10272 = vmatprep.subr.bf16.mxu0 0
  %10273 = vmatpush1.bf16.msra.mxu0 0
  %10274 = vmatprep.subr.bf16.mxu0 0
  %10275 = vmatpush1.bf16.msra.mxu0 0
  %10276 = vmatprep.subr.bf16.mxu0 0
  %10277 = vmatpush1.bf16.msra.mxu0 0
  %10278 = vmatprep.subr.bf16.mxu0 0
  %10279 = vmatpush1.bf16.msra.mxu0 0
  %10280 = vmatprep.subr.bf16.mxu0 0
  %10281 = vmatpush1.bf16.msra.mxu0 0
  %10282 = vmatprep.subr.bf16.mxu0 0
  %10283 = vmatpush1.bf16.msra.mxu0 0
  %10284 = vmatprep.subr.bf16.mxu0 0
  %10285 = vmatpush1.bf16.msra.mxu0 0
  %10286 = vmatprep.subr.bf16.mxu0 0
  %10287 = vmatpush1.bf16.msra.mxu0 0
  %10288 = vmatprep.subr.bf16.mxu0 0
  %10289 = vmatpush1.bf16.msra.mxu0 0
  %10290 = vmatprep.subr.bf16.mxu0 0
  %10291 = vmatpush1.bf16.msra.mxu0 0
  %10292 = vmatprep.subr.bf16.mxu0 0
  %10293 = vmatpush1.bf16.msra.mxu0 0
  %10294 = vmatprep.subr.bf16.mxu0 0
  %10295 = vmatpush1.bf16.msra.mxu0 0
  %10296 = vmatprep.mubr.bf16.mxu0 0
  %10297 = vmatmul.mubr.bf16.gmra.mrb[0].mxu0 %v10262
  %v10298 = vpop.f32.mrb[0].mxu0
  %v10299 = vadd.f32 %v9300, %v10298
  %v10300 = vpop.f32.mrb[0].mxu0
  %v10301 = vpop.f32.mrb[0].mxu0
  %v10302 = vpop.f32.mrb[0].mxu0
  %10303 = vdwg.mxu0
  %v10305 = vrot.slane %v10299, 4
  %v10307 = vadd.f32 %v9270, %v10305
  %v10308 = vadd.f32 %v9275, %v10305
  %v10309 = vxor.u32 %v10307, 2147483648
  %v10310 = vxor.u32 %v10308, 2147483648
  %v10311 = vmul.f32 %v10309, 1.442695
  %v10312 = vpow.pop %v10311
  %v10313 = vmul.f32 %v10310, 1.442695
  %v10314 = vpow.pop %v10313
  %v10315 = vadd.f32 %v10312, 1.0
  %v10316 = vadd.f32 %v10314, 1.0
  %v10317 = vrcp.pop %v10315
  %v10318 = vmul.f32 1.0, %v10317
  %v10319 = vrcp.pop %v10316
  %v10320 = vmul.f32 1.0, %v10319
  %10321 = vrot.lane.b32.xlu0 %v10305, 64
  %v10322 = vpop.permute.xlu0 %10321
  %v10324 = vmul.f32 %v10318, %v10322
  %v10325 = vmul.f32 %v10320, %v10322
  %10328 = vrot.lane.b32.xlu0 %v10324, 64
  %v10329 = vpop.permute.xlu0 %10328
  %10330 = vrot.lane.b32.xlu0 %v10325, 64
  %v10331 = vpop.permute.xlu0 %10330
  %v10334 = vadd.f32 %v9270, %v10329
  %v10335 = vadd.f32 %v9275, %v10331
  %v10336 = vtanh.pop %v10334
  %v10337 = vtanh.pop %v10335
  %v10338 = vsub.f32 1.0, %v10318
  %v10339 = vsub.f32 1.0, %v10320
  %10342 = vrot.lane.b32.xlu0 %v10336, 96
  %v10343 = vpop.permute.xlu0 %10342
  %10344 = vrot.lane.b32.xlu0 %v10337, 96
  %v10345 = vpop.permute.xlu0 %10344
  %v10348 = vmul.f32 %v10338, %v10343
  %v10349 = vmul.f32 %v10339, %v10345
  %v10352 = vrot.slane %v10234, 2
  %v10353 = vrot.slane %v10235, 2
  %v10354 = vsel %vm9579, %v10352, %v10353
  %v10357 = vmul.f32 %v10318, %v10354
  %v10358 = vmul.f32 %v10320, %v10353
  %v10359 = vadd.f32 %v10348, %v10357
  %v10360 = vadd.f32 %v10349, %v10358
  %v10361 = vmul.f32 %v10359, %v10118
  %v10362 = vmul.f32 %v10360, %v10118
  %10365 = vrot.lane.b32.xlu0 %v10361, 96
  %v10366 = vpop.permute.xlu0 %10365
  %10367 = vrot.lane.b32.xlu0 %v10362, 96
  %v10368 = vpop.permute.xlu0 %10367
  %vm10371 = vcmask 261124
  %v10372 = vsel %vm10371, %v10366, 0.0
  %10373 = vadd.xlane.f32.xlu0 %v10372
  %v10374 = vpop.xlane.xlu0 %10373
  %vm10375 = vcmask 254976
  %v10376 = vsel %vm10375, %v10368, 0.0
  %10377 = vadd.xlane.f32.xlu0 %v10376
  %v10378 = vpop.xlane.xlu0 %10377
  %v10379 = vadd.f32 %v10374, %v10133
  %v10380 = vadd.f32 %v10378, %v10133
  %v10381 = vpack.c.bf16 %v10360, %v10359
  %v10383 = vrot.slane %v10381, 2
  %10384 = vrot.lane.b32.xlu0 %v10383, 96
  %v10385 = vpop.permute.xlu0 %10384
  %v10387 = vsel %vm6274, %v10385, 0
  %10389 = vmatprep.subr.bf16.mxu0 0
  %10390 = vmatpush1.bf16.msra.mxu0 %v9310
  %10391 = vmatprep.subr.bf16.mxu0 0
  %10392 = vmatpush1.bf16.msra.mxu0 %v9311
  %10393 = vmatprep.subr.bf16.mxu0 0
  %10394 = vmatpush1.bf16.msra.mxu0 0
  %10395 = vmatprep.subr.bf16.mxu0 0
  %10396 = vmatpush1.bf16.msra.mxu0 0
  %10397 = vmatprep.subr.bf16.mxu0 0
  %10398 = vmatpush1.bf16.msra.mxu0 0
  %10399 = vmatprep.subr.bf16.mxu0 0
  %10400 = vmatpush1.bf16.msra.mxu0 0
  %10401 = vmatprep.subr.bf16.mxu0 0
  %10402 = vmatpush1.bf16.msra.mxu0 0
  %10403 = vmatprep.subr.bf16.mxu0 0
  %10404 = vmatpush1.bf16.msra.mxu0 0
  %10405 = vmatprep.subr.bf16.mxu0 0
  %10406 = vmatpush1.bf16.msra.mxu0 0
  %10407 = vmatprep.subr.bf16.mxu0 0
  %10408 = vmatpush1.bf16.msra.mxu0 0
  %10409 = vmatprep.subr.bf16.mxu0 0
  %10410 = vmatpush1.bf16.msra.mxu0 0
  %10411 = vmatprep.subr.bf16.mxu0 0
  %10412 = vmatpush1.bf16.msra.mxu0 0
  %10413 = vmatprep.subr.bf16.mxu0 0
  %10414 = vmatpush1.bf16.msra.mxu0 0
  %10415 = vmatprep.subr.bf16.mxu0 0
  %10416 = vmatpush1.bf16.msra.mxu0 0
  %10417 = vmatprep.subr.bf16.mxu0 0
  %10418 = vmatpush1.bf16.msra.mxu0 0
  %10419 = vmatprep.subr.bf16.mxu0 0
  %10420 = vmatpush1.bf16.msra.mxu0 0
  %10421 = vmatprep.mubr.bf16.mxu0 0
  %10422 = vmatmul.mubr.bf16.gmra.mrb[0].mxu0 %v10387
  %v10423 = vpop.f32.mrb[0].mxu0
  %v10424 = vadd.f32 %v9300, %v10423
  %v10425 = vpop.f32.mrb[0].mxu0
  %v10426 = vpop.f32.mrb[0].mxu0
  %v10427 = vpop.f32.mrb[0].mxu0
  %10428 = vdwg.mxu0
  %v10430 = vrot.slane %v10424, 6
  %v10432 = vadd.f32 %v9275, %v10430
  %v10433 = vxor.u32 %v10432, 2147483648
  %v10434 = vmul.f32 %v10433, 1.442695
  %v10435 = vpow.pop %v10434
  %v10436 = vadd.f32 %v10435, 1.0
  %v10437 = vrcp.pop %v10436
  %v10438 = vmul.f32 1.0, %v10437
  %10439 = vrot.lane.b32.xlu0 %v10430, 64
  %v10440 = vpop.permute.xlu0 %10439
  %v10442 = vmul.f32 %v10438, %v10440
  %10444 = vrot.lane.b32.xlu0 %v10442, 64
  %v10445 = vpop.permute.xlu0 %10444
  %v10447 = vadd.f32 %v9275, %v10445
  %v10448 = vtanh.pop %v10447
  %v10449 = vsub.f32 1.0, %v10438
  %10451 = vrot.lane.b32.xlu0 %v10448, 96
  %v10452 = vpop.permute.xlu0 %10451
  %v10454 = vmul.f32 %v10449, %v10452
  %v10457 = vrot.slane %v10359, 2
  %v10458 = vrot.slane %v10360, 2
  %v10459 = vsel %vm9579, %v10457, %v10458
  %v10461 = vmul.f32 %v10438, %v10459
  %v10462 = vadd.f32 %v10454, %v10461
  %v10463 = vmul.f32 %v10462, %v10118
  %10465 = vrot.lane.b32.xlu0 %v10463, 96
  %v10466 = vpop.permute.xlu0 %10465
  %vm10468 = vcmask 261122
  %v10469 = vsel %vm10468, %v10466, 0.0
  %10470 = vadd.xlane.f32.xlu0 %v10469
  %v10471 = vpop.xlane.xlu0 %10470
  %v10472 = vadd.f32 %v10471, %v10133
  %v10473 = vpack.c.bf16 %v10462, %v10462
  %v10475 = vrot.slane %v10473, 1
  %10476 = vrot.lane.b32.xlu0 %v10475, 96
  %v10477 = vpop.permute.xlu0 %10476
  %v10479 = vsel %vm6274, %v10477, 0
  %10481 = vmatprep.subr.bf16.mxu0 0
  %10482 = vmatpush1.bf16.msra.mxu0 %v9310
  %10483 = vmatprep.subr.bf16.mxu0 0
  %10484 = vmatpush1.bf16.msra.mxu0 %v9311
  %10485 = vmatprep.subr.bf16.mxu0 0
  %10486 = vmatpush1.bf16.msra.mxu0 0
  %10487 = vmatprep.subr.bf16.mxu0 0
  %10488 = vmatpush1.bf16.msra.mxu0 0
  %10489 = vmatprep.subr.bf16.mxu0 0
  %10490 = vmatpush1.bf16.msra.mxu0 0
  %10491 = vmatprep.subr.bf16.mxu0 0
  %10492 = vmatpush1.bf16.msra.mxu0 0
  %10493 = vmatprep.subr.bf16.mxu0 0
  %10494 = vmatpush1.bf16.msra.mxu0 0
  %10495 = vmatprep.subr.bf16.mxu0 0
  %10496 = vmatpush1.bf16.msra.mxu0 0
  %10497 = vmatprep.subr.bf16.mxu0 0
  %10498 = vmatpush1.bf16.msra.mxu0 0
  %10499 = vmatprep.subr.bf16.mxu0 0
  %10500 = vmatpush1.bf16.msra.mxu0 0
  %10501 = vmatprep.subr.bf16.mxu0 0
  %10502 = vmatpush1.bf16.msra.mxu0 0
  %10503 = vmatprep.subr.bf16.mxu0 0
  %10504 = vmatpush1.bf16.msra.mxu0 0
  %10505 = vmatprep.subr.bf16.mxu0 0
  %10506 = vmatpush1.bf16.msra.mxu0 0
  %10507 = vmatprep.subr.bf16.mxu0 0
  %10508 = vmatpush1.bf16.msra.mxu0 0
  %10509 = vmatprep.subr.bf16.mxu0 0
  %10510 = vmatpush1.bf16.msra.mxu0 0
  %10511 = vmatprep.subr.bf16.mxu0 0
  %10512 = vmatpush1.bf16.msra.mxu0 0
  %10513 = vmatprep.mubr.bf16.mxu0 0
  %10514 = vmatmul.mubr.bf16.gmra.mrb[0].mxu0 %v10479
  %v10515 = vpop.f32.mrb[0].mxu0
  %v10516 = vadd.f32 %v9300, %v10515
  %v10517 = vpop.f32.mrb[0].mxu0
  %v10518 = vpop.f32.mrb[0].mxu0
  %v10519 = vpop.f32.mrb[0].mxu0
  %10520 = vdwg.mxu0
  %v10521 = vadd.f32 %v9278, %v10516
  %v10522 = vxor.u32 %v10521, 2147483648
  %v10523 = vmul.f32 %v10522, 1.442695
  %v10524 = vpow.pop %v10523
  %v10525 = vadd.f32 %v10524, 1.0
  %v10526 = vrcp.pop %v10525
  %v10527 = vmul.f32 1.0, %v10526
  %10529 = vrot.lane.b32.xlu0 %v10516, 64
  %v10530 = vpop.permute.xlu0 %10529
  %v10532 = vmul.f32 %v10527, %v10530
  %10534 = vrot.lane.b32.xlu0 %v10532, 64
  %v10535 = vpop.permute.xlu0 %10534
  %v10537 = vadd.f32 %v9278, %v10535
  %v10538 = vtanh.pop %v10537
  %v10539 = vsub.f32 1.0, %v10527
  %10541 = vrot.lane.b32.xlu0 %v10538, 96
  %v10542 = vpop.permute.xlu0 %10541
  %v10544 = vmul.f32 %v10539, %v10542
  %v10546 = vrot.slane %v10462, 2
  %v10548 = vmul.f32 %v10527, %v10546
  %v10549 = vadd.f32 %v10544, %v10548
  %v10550 = vmul.f32 %v10549, %v10118
  %10552 = vrot.lane.b32.xlu0 %v10550, 96
  %v10553 = vpop.permute.xlu0 %10552
  %v10555 = vsel %vm10125, %v10553, 0.0
  %10556 = vadd.xlane.f32.xlu0 %v10555
  %v10557 = vpop.xlane.xlu0 %10556
  %v10558 = vadd.f32 %v10557, %v10133
  %v10559 = vpack.c.bf16 %v10549, %v10549
  %10561 = vrot.lane.b32.xlu0 %v10559, 96
  %v10562 = vpop.permute.xlu0 %10561
  %v10564 = vsel %vm6274, %v10562, 0
  %10566 = vmatprep.subr.bf16.mxu0 0
  %10567 = vmatpush1.bf16.msra.mxu0 %v9310
  %10568 = vmatprep.subr.bf16.mxu0 0
  %10569 = vmatpush1.bf16.msra.mxu0 %v9311
  %10570 = vmatprep.subr.bf16.mxu0 0
  %10571 = vmatpush1.bf16.msra.mxu0 0
  %10572 = vmatprep.subr.bf16.mxu0 0
  %10573 = vmatpush1.bf16.msra.mxu0 0
  %10574 = vmatprep.subr.bf16.mxu0 0
  %10575 = vmatpush1.bf16.msra.mxu0 0
  %10576 = vmatprep.subr.bf16.mxu0 0
  %10577 = vmatpush1.bf16.msra.mxu0 0
  %10578 = vmatprep.subr.bf16.mxu0 0
  %10579 = vmatpush1.bf16.msra.mxu0 0
  %10580 = vmatprep.subr.bf16.mxu0 0
  %10581 = vmatpush1.bf16.msra.mxu0 0
  %10582 = vmatprep.subr.bf16.mxu0 0
  %10583 = vmatpush1.bf16.msra.mxu0 0
  %10584 = vmatprep.subr.bf16.mxu0 0
  %10585 = vmatpush1.bf16.msra.mxu0 0
  %10586 = vmatprep.subr.bf16.mxu0 0
  %10587 = vmatpush1.bf16.msra.mxu0 0
  %10588 = vmatprep.subr.bf16.mxu0 0
  %10589 = vmatpush1.bf16.msra.mxu0 0
  %10590 = vmatprep.subr.bf16.mxu0 0
  %10591 = vmatpush1.bf16.msra.mxu0 0
  %10592 = vmatprep.subr.bf16.mxu0 0
  %10593 = vmatpush1.bf16.msra.mxu0 0
  %10594 = vmatprep.subr.bf16.mxu0 0
  %10595 = vmatpush1.bf16.msra.mxu0 0
  %10596 = vmatprep.subr.bf16.mxu0 0
  %10597 = vmatpush1.bf16.msra.mxu0 0
  %10598 = vmatprep.mubr.bf16.mxu0 0
  %10599 = vmatmul.mubr.bf16.gmra.mrb[0].mxu0 %v10564
  %v10600 = vpop.f32.mrb[0].mxu0
  %v10601 = vadd.f32 %v9300, %v10600
  %v10602 = vpop.f32.mrb[0].mxu0
  %v10603 = vpop.f32.mrb[0].mxu0
  %v10604 = vpop.f32.mrb[0].mxu0
  %10605 = vdwg.mxu0
  %v10607 = vrot.slane %v10601, 2
  %v10609 = vadd.f32 %v9278, %v10607
  %v10610 = vadd.f32 %v9283, %v10607
  %v10611 = vxor.u32 %v10609, 2147483648
  %v10612 = vxor.u32 %v10610, 2147483648
  %v10613 = vmul.f32 %v10611, 1.442695
  %v10614 = vpow.pop %v10613
  %v10615 = vmul.f32 %v10612, 1.442695
  %v10616 = vpow.pop %v10615
  %v10617 = vadd.f32 %v10614, 1.0
  %v10618 = vadd.f32 %v10616, 1.0
  %v10619 = vrcp.pop %v10617
  %v10620 = vmul.f32 1.0, %v10619
  %v10621 = vrcp.pop %v10618
  %v10622 = vmul.f32 1.0, %v10621
  %10623 = vrot.lane.b32.xlu0 %v10607, 64
  %v10624 = vpop.permute.xlu0 %10623
  %v10626 = vmul.f32 %v10620, %v10624
  %v10627 = vmul.f32 %v10622, %v10624
  %10630 = vrot.lane.b32.xlu0 %v10626, 64
  %v10631 = vpop.permute.xlu0 %10630
  %10632 = vrot.lane.b32.xlu0 %v10627, 64
  %v10633 = vpop.permute.xlu0 %10632
  %v10636 = vadd.f32 %v9278, %v10631
  %v10637 = vadd.f32 %v9283, %v10633
  %v10638 = vtanh.pop %v10636
  %v10639 = vtanh.pop %v10637
  %v10640 = vsub.f32 1.0, %v10620
  %v10641 = vsub.f32 1.0, %v10622
  %10644 = vrot.lane.b32.xlu0 %v10638, 96
  %v10645 = vpop.permute.xlu0 %10644
  %10646 = vrot.lane.b32.xlu0 %v10639, 96
  %v10647 = vpop.permute.xlu0 %10646
  %v10650 = vmul.f32 %v10640, %v10645
  %v10651 = vmul.f32 %v10641, %v10647
  %v10653 = vrot.slane %v10549, 2
  %v10655 = vmul.f32 %v10620, %v10653
  %v10656 = vmul.f32 %v10622, %v10653
  %v10657 = vadd.f32 %v10650, %v10655
  %v10658 = vadd.f32 %v10651, %v10656
  %v10659 = vmul.f32 %v10657, %v10118
  %v10660 = vmul.f32 %v10658, %v10118
  %10663 = vrot.lane.b32.xlu0 %v10659, 96
  %v10664 = vpop.permute.xlu0 %10663
  %10665 = vrot.lane.b32.xlu0 %v10660, 96
  %v10666 = vpop.permute.xlu0 %10665
  %v10669 = vsel %vm10246, %v10664, 0.0
  %10670 = vadd.xlane.f32.xlu0 %v10669
  %v10671 = vpop.xlane.xlu0 %10670
  %v10672 = vsel %vm10250, %v10666, 0.0
  %10673 = vadd.xlane.f32.xlu0 %v10672
  %v10674 = vpop.xlane.xlu0 %10673
  %v10675 = vadd.f32 %v10671, %v10133
  %v10676 = vadd.f32 %v10674, %v10133
  %v10677 = vpack.c.bf16 %v10658, %v10657
  %v10679 = vrot.slane %v10677, 3
  %10680 = vrot.lane.b32.xlu0 %v10679, 96
  %v10681 = vpop.permute.xlu0 %10680
  %v10683 = vsel %vm6274, %v10681, 0
  %10685 = vmatprep.subr.bf16.mxu0 0
  %10686 = vmatpush1.bf16.msra.mxu0 %v9310
  %10687 = vmatprep.subr.bf16.mxu0 0
  %10688 = vmatpush1.bf16.msra.mxu0 %v9311
  %10689 = vmatprep.subr.bf16.mxu0 0
  %10690 = vmatpush1.bf16.msra.mxu0 0
  %10691 = vmatprep.subr.bf16.mxu0 0
  %10692 = vmatpush1.bf16.msra.mxu0 0
  %10693 = vmatprep.subr.bf16.mxu0 0
  %10694 = vmatpush1.bf16.msra.mxu0 0
  %10695 = vmatprep.subr.bf16.mxu0 0
  %10696 = vmatpush1.bf16.msra.mxu0 0
  %10697 = vmatprep.subr.bf16.mxu0 0
  %10698 = vmatpush1.bf16.msra.mxu0 0
  %10699 = vmatprep.subr.bf16.mxu0 0
  %10700 = vmatpush1.bf16.msra.mxu0 0
  %10701 = vmatprep.subr.bf16.mxu0 0
  %10702 = vmatpush1.bf16.msra.mxu0 0
  %10703 = vmatprep.subr.bf16.mxu0 0
  %10704 = vmatpush1.bf16.msra.mxu0 0
  %10705 = vmatprep.subr.bf16.mxu0 0
  %10706 = vmatpush1.bf16.msra.mxu0 0
  %10707 = vmatprep.subr.bf16.mxu0 0
  %10708 = vmatpush1.bf16.msra.mxu0 0
  %10709 = vmatprep.subr.bf16.mxu0 0
  %10710 = vmatpush1.bf16.msra.mxu0 0
  %10711 = vmatprep.subr.bf16.mxu0 0
  %10712 = vmatpush1.bf16.msra.mxu0 0
  %10713 = vmatprep.subr.bf16.mxu0 0
  %10714 = vmatpush1.bf16.msra.mxu0 0
  %10715 = vmatprep.subr.bf16.mxu0 0
  %10716 = vmatpush1.bf16.msra.mxu0 0
  %10717 = vmatprep.mubr.bf16.mxu0 0
  %10718 = vmatmul.mubr.bf16.gmra.mrb[0].mxu0 %v10683
  %v10719 = vpop.f32.mrb[0].mxu0
  %v10720 = vadd.f32 %v9300, %v10719
  %v10721 = vpop.f32.mrb[0].mxu0
  %v10722 = vpop.f32.mrb[0].mxu0
  %v10723 = vpop.f32.mrb[0].mxu0
  %10724 = vdwg.mxu0
  %v10726 = vrot.slane %v10720, 4
  %v10728 = vadd.f32 %v9283, %v10726
  %v10729 = vadd.f32 %v9286, %v10726
  %v10730 = vxor.u32 %v10728, 2147483648
  %v10731 = vxor.u32 %v10729, 2147483648
  %v10732 = vmul.f32 %v10730, 1.442695
  %v10733 = vpow.pop %v10732
  %v10734 = vmul.f32 %v10731, 1.442695
  %v10735 = vpow.pop %v10734
  %v10736 = vadd.f32 %v10733, 1.0
  %v10737 = vadd.f32 %v10735, 1.0
  %v10738 = vrcp.pop %v10736
  %v10739 = vmul.f32 1.0, %v10738
  %v10740 = vrcp.pop %v10737
  %v10741 = vmul.f32 1.0, %v10740
  %10742 = vrot.lane.b32.xlu0 %v10726, 64
  %v10743 = vpop.permute.xlu0 %10742
  %v10745 = vmul.f32 %v10739, %v10743
  %v10746 = vmul.f32 %v10741, %v10743
  %10749 = vrot.lane.b32.xlu0 %v10745, 64
  %v10750 = vpop.permute.xlu0 %10749
  %10751 = vrot.lane.b32.xlu0 %v10746, 64
  %v10752 = vpop.permute.xlu0 %10751
  %v10755 = vadd.f32 %v9283, %v10750
  %v10756 = vadd.f32 %v9286, %v10752
  %v10757 = vtanh.pop %v10755
  %v10758 = vtanh.pop %v10756
  %v10759 = vsub.f32 1.0, %v10739
  %v10760 = vsub.f32 1.0, %v10741
  %10763 = vrot.lane.b32.xlu0 %v10757, 96
  %v10764 = vpop.permute.xlu0 %10763
  %10765 = vrot.lane.b32.xlu0 %v10758, 96
  %v10766 = vpop.permute.xlu0 %10765
  %v10769 = vmul.f32 %v10759, %v10764
  %v10770 = vmul.f32 %v10760, %v10766
  %v10773 = vrot.slane %v10657, 2
  %v10774 = vrot.slane %v10658, 2
  %v10775 = vsel %vm9579, %v10773, %v10774
  %v10778 = vmul.f32 %v10739, %v10775
  %v10779 = vmul.f32 %v10741, %v10774
  %v10780 = vadd.f32 %v10769, %v10778
  %v10781 = vadd.f32 %v10770, %v10779
  %v10782 = vmul.f32 %v10780, %v10118
  %v10783 = vmul.f32 %v10781, %v10118
  %10786 = vrot.lane.b32.xlu0 %v10782, 96
  %v10787 = vpop.permute.xlu0 %10786
  %10788 = vrot.lane.b32.xlu0 %v10783, 96
  %v10789 = vpop.permute.xlu0 %10788
  %v10792 = vsel %vm10371, %v10787, 0.0
  %10793 = vadd.xlane.f32.xlu0 %v10792
  %v10794 = vpop.xlane.xlu0 %10793
  %v10795 = vsel %vm10375, %v10789, 0.0
  %10796 = vadd.xlane.f32.xlu0 %v10795
  %v10797 = vpop.xlane.xlu0 %10796
  %v10798 = vadd.f32 %v10794, %v10133
  %v10799 = vadd.f32 %v10797, %v10133
  %v10800 = vpack.c.bf16 %v10781, %v10780
  %v10802 = vrot.slane %v10800, 2
  %10803 = vrot.lane.b32.xlu0 %v10802, 96
  %v10804 = vpop.permute.xlu0 %10803
  %v10806 = vsel %vm6274, %v10804, 0
  %10808 = vmatprep.subr.bf16.mxu0 0
  %10809 = vmatpush1.bf16.msra.mxu0 %v9310
  %10810 = vmatprep.subr.bf16.mxu0 0
  %10811 = vmatpush1.bf16.msra.mxu0 %v9311
  %10812 = vmatprep.subr.bf16.mxu0 0
  %10813 = vmatpush1.bf16.msra.mxu0 0
  %10814 = vmatprep.subr.bf16.mxu0 0
  %10815 = vmatpush1.bf16.msra.mxu0 0
  %10816 = vmatprep.subr.bf16.mxu0 0
  %10817 = vmatpush1.bf16.msra.mxu0 0
  %10818 = vmatprep.subr.bf16.mxu0 0
  %10819 = vmatpush1.bf16.msra.mxu0 0
  %10820 = vmatprep.subr.bf16.mxu0 0
  %10821 = vmatpush1.bf16.msra.mxu0 0
  %10822 = vmatprep.subr.bf16.mxu0 0
  %10823 = vmatpush1.bf16.msra.mxu0 0
  %10824 = vmatprep.subr.bf16.mxu0 0
  %10825 = vmatpush1.bf16.msra.mxu0 0
  %10826 = vmatprep.subr.bf16.mxu0 0
  %10827 = vmatpush1.bf16.msra.mxu0 0
  %10828 = vmatprep.subr.bf16.mxu0 0
  %10829 = vmatpush1.bf16.msra.mxu0 0
  %10830 = vmatprep.subr.bf16.mxu0 0
  %10831 = vmatpush1.bf16.msra.mxu0 0
  %10832 = vmatprep.subr.bf16.mxu0 0
  %10833 = vmatpush1.bf16.msra.mxu0 0
  %10834 = vmatprep.subr.bf16.mxu0 0
  %10835 = vmatpush1.bf16.msra.mxu0 0
  %10836 = vmatprep.subr.bf16.mxu0 0
  %10837 = vmatpush1.bf16.msra.mxu0 0
  %10838 = vmatprep.subr.bf16.mxu0 0
  %10839 = vmatpush1.bf16.msra.mxu0 0
  %10840 = vmatprep.mubr.bf16.mxu0 0
  %10841 = vmatmul.mubr.bf16.gmra.mrb[0].mxu0 %v10806
  %v10842 = vpop.f32.mrb[0].mxu0
  %v10843 = vadd.f32 %v9300, %v10842
  %v10844 = vpop.f32.mrb[0].mxu0
  %v10845 = vpop.f32.mrb[0].mxu0
  %v10846 = vpop.f32.mrb[0].mxu0
  %10847 = vdwg.mxu0
  %v10849 = vrot.slane %v10843, 6
  %v10851 = vadd.f32 %v9286, %v10849
  %v10852 = vxor.u32 %v10851, 2147483648
  %v10853 = vmul.f32 %v10852, 1.442695
  %v10854 = vpow.pop %v10853
  %v10855 = vadd.f32 %v10854, 1.0
  %v10856 = vrcp.pop %v10855
  %v10857 = vmul.f32 1.0, %v10856
  %10858 = vrot.lane.b32.xlu0 %v10849, 64
  %v10859 = vpop.permute.xlu0 %10858
  %v10861 = vmul.f32 %v10857, %v10859
  %10863 = vrot.lane.b32.xlu0 %v10861, 64
  %v10864 = vpop.permute.xlu0 %10863
  %v10866 = vadd.f32 %v9286, %v10864
  %v10867 = vtanh.pop %v10866
  %v10868 = vsub.f32 1.0, %v10857
  %10870 = vrot.lane.b32.xlu0 %v10867, 96
  %v10871 = vpop.permute.xlu0 %10870
  %v10873 = vmul.f32 %v10868, %v10871
  %v10876 = vrot.slane %v10780, 2
  %v10877 = vrot.slane %v10781, 2
  %v10878 = vsel %vm9579, %v10876, %v10877
  %v10880 = vmul.f32 %v10857, %v10878
  %v10881 = vadd.f32 %v10873, %v10880
  %v10882 = vmul.f32 %v10881, %v10118
  %10884 = vrot.lane.b32.xlu0 %v10882, 96
  %v10885 = vpop.permute.xlu0 %10884
  %v10887 = vsel %vm10468, %v10885, 0.0
  %10888 = vadd.xlane.f32.xlu0 %v10887
  %v10889 = vpop.xlane.xlu0 %10888
  %v10890 = vadd.f32 %v10889, %v10133
  %vm10893 = vcmask 1041408
  %v10894 = vrot.slane %v10254, 6
  %v10895 = vrot.slane %v10255, 6
  %v10896 = vsel %vm10893, %v10894, %v10895
  %10897 = vrot.lane.b32.xlu0 %v10896, 1
  %v10898 = vpop.permute.xlu0 %10897
  %v10902 = vrot.slane %v10379, 4
  %v10903 = vrot.slane %v10380, 4
  %v10904 = vsel %vm281, %v10902, %v10903
  %10905 = vrot.lane.b32.xlu0 %v10904, 2
  %v10906 = vpop.permute.xlu0 %10905
  %v10909 = vrot.slane %v10472, 2
  %10910 = vrot.lane.b32.xlu0 %v10909, 3
  %v10911 = vpop.permute.xlu0 %10910
  %10914 = vrot.lane.b32.xlu0 %v10558, 4
  %v10915 = vpop.permute.xlu0 %10914
  %v10919 = vrot.slane %v10675, 6
  %v10920 = vrot.slane %v10676, 6
  %v10921 = vsel %vm10893, %v10919, %v10920
  %10922 = vrot.lane.b32.xlu0 %v10921, 5
  %v10923 = vpop.permute.xlu0 %10922
  %v10927 = vrot.slane %v10798, 4
  %v10928 = vrot.slane %v10799, 4
  %v10929 = vsel %vm281, %v10927, %v10928
  %10930 = vrot.lane.b32.xlu0 %v10929, 6
  %v10931 = vpop.permute.xlu0 %10930
  %v10934 = vrot.slane %v10890, 2
  %10935 = vrot.lane.b32.xlu0 %v10934, 7
  %v10936 = vpop.permute.xlu0 %10935
  %vm10938 = vcmask 7168
  %v10939 = vsel %vm10938, %v10135, %v10898
  %vm10940 = vcmask 15360
  %v10941 = vsel %vm10940, %v10939, %v10906
  %vm10942 = vcmask 23552
  %v10943 = vsel %vm10942, %v10941, %v10911
  %vm10944 = vcmask 31744
  %v10945 = vsel %vm10944, %v10943, %v10915
  %vm10946 = vcmask 39936
  %v10947 = vsel %vm10946, %v10945, %v10923
  %vm10948 = vcmask 48128
  %v10949 = vsel %vm10948, %v10947, %v10931
  %vm10950 = vcmask 56320
  %v10951 = vsel %vm10950, %v10949, %v10936
  %vm10952 = vcmask 62464
  %10953 = vst.msk [vmem:[%s16] sm:$0x3f] %vm10952, %v10951
  // Predicated region
  $region66: #{forward.1} parent=0 // pred_check
    _
  $region67: #{forward.1} parent=0 // pred_check_branch
    %10955 = sbr.rel (0) target = $region69
  $region68: #{forward.1} parent=0 // pred_region
    _
  $region69: #{forward.1} parent=0 // pred_fallthru
    _
  // Predicated region
  $region70: #{forward.1} parent=0 // pred_check
    _
  $region71: #{forward.1} parent=0 // pred_check_branch
    %10957 = sbr.rel (0) target = $region73
  $region72: #{forward.1} parent=0 // pred_region
    _
  $region73: #{forward.1} parent=0 // pred_fallthru
    _

</llo_original>
